<compile_context>
chip_gen: v6e
topology: v6e:2x2x1
jax: 0.10.0
libtpu: 0.0.40
codegen_flags: <defaults>
</compile_context>

<pallas_src>
import jax
import jax.numpy as jnp
from jax.experimental import pallas as pl
from jax.experimental.pallas import tpu as pltpu


def basis_kernel(xi_ref, xjT_ref, w1_ref, b1_ref, w2_ref, b2_ref, out_ref):
    # xi_ref : [1, TN, D]   row block (the "i" side)          (VMEM)
    # xjT_ref: [1, D, N]    transposed full x (the "j" side)  (VMEM)
    # w1_ref : [H]   b1_ref: [H]   w2_ref: [K*H]   b2_ref: [K]   (SMEM scalars)
    # out_ref: [1, TN, N*D*K]  flat, lane-dense output slab
    xi = xi_ref[0]                       # [TN, D]
    xjT = xjT_ref[0]                     # [D, N]
    TN, D = xi.shape
    N = xjT.shape[1]
    H = w1_ref.shape[0]
    K = b2_ref.shape[0]

    # Per-coordinate pairwise differences, pair index j on the lane axis.
    #   delta[d][i, j] = x[j, d] - x[i, d]
    delta = [xjT[d:d + 1, :] - xi[:, d:d + 1] for d in range(D)]   # D x [TN, N]

    # Squared distance. relu(delta^2) == delta^2, so the relu is dropped.
    norm = delta[0] * delta[0]
    for d in range(1, D):
        norm = norm + delta[d] * delta[d]                          # [TN, N]

    # Attention MLP (Linear(1->H) -> SiLU -> Linear(H->K)), compact & lane-dense
    # on [TN, N]; scalar weights from SMEM; unrolled over H/K; VPU + EUP only.
    att = [jnp.zeros_like(norm) for _ in range(K)]
    for h in range(H):
        z = norm * w1_ref[h] + b1_ref[h]
        s = z * jax.nn.sigmoid(z)                                  # SiLU
        for k in range(K):
            att[k] = att[k] + s * w2_ref[k * H + h]
    att = [att[k] + b2_ref[k] for k in range(K)]                   # K x [TN, N]

    # basis[i, j, d, k] = delta_d[i, j] * att_k[i, j], assembled into the flat
    # (j, d, k)-ordered slab.  The products are computed fully dense on [TN, N];
    # the stack+reshape is the single in-register/VMEM relayout, and the HBM
    # store of the resulting [TN, N*D*K] slab is unmasked / lane-dense.
    prods = [delta[d] * att[k] for d in range(D) for k in range(K)]  # D*K x [TN, N]
    stacked = jnp.stack(prods, axis=-1)                              # [TN, N, D*K]
    out_ref[0] = stacked.reshape(TN, N * D * K).astype(out_ref.dtype)


def _pick_row_tile(n, row_bytes, budget=2 * 1024 * 1024):
    """Largest row tile (multiple of 8 dividing n, or n itself) fitting the budget."""
    if n % 8 != 0:
        return n                       # single tile; block dim == full dim is allowed
    best = 8
    t = 8
    while t <= n:
        if n % t == 0 and t * row_bytes <= budget:
            best = t
        t *= 2
    if n * row_bytes <= budget:
        best = n
    return best


def basis_generation(x, w1, b1, w2, b2, *, row_tile=None):
    """x: [B, N, D]; w1: [H, 1]; b1: [H]; w2: [K, H]; b2: [K] -> [B, N, N, D, K]."""
    B, N, D = x.shape
    H = w1.shape[0]
    K = w2.shape[0]
    NDK = N * D * K

    TN = _pick_row_tile(N, NDK * 4) if row_tile is None else row_tile
    assert N % TN == 0, f"row tile {TN} must divide N={N}"

    # Glue (tiny XLA-side prep): f32 compute, transposed copy of x for the j
    # side, flattened weights for SMEM scalar access.
    x32 = x.astype(jnp.float32)
    xT = jnp.swapaxes(x32, 1, 2)                     # [B, D, N]
    w1f = w1.reshape(H).astype(jnp.float32)          # [H]
    b1f = b1.reshape(H).astype(jnp.float32)          # [H]
    w2f = w2.reshape(K * H).astype(jnp.float32)      # [K*H], k-major
    b2f = b2.reshape(K).astype(jnp.float32)          # [K]

    out_tile_bytes = TN * NDK * 4
    vmem_limit = int(min(96 * 2**20, max(32 * 2**20, 16 * out_tile_bytes)))

    out_flat = pl.pallas_call(
        basis_kernel,
        out_shape=jax.ShapeDtypeStruct((B, N, NDK), x.dtype),
        grid_spec=pltpu.PrefetchScalarGridSpec(
            num_scalar_prefetch=0,
            grid=(B, N // TN),
            in_specs=[
                pl.BlockSpec((1, TN, D), lambda b, i: (b, i, 0)),     # x rows (i side)
                pl.BlockSpec((1, D, N), lambda b, i: (b, 0, 0)),      # x^T full (j side)
                pl.BlockSpec(memory_space=pltpu.MemorySpace.SMEM),    # w1
                pl.BlockSpec(memory_space=pltpu.MemorySpace.SMEM),    # b1
                pl.BlockSpec(memory_space=pltpu.MemorySpace.SMEM),    # w2
                pl.BlockSpec(memory_space=pltpu.MemorySpace.SMEM),    # b2
            ],
            out_specs=pl.BlockSpec((1, TN, NDK), lambda b, i: (b, i, 0)),
        ),
        compiler_params=pltpu.CompilerParams(
            dimension_semantics=("parallel", "parallel"),
            vmem_limit_bytes=vmem_limit,
        ),
    )(x32, xT, w1f, b1f, w2f, b2f)

    # Free (contiguous) reshape back to the module's output layout.
    return out_flat.reshape(B, N, N, D, K)


def basis_reference(x, w1, b1, w2, b2):
    """Pure-JAX reference matching the PyTorch forward semantics."""
    delta = x[..., None, :, :] - x[..., :, None, :]              # [B, N, N, D]
    norm = jnp.maximum(delta ** 2, 0.0).sum(-1, keepdims=True)   # [B, N, N, 1]
    h = jax.nn.silu(norm @ w1.T + b1)                            # [B, N, N, H]
    att = h @ w2.T + b2                                          # [B, N, N, K]
    return delta[..., None] * att[..., None, :]                  # [B, N, N, D, K]


if __name__ == "__main__":
    B, N, D = 2, 32, 4       # batch, particles, coordinate dims
    H, K = 16, 8             # attention MLP hidden / basis count

    key = jax.random.PRNGKey(0)
    kx, k1, k2, k3, k4 = jax.random.split(key, 5)
    x = jax.random.normal(kx, (B, N, D), dtype=jnp.float32)
    w1 = jax.random.normal(k1, (H, 1), dtype=jnp.float32) * 0.5
    b1 = jax.random.normal(k2, (H,), dtype=jnp.float32) * 0.1
    w2 = jax.random.normal(k3, (K, H), dtype=jnp.float32) * 0.5
    b2 = jax.random.normal(k4, (K,), dtype=jnp.float32) * 0.1

    # row_tile=8 exercises the multi-tile row grid: grid = (B, N // 8) = (2, 4)
    out = basis_generation(x, w1, b1, w2, b2, row_tile=8)
    out = jax.block_until_ready(out)

    ref = basis_reference(x, w1, b1, w2, b2)
    assert out.shape == (B, N, N, D, K), out.shape
    assert jnp.allclose(out, ref, rtol=1e-4, atol=1e-4), "mismatch vs reference"

    print("KERNEL_OK")
</pallas_src>

<mosaic_0001>
module attributes {stable_mosaic.version = 11 : i64} {
  func.func @basis_kernel(%arg0: i32, %arg1: i32, %arg2: memref<1x8x4xf32, #tpu.memory_space<vmem>>, %arg3: memref<1x4x32xf32, #tpu.memory_space<vmem>>, %arg4: memref<16xf32, #tpu.memory_space<smem>>, %arg5: memref<16xf32, #tpu.memory_space<smem>>, %arg6: memref<128xf32, #tpu.memory_space<smem>>, %arg7: memref<8xf32, #tpu.memory_space<smem>>, %arg8: memref<1x8x1024xf32, #tpu.memory_space<vmem>>) attributes {dimension_semantics = [#tpu.dimension_semantics<parallel>, #tpu.dimension_semantics<parallel>], iteration_bounds = array<i64: 2, 4>, scalar_prefetch = 0 : i64, scratch_operands = 0 : i64, tpu.core_type = #tpu.core_type<tc>, window_params = [{transform_indices = @transform_0, window_bounds = array<i64: 1, 8, 4>}, {transform_indices = @transform_1, window_bounds = array<i64: 1, 4, 32>}, {transform_indices = @transform_2, window_bounds = array<i64: 16>}, {transform_indices = @transform_3, window_bounds = array<i64: 16>}, {transform_indices = @transform_4, window_bounds = array<i64: 128>}, {transform_indices = @transform_5, window_bounds = array<i64: 8>}, {transform_indices = @transform_6, window_bounds = array<i64: 1, 8, 1024>}]} {
    %c0 = arith.constant 0 : index
    %c0_0 = arith.constant 0 : index
    %c0_1 = arith.constant 0 : index
    %0 = vector.load %arg2[%c0, %c0_0, %c0_1] : memref<1x8x4xf32, #tpu.memory_space<vmem>>, vector<1x8x4xf32>
    %1 = vector.shape_cast %0 : vector<1x8x4xf32> to vector<8x4xf32>
    %c0_2 = arith.constant 0 : index
    %c0_3 = arith.constant 0 : index
    %c0_4 = arith.constant 0 : index
    %2 = vector.load %arg3[%c0_2, %c0_3, %c0_4] : memref<1x4x32xf32, #tpu.memory_space<vmem>>, vector<1x4x32xf32>
    %3 = vector.shape_cast %2 : vector<1x4x32xf32> to vector<4x32xf32>
    %4 = vector.extract_strided_slice %3 {offsets = [0, 0], sizes = [1, 32], strides = [1, 1]} : vector<4x32xf32> to vector<1x32xf32>
    %5 = vector.extract_strided_slice %1 {offsets = [0, 0], sizes = [8, 1], strides = [1, 1]} : vector<8x4xf32> to vector<8x1xf32>
    %6 = vector.broadcast %4 : vector<1x32xf32> to vector<8x32xf32>
    %7 = vector.broadcast %5 : vector<8x1xf32> to vector<8x32xf32>
    %8 = arith.subf %6, %7 : vector<8x32xf32>
    %9 = vector.extract_strided_slice %3 {offsets = [1, 0], sizes = [1, 32], strides = [1, 1]} : vector<4x32xf32> to vector<1x32xf32>
    %10 = vector.extract_strided_slice %1 {offsets = [0, 1], sizes = [8, 1], strides = [1, 1]} : vector<8x4xf32> to vector<8x1xf32>
    %11 = vector.broadcast %9 : vector<1x32xf32> to vector<8x32xf32>
    %12 = vector.broadcast %10 : vector<8x1xf32> to vector<8x32xf32>
    %13 = arith.subf %11, %12 : vector<8x32xf32>
    %14 = vector.extract_strided_slice %3 {offsets = [2, 0], sizes = [1, 32], strides = [1, 1]} : vector<4x32xf32> to vector<1x32xf32>
    %15 = vector.extract_strided_slice %1 {offsets = [0, 2], sizes = [8, 1], strides = [1, 1]} : vector<8x4xf32> to vector<8x1xf32>
    %16 = vector.broadcast %14 : vector<1x32xf32> to vector<8x32xf32>
    %17 = vector.broadcast %15 : vector<8x1xf32> to vector<8x32xf32>
    %18 = arith.subf %16, %17 : vector<8x32xf32>
    %19 = vector.extract_strided_slice %3 {offsets = [3, 0], sizes = [1, 32], strides = [1, 1]} : vector<4x32xf32> to vector<1x32xf32>
    %20 = vector.extract_strided_slice %1 {offsets = [0, 3], sizes = [8, 1], strides = [1, 1]} : vector<8x4xf32> to vector<8x1xf32>
    %21 = vector.broadcast %19 : vector<1x32xf32> to vector<8x32xf32>
    %22 = vector.broadcast %20 : vector<8x1xf32> to vector<8x32xf32>
    %23 = arith.subf %21, %22 : vector<8x32xf32>
    %24 = arith.mulf %8, %8 : vector<8x32xf32>
    %25 = arith.mulf %13, %13 : vector<8x32xf32>
    %26 = arith.addf %24, %25 : vector<8x32xf32>
    %27 = arith.mulf %18, %18 : vector<8x32xf32>
    %28 = arith.addf %26, %27 : vector<8x32xf32>
    %29 = arith.mulf %23, %23 : vector<8x32xf32>
    %30 = arith.addf %28, %29 : vector<8x32xf32>
    %cst = arith.constant 0.000000e+00 : f32
    %31 = vector.broadcast %cst : f32 to vector<8x32xf32>
    %cst_5 = arith.constant 0.000000e+00 : f32
    %32 = vector.broadcast %cst_5 : f32 to vector<8x32xf32>
    %cst_6 = arith.constant 0.000000e+00 : f32
    %33 = vector.broadcast %cst_6 : f32 to vector<8x32xf32>
    %cst_7 = arith.constant 0.000000e+00 : f32
    %34 = vector.broadcast %cst_7 : f32 to vector<8x32xf32>
    %cst_8 = arith.constant 0.000000e+00 : f32
    %35 = vector.broadcast %cst_8 : f32 to vector<8x32xf32>
    %cst_9 = arith.constant 0.000000e+00 : f32
    %36 = vector.broadcast %cst_9 : f32 to vector<8x32xf32>
    %cst_10 = arith.constant 0.000000e+00 : f32
    %37 = vector.broadcast %cst_10 : f32 to vector<8x32xf32>
    %cst_11 = arith.constant 0.000000e+00 : f32
    %38 = vector.broadcast %cst_11 : f32 to vector<8x32xf32>
    %c0_12 = arith.constant 0 : index
    %39 = memref.load %arg4[%c0_12] : memref<16xf32, #tpu.memory_space<smem>>
    %40 = vector.broadcast %39 : f32 to vector<8x32xf32>
    %41 = arith.mulf %30, %40 : vector<8x32xf32>
    %c0_13 = arith.constant 0 : index
    %42 = memref.load %arg5[%c0_13] : memref<16xf32, #tpu.memory_space<smem>>
    %43 = vector.broadcast %42 : f32 to vector<8x32xf32>
    %44 = arith.addf %41, %43 : vector<8x32xf32>
    %45 = arith.negf %44 : vector<8x32xf32>
    %46 = math.exp %45 : vector<8x32xf32>
    %cst_14 = arith.constant 1.000000e+00 : f32
    %47 = vector.broadcast %cst_14 : f32 to vector<8x32xf32>
    %48 = arith.addf %47, %46 : vector<8x32xf32>
    %49 = arith.divf %47, %48 : vector<8x32xf32>
    %50 = arith.mulf %44, %49 : vector<8x32xf32>
    %c0_15 = arith.constant 0 : index
    %51 = memref.load %arg6[%c0_15] : memref<128xf32, #tpu.memory_space<smem>>
    %52 = vector.broadcast %51 : f32 to vector<8x32xf32>
    %53 = arith.mulf %50, %52 : vector<8x32xf32>
    %54 = arith.addf %31, %53 : vector<8x32xf32>
    %c16 = arith.constant 16 : index
    %55 = memref.load %arg6[%c16] : memref<128xf32, #tpu.memory_space<smem>>
    %56 = vector.broadcast %55 : f32 to vector<8x32xf32>
    %57 = arith.mulf %50, %56 : vector<8x32xf32>
    %58 = arith.addf %32, %57 : vector<8x32xf32>
    %c32 = arith.constant 32 : index
    %59 = memref.load %arg6[%c32] : memref<128xf32, #tpu.memory_space<smem>>
    %60 = vector.broadcast %59 : f32 to vector<8x32xf32>
    %61 = arith.mulf %50, %60 : vector<8x32xf32>
    %62 = arith.addf %33, %61 : vector<8x32xf32>
    %c48 = arith.constant 48 : index
    %63 = memref.load %arg6[%c48] : memref<128xf32, #tpu.memory_space<smem>>
    %64 = vector.broadcast %63 : f32 to vector<8x32xf32>
    %65 = arith.mulf %50, %64 : vector<8x32xf32>
    %66 = arith.addf %34, %65 : vector<8x32xf32>
    %c64 = arith.constant 64 : index
    %67 = memref.load %arg6[%c64] : memref<128xf32, #tpu.memory_space<smem>>
    %68 = vector.broadcast %67 : f32 to vector<8x32xf32>
    %69 = arith.mulf %50, %68 : vector<8x32xf32>
    %70 = arith.addf %35, %69 : vector<8x32xf32>
    %c80 = arith.constant 80 : index
    %71 = memref.load %arg6[%c80] : memref<128xf32, #tpu.memory_space<smem>>
    %72 = vector.broadcast %71 : f32 to vector<8x32xf32>
    %73 = arith.mulf %50, %72 : vector<8x32xf32>
    %74 = arith.addf %36, %73 : vector<8x32xf32>
    %c96 = arith.constant 96 : index
    %75 = memref.load %arg6[%c96] : memref<128xf32, #tpu.memory_space<smem>>
    %76 = vector.broadcast %75 : f32 to vector<8x32xf32>
    %77 = arith.mulf %50, %76 : vector<8x32xf32>
    %78 = arith.addf %37, %77 : vector<8x32xf32>
    %c112 = arith.constant 112 : index
    %79 = memref.load %arg6[%c112] : memref<128xf32, #tpu.memory_space<smem>>
    %80 = vector.broadcast %79 : f32 to vector<8x32xf32>
    %81 = arith.mulf %50, %80 : vector<8x32xf32>
    %82 = arith.addf %38, %81 : vector<8x32xf32>
    %c1 = arith.constant 1 : index
    %83 = memref.load %arg4[%c1] : memref<16xf32, #tpu.memory_space<smem>>
    %84 = vector.broadcast %83 : f32 to vector<8x32xf32>
    %85 = arith.mulf %30, %84 : vector<8x32xf32>
    %c1_16 = arith.constant 1 : index
    %86 = memref.load %arg5[%c1_16] : memref<16xf32, #tpu.memory_space<smem>>
    %87 = vector.broadcast %86 : f32 to vector<8x32xf32>
    %88 = arith.addf %85, %87 : vector<8x32xf32>
    %89 = arith.negf %88 : vector<8x32xf32>
    %90 = math.exp %89 : vector<8x32xf32>
    %cst_17 = arith.constant 1.000000e+00 : f32
    %91 = vector.broadcast %cst_17 : f32 to vector<8x32xf32>
    %92 = arith.addf %91, %90 : vector<8x32xf32>
    %93 = arith.divf %91, %92 : vector<8x32xf32>
    %94 = arith.mulf %88, %93 : vector<8x32xf32>
    %c1_18 = arith.constant 1 : index
    %95 = memref.load %arg6[%c1_18] : memref<128xf32, #tpu.memory_space<smem>>
    %96 = vector.broadcast %95 : f32 to vector<8x32xf32>
    %97 = arith.mulf %94, %96 : vector<8x32xf32>
    %98 = arith.addf %54, %97 : vector<8x32xf32>
    %c17 = arith.constant 17 : index
    %99 = memref.load %arg6[%c17] : memref<128xf32, #tpu.memory_space<smem>>
    %100 = vector.broadcast %99 : f32 to vector<8x32xf32>
    %101 = arith.mulf %94, %100 : vector<8x32xf32>
    %102 = arith.addf %58, %101 : vector<8x32xf32>
    %c33 = arith.constant 33 : index
    %103 = memref.load %arg6[%c33] : memref<128xf32, #tpu.memory_space<smem>>
    %104 = vector.broadcast %103 : f32 to vector<8x32xf32>
    %105 = arith.mulf %94, %104 : vector<8x32xf32>
    %106 = arith.addf %62, %105 : vector<8x32xf32>
    %c49 = arith.constant 49 : index
    %107 = memref.load %arg6[%c49] : memref<128xf32, #tpu.memory_space<smem>>
    %108 = vector.broadcast %107 : f32 to vector<8x32xf32>
    %109 = arith.mulf %94, %108 : vector<8x32xf32>
    %110 = arith.addf %66, %109 : vector<8x32xf32>
    %c65 = arith.constant 65 : index
    %111 = memref.load %arg6[%c65] : memref<128xf32, #tpu.memory_space<smem>>
    %112 = vector.broadcast %111 : f32 to vector<8x32xf32>
    %113 = arith.mulf %94, %112 : vector<8x32xf32>
    %114 = arith.addf %70, %113 : vector<8x32xf32>
    %c81 = arith.constant 81 : index
    %115 = memref.load %arg6[%c81] : memref<128xf32, #tpu.memory_space<smem>>
    %116 = vector.broadcast %115 : f32 to vector<8x32xf32>
    %117 = arith.mulf %94, %116 : vector<8x32xf32>
    %118 = arith.addf %74, %117 : vector<8x32xf32>
    %c97 = arith.constant 97 : index
    %119 = memref.load %arg6[%c97] : memref<128xf32, #tpu.memory_space<smem>>
    %120 = vector.broadcast %119 : f32 to vector<8x32xf32>
    %121 = arith.mulf %94, %120 : vector<8x32xf32>
    %122 = arith.addf %78, %121 : vector<8x32xf32>
    %c113 = arith.constant 113 : index
    %123 = memref.load %arg6[%c113] : memref<128xf32, #tpu.memory_space<smem>>
    %124 = vector.broadcast %123 : f32 to vector<8x32xf32>
    %125 = arith.mulf %94, %124 : vector<8x32xf32>
    %126 = arith.addf %82, %125 : vector<8x32xf32>
    %c2 = arith.constant 2 : index
    %127 = memref.load %arg4[%c2] : memref<16xf32, #tpu.memory_space<smem>>
    %128 = vector.broadcast %127 : f32 to vector<8x32xf32>
    %129 = arith.mulf %30, %128 : vector<8x32xf32>
    %c2_19 = arith.constant 2 : index
    %130 = memref.load %arg5[%c2_19] : memref<16xf32, #tpu.memory_space<smem>>
    %131 = vector.broadcast %130 : f32 to vector<8x32xf32>
    %132 = arith.addf %129, %131 : vector<8x32xf32>
    %133 = arith.negf %132 : vector<8x32xf32>
    %134 = math.exp %133 : vector<8x32xf32>
    %cst_20 = arith.constant 1.000000e+00 : f32
    %135 = vector.broadcast %cst_20 : f32 to vector<8x32xf32>
    %136 = arith.addf %135, %134 : vector<8x32xf32>
    %137 = arith.divf %135, %136 : vector<8x32xf32>
    %138 = arith.mulf %132, %137 : vector<8x32xf32>
    %c2_21 = arith.constant 2 : index
    %139 = memref.load %arg6[%c2_21] : memref<128xf32, #tpu.memory_space<smem>>
    %140 = vector.broadcast %139 : f32 to vector<8x32xf32>
    %141 = arith.mulf %138, %140 : vector<8x32xf32>
    %142 = arith.addf %98, %141 : vector<8x32xf32>
    %c18 = arith.constant 18 : index
    %143 = memref.load %arg6[%c18] : memref<128xf32, #tpu.memory_space<smem>>
    %144 = vector.broadcast %143 : f32 to vector<8x32xf32>
    %145 = arith.mulf %138, %144 : vector<8x32xf32>
    %146 = arith.addf %102, %145 : vector<8x32xf32>
    %c34 = arith.constant 34 : index
    %147 = memref.load %arg6[%c34] : memref<128xf32, #tpu.memory_space<smem>>
    %148 = vector.broadcast %147 : f32 to vector<8x32xf32>
    %149 = arith.mulf %138, %148 : vector<8x32xf32>
    %150 = arith.addf %106, %149 : vector<8x32xf32>
    %c50 = arith.constant 50 : index
    %151 = memref.load %arg6[%c50] : memref<128xf32, #tpu.memory_space<smem>>
    %152 = vector.broadcast %151 : f32 to vector<8x32xf32>
    %153 = arith.mulf %138, %152 : vector<8x32xf32>
    %154 = arith.addf %110, %153 : vector<8x32xf32>
    %c66 = arith.constant 66 : index
    %155 = memref.load %arg6[%c66] : memref<128xf32, #tpu.memory_space<smem>>
    %156 = vector.broadcast %155 : f32 to vector<8x32xf32>
    %157 = arith.mulf %138, %156 : vector<8x32xf32>
    %158 = arith.addf %114, %157 : vector<8x32xf32>
    %c82 = arith.constant 82 : index
    %159 = memref.load %arg6[%c82] : memref<128xf32, #tpu.memory_space<smem>>
    %160 = vector.broadcast %159 : f32 to vector<8x32xf32>
    %161 = arith.mulf %138, %160 : vector<8x32xf32>
    %162 = arith.addf %118, %161 : vector<8x32xf32>
    %c98 = arith.constant 98 : index
    %163 = memref.load %arg6[%c98] : memref<128xf32, #tpu.memory_space<smem>>
    %164 = vector.broadcast %163 : f32 to vector<8x32xf32>
    %165 = arith.mulf %138, %164 : vector<8x32xf32>
    %166 = arith.addf %122, %165 : vector<8x32xf32>
    %c114 = arith.constant 114 : index
    %167 = memref.load %arg6[%c114] : memref<128xf32, #tpu.memory_space<smem>>
    %168 = vector.broadcast %167 : f32 to vector<8x32xf32>
    %169 = arith.mulf %138, %168 : vector<8x32xf32>
    %170 = arith.addf %126, %169 : vector<8x32xf32>
    %c3 = arith.constant 3 : index
    %171 = memref.load %arg4[%c3] : memref<16xf32, #tpu.memory_space<smem>>
    %172 = vector.broadcast %171 : f32 to vector<8x32xf32>
    %173 = arith.mulf %30, %172 : vector<8x32xf32>
    %c3_22 = arith.constant 3 : index
    %174 = memref.load %arg5[%c3_22] : memref<16xf32, #tpu.memory_space<smem>>
    %175 = vector.broadcast %174 : f32 to vector<8x32xf32>
    %176 = arith.addf %173, %175 : vector<8x32xf32>
    %177 = arith.negf %176 : vector<8x32xf32>
    %178 = math.exp %177 : vector<8x32xf32>
    %cst_23 = arith.constant 1.000000e+00 : f32
    %179 = vector.broadcast %cst_23 : f32 to vector<8x32xf32>
    %180 = arith.addf %179, %178 : vector<8x32xf32>
    %181 = arith.divf %179, %180 : vector<8x32xf32>
    %182 = arith.mulf %176, %181 : vector<8x32xf32>
    %c3_24 = arith.constant 3 : index
    %183 = memref.load %arg6[%c3_24] : memref<128xf32, #tpu.memory_space<smem>>
    %184 = vector.broadcast %183 : f32 to vector<8x32xf32>
    %185 = arith.mulf %182, %184 : vector<8x32xf32>
    %186 = arith.addf %142, %185 : vector<8x32xf32>
    %c19 = arith.constant 19 : index
    %187 = memref.load %arg6[%c19] : memref<128xf32, #tpu.memory_space<smem>>
    %188 = vector.broadcast %187 : f32 to vector<8x32xf32>
    %189 = arith.mulf %182, %188 : vector<8x32xf32>
    %190 = arith.addf %146, %189 : vector<8x32xf32>
    %c35 = arith.constant 35 : index
    %191 = memref.load %arg6[%c35] : memref<128xf32, #tpu.memory_space<smem>>
    %192 = vector.broadcast %191 : f32 to vector<8x32xf32>
    %193 = arith.mulf %182, %192 : vector<8x32xf32>
    %194 = arith.addf %150, %193 : vector<8x32xf32>
    %c51 = arith.constant 51 : index
    %195 = memref.load %arg6[%c51] : memref<128xf32, #tpu.memory_space<smem>>
    %196 = vector.broadcast %195 : f32 to vector<8x32xf32>
    %197 = arith.mulf %182, %196 : vector<8x32xf32>
    %198 = arith.addf %154, %197 : vector<8x32xf32>
    %c67 = arith.constant 67 : index
    %199 = memref.load %arg6[%c67] : memref<128xf32, #tpu.memory_space<smem>>
    %200 = vector.broadcast %199 : f32 to vector<8x32xf32>
    %201 = arith.mulf %182, %200 : vector<8x32xf32>
    %202 = arith.addf %158, %201 : vector<8x32xf32>
    %c83 = arith.constant 83 : index
    %203 = memref.load %arg6[%c83] : memref<128xf32, #tpu.memory_space<smem>>
    %204 = vector.broadcast %203 : f32 to vector<8x32xf32>
    %205 = arith.mulf %182, %204 : vector<8x32xf32>
    %206 = arith.addf %162, %205 : vector<8x32xf32>
    %c99 = arith.constant 99 : index
    %207 = memref.load %arg6[%c99] : memref<128xf32, #tpu.memory_space<smem>>
    %208 = vector.broadcast %207 : f32 to vector<8x32xf32>
    %209 = arith.mulf %182, %208 : vector<8x32xf32>
    %210 = arith.addf %166, %209 : vector<8x32xf32>
    %c115 = arith.constant 115 : index
    %211 = memref.load %arg6[%c115] : memref<128xf32, #tpu.memory_space<smem>>
    %212 = vector.broadcast %211 : f32 to vector<8x32xf32>
    %213 = arith.mulf %182, %212 : vector<8x32xf32>
    %214 = arith.addf %170, %213 : vector<8x32xf32>
    %c4 = arith.constant 4 : index
    %215 = memref.load %arg4[%c4] : memref<16xf32, #tpu.memory_space<smem>>
    %216 = vector.broadcast %215 : f32 to vector<8x32xf32>
    %217 = arith.mulf %30, %216 : vector<8x32xf32>
    %c4_25 = arith.constant 4 : index
    %218 = memref.load %arg5[%c4_25] : memref<16xf32, #tpu.memory_space<smem>>
    %219 = vector.broadcast %218 : f32 to vector<8x32xf32>
    %220 = arith.addf %217, %219 : vector<8x32xf32>
    %221 = arith.negf %220 : vector<8x32xf32>
    %222 = math.exp %221 : vector<8x32xf32>
    %cst_26 = arith.constant 1.000000e+00 : f32
    %223 = vector.broadcast %cst_26 : f32 to vector<8x32xf32>
    %224 = arith.addf %223, %222 : vector<8x32xf32>
    %225 = arith.divf %223, %224 : vector<8x32xf32>
    %226 = arith.mulf %220, %225 : vector<8x32xf32>
    %c4_27 = arith.constant 4 : index
    %227 = memref.load %arg6[%c4_27] : memref<128xf32, #tpu.memory_space<smem>>
    %228 = vector.broadcast %227 : f32 to vector<8x32xf32>
    %229 = arith.mulf %226, %228 : vector<8x32xf32>
    %230 = arith.addf %186, %229 : vector<8x32xf32>
    %c20 = arith.constant 20 : index
    %231 = memref.load %arg6[%c20] : memref<128xf32, #tpu.memory_space<smem>>
    %232 = vector.broadcast %231 : f32 to vector<8x32xf32>
    %233 = arith.mulf %226, %232 : vector<8x32xf32>
    %234 = arith.addf %190, %233 : vector<8x32xf32>
    %c36 = arith.constant 36 : index
    %235 = memref.load %arg6[%c36] : memref<128xf32, #tpu.memory_space<smem>>
    %236 = vector.broadcast %235 : f32 to vector<8x32xf32>
    %237 = arith.mulf %226, %236 : vector<8x32xf32>
    %238 = arith.addf %194, %237 : vector<8x32xf32>
    %c52 = arith.constant 52 : index
    %239 = memref.load %arg6[%c52] : memref<128xf32, #tpu.memory_space<smem>>
    %240 = vector.broadcast %239 : f32 to vector<8x32xf32>
    %241 = arith.mulf %226, %240 : vector<8x32xf32>
    %242 = arith.addf %198, %241 : vector<8x32xf32>
    %c68 = arith.constant 68 : index
    %243 = memref.load %arg6[%c68] : memref<128xf32, #tpu.memory_space<smem>>
    %244 = vector.broadcast %243 : f32 to vector<8x32xf32>
    %245 = arith.mulf %226, %244 : vector<8x32xf32>
    %246 = arith.addf %202, %245 : vector<8x32xf32>
    %c84 = arith.constant 84 : index
    %247 = memref.load %arg6[%c84] : memref<128xf32, #tpu.memory_space<smem>>
    %248 = vector.broadcast %247 : f32 to vector<8x32xf32>
    %249 = arith.mulf %226, %248 : vector<8x32xf32>
    %250 = arith.addf %206, %249 : vector<8x32xf32>
    %c100 = arith.constant 100 : index
    %251 = memref.load %arg6[%c100] : memref<128xf32, #tpu.memory_space<smem>>
    %252 = vector.broadcast %251 : f32 to vector<8x32xf32>
    %253 = arith.mulf %226, %252 : vector<8x32xf32>
    %254 = arith.addf %210, %253 : vector<8x32xf32>
    %c116 = arith.constant 116 : index
    %255 = memref.load %arg6[%c116] : memref<128xf32, #tpu.memory_space<smem>>
    %256 = vector.broadcast %255 : f32 to vector<8x32xf32>
    %257 = arith.mulf %226, %256 : vector<8x32xf32>
    %258 = arith.addf %214, %257 : vector<8x32xf32>
    %c5 = arith.constant 5 : index
    %259 = memref.load %arg4[%c5] : memref<16xf32, #tpu.memory_space<smem>>
    %260 = vector.broadcast %259 : f32 to vector<8x32xf32>
    %261 = arith.mulf %30, %260 : vector<8x32xf32>
    %c5_28 = arith.constant 5 : index
    %262 = memref.load %arg5[%c5_28] : memref<16xf32, #tpu.memory_space<smem>>
    %263 = vector.broadcast %262 : f32 to vector<8x32xf32>
    %264 = arith.addf %261, %263 : vector<8x32xf32>
    %265 = arith.negf %264 : vector<8x32xf32>
    %266 = math.exp %265 : vector<8x32xf32>
    %cst_29 = arith.constant 1.000000e+00 : f32
    %267 = vector.broadcast %cst_29 : f32 to vector<8x32xf32>
    %268 = arith.addf %267, %266 : vector<8x32xf32>
    %269 = arith.divf %267, %268 : vector<8x32xf32>
    %270 = arith.mulf %264, %269 : vector<8x32xf32>
    %c5_30 = arith.constant 5 : index
    %271 = memref.load %arg6[%c5_30] : memref<128xf32, #tpu.memory_space<smem>>
    %272 = vector.broadcast %271 : f32 to vector<8x32xf32>
    %273 = arith.mulf %270, %272 : vector<8x32xf32>
    %274 = arith.addf %230, %273 : vector<8x32xf32>
    %c21 = arith.constant 21 : index
    %275 = memref.load %arg6[%c21] : memref<128xf32, #tpu.memory_space<smem>>
    %276 = vector.broadcast %275 : f32 to vector<8x32xf32>
    %277 = arith.mulf %270, %276 : vector<8x32xf32>
    %278 = arith.addf %234, %277 : vector<8x32xf32>
    %c37 = arith.constant 37 : index
    %279 = memref.load %arg6[%c37] : memref<128xf32, #tpu.memory_space<smem>>
    %280 = vector.broadcast %279 : f32 to vector<8x32xf32>
    %281 = arith.mulf %270, %280 : vector<8x32xf32>
    %282 = arith.addf %238, %281 : vector<8x32xf32>
    %c53 = arith.constant 53 : index
    %283 = memref.load %arg6[%c53] : memref<128xf32, #tpu.memory_space<smem>>
    %284 = vector.broadcast %283 : f32 to vector<8x32xf32>
    %285 = arith.mulf %270, %284 : vector<8x32xf32>
    %286 = arith.addf %242, %285 : vector<8x32xf32>
    %c69 = arith.constant 69 : index
    %287 = memref.load %arg6[%c69] : memref<128xf32, #tpu.memory_space<smem>>
    %288 = vector.broadcast %287 : f32 to vector<8x32xf32>
    %289 = arith.mulf %270, %288 : vector<8x32xf32>
    %290 = arith.addf %246, %289 : vector<8x32xf32>
    %c85 = arith.constant 85 : index
    %291 = memref.load %arg6[%c85] : memref<128xf32, #tpu.memory_space<smem>>
    %292 = vector.broadcast %291 : f32 to vector<8x32xf32>
    %293 = arith.mulf %270, %292 : vector<8x32xf32>
    %294 = arith.addf %250, %293 : vector<8x32xf32>
    %c101 = arith.constant 101 : index
    %295 = memref.load %arg6[%c101] : memref<128xf32, #tpu.memory_space<smem>>
    %296 = vector.broadcast %295 : f32 to vector<8x32xf32>
    %297 = arith.mulf %270, %296 : vector<8x32xf32>
    %298 = arith.addf %254, %297 : vector<8x32xf32>
    %c117 = arith.constant 117 : index
    %299 = memref.load %arg6[%c117] : memref<128xf32, #tpu.memory_space<smem>>
    %300 = vector.broadcast %299 : f32 to vector<8x32xf32>
    %301 = arith.mulf %270, %300 : vector<8x32xf32>
    %302 = arith.addf %258, %301 : vector<8x32xf32>
    %c6 = arith.constant 6 : index
    %303 = memref.load %arg4[%c6] : memref<16xf32, #tpu.memory_space<smem>>
    %304 = vector.broadcast %303 : f32 to vector<8x32xf32>
    %305 = arith.mulf %30, %304 : vector<8x32xf32>
    %c6_31 = arith.constant 6 : index
    %306 = memref.load %arg5[%c6_31] : memref<16xf32, #tpu.memory_space<smem>>
    %307 = vector.broadcast %306 : f32 to vector<8x32xf32>
    %308 = arith.addf %305, %307 : vector<8x32xf32>
    %309 = arith.negf %308 : vector<8x32xf32>
    %310 = math.exp %309 : vector<8x32xf32>
    %cst_32 = arith.constant 1.000000e+00 : f32
    %311 = vector.broadcast %cst_32 : f32 to vector<8x32xf32>
    %312 = arith.addf %311, %310 : vector<8x32xf32>
    %313 = arith.divf %311, %312 : vector<8x32xf32>
    %314 = arith.mulf %308, %313 : vector<8x32xf32>
    %c6_33 = arith.constant 6 : index
    %315 = memref.load %arg6[%c6_33] : memref<128xf32, #tpu.memory_space<smem>>
    %316 = vector.broadcast %315 : f32 to vector<8x32xf32>
    %317 = arith.mulf %314, %316 : vector<8x32xf32>
    %318 = arith.addf %274, %317 : vector<8x32xf32>
    %c22 = arith.constant 22 : index
    %319 = memref.load %arg6[%c22] : memref<128xf32, #tpu.memory_space<smem>>
    %320 = vector.broadcast %319 : f32 to vector<8x32xf32>
    %321 = arith.mulf %314, %320 : vector<8x32xf32>
    %322 = arith.addf %278, %321 : vector<8x32xf32>
    %c38 = arith.constant 38 : index
    %323 = memref.load %arg6[%c38] : memref<128xf32, #tpu.memory_space<smem>>
    %324 = vector.broadcast %323 : f32 to vector<8x32xf32>
    %325 = arith.mulf %314, %324 : vector<8x32xf32>
    %326 = arith.addf %282, %325 : vector<8x32xf32>
    %c54 = arith.constant 54 : index
    %327 = memref.load %arg6[%c54] : memref<128xf32, #tpu.memory_space<smem>>
    %328 = vector.broadcast %327 : f32 to vector<8x32xf32>
    %329 = arith.mulf %314, %328 : vector<8x32xf32>
    %330 = arith.addf %286, %329 : vector<8x32xf32>
    %c70 = arith.constant 70 : index
    %331 = memref.load %arg6[%c70] : memref<128xf32, #tpu.memory_space<smem>>
    %332 = vector.broadcast %331 : f32 to vector<8x32xf32>
    %333 = arith.mulf %314, %332 : vector<8x32xf32>
    %334 = arith.addf %290, %333 : vector<8x32xf32>
    %c86 = arith.constant 86 : index
    %335 = memref.load %arg6[%c86] : memref<128xf32, #tpu.memory_space<smem>>
    %336 = vector.broadcast %335 : f32 to vector<8x32xf32>
    %337 = arith.mulf %314, %336 : vector<8x32xf32>
    %338 = arith.addf %294, %337 : vector<8x32xf32>
    %c102 = arith.constant 102 : index
    %339 = memref.load %arg6[%c102] : memref<128xf32, #tpu.memory_space<smem>>
    %340 = vector.broadcast %339 : f32 to vector<8x32xf32>
    %341 = arith.mulf %314, %340 : vector<8x32xf32>
    %342 = arith.addf %298, %341 : vector<8x32xf32>
    %c118 = arith.constant 118 : index
    %343 = memref.load %arg6[%c118] : memref<128xf32, #tpu.memory_space<smem>>
    %344 = vector.broadcast %343 : f32 to vector<8x32xf32>
    %345 = arith.mulf %314, %344 : vector<8x32xf32>
    %346 = arith.addf %302, %345 : vector<8x32xf32>
    %c7 = arith.constant 7 : index
    %347 = memref.load %arg4[%c7] : memref<16xf32, #tpu.memory_space<smem>>
    %348 = vector.broadcast %347 : f32 to vector<8x32xf32>
    %349 = arith.mulf %30, %348 : vector<8x32xf32>
    %c7_34 = arith.constant 7 : index
    %350 = memref.load %arg5[%c7_34] : memref<16xf32, #tpu.memory_space<smem>>
    %351 = vector.broadcast %350 : f32 to vector<8x32xf32>
    %352 = arith.addf %349, %351 : vector<8x32xf32>
    %353 = arith.negf %352 : vector<8x32xf32>
    %354 = math.exp %353 : vector<8x32xf32>
    %cst_35 = arith.constant 1.000000e+00 : f32
    %355 = vector.broadcast %cst_35 : f32 to vector<8x32xf32>
    %356 = arith.addf %355, %354 : vector<8x32xf32>
    %357 = arith.divf %355, %356 : vector<8x32xf32>
    %358 = arith.mulf %352, %357 : vector<8x32xf32>
    %c7_36 = arith.constant 7 : index
    %359 = memref.load %arg6[%c7_36] : memref<128xf32, #tpu.memory_space<smem>>
    %360 = vector.broadcast %359 : f32 to vector<8x32xf32>
    %361 = arith.mulf %358, %360 : vector<8x32xf32>
    %362 = arith.addf %318, %361 : vector<8x32xf32>
    %c23 = arith.constant 23 : index
    %363 = memref.load %arg6[%c23] : memref<128xf32, #tpu.memory_space<smem>>
    %364 = vector.broadcast %363 : f32 to vector<8x32xf32>
    %365 = arith.mulf %358, %364 : vector<8x32xf32>
    %366 = arith.addf %322, %365 : vector<8x32xf32>
    %c39 = arith.constant 39 : index
    %367 = memref.load %arg6[%c39] : memref<128xf32, #tpu.memory_space<smem>>
    %368 = vector.broadcast %367 : f32 to vector<8x32xf32>
    %369 = arith.mulf %358, %368 : vector<8x32xf32>
    %370 = arith.addf %326, %369 : vector<8x32xf32>
    %c55 = arith.constant 55 : index
    %371 = memref.load %arg6[%c55] : memref<128xf32, #tpu.memory_space<smem>>
    %372 = vector.broadcast %371 : f32 to vector<8x32xf32>
    %373 = arith.mulf %358, %372 : vector<8x32xf32>
    %374 = arith.addf %330, %373 : vector<8x32xf32>
    %c71 = arith.constant 71 : index
    %375 = memref.load %arg6[%c71] : memref<128xf32, #tpu.memory_space<smem>>
    %376 = vector.broadcast %375 : f32 to vector<8x32xf32>
    %377 = arith.mulf %358, %376 : vector<8x32xf32>
    %378 = arith.addf %334, %377 : vector<8x32xf32>
    %c87 = arith.constant 87 : index
    %379 = memref.load %arg6[%c87] : memref<128xf32, #tpu.memory_space<smem>>
    %380 = vector.broadcast %379 : f32 to vector<8x32xf32>
    %381 = arith.mulf %358, %380 : vector<8x32xf32>
    %382 = arith.addf %338, %381 : vector<8x32xf32>
    %c103 = arith.constant 103 : index
    %383 = memref.load %arg6[%c103] : memref<128xf32, #tpu.memory_space<smem>>
    %384 = vector.broadcast %383 : f32 to vector<8x32xf32>
    %385 = arith.mulf %358, %384 : vector<8x32xf32>
    %386 = arith.addf %342, %385 : vector<8x32xf32>
    %c119 = arith.constant 119 : index
    %387 = memref.load %arg6[%c119] : memref<128xf32, #tpu.memory_space<smem>>
    %388 = vector.broadcast %387 : f32 to vector<8x32xf32>
    %389 = arith.mulf %358, %388 : vector<8x32xf32>
    %390 = arith.addf %346, %389 : vector<8x32xf32>
    %c8 = arith.constant 8 : index
    %391 = memref.load %arg4[%c8] : memref<16xf32, #tpu.memory_space<smem>>
    %392 = vector.broadcast %391 : f32 to vector<8x32xf32>
    %393 = arith.mulf %30, %392 : vector<8x32xf32>
    %c8_37 = arith.constant 8 : index
    %394 = memref.load %arg5[%c8_37] : memref<16xf32, #tpu.memory_space<smem>>
    %395 = vector.broadcast %394 : f32 to vector<8x32xf32>
    %396 = arith.addf %393, %395 : vector<8x32xf32>
    %397 = arith.negf %396 : vector<8x32xf32>
    %398 = math.exp %397 : vector<8x32xf32>
    %cst_38 = arith.constant 1.000000e+00 : f32
    %399 = vector.broadcast %cst_38 : f32 to vector<8x32xf32>
    %400 = arith.addf %399, %398 : vector<8x32xf32>
    %401 = arith.divf %399, %400 : vector<8x32xf32>
    %402 = arith.mulf %396, %401 : vector<8x32xf32>
    %c8_39 = arith.constant 8 : index
    %403 = memref.load %arg6[%c8_39] : memref<128xf32, #tpu.memory_space<smem>>
    %404 = vector.broadcast %403 : f32 to vector<8x32xf32>
    %405 = arith.mulf %402, %404 : vector<8x32xf32>
    %406 = arith.addf %362, %405 : vector<8x32xf32>
    %c24 = arith.constant 24 : index
    %407 = memref.load %arg6[%c24] : memref<128xf32, #tpu.memory_space<smem>>
    %408 = vector.broadcast %407 : f32 to vector<8x32xf32>
    %409 = arith.mulf %402, %408 : vector<8x32xf32>
    %410 = arith.addf %366, %409 : vector<8x32xf32>
    %c40 = arith.constant 40 : index
    %411 = memref.load %arg6[%c40] : memref<128xf32, #tpu.memory_space<smem>>
    %412 = vector.broadcast %411 : f32 to vector<8x32xf32>
    %413 = arith.mulf %402, %412 : vector<8x32xf32>
    %414 = arith.addf %370, %413 : vector<8x32xf32>
    %c56 = arith.constant 56 : index
    %415 = memref.load %arg6[%c56] : memref<128xf32, #tpu.memory_space<smem>>
    %416 = vector.broadcast %415 : f32 to vector<8x32xf32>
    %417 = arith.mulf %402, %416 : vector<8x32xf32>
    %418 = arith.addf %374, %417 : vector<8x32xf32>
    %c72 = arith.constant 72 : index
    %419 = memref.load %arg6[%c72] : memref<128xf32, #tpu.memory_space<smem>>
    %420 = vector.broadcast %419 : f32 to vector<8x32xf32>
    %421 = arith.mulf %402, %420 : vector<8x32xf32>
    %422 = arith.addf %378, %421 : vector<8x32xf32>
    %c88 = arith.constant 88 : index
    %423 = memref.load %arg6[%c88] : memref<128xf32, #tpu.memory_space<smem>>
    %424 = vector.broadcast %423 : f32 to vector<8x32xf32>
    %425 = arith.mulf %402, %424 : vector<8x32xf32>
    %426 = arith.addf %382, %425 : vector<8x32xf32>
    %c104 = arith.constant 104 : index
    %427 = memref.load %arg6[%c104] : memref<128xf32, #tpu.memory_space<smem>>
    %428 = vector.broadcast %427 : f32 to vector<8x32xf32>
    %429 = arith.mulf %402, %428 : vector<8x32xf32>
    %430 = arith.addf %386, %429 : vector<8x32xf32>
    %c120 = arith.constant 120 : index
    %431 = memref.load %arg6[%c120] : memref<128xf32, #tpu.memory_space<smem>>
    %432 = vector.broadcast %431 : f32 to vector<8x32xf32>
    %433 = arith.mulf %402, %432 : vector<8x32xf32>
    %434 = arith.addf %390, %433 : vector<8x32xf32>
    %c9 = arith.constant 9 : index
    %435 = memref.load %arg4[%c9] : memref<16xf32, #tpu.memory_space<smem>>
    %436 = vector.broadcast %435 : f32 to vector<8x32xf32>
    %437 = arith.mulf %30, %436 : vector<8x32xf32>
    %c9_40 = arith.constant 9 : index
    %438 = memref.load %arg5[%c9_40] : memref<16xf32, #tpu.memory_space<smem>>
    %439 = vector.broadcast %438 : f32 to vector<8x32xf32>
    %440 = arith.addf %437, %439 : vector<8x32xf32>
    %441 = arith.negf %440 : vector<8x32xf32>
    %442 = math.exp %441 : vector<8x32xf32>
    %cst_41 = arith.constant 1.000000e+00 : f32
    %443 = vector.broadcast %cst_41 : f32 to vector<8x32xf32>
    %444 = arith.addf %443, %442 : vector<8x32xf32>
    %445 = arith.divf %443, %444 : vector<8x32xf32>
    %446 = arith.mulf %440, %445 : vector<8x32xf32>
    %c9_42 = arith.constant 9 : index
    %447 = memref.load %arg6[%c9_42] : memref<128xf32, #tpu.memory_space<smem>>
    %448 = vector.broadcast %447 : f32 to vector<8x32xf32>
    %449 = arith.mulf %446, %448 : vector<8x32xf32>
    %450 = arith.addf %406, %449 : vector<8x32xf32>
    %c25 = arith.constant 25 : index
    %451 = memref.load %arg6[%c25] : memref<128xf32, #tpu.memory_space<smem>>
    %452 = vector.broadcast %451 : f32 to vector<8x32xf32>
    %453 = arith.mulf %446, %452 : vector<8x32xf32>
    %454 = arith.addf %410, %453 : vector<8x32xf32>
    %c41 = arith.constant 41 : index
    %455 = memref.load %arg6[%c41] : memref<128xf32, #tpu.memory_space<smem>>
    %456 = vector.broadcast %455 : f32 to vector<8x32xf32>
    %457 = arith.mulf %446, %456 : vector<8x32xf32>
    %458 = arith.addf %414, %457 : vector<8x32xf32>
    %c57 = arith.constant 57 : index
    %459 = memref.load %arg6[%c57] : memref<128xf32, #tpu.memory_space<smem>>
    %460 = vector.broadcast %459 : f32 to vector<8x32xf32>
    %461 = arith.mulf %446, %460 : vector<8x32xf32>
    %462 = arith.addf %418, %461 : vector<8x32xf32>
    %c73 = arith.constant 73 : index
    %463 = memref.load %arg6[%c73] : memref<128xf32, #tpu.memory_space<smem>>
    %464 = vector.broadcast %463 : f32 to vector<8x32xf32>
    %465 = arith.mulf %446, %464 : vector<8x32xf32>
    %466 = arith.addf %422, %465 : vector<8x32xf32>
    %c89 = arith.constant 89 : index
    %467 = memref.load %arg6[%c89] : memref<128xf32, #tpu.memory_space<smem>>
    %468 = vector.broadcast %467 : f32 to vector<8x32xf32>
    %469 = arith.mulf %446, %468 : vector<8x32xf32>
    %470 = arith.addf %426, %469 : vector<8x32xf32>
    %c105 = arith.constant 105 : index
    %471 = memref.load %arg6[%c105] : memref<128xf32, #tpu.memory_space<smem>>
    %472 = vector.broadcast %471 : f32 to vector<8x32xf32>
    %473 = arith.mulf %446, %472 : vector<8x32xf32>
    %474 = arith.addf %430, %473 : vector<8x32xf32>
    %c121 = arith.constant 121 : index
    %475 = memref.load %arg6[%c121] : memref<128xf32, #tpu.memory_space<smem>>
    %476 = vector.broadcast %475 : f32 to vector<8x32xf32>
    %477 = arith.mulf %446, %476 : vector<8x32xf32>
    %478 = arith.addf %434, %477 : vector<8x32xf32>
    %c10 = arith.constant 10 : index
    %479 = memref.load %arg4[%c10] : memref<16xf32, #tpu.memory_space<smem>>
    %480 = vector.broadcast %479 : f32 to vector<8x32xf32>
    %481 = arith.mulf %30, %480 : vector<8x32xf32>
    %c10_43 = arith.constant 10 : index
    %482 = memref.load %arg5[%c10_43] : memref<16xf32, #tpu.memory_space<smem>>
    %483 = vector.broadcast %482 : f32 to vector<8x32xf32>
    %484 = arith.addf %481, %483 : vector<8x32xf32>
    %485 = arith.negf %484 : vector<8x32xf32>
    %486 = math.exp %485 : vector<8x32xf32>
    %cst_44 = arith.constant 1.000000e+00 : f32
    %487 = vector.broadcast %cst_44 : f32 to vector<8x32xf32>
    %488 = arith.addf %487, %486 : vector<8x32xf32>
    %489 = arith.divf %487, %488 : vector<8x32xf32>
    %490 = arith.mulf %484, %489 : vector<8x32xf32>
    %c10_45 = arith.constant 10 : index
    %491 = memref.load %arg6[%c10_45] : memref<128xf32, #tpu.memory_space<smem>>
    %492 = vector.broadcast %491 : f32 to vector<8x32xf32>
    %493 = arith.mulf %490, %492 : vector<8x32xf32>
    %494 = arith.addf %450, %493 : vector<8x32xf32>
    %c26 = arith.constant 26 : index
    %495 = memref.load %arg6[%c26] : memref<128xf32, #tpu.memory_space<smem>>
    %496 = vector.broadcast %495 : f32 to vector<8x32xf32>
    %497 = arith.mulf %490, %496 : vector<8x32xf32>
    %498 = arith.addf %454, %497 : vector<8x32xf32>
    %c42 = arith.constant 42 : index
    %499 = memref.load %arg6[%c42] : memref<128xf32, #tpu.memory_space<smem>>
    %500 = vector.broadcast %499 : f32 to vector<8x32xf32>
    %501 = arith.mulf %490, %500 : vector<8x32xf32>
    %502 = arith.addf %458, %501 : vector<8x32xf32>
    %c58 = arith.constant 58 : index
    %503 = memref.load %arg6[%c58] : memref<128xf32, #tpu.memory_space<smem>>
    %504 = vector.broadcast %503 : f32 to vector<8x32xf32>
    %505 = arith.mulf %490, %504 : vector<8x32xf32>
    %506 = arith.addf %462, %505 : vector<8x32xf32>
    %c74 = arith.constant 74 : index
    %507 = memref.load %arg6[%c74] : memref<128xf32, #tpu.memory_space<smem>>
    %508 = vector.broadcast %507 : f32 to vector<8x32xf32>
    %509 = arith.mulf %490, %508 : vector<8x32xf32>
    %510 = arith.addf %466, %509 : vector<8x32xf32>
    %c90 = arith.constant 90 : index
    %511 = memref.load %arg6[%c90] : memref<128xf32, #tpu.memory_space<smem>>
    %512 = vector.broadcast %511 : f32 to vector<8x32xf32>
    %513 = arith.mulf %490, %512 : vector<8x32xf32>
    %514 = arith.addf %470, %513 : vector<8x32xf32>
    %c106 = arith.constant 106 : index
    %515 = memref.load %arg6[%c106] : memref<128xf32, #tpu.memory_space<smem>>
    %516 = vector.broadcast %515 : f32 to vector<8x32xf32>
    %517 = arith.mulf %490, %516 : vector<8x32xf32>
    %518 = arith.addf %474, %517 : vector<8x32xf32>
    %c122 = arith.constant 122 : index
    %519 = memref.load %arg6[%c122] : memref<128xf32, #tpu.memory_space<smem>>
    %520 = vector.broadcast %519 : f32 to vector<8x32xf32>
    %521 = arith.mulf %490, %520 : vector<8x32xf32>
    %522 = arith.addf %478, %521 : vector<8x32xf32>
    %c11 = arith.constant 11 : index
    %523 = memref.load %arg4[%c11] : memref<16xf32, #tpu.memory_space<smem>>
    %524 = vector.broadcast %523 : f32 to vector<8x32xf32>
    %525 = arith.mulf %30, %524 : vector<8x32xf32>
    %c11_46 = arith.constant 11 : index
    %526 = memref.load %arg5[%c11_46] : memref<16xf32, #tpu.memory_space<smem>>
    %527 = vector.broadcast %526 : f32 to vector<8x32xf32>
    %528 = arith.addf %525, %527 : vector<8x32xf32>
    %529 = arith.negf %528 : vector<8x32xf32>
    %530 = math.exp %529 : vector<8x32xf32>
    %cst_47 = arith.constant 1.000000e+00 : f32
    %531 = vector.broadcast %cst_47 : f32 to vector<8x32xf32>
    %532 = arith.addf %531, %530 : vector<8x32xf32>
    %533 = arith.divf %531, %532 : vector<8x32xf32>
    %534 = arith.mulf %528, %533 : vector<8x32xf32>
    %c11_48 = arith.constant 11 : index
    %535 = memref.load %arg6[%c11_48] : memref<128xf32, #tpu.memory_space<smem>>
    %536 = vector.broadcast %535 : f32 to vector<8x32xf32>
    %537 = arith.mulf %534, %536 : vector<8x32xf32>
    %538 = arith.addf %494, %537 : vector<8x32xf32>
    %c27 = arith.constant 27 : index
    %539 = memref.load %arg6[%c27] : memref<128xf32, #tpu.memory_space<smem>>
    %540 = vector.broadcast %539 : f32 to vector<8x32xf32>
    %541 = arith.mulf %534, %540 : vector<8x32xf32>
    %542 = arith.addf %498, %541 : vector<8x32xf32>
    %c43 = arith.constant 43 : index
    %543 = memref.load %arg6[%c43] : memref<128xf32, #tpu.memory_space<smem>>
    %544 = vector.broadcast %543 : f32 to vector<8x32xf32>
    %545 = arith.mulf %534, %544 : vector<8x32xf32>
    %546 = arith.addf %502, %545 : vector<8x32xf32>
    %c59 = arith.constant 59 : index
    %547 = memref.load %arg6[%c59] : memref<128xf32, #tpu.memory_space<smem>>
    %548 = vector.broadcast %547 : f32 to vector<8x32xf32>
    %549 = arith.mulf %534, %548 : vector<8x32xf32>
    %550 = arith.addf %506, %549 : vector<8x32xf32>
    %c75 = arith.constant 75 : index
    %551 = memref.load %arg6[%c75] : memref<128xf32, #tpu.memory_space<smem>>
    %552 = vector.broadcast %551 : f32 to vector<8x32xf32>
    %553 = arith.mulf %534, %552 : vector<8x32xf32>
    %554 = arith.addf %510, %553 : vector<8x32xf32>
    %c91 = arith.constant 91 : index
    %555 = memref.load %arg6[%c91] : memref<128xf32, #tpu.memory_space<smem>>
    %556 = vector.broadcast %555 : f32 to vector<8x32xf32>
    %557 = arith.mulf %534, %556 : vector<8x32xf32>
    %558 = arith.addf %514, %557 : vector<8x32xf32>
    %c107 = arith.constant 107 : index
    %559 = memref.load %arg6[%c107] : memref<128xf32, #tpu.memory_space<smem>>
    %560 = vector.broadcast %559 : f32 to vector<8x32xf32>
    %561 = arith.mulf %534, %560 : vector<8x32xf32>
    %562 = arith.addf %518, %561 : vector<8x32xf32>
    %c123 = arith.constant 123 : index
    %563 = memref.load %arg6[%c123] : memref<128xf32, #tpu.memory_space<smem>>
    %564 = vector.broadcast %563 : f32 to vector<8x32xf32>
    %565 = arith.mulf %534, %564 : vector<8x32xf32>
    %566 = arith.addf %522, %565 : vector<8x32xf32>
    %c12 = arith.constant 12 : index
    %567 = memref.load %arg4[%c12] : memref<16xf32, #tpu.memory_space<smem>>
    %568 = vector.broadcast %567 : f32 to vector<8x32xf32>
    %569 = arith.mulf %30, %568 : vector<8x32xf32>
    %c12_49 = arith.constant 12 : index
    %570 = memref.load %arg5[%c12_49] : memref<16xf32, #tpu.memory_space<smem>>
    %571 = vector.broadcast %570 : f32 to vector<8x32xf32>
    %572 = arith.addf %569, %571 : vector<8x32xf32>
    %573 = arith.negf %572 : vector<8x32xf32>
    %574 = math.exp %573 : vector<8x32xf32>
    %cst_50 = arith.constant 1.000000e+00 : f32
    %575 = vector.broadcast %cst_50 : f32 to vector<8x32xf32>
    %576 = arith.addf %575, %574 : vector<8x32xf32>
    %577 = arith.divf %575, %576 : vector<8x32xf32>
    %578 = arith.mulf %572, %577 : vector<8x32xf32>
    %c12_51 = arith.constant 12 : index
    %579 = memref.load %arg6[%c12_51] : memref<128xf32, #tpu.memory_space<smem>>
    %580 = vector.broadcast %579 : f32 to vector<8x32xf32>
    %581 = arith.mulf %578, %580 : vector<8x32xf32>
    %582 = arith.addf %538, %581 : vector<8x32xf32>
    %c28 = arith.constant 28 : index
    %583 = memref.load %arg6[%c28] : memref<128xf32, #tpu.memory_space<smem>>
    %584 = vector.broadcast %583 : f32 to vector<8x32xf32>
    %585 = arith.mulf %578, %584 : vector<8x32xf32>
    %586 = arith.addf %542, %585 : vector<8x32xf32>
    %c44 = arith.constant 44 : index
    %587 = memref.load %arg6[%c44] : memref<128xf32, #tpu.memory_space<smem>>
    %588 = vector.broadcast %587 : f32 to vector<8x32xf32>
    %589 = arith.mulf %578, %588 : vector<8x32xf32>
    %590 = arith.addf %546, %589 : vector<8x32xf32>
    %c60 = arith.constant 60 : index
    %591 = memref.load %arg6[%c60] : memref<128xf32, #tpu.memory_space<smem>>
    %592 = vector.broadcast %591 : f32 to vector<8x32xf32>
    %593 = arith.mulf %578, %592 : vector<8x32xf32>
    %594 = arith.addf %550, %593 : vector<8x32xf32>
    %c76 = arith.constant 76 : index
    %595 = memref.load %arg6[%c76] : memref<128xf32, #tpu.memory_space<smem>>
    %596 = vector.broadcast %595 : f32 to vector<8x32xf32>
    %597 = arith.mulf %578, %596 : vector<8x32xf32>
    %598 = arith.addf %554, %597 : vector<8x32xf32>
    %c92 = arith.constant 92 : index
    %599 = memref.load %arg6[%c92] : memref<128xf32, #tpu.memory_space<smem>>
    %600 = vector.broadcast %599 : f32 to vector<8x32xf32>
    %601 = arith.mulf %578, %600 : vector<8x32xf32>
    %602 = arith.addf %558, %601 : vector<8x32xf32>
    %c108 = arith.constant 108 : index
    %603 = memref.load %arg6[%c108] : memref<128xf32, #tpu.memory_space<smem>>
    %604 = vector.broadcast %603 : f32 to vector<8x32xf32>
    %605 = arith.mulf %578, %604 : vector<8x32xf32>
    %606 = arith.addf %562, %605 : vector<8x32xf32>
    %c124 = arith.constant 124 : index
    %607 = memref.load %arg6[%c124] : memref<128xf32, #tpu.memory_space<smem>>
    %608 = vector.broadcast %607 : f32 to vector<8x32xf32>
    %609 = arith.mulf %578, %608 : vector<8x32xf32>
    %610 = arith.addf %566, %609 : vector<8x32xf32>
    %c13 = arith.constant 13 : index
    %611 = memref.load %arg4[%c13] : memref<16xf32, #tpu.memory_space<smem>>
    %612 = vector.broadcast %611 : f32 to vector<8x32xf32>
    %613 = arith.mulf %30, %612 : vector<8x32xf32>
    %c13_52 = arith.constant 13 : index
    %614 = memref.load %arg5[%c13_52] : memref<16xf32, #tpu.memory_space<smem>>
    %615 = vector.broadcast %614 : f32 to vector<8x32xf32>
    %616 = arith.addf %613, %615 : vector<8x32xf32>
    %617 = arith.negf %616 : vector<8x32xf32>
    %618 = math.exp %617 : vector<8x32xf32>
    %cst_53 = arith.constant 1.000000e+00 : f32
    %619 = vector.broadcast %cst_53 : f32 to vector<8x32xf32>
    %620 = arith.addf %619, %618 : vector<8x32xf32>
    %621 = arith.divf %619, %620 : vector<8x32xf32>
    %622 = arith.mulf %616, %621 : vector<8x32xf32>
    %c13_54 = arith.constant 13 : index
    %623 = memref.load %arg6[%c13_54] : memref<128xf32, #tpu.memory_space<smem>>
    %624 = vector.broadcast %623 : f32 to vector<8x32xf32>
    %625 = arith.mulf %622, %624 : vector<8x32xf32>
    %626 = arith.addf %582, %625 : vector<8x32xf32>
    %c29 = arith.constant 29 : index
    %627 = memref.load %arg6[%c29] : memref<128xf32, #tpu.memory_space<smem>>
    %628 = vector.broadcast %627 : f32 to vector<8x32xf32>
    %629 = arith.mulf %622, %628 : vector<8x32xf32>
    %630 = arith.addf %586, %629 : vector<8x32xf32>
    %c45 = arith.constant 45 : index
    %631 = memref.load %arg6[%c45] : memref<128xf32, #tpu.memory_space<smem>>
    %632 = vector.broadcast %631 : f32 to vector<8x32xf32>
    %633 = arith.mulf %622, %632 : vector<8x32xf32>
    %634 = arith.addf %590, %633 : vector<8x32xf32>
    %c61 = arith.constant 61 : index
    %635 = memref.load %arg6[%c61] : memref<128xf32, #tpu.memory_space<smem>>
    %636 = vector.broadcast %635 : f32 to vector<8x32xf32>
    %637 = arith.mulf %622, %636 : vector<8x32xf32>
    %638 = arith.addf %594, %637 : vector<8x32xf32>
    %c77 = arith.constant 77 : index
    %639 = memref.load %arg6[%c77] : memref<128xf32, #tpu.memory_space<smem>>
    %640 = vector.broadcast %639 : f32 to vector<8x32xf32>
    %641 = arith.mulf %622, %640 : vector<8x32xf32>
    %642 = arith.addf %598, %641 : vector<8x32xf32>
    %c93 = arith.constant 93 : index
    %643 = memref.load %arg6[%c93] : memref<128xf32, #tpu.memory_space<smem>>
    %644 = vector.broadcast %643 : f32 to vector<8x32xf32>
    %645 = arith.mulf %622, %644 : vector<8x32xf32>
    %646 = arith.addf %602, %645 : vector<8x32xf32>
    %c109 = arith.constant 109 : index
    %647 = memref.load %arg6[%c109] : memref<128xf32, #tpu.memory_space<smem>>
    %648 = vector.broadcast %647 : f32 to vector<8x32xf32>
    %649 = arith.mulf %622, %648 : vector<8x32xf32>
    %650 = arith.addf %606, %649 : vector<8x32xf32>
    %c125 = arith.constant 125 : index
    %651 = memref.load %arg6[%c125] : memref<128xf32, #tpu.memory_space<smem>>
    %652 = vector.broadcast %651 : f32 to vector<8x32xf32>
    %653 = arith.mulf %622, %652 : vector<8x32xf32>
    %654 = arith.addf %610, %653 : vector<8x32xf32>
    %c14 = arith.constant 14 : index
    %655 = memref.load %arg4[%c14] : memref<16xf32, #tpu.memory_space<smem>>
    %656 = vector.broadcast %655 : f32 to vector<8x32xf32>
    %657 = arith.mulf %30, %656 : vector<8x32xf32>
    %c14_55 = arith.constant 14 : index
    %658 = memref.load %arg5[%c14_55] : memref<16xf32, #tpu.memory_space<smem>>
    %659 = vector.broadcast %658 : f32 to vector<8x32xf32>
    %660 = arith.addf %657, %659 : vector<8x32xf32>
    %661 = arith.negf %660 : vector<8x32xf32>
    %662 = math.exp %661 : vector<8x32xf32>
    %cst_56 = arith.constant 1.000000e+00 : f32
    %663 = vector.broadcast %cst_56 : f32 to vector<8x32xf32>
    %664 = arith.addf %663, %662 : vector<8x32xf32>
    %665 = arith.divf %663, %664 : vector<8x32xf32>
    %666 = arith.mulf %660, %665 : vector<8x32xf32>
    %c14_57 = arith.constant 14 : index
    %667 = memref.load %arg6[%c14_57] : memref<128xf32, #tpu.memory_space<smem>>
    %668 = vector.broadcast %667 : f32 to vector<8x32xf32>
    %669 = arith.mulf %666, %668 : vector<8x32xf32>
    %670 = arith.addf %626, %669 : vector<8x32xf32>
    %c30 = arith.constant 30 : index
    %671 = memref.load %arg6[%c30] : memref<128xf32, #tpu.memory_space<smem>>
    %672 = vector.broadcast %671 : f32 to vector<8x32xf32>
    %673 = arith.mulf %666, %672 : vector<8x32xf32>
    %674 = arith.addf %630, %673 : vector<8x32xf32>
    %c46 = arith.constant 46 : index
    %675 = memref.load %arg6[%c46] : memref<128xf32, #tpu.memory_space<smem>>
    %676 = vector.broadcast %675 : f32 to vector<8x32xf32>
    %677 = arith.mulf %666, %676 : vector<8x32xf32>
    %678 = arith.addf %634, %677 : vector<8x32xf32>
    %c62 = arith.constant 62 : index
    %679 = memref.load %arg6[%c62] : memref<128xf32, #tpu.memory_space<smem>>
    %680 = vector.broadcast %679 : f32 to vector<8x32xf32>
    %681 = arith.mulf %666, %680 : vector<8x32xf32>
    %682 = arith.addf %638, %681 : vector<8x32xf32>
    %c78 = arith.constant 78 : index
    %683 = memref.load %arg6[%c78] : memref<128xf32, #tpu.memory_space<smem>>
    %684 = vector.broadcast %683 : f32 to vector<8x32xf32>
    %685 = arith.mulf %666, %684 : vector<8x32xf32>
    %686 = arith.addf %642, %685 : vector<8x32xf32>
    %c94 = arith.constant 94 : index
    %687 = memref.load %arg6[%c94] : memref<128xf32, #tpu.memory_space<smem>>
    %688 = vector.broadcast %687 : f32 to vector<8x32xf32>
    %689 = arith.mulf %666, %688 : vector<8x32xf32>
    %690 = arith.addf %646, %689 : vector<8x32xf32>
    %c110 = arith.constant 110 : index
    %691 = memref.load %arg6[%c110] : memref<128xf32, #tpu.memory_space<smem>>
    %692 = vector.broadcast %691 : f32 to vector<8x32xf32>
    %693 = arith.mulf %666, %692 : vector<8x32xf32>
    %694 = arith.addf %650, %693 : vector<8x32xf32>
    %c126 = arith.constant 126 : index
    %695 = memref.load %arg6[%c126] : memref<128xf32, #tpu.memory_space<smem>>
    %696 = vector.broadcast %695 : f32 to vector<8x32xf32>
    %697 = arith.mulf %666, %696 : vector<8x32xf32>
    %698 = arith.addf %654, %697 : vector<8x32xf32>
    %c15 = arith.constant 15 : index
    %699 = memref.load %arg4[%c15] : memref<16xf32, #tpu.memory_space<smem>>
    %700 = vector.broadcast %699 : f32 to vector<8x32xf32>
    %701 = arith.mulf %30, %700 : vector<8x32xf32>
    %c15_58 = arith.constant 15 : index
    %702 = memref.load %arg5[%c15_58] : memref<16xf32, #tpu.memory_space<smem>>
    %703 = vector.broadcast %702 : f32 to vector<8x32xf32>
    %704 = arith.addf %701, %703 : vector<8x32xf32>
    %705 = arith.negf %704 : vector<8x32xf32>
    %706 = math.exp %705 : vector<8x32xf32>
    %cst_59 = arith.constant 1.000000e+00 : f32
    %707 = vector.broadcast %cst_59 : f32 to vector<8x32xf32>
    %708 = arith.addf %707, %706 : vector<8x32xf32>
    %709 = arith.divf %707, %708 : vector<8x32xf32>
    %710 = arith.mulf %704, %709 : vector<8x32xf32>
    %c15_60 = arith.constant 15 : index
    %711 = memref.load %arg6[%c15_60] : memref<128xf32, #tpu.memory_space<smem>>
    %712 = vector.broadcast %711 : f32 to vector<8x32xf32>
    %713 = arith.mulf %710, %712 : vector<8x32xf32>
    %714 = arith.addf %670, %713 : vector<8x32xf32>
    %c31 = arith.constant 31 : index
    %715 = memref.load %arg6[%c31] : memref<128xf32, #tpu.memory_space<smem>>
    %716 = vector.broadcast %715 : f32 to vector<8x32xf32>
    %717 = arith.mulf %710, %716 : vector<8x32xf32>
    %718 = arith.addf %674, %717 : vector<8x32xf32>
    %c47 = arith.constant 47 : index
    %719 = memref.load %arg6[%c47] : memref<128xf32, #tpu.memory_space<smem>>
    %720 = vector.broadcast %719 : f32 to vector<8x32xf32>
    %721 = arith.mulf %710, %720 : vector<8x32xf32>
    %722 = arith.addf %678, %721 : vector<8x32xf32>
    %c63 = arith.constant 63 : index
    %723 = memref.load %arg6[%c63] : memref<128xf32, #tpu.memory_space<smem>>
    %724 = vector.broadcast %723 : f32 to vector<8x32xf32>
    %725 = arith.mulf %710, %724 : vector<8x32xf32>
    %726 = arith.addf %682, %725 : vector<8x32xf32>
    %c79 = arith.constant 79 : index
    %727 = memref.load %arg6[%c79] : memref<128xf32, #tpu.memory_space<smem>>
    %728 = vector.broadcast %727 : f32 to vector<8x32xf32>
    %729 = arith.mulf %710, %728 : vector<8x32xf32>
    %730 = arith.addf %686, %729 : vector<8x32xf32>
    %c95 = arith.constant 95 : index
    %731 = memref.load %arg6[%c95] : memref<128xf32, #tpu.memory_space<smem>>
    %732 = vector.broadcast %731 : f32 to vector<8x32xf32>
    %733 = arith.mulf %710, %732 : vector<8x32xf32>
    %734 = arith.addf %690, %733 : vector<8x32xf32>
    %c111 = arith.constant 111 : index
    %735 = memref.load %arg6[%c111] : memref<128xf32, #tpu.memory_space<smem>>
    %736 = vector.broadcast %735 : f32 to vector<8x32xf32>
    %737 = arith.mulf %710, %736 : vector<8x32xf32>
    %738 = arith.addf %694, %737 : vector<8x32xf32>
    %c127 = arith.constant 127 : index
    %739 = memref.load %arg6[%c127] : memref<128xf32, #tpu.memory_space<smem>>
    %740 = vector.broadcast %739 : f32 to vector<8x32xf32>
    %741 = arith.mulf %710, %740 : vector<8x32xf32>
    %742 = arith.addf %698, %741 : vector<8x32xf32>
    %c0_61 = arith.constant 0 : index
    %743 = memref.load %arg7[%c0_61] : memref<8xf32, #tpu.memory_space<smem>>
    %744 = vector.broadcast %743 : f32 to vector<8x32xf32>
    %745 = arith.addf %714, %744 : vector<8x32xf32>
    %c1_62 = arith.constant 1 : index
    %746 = memref.load %arg7[%c1_62] : memref<8xf32, #tpu.memory_space<smem>>
    %747 = vector.broadcast %746 : f32 to vector<8x32xf32>
    %748 = arith.addf %718, %747 : vector<8x32xf32>
    %c2_63 = arith.constant 2 : index
    %749 = memref.load %arg7[%c2_63] : memref<8xf32, #tpu.memory_space<smem>>
    %750 = vector.broadcast %749 : f32 to vector<8x32xf32>
    %751 = arith.addf %722, %750 : vector<8x32xf32>
    %c3_64 = arith.constant 3 : index
    %752 = memref.load %arg7[%c3_64] : memref<8xf32, #tpu.memory_space<smem>>
    %753 = vector.broadcast %752 : f32 to vector<8x32xf32>
    %754 = arith.addf %726, %753 : vector<8x32xf32>
    %c4_65 = arith.constant 4 : index
    %755 = memref.load %arg7[%c4_65] : memref<8xf32, #tpu.memory_space<smem>>
    %756 = vector.broadcast %755 : f32 to vector<8x32xf32>
    %757 = arith.addf %730, %756 : vector<8x32xf32>
    %c5_66 = arith.constant 5 : index
    %758 = memref.load %arg7[%c5_66] : memref<8xf32, #tpu.memory_space<smem>>
    %759 = vector.broadcast %758 : f32 to vector<8x32xf32>
    %760 = arith.addf %734, %759 : vector<8x32xf32>
    %c6_67 = arith.constant 6 : index
    %761 = memref.load %arg7[%c6_67] : memref<8xf32, #tpu.memory_space<smem>>
    %762 = vector.broadcast %761 : f32 to vector<8x32xf32>
    %763 = arith.addf %738, %762 : vector<8x32xf32>
    %c7_68 = arith.constant 7 : index
    %764 = memref.load %arg7[%c7_68] : memref<8xf32, #tpu.memory_space<smem>>
    %765 = vector.broadcast %764 : f32 to vector<8x32xf32>
    %766 = arith.addf %742, %765 : vector<8x32xf32>
    %767 = arith.mulf %8, %745 : vector<8x32xf32>
    %768 = arith.mulf %8, %748 : vector<8x32xf32>
    %769 = arith.mulf %8, %751 : vector<8x32xf32>
    %770 = arith.mulf %8, %754 : vector<8x32xf32>
    %771 = arith.mulf %8, %757 : vector<8x32xf32>
    %772 = arith.mulf %8, %760 : vector<8x32xf32>
    %773 = arith.mulf %8, %763 : vector<8x32xf32>
    %774 = arith.mulf %8, %766 : vector<8x32xf32>
    %775 = arith.mulf %13, %745 : vector<8x32xf32>
    %776 = arith.mulf %13, %748 : vector<8x32xf32>
    %777 = arith.mulf %13, %751 : vector<8x32xf32>
    %778 = arith.mulf %13, %754 : vector<8x32xf32>
    %779 = arith.mulf %13, %757 : vector<8x32xf32>
    %780 = arith.mulf %13, %760 : vector<8x32xf32>
    %781 = arith.mulf %13, %763 : vector<8x32xf32>
    %782 = arith.mulf %13, %766 : vector<8x32xf32>
    %783 = arith.mulf %18, %745 : vector<8x32xf32>
    %784 = arith.mulf %18, %748 : vector<8x32xf32>
    %785 = arith.mulf %18, %751 : vector<8x32xf32>
    %786 = arith.mulf %18, %754 : vector<8x32xf32>
    %787 = arith.mulf %18, %757 : vector<8x32xf32>
    %788 = arith.mulf %18, %760 : vector<8x32xf32>
    %789 = arith.mulf %18, %763 : vector<8x32xf32>
    %790 = arith.mulf %18, %766 : vector<8x32xf32>
    %791 = arith.mulf %23, %745 : vector<8x32xf32>
    %792 = arith.mulf %23, %748 : vector<8x32xf32>
    %793 = arith.mulf %23, %751 : vector<8x32xf32>
    %794 = arith.mulf %23, %754 : vector<8x32xf32>
    %795 = arith.mulf %23, %757 : vector<8x32xf32>
    %796 = arith.mulf %23, %760 : vector<8x32xf32>
    %797 = arith.mulf %23, %763 : vector<8x32xf32>
    %798 = arith.mulf %23, %766 : vector<8x32xf32>
    %799 = vector.shape_cast %767 : vector<8x32xf32> to vector<8x32x1xf32>
    %800 = vector.shape_cast %768 : vector<8x32xf32> to vector<8x32x1xf32>
    %801 = vector.shape_cast %769 : vector<8x32xf32> to vector<8x32x1xf32>
    %802 = vector.shape_cast %770 : vector<8x32xf32> to vector<8x32x1xf32>
    %803 = vector.shape_cast %771 : vector<8x32xf32> to vector<8x32x1xf32>
    %804 = vector.shape_cast %772 : vector<8x32xf32> to vector<8x32x1xf32>
    %805 = vector.shape_cast %773 : vector<8x32xf32> to vector<8x32x1xf32>
    %806 = vector.shape_cast %774 : vector<8x32xf32> to vector<8x32x1xf32>
    %807 = vector.shape_cast %775 : vector<8x32xf32> to vector<8x32x1xf32>
    %808 = vector.shape_cast %776 : vector<8x32xf32> to vector<8x32x1xf32>
    %809 = vector.shape_cast %777 : vector<8x32xf32> to vector<8x32x1xf32>
    %810 = vector.shape_cast %778 : vector<8x32xf32> to vector<8x32x1xf32>
    %811 = vector.shape_cast %779 : vector<8x32xf32> to vector<8x32x1xf32>
    %812 = vector.shape_cast %780 : vector<8x32xf32> to vector<8x32x1xf32>
    %813 = vector.shape_cast %781 : vector<8x32xf32> to vector<8x32x1xf32>
    %814 = vector.shape_cast %782 : vector<8x32xf32> to vector<8x32x1xf32>
    %815 = vector.shape_cast %783 : vector<8x32xf32> to vector<8x32x1xf32>
    %816 = vector.shape_cast %784 : vector<8x32xf32> to vector<8x32x1xf32>
    %817 = vector.shape_cast %785 : vector<8x32xf32> to vector<8x32x1xf32>
    %818 = vector.shape_cast %786 : vector<8x32xf32> to vector<8x32x1xf32>
    %819 = vector.shape_cast %787 : vector<8x32xf32> to vector<8x32x1xf32>
    %820 = vector.shape_cast %788 : vector<8x32xf32> to vector<8x32x1xf32>
    %821 = vector.shape_cast %789 : vector<8x32xf32> to vector<8x32x1xf32>
    %822 = vector.shape_cast %790 : vector<8x32xf32> to vector<8x32x1xf32>
    %823 = vector.shape_cast %791 : vector<8x32xf32> to vector<8x32x1xf32>
    %824 = vector.shape_cast %792 : vector<8x32xf32> to vector<8x32x1xf32>
    %825 = vector.shape_cast %793 : vector<8x32xf32> to vector<8x32x1xf32>
    %826 = vector.shape_cast %794 : vector<8x32xf32> to vector<8x32x1xf32>
    %827 = vector.shape_cast %795 : vector<8x32xf32> to vector<8x32x1xf32>
    %828 = vector.shape_cast %796 : vector<8x32xf32> to vector<8x32x1xf32>
    %829 = vector.shape_cast %797 : vector<8x32xf32> to vector<8x32x1xf32>
    %830 = vector.shape_cast %798 : vector<8x32xf32> to vector<8x32x1xf32>
    %831 = tpu.concatenate %799, %800, %801, %802, %803, %804, %805, %806, %807, %808, %809, %810, %811, %812, %813, %814 in 2 : vector<8x32x1xf32>, vector<8x32x1xf32>, vector<8x32x1xf32>, vector<8x32x1xf32>, vector<8x32x1xf32>, vector<8x32x1xf32>, vector<8x32x1xf32>, vector<8x32x1xf32>, vector<8x32x1xf32>, vector<8x32x1xf32>, vector<8x32x1xf32>, vector<8x32x1xf32>, vector<8x32x1xf32>, vector<8x32x1xf32>, vector<8x32x1xf32>, vector<8x32x1xf32> -> vector<8x32x16xf32>
    %832 = tpu.concatenate %815, %816, %817, %818, %819, %820, %821, %822, %823, %824, %825, %826, %827, %828, %829, %830 in 2 : vector<8x32x1xf32>, vector<8x32x1xf32>, vector<8x32x1xf32>, vector<8x32x1xf32>, vector<8x32x1xf32>, vector<8x32x1xf32>, vector<8x32x1xf32>, vector<8x32x1xf32>, vector<8x32x1xf32>, vector<8x32x1xf32>, vector<8x32x1xf32>, vector<8x32x1xf32>, vector<8x32x1xf32>, vector<8x32x1xf32>, vector<8x32x1xf32>, vector<8x32x1xf32> -> vector<8x32x16xf32>
    %833 = tpu.concatenate %831, %832 in 2 : vector<8x32x16xf32>, vector<8x32x16xf32> -> vector<8x32x32xf32>
    %834 = vector.shape_cast %833 : vector<8x32x32xf32> to vector<8x1024xf32>
    %c0_69 = arith.constant 0 : index
    %c0_70 = arith.constant 0 : index
    %c0_71 = arith.constant 0 : index
    %835 = vector.load %arg8[%c0_69, %c0_70, %c0_71] : memref<1x8x1024xf32, #tpu.memory_space<vmem>>, vector<1x8x1024xf32>
    %836 = vector.shape_cast %835 : vector<1x8x1024xf32> to vector<8x1024xf32>
    %837 = vector.shape_cast %834 : vector<8x1024xf32> to vector<1x8x1024xf32>
    tpu.vector_store %arg8[%c0_69, %c0_70, %c0_71], %837 {strides = array<i32>} : memref<1x8x1024xf32, #tpu.memory_space<vmem>>, vector<1x8x1024xf32>,
    return
  }
  func.func @transform_0(%arg0: i32, %arg1: i32) -> (i32, i32, i32) {
    %c0_i32 = arith.constant 0 : i32
    %c0_i32_0 = arith.constant 0 : i32
    return %arg0, %arg1, %c0_i32 : i32, i32, i32
  }
  func.func @transform_1(%arg0: i32, %arg1: i32) -> (i32, i32, i32) {
    %c0_i32 = arith.constant 0 : i32
    %c0_i32_0 = arith.constant 0 : i32
    %c0_i32_1 = arith.constant 0 : i32
    return %arg0, %c0_i32, %c0_i32_0 : i32, i32, i32
  }
  func.func @transform_2(%arg0: i32, %arg1: i32) -> i32 {
    %c0_i32 = arith.constant 0 : i32
    %c0_i32_0 = arith.constant 0 : i32
    return %c0_i32 : i32
  }
  func.func @transform_3(%arg0: i32, %arg1: i32) -> i32 {
    %c0_i32 = arith.constant 0 : i32
    %c0_i32_0 = arith.constant 0 : i32
    return %c0_i32 : i32
  }
  func.func @transform_4(%arg0: i32, %arg1: i32) -> i32 {
    %c0_i32 = arith.constant 0 : i32
    %c0_i32_0 = arith.constant 0 : i32
    return %c0_i32 : i32
  }
  func.func @transform_5(%arg0: i32, %arg1: i32) -> i32 {
    %c0_i32 = arith.constant 0 : i32
    %c0_i32_0 = arith.constant 0 : i32
    return %c0_i32 : i32
  }
  func.func @transform_6(%arg0: i32, %arg1: i32) -> (i32, i32, i32) {
    %c0_i32 = arith.constant 0 : i32
    %c0_i32_0 = arith.constant 0 : i32
    return %arg0, %arg1, %c0_i32 : i32, i32, i32
  }
}

</mosaic_0001>

<llo_original>
// kernel: tpu_custom_call.1
$region0: #{tpu_custom_call.1}
  #allocation0 [shape = 'u32[]', space=smem, size = 0x4, offset = 0x4, fixed_abs, tag = 'smem constant byte address 0x4 - core index']
  #allocation1 [shape = 'u32[144,128]{1,0:T(1,128)}', space=vmem, size = 0x12000, scoped, tag = 'internal scratch']
  %s0 = inlined_call_operand.vmem [shape: f32[2,32,4], index: 0, kind: input, shape index: {}]
  %s1 = inlined_call_operand.vmem [shape: f32[2,4,32], index: 1, kind: input, shape index: {}]
  %s2 = inlined_call_operand.vmem [shape: f32[16], index: 2, kind: input, shape index: {}]
  %s3 = inlined_call_operand.vmem [shape: f32[16], index: 3, kind: input, shape index: {}]
  %s4 = inlined_call_operand.vmem [shape: f32[128], index: 4, kind: input, shape index: {}]
  %s5 = inlined_call_operand.vmem [shape: f32[8], index: 5, kind: input, shape index: {}]
  %s6 = inlined_call_operand.hbm [shape: f32[2,32,1024], index: 6, kind: output, shape index: {}]
  %s7 = sld [smem:[#allocation0]]
  $region73: #{tpu_custom_call.1} parent=0
    _
  %s9 = ssub.s32 1, %s7
  %s10 = scalar_select 0, %s9, %s7
  $region1: #{tpu_custom_call.1} parent=0
    #allocation2 [shape = 'u8[512]{0}', space=smem, size = 0x200, scoped, tag = 'input window, operand 2, single buffered']
    #allocation3 [shape = 's32[2]{0}', space=sflag, size = 0x8, scoped, tag = 'scoped memory for tpu_custom_call.1']
    #allocation4 [shape = 's32[2]{0}', space=sflag, size = 0x8, scoped, tag = 'scoped memory for tpu_custom_call.1']
    #allocation5 [shape = 'u8[512]{0}', space=smem, size = 0x200, scoped, tag = 'input window, operand 3, single buffered']
    #allocation6 [shape = 's32[1]{0}', space=sflag, size = 0x4, scoped, tag = 'scoped memory for tpu_custom_call.1']
    #allocation7 [shape = 'u8[512]{0}', space=smem, size = 0x200, scoped, tag = 'input window, operand 4, single buffered']
    #allocation8 [shape = 'u8[512]{0}', space=smem, size = 0x200, scoped, tag = 'input window, operand 5, single buffered']
    #allocation9 [shape = 's32[1]{0}', space=sflag, size = 0x4, scoped, tag = 'scoped memory for tpu_custom_call.1']
    #allocation10 [shape = 'u8[65536]{0}', space=vmem, size = 0x10000, scoped, tag = 'output window, operand 0']
    %11 = vsyncpa [#allocation4], 0
    %12 = vsyncpa [#allocation6], 0
    %13 = vsyncpa [#allocation9], 0
    %14 = vsyncpa [#allocation3], 0
    %s15 = scalar_lea.sflag [#allocation3], 1
    %16 = vsyncpa %s15, 0
    loop: start=0, step=1, limit=10
    $region2: #{tpu_custom_call.1} parent=1 // loop_pre_header
      _
    $region3: #{tpu_custom_call.1} parent=1 // loop_header
      %s18 = sphi 0, %s22
      %p19 = scmp.ge.s32.totalorder %s18, 10
      %s25 = sphi 0, %s37
      %s26 = sphi 0, %s33
      %s27 = sphi 0, %s25
      %s28 = sphi 0, %s26
      %s29 = sphi 0, %s27
      %s30 = sphi 0, %s28
      %s42 = sphi 0, %s44
      %s45 = sphi 0, %s42
      %s46 = sphi 0, %s45
      %s62 = sphi 0, %s46
      %s68 = sphi 0, %s70
      %s71 = sphi 0, %s68
      %s72 = sphi 0, %s71
      %s88 = sphi 0, %s72
      %s92 = sphi 0, %s92
      %s94 = sphi 0, %s92
      %s95 = sphi 0, %s94
      %s109 = sphi 0, %s95
      %s113 = sphi 0, %s113
      %s115 = sphi 0, %s113
      %s116 = sphi 0, %s115
      %s130 = sphi 0, %s116
      %s134 = sphi 0, %s134
      %s136 = sphi 0, %s134
      %s137 = sphi 0, %s136
      %s151 = sphi 0, %s137
      %s155 = sphi 0, %s155
      %s157 = sphi 0, %s155
      %s158 = sphi 0, %s157
      %s172 = sphi 0, %s158
      %s180 = sphi 0, %s182
      %s183 = sphi 0, %s180
      %s184 = sphi 0, %s183
      %s200 = sphi 0, %s184
    $region4: #{tpu_custom_call.1} parent=1 // loop_header_branch
      %21 = sbr.rel (%p19) target = $region8
    $region5: #{tpu_custom_call.1} parent=1 // loop_body
      %s23 = ssub.s32 %s18, 1
      %s24 = ssub.s32 %s18, 2
      %s31 = sadd.s32 1, %s26
      %p32 = scmp.ge.s32.totalorder %s31, 4
      %s33 = scalar_select %p32, 0, %s31
      %s34 = sadd.s32 1, %s25
      %s35 = scalar_select %p32, %s34, %s25
      %p36 = scmp.ge.s32.totalorder %s35, 2
      %s37 = scalar_select %p36, 0, %s35
      %s38 = ssub.s32 %s25, %s37
      %s39 = ssub.s32 %s26, %s33
      %s40 = sor.u32 %s38, %s39
      %p41 = scmp.eq.s32.totalorder %s40, 0
      %s43 = sadd.s32 %s42, 1
      %s44 = scalar_select %p41, %s42, %s43
      %p47 = pneg %p41
      %p48 = scmp.eq.s32.totalorder %s18, 7
      %p49 = por %p47, %p48
      %p50 = scmp.ne.s32.totalorder %s42, %s45
      %p51 = scmp.eq.s32.totalorder %s18, 0
      %p52 = por %p50, %p51
      %p53 = scmp.ne.s32.totalorder %s42, %s45
      %p54 = scmp.eq.s32.totalorder %s23, 7
      %p55 = por %p53, %p54
      %p56 = scmp.ne.s32.totalorder %s45, %s46
      %p57 = scmp.eq.s32.totalorder %s23, 0
      %p58 = por %p56, %p57
      %p59 = scmp.ne.s32.totalorder %s45, %s46
      %p60 = scmp.eq.s32.totalorder %s24, 7
      %p61 = por %p59, %p60
      %p63 = scmp.ne.s32.totalorder %s46, %s62
      %p64 = scmp.eq.s32.totalorder %s24, 0
      %p65 = por %p63, %p64
      %s66 = ssub.s32 %s25, %s37
      %p67 = scmp.eq.s32.totalorder %s66, 0
      %s69 = sadd.s32 %s68, 1
      %s70 = scalar_select %p67, %s68, %s69
      %p73 = pneg %p67
      %p74 = scmp.eq.s32.totalorder %s18, 7
      %p75 = por %p73, %p74
      %p76 = scmp.ne.s32.totalorder %s68, %s71
      %p77 = scmp.eq.s32.totalorder %s18, 0
      %p78 = por %p76, %p77
      %p79 = scmp.ne.s32.totalorder %s68, %s71
      %p80 = scmp.eq.s32.totalorder %s23, 7
      %p81 = por %p79, %p80
      %p82 = scmp.ne.s32.totalorder %s71, %s72
      %p83 = scmp.eq.s32.totalorder %s23, 0
      %p84 = por %p82, %p83
      %p85 = scmp.ne.s32.totalorder %s71, %s72
      %p86 = scmp.eq.s32.totalorder %s24, 7
      %p87 = por %p85, %p86
      %p89 = scmp.ne.s32.totalorder %s72, %s88
      %p90 = scmp.eq.s32.totalorder %s24, 0
      %p91 = por %p89, %p90
      %s93 = sadd.s32 %s92, 1
      %p96 = scmp.eq.s32.totalorder %s18, 7
      %p97 = scmp.ne.s32.totalorder %s92, %s94
      %p98 = scmp.eq.s32.totalorder %s18, 0
      %p99 = por %p97, %p98
      %p100 = scmp.ne.s32.totalorder %s92, %s94
      %p101 = scmp.eq.s32.totalorder %s23, 7
      %p102 = por %p100, %p101
      %p103 = scmp.ne.s32.totalorder %s94, %s95
      %p104 = scmp.eq.s32.totalorder %s23, 0
      %p105 = por %p103, %p104
      %p106 = scmp.ne.s32.totalorder %s94, %s95
      %p107 = scmp.eq.s32.totalorder %s24, 7
      %p108 = por %p106, %p107
      %p110 = scmp.ne.s32.totalorder %s95, %s109
      %p111 = scmp.eq.s32.totalorder %s24, 0
      %p112 = por %p110, %p111
      %s114 = sadd.s32 %s113, 1
      %p117 = scmp.eq.s32.totalorder %s18, 7
      %p118 = scmp.ne.s32.totalorder %s113, %s115
      %p119 = scmp.eq.s32.totalorder %s18, 0
      %p120 = por %p118, %p119
      %p121 = scmp.ne.s32.totalorder %s113, %s115
      %p122 = scmp.eq.s32.totalorder %s23, 7
      %p123 = por %p121, %p122
      %p124 = scmp.ne.s32.totalorder %s115, %s116
      %p125 = scmp.eq.s32.totalorder %s23, 0
      %p126 = por %p124, %p125
      %p127 = scmp.ne.s32.totalorder %s115, %s116
      %p128 = scmp.eq.s32.totalorder %s24, 7
      %p129 = por %p127, %p128
      %p131 = scmp.ne.s32.totalorder %s116, %s130
      %p132 = scmp.eq.s32.totalorder %s24, 0
      %p133 = por %p131, %p132
      %s135 = sadd.s32 %s134, 1
      %p138 = scmp.eq.s32.totalorder %s18, 7
      %p139 = scmp.ne.s32.totalorder %s134, %s136
      %p140 = scmp.eq.s32.totalorder %s18, 0
      %p141 = por %p139, %p140
      %p142 = scmp.ne.s32.totalorder %s134, %s136
      %p143 = scmp.eq.s32.totalorder %s23, 7
      %p144 = por %p142, %p143
      %p145 = scmp.ne.s32.totalorder %s136, %s137
      %p146 = scmp.eq.s32.totalorder %s23, 0
      %p147 = por %p145, %p146
      %p148 = scmp.ne.s32.totalorder %s136, %s137
      %p149 = scmp.eq.s32.totalorder %s24, 7
      %p150 = por %p148, %p149
      %p152 = scmp.ne.s32.totalorder %s137, %s151
      %p153 = scmp.eq.s32.totalorder %s24, 0
      %p154 = por %p152, %p153
      %s156 = sadd.s32 %s155, 1
      %p159 = scmp.eq.s32.totalorder %s18, 7
      %p160 = scmp.ne.s32.totalorder %s155, %s157
      %p161 = scmp.eq.s32.totalorder %s18, 0
      %p162 = por %p160, %p161
      %p163 = scmp.ne.s32.totalorder %s155, %s157
      %p164 = scmp.eq.s32.totalorder %s23, 7
      %p165 = por %p163, %p164
      %p166 = scmp.ne.s32.totalorder %s157, %s158
      %p167 = scmp.eq.s32.totalorder %s23, 0
      %p168 = por %p166, %p167
      %p169 = scmp.ne.s32.totalorder %s157, %s158
      %p170 = scmp.eq.s32.totalorder %s24, 7
      %p171 = por %p169, %p170
      %p173 = scmp.ne.s32.totalorder %s158, %s172
      %p174 = scmp.eq.s32.totalorder %s24, 0
      %p175 = por %p173, %p174
      %s176 = ssub.s32 %s25, %s37
      %s177 = ssub.s32 %s26, %s33
      %s178 = sor.u32 %s176, %s177
      %p179 = scmp.eq.s32.totalorder %s178, 0
      %s181 = sadd.s32 %s180, 1
      %s182 = scalar_select %p179, %s180, %s181
      %p185 = pneg %p179
      %p186 = scmp.eq.s32.totalorder %s18, 7
      %p187 = por %p185, %p186
      %p188 = scmp.ne.s32.totalorder %s180, %s183
      %p189 = scmp.eq.s32.totalorder %s18, 0
      %p190 = por %p188, %p189
      %p191 = scmp.ne.s32.totalorder %s180, %s183
      %p192 = scmp.eq.s32.totalorder %s23, 7
      %p193 = por %p191, %p192
      %p194 = scmp.ne.s32.totalorder %s183, %s184
      %p195 = scmp.eq.s32.totalorder %s23, 0
      %p196 = por %p194, %p195
      %p197 = scmp.ne.s32.totalorder %s183, %s184
      %p198 = scmp.eq.s32.totalorder %s24, 7
      %p199 = por %p197, %p198
      %p201 = scmp.ne.s32.totalorder %s184, %s200
      %p202 = scmp.eq.s32.totalorder %s24, 0
      %p203 = por %p201, %p202
      %p204 = scmp.le.s32.totalorder 1, %s18
      %p205 = scmp.lt.s32.totalorder %s18, 9
      %p206 = pnand %p204, %p205
      %p207 = pneg %p206
      // Predicated region
      $region9: #{tpu_custom_call.1} parent=5 // pred_check
        _
      $region10: #{tpu_custom_call.1} parent=5 // pred_check_branch
        %209 = sbr.rel (%p206) target = $region12
      $region11: #{tpu_custom_call.1} parent=5 // pred_region
        %s210 = ssub.s32 %s18, 1
        // Predicated region
        $region13: #{tpu_custom_call.1} parent=11 // pred_check
          %p211 = pneg %p105
        $region14: #{tpu_custom_call.1} parent=11 // pred_check_branch
          %213 = sbr.rel (%p211) target = $region16
        $region15: #{tpu_custom_call.1} parent=11 // pred_region
          %s215 = ssub.s32 16, 16
          %216 = vsyncadd [#allocation4], %s215
          %s218 = sshll.u32 %s2, 4
          %s219 = int_to_ptr.vmem [resolvable:$true] %s218
          %221 = dma.vmem_to_smem %s219, 16, [#allocation2], [#allocation4]
        $region16: #{tpu_custom_call.1} parent=11 // pred_fallthru
          _
        // Predicated region
        $region17: #{tpu_custom_call.1} parent=11 // pred_check
          %p222 = pneg %p126
        $region18: #{tpu_custom_call.1} parent=11 // pred_check_branch
          %224 = sbr.rel (%p222) target = $region20
        $region19: #{tpu_custom_call.1} parent=11 // pred_region
          %s226 = ssub.s32 16, 16
          %227 = vsyncadd [#allocation6], %s226
          %s229 = sshll.u32 %s3, 4
          %s230 = int_to_ptr.vmem [resolvable:$true] %s229
          %232 = dma.vmem_to_smem %s230, 16, [#allocation5], [#allocation6]
        $region20: #{tpu_custom_call.1} parent=11 // pred_fallthru
          _
        // Predicated region
        $region21: #{tpu_custom_call.1} parent=11 // pred_check
          %p233 = pneg %p147
        $region22: #{tpu_custom_call.1} parent=11 // pred_check_branch
          %235 = sbr.rel (%p233) target = $region24
        $region23: #{tpu_custom_call.1} parent=11 // pred_region
          %s237 = ssub.s32 16, 16
          %238 = vsyncadd [#allocation6], %s237
          %s240 = sshll.u32 %s4, 4
          %s241 = int_to_ptr.vmem [resolvable:$true] %s240
          %243 = dma.vmem_to_smem %s241, 16, [#allocation7], [#allocation6]
        $region24: #{tpu_custom_call.1} parent=11 // pred_fallthru
          _
        // Predicated region
        $region25: #{tpu_custom_call.1} parent=11 // pred_check
          %p244 = pneg %p168
        $region26: #{tpu_custom_call.1} parent=11 // pred_check_branch
          %246 = sbr.rel (%p244) target = $region28
        $region27: #{tpu_custom_call.1} parent=11 // pred_region
          %s248 = ssub.s32 16, 16
          %249 = vsyncadd [#allocation9], %s248
          %s251 = sshll.u32 %s5, 4
          %s252 = int_to_ptr.vmem [resolvable:$true] %s251
          %254 = dma.vmem_to_smem %s252, 16, [#allocation8], [#allocation9]
        $region28: #{tpu_custom_call.1} parent=11 // pred_fallthru
          _
      $region12: #{tpu_custom_call.1} parent=5 // pred_fallthru
        _
      %p255 = scmp.lt.s32.totalorder %s18, 8
      // Predicated region
      $region29: #{tpu_custom_call.1} parent=5 // pred_check
        %p256 = pneg %p255
      $region30: #{tpu_custom_call.1} parent=5 // pred_check_branch
        %258 = sbr.rel (%p256) target = $region32
      $region31: #{tpu_custom_call.1} parent=5 // pred_region
        // Predicated region
        $region33: #{tpu_custom_call.1} parent=31 // pred_check
          %p259 = pneg %p52
        $region34: #{tpu_custom_call.1} parent=31 // pred_check_branch
          %261 = sbr.rel (%p259) target = $region36
        $region35: #{tpu_custom_call.1} parent=31 // pred_region
          %p262 = scmp.lt.s32.totalorder %s25, 1
          %s263 = scalar_select %p262, %s25, 1
          %p264 = scmp.lt.s32.totalorder %s26, 3
          %s265 = scalar_select %p264, %s26, 3
          %s266 = smul.addr %s263, 4
          %s267 = sadd.s32 %s265, %s266
          %s268 = smul.addr %s267, 8
          %s269 = scalar_lea.vmem %s0, %s268
        $region36: #{tpu_custom_call.1} parent=31 // pred_fallthru
          _
        // Predicated region
        $region37: #{tpu_custom_call.1} parent=31 // pred_check
          %p270 = pneg %p78
        $region38: #{tpu_custom_call.1} parent=31 // pred_check_branch
          %272 = sbr.rel (%p270) target = $region40
        $region39: #{tpu_custom_call.1} parent=31 // pred_region
          %p273 = scmp.lt.s32.totalorder %s25, 1
          %s274 = scalar_select %p273, %s25, 1
          %s275 = smul.addr %s274, 4
          %s276 = scalar_lea.vmem %s1, %s275
        $region40: #{tpu_custom_call.1} parent=31 // pred_fallthru
          _
      $region32: #{tpu_custom_call.1} parent=5 // pred_fallthru
        _
      %p277 = scmp.le.s32.totalorder 1, %s18
      %p278 = scmp.lt.s32.totalorder %s18, 9
      %p279 = pnand %p277, %p278
      %p280 = pneg %p279
      // Predicated region
      $region41: #{tpu_custom_call.1} parent=5 // pred_check
        _
      $region42: #{tpu_custom_call.1} parent=5 // pred_check_branch
        %282 = sbr.rel (%p279) target = $region44
      $region43: #{tpu_custom_call.1} parent=5 // pred_region
        %s283 = ssub.s32 %s18, 1
        // Predicated region
        $region45: #{tpu_custom_call.1} parent=43 // pred_check
          %p284 = pneg %p105
        $region46: #{tpu_custom_call.1} parent=43 // pred_check_branch
          %286 = sbr.rel (%p284) target = $region48
        $region47: #{tpu_custom_call.1} parent=43 // pred_region
          %287 = dma.done [#allocation4], 16
        $region48: #{tpu_custom_call.1} parent=43 // pred_fallthru
          _
        // Predicated region
        $region49: #{tpu_custom_call.1} parent=43 // pred_check
          %p288 = pneg %p126
        $region50: #{tpu_custom_call.1} parent=43 // pred_check_branch
          %290 = sbr.rel (%p288) target = $region52
        $region51: #{tpu_custom_call.1} parent=43 // pred_region
          %291 = dma.done [#allocation6], 16
        $region52: #{tpu_custom_call.1} parent=43 // pred_fallthru
          _
        // Predicated region
        $region53: #{tpu_custom_call.1} parent=43 // pred_check
          %p292 = pneg %p147
        $region54: #{tpu_custom_call.1} parent=43 // pred_check_branch
          %294 = sbr.rel (%p292) target = $region56
        $region55: #{tpu_custom_call.1} parent=43 // pred_region
          %295 = dma.done [#allocation6], 16
        $region56: #{tpu_custom_call.1} parent=43 // pred_fallthru
          _
        // Predicated region
        $region57: #{tpu_custom_call.1} parent=43 // pred_check
          %p296 = pneg %p168
        $region58: #{tpu_custom_call.1} parent=43 // pred_check_branch
          %298 = sbr.rel (%p296) target = $region60
        $region59: #{tpu_custom_call.1} parent=43 // pred_region
          %299 = dma.done [#allocation9], 16
        $region60: #{tpu_custom_call.1} parent=43 // pred_fallthru
          _
        %300 = sfence
        %p301 = scmp.lt.s32.totalorder %s27, 1
        %s302 = scalar_select %p301, %s27, 1
        %p303 = scmp.lt.s32.totalorder %s28, 3
        %s304 = scalar_select %p303, %s28, 3
        %s305 = smul.addr %s302, 4
        %s306 = sadd.s32 %s304, %s305
        %s307 = smul.addr %s306, 8
        %s308 = scalar_lea.vmem %s0, %s307
        %p309 = pneg %p58
        %p310 = pneg %p55
        %p311 = scmp.lt.s32.totalorder %s27, 1
        %s312 = scalar_select %p311, %s27, 1
        %s313 = smul.addr %s312, 4
        %s314 = scalar_lea.vmem %s1, %s313
        %p315 = pneg %p84
        %p316 = pneg %p81
        %p317 = pneg %p105
        %p318 = pneg %p102
        %p319 = pneg %p126
        %p320 = pneg %p123
        %p321 = pneg %p147
        %p322 = pneg %p144
        %p323 = pneg %p168
        %p324 = pneg %p165
        %p325 = pneg %p196
        %p326 = pneg %p193
        %s327 = sand.u32 %s183, 1
        %s328 = scalar_lea.sflag [#allocation3], %s327
        %s329 = sand.u32 %s183, 1
        %s330 = smul.addr %s329, 64
        %s331 = scalar_lea.vmem [#allocation10], %s330
        %p332 = scmp.lt.s32.totalorder %s27, 1
        %s333 = scalar_select %p332, %s27, 1
        %p334 = scmp.lt.s32.totalorder %s28, 3
        %s335 = scalar_select %p334, %s28, 3
        %s336 = smul.addr %s333, 4
        %s337 = sadd.s32 %s335, %s336
        %s338 = smul.addr %s337, 8
        %s339 = scalar_lea.vmem %s0, %s338
        %p340 = scmp.lt.s32.totalorder %s27, 1
        %s341 = scalar_select %p340, %s27, 1
        %s342 = smul.addr %s341, 4
        %s343 = scalar_lea.vmem %s1, %s342
        %v344 = vld [vmem:[%s339] sm:$0xff]
        %v345 = vld [vmem:[%s343] sm:$0xf]
        %v346 = vlaneseq
        %v347 = vshrl.u32 %v346, 7
        %v348 = vsub.s32 0, %v347
        %v349 = vrot.slane %v345, %v348
        %351 = vset.pattern.permute.xlu0 0
        %352 = vperm.xlu0 %351, %v344
        %v353 = vpop.permute.xlu0 %352
        %v355 = vsub.f32 %v349, %v353
        %v356 = vlaneseq
        %v357 = vshrl.u32 %v356, 7
        %v358 = vsub.s32 1, %v357
        %v359 = vrot.slane %v345, %v358
        %360 = vset.pattern.permute.xlu0 1
        %361 = vperm.xlu0 %360, %v344
        %v362 = vpop.permute.xlu0 %361
        %v364 = vsub.f32 %v359, %v362
        %v365 = vlaneseq
        %v366 = vshrl.u32 %v365, 7
        %v367 = vsub.s32 2, %v366
        %v368 = vrot.slane %v345, %v367
        %369 = vset.pattern.permute.xlu0 2
        %370 = vperm.xlu0 %369, %v344
        %v371 = vpop.permute.xlu0 %370
        %v373 = vsub.f32 %v368, %v371
        %v374 = vlaneseq
        %v375 = vshrl.u32 %v374, 7
        %v376 = vsub.s32 3, %v375
        %v377 = vrot.slane %v345, %v376
        %378 = vset.pattern.permute.xlu0 3
        %379 = vperm.xlu0 %378, %v344
        %v380 = vpop.permute.xlu0 %379
        %v382 = vsub.f32 %v377, %v380
        %v383 = vmul.f32 %v355, %v355
        %v384 = vmul.f32 %v364, %v364
        %v385 = vadd.f32 %v383, %v384
        %v386 = vmul.f32 %v373, %v373
        %v387 = vadd.f32 %v385, %v386
        %v388 = vmul.f32 %v382, %v382
        %v389 = vadd.f32 %v387, %v388
        %s390 = sld [smem:[#allocation2]]
        %v391 = vstv %s390
        %v392 = vmul.f32 %v389, %v391
        %s393 = sld [smem:[#allocation5]]
        %v394 = vstv %s393
        %v395 = vadd.f32 %v392, %v394
        %v396 = vxor.u32 %v395, 2147483648
        %v397 = vmul.f32 %v396, 1.442695
        %v398 = vpow.pop %v397
        %v399 = vadd.f32 %v398, 1.0
        %v400 = vrcp.pop %v399
        %v401 = vmul.f32 1.0, %v400
        %v402 = vmul.f32 %v395, %v401
        %s403 = sld [smem:[#allocation7]]
        %v404 = vstv %s403
        %v405 = vmul.f32 %v402, %v404
        %v406 = vadd.f32 %v405, 0.0
        %s407 = sld [smem:[#allocation7 + $0x10]]
        %v408 = vstv %s407
        %v409 = vmul.f32 %v402, %v408
        %v410 = vadd.f32 %v409, 0.0
        %s411 = sld [smem:[#allocation7 + $0x20]]
        %v412 = vstv %s411
        %v413 = vmul.f32 %v402, %v412
        %v414 = vadd.f32 %v413, 0.0
        %s415 = sld [smem:[#allocation7 + $0x30]]
        %v416 = vstv %s415
        %v417 = vmul.f32 %v402, %v416
        %v418 = vadd.f32 %v417, 0.0
        %s419 = sld [smem:[#allocation7 + $0x40]]
        %v420 = vstv %s419
        %v421 = vmul.f32 %v402, %v420
        %v422 = vadd.f32 %v421, 0.0
        %s423 = sld [smem:[#allocation7 + $0x50]]
        %v424 = vstv %s423
        %v425 = vmul.f32 %v402, %v424
        %v426 = vadd.f32 %v425, 0.0
        %s427 = sld [smem:[#allocation7 + $0x60]]
        %v428 = vstv %s427
        %v429 = vmul.f32 %v402, %v428
        %v430 = vadd.f32 %v429, 0.0
        %s431 = sld [smem:[#allocation7 + $0x70]]
        %v432 = vstv %s431
        %v433 = vmul.f32 %v402, %v432
        %v434 = vadd.f32 %v433, 0.0
        %s435 = sld [smem:[#allocation2 + $0x1]]
        %v436 = vstv %s435
        %v437 = vmul.f32 %v389, %v436
        %s438 = sld [smem:[#allocation5 + $0x1]]
        %v439 = vstv %s438
        %v440 = vadd.f32 %v437, %v439
        %v441 = vxor.u32 %v440, 2147483648
        %v442 = vmul.f32 %v441, 1.442695
        %v443 = vpow.pop %v442
        %v444 = vadd.f32 %v443, 1.0
        %v445 = vrcp.pop %v444
        %v446 = vmul.f32 1.0, %v445
        %v447 = vmul.f32 %v440, %v446
        %s448 = sld [smem:[#allocation7 + $0x1]]
        %v449 = vstv %s448
        %v450 = vmul.f32 %v447, %v449
        %v451 = vadd.f32 %v406, %v450
        %s452 = sld [smem:[#allocation7 + $0x11]]
        %v453 = vstv %s452
        %v454 = vmul.f32 %v447, %v453
        %v455 = vadd.f32 %v410, %v454
        %s456 = sld [smem:[#allocation7 + $0x21]]
        %v457 = vstv %s456
        %v458 = vmul.f32 %v447, %v457
        %v459 = vadd.f32 %v414, %v458
        %s460 = sld [smem:[#allocation7 + $0x31]]
        %v461 = vstv %s460
        %v462 = vmul.f32 %v447, %v461
        %v463 = vadd.f32 %v418, %v462
        %s464 = sld [smem:[#allocation7 + $0x41]]
        %v465 = vstv %s464
        %v466 = vmul.f32 %v447, %v465
        %v467 = vadd.f32 %v422, %v466
        %s468 = sld [smem:[#allocation7 + $0x51]]
        %v469 = vstv %s468
        %v470 = vmul.f32 %v447, %v469
        %v471 = vadd.f32 %v426, %v470
        %s472 = sld [smem:[#allocation7 + $0x61]]
        %v473 = vstv %s472
        %v474 = vmul.f32 %v447, %v473
        %v475 = vadd.f32 %v430, %v474
        %s476 = sld [smem:[#allocation7 + $0x71]]
        %v477 = vstv %s476
        %v478 = vmul.f32 %v447, %v477
        %v479 = vadd.f32 %v434, %v478
        %s480 = sld [smem:[#allocation2 + $0x2]]
        %v481 = vstv %s480
        %v482 = vmul.f32 %v389, %v481
        %s483 = sld [smem:[#allocation5 + $0x2]]
        %v484 = vstv %s483
        %v485 = vadd.f32 %v482, %v484
        %v486 = vxor.u32 %v485, 2147483648
        %v487 = vmul.f32 %v486, 1.442695
        %v488 = vpow.pop %v487
        %v489 = vadd.f32 %v488, 1.0
        %v490 = vrcp.pop %v489
        %v491 = vmul.f32 1.0, %v490
        %v492 = vmul.f32 %v485, %v491
        %s493 = sld [smem:[#allocation7 + $0x2]]
        %v494 = vstv %s493
        %v495 = vmul.f32 %v492, %v494
        %v496 = vadd.f32 %v451, %v495
        %s497 = sld [smem:[#allocation7 + $0x12]]
        %v498 = vstv %s497
        %v499 = vmul.f32 %v492, %v498
        %v500 = vadd.f32 %v455, %v499
        %s501 = sld [smem:[#allocation7 + $0x22]]
        %v502 = vstv %s501
        %v503 = vmul.f32 %v492, %v502
        %v504 = vadd.f32 %v459, %v503
        %s505 = sld [smem:[#allocation7 + $0x32]]
        %v506 = vstv %s505
        %v507 = vmul.f32 %v492, %v506
        %v508 = vadd.f32 %v463, %v507
        %s509 = sld [smem:[#allocation7 + $0x42]]
        %v510 = vstv %s509
        %v511 = vmul.f32 %v492, %v510
        %v512 = vadd.f32 %v467, %v511
        %s513 = sld [smem:[#allocation7 + $0x52]]
        %v514 = vstv %s513
        %v515 = vmul.f32 %v492, %v514
        %v516 = vadd.f32 %v471, %v515
        %s517 = sld [smem:[#allocation7 + $0x62]]
        %v518 = vstv %s517
        %v519 = vmul.f32 %v492, %v518
        %v520 = vadd.f32 %v475, %v519
        %s521 = sld [smem:[#allocation7 + $0x72]]
        %v522 = vstv %s521
        %v523 = vmul.f32 %v492, %v522
        %v524 = vadd.f32 %v479, %v523
        %s525 = sld [smem:[#allocation2 + $0x3]]
        %v526 = vstv %s525
        %v527 = vmul.f32 %v389, %v526
        %s528 = sld [smem:[#allocation5 + $0x3]]
        %v529 = vstv %s528
        %v530 = vadd.f32 %v527, %v529
        %v531 = vxor.u32 %v530, 2147483648
        %v532 = vmul.f32 %v531, 1.442695
        %v533 = vpow.pop %v532
        %v534 = vadd.f32 %v533, 1.0
        %v535 = vrcp.pop %v534
        %v536 = vmul.f32 1.0, %v535
        %v537 = vmul.f32 %v530, %v536
        %s538 = sld [smem:[#allocation7 + $0x3]]
        %v539 = vstv %s538
        %v540 = vmul.f32 %v537, %v539
        %v541 = vadd.f32 %v496, %v540
        %s542 = sld [smem:[#allocation7 + $0x13]]
        %v543 = vstv %s542
        %v544 = vmul.f32 %v537, %v543
        %v545 = vadd.f32 %v500, %v544
        %s546 = sld [smem:[#allocation7 + $0x23]]
        %v547 = vstv %s546
        %v548 = vmul.f32 %v537, %v547
        %v549 = vadd.f32 %v504, %v548
        %s550 = sld [smem:[#allocation7 + $0x33]]
        %v551 = vstv %s550
        %v552 = vmul.f32 %v537, %v551
        %v553 = vadd.f32 %v508, %v552
        %s554 = sld [smem:[#allocation7 + $0x43]]
        %v555 = vstv %s554
        %v556 = vmul.f32 %v537, %v555
        %v557 = vadd.f32 %v512, %v556
        %s558 = sld [smem:[#allocation7 + $0x53]]
        %v559 = vstv %s558
        %v560 = vmul.f32 %v537, %v559
        %v561 = vadd.f32 %v516, %v560
        %s562 = sld [smem:[#allocation7 + $0x63]]
        %v563 = vstv %s562
        %v564 = vmul.f32 %v537, %v563
        %v565 = vadd.f32 %v520, %v564
        %s566 = sld [smem:[#allocation7 + $0x73]]
        %v567 = vstv %s566
        %v568 = vmul.f32 %v537, %v567
        %v569 = vadd.f32 %v524, %v568
        %s570 = sld [smem:[#allocation2 + $0x4]]
        %v571 = vstv %s570
        %v572 = vmul.f32 %v389, %v571
        %s573 = sld [smem:[#allocation5 + $0x4]]
        %v574 = vstv %s573
        %v575 = vadd.f32 %v572, %v574
        %v576 = vxor.u32 %v575, 2147483648
        %v577 = vmul.f32 %v576, 1.442695
        %v578 = vpow.pop %v577
        %v579 = vadd.f32 %v578, 1.0
        %v580 = vrcp.pop %v579
        %v581 = vmul.f32 1.0, %v580
        %v582 = vmul.f32 %v575, %v581
        %s583 = sld [smem:[#allocation7 + $0x4]]
        %v584 = vstv %s583
        %v585 = vmul.f32 %v582, %v584
        %v586 = vadd.f32 %v541, %v585
        %s587 = sld [smem:[#allocation7 + $0x14]]
        %v588 = vstv %s587
        %v589 = vmul.f32 %v582, %v588
        %v590 = vadd.f32 %v545, %v589
        %s591 = sld [smem:[#allocation7 + $0x24]]
        %v592 = vstv %s591
        %v593 = vmul.f32 %v582, %v592
        %v594 = vadd.f32 %v549, %v593
        %s595 = sld [smem:[#allocation7 + $0x34]]
        %v596 = vstv %s595
        %v597 = vmul.f32 %v582, %v596
        %v598 = vadd.f32 %v553, %v597
        %s599 = sld [smem:[#allocation7 + $0x44]]
        %v600 = vstv %s599
        %v601 = vmul.f32 %v582, %v600
        %v602 = vadd.f32 %v557, %v601
        %s603 = sld [smem:[#allocation7 + $0x54]]
        %v604 = vstv %s603
        %v605 = vmul.f32 %v582, %v604
        %v606 = vadd.f32 %v561, %v605
        %s607 = sld [smem:[#allocation7 + $0x64]]
        %v608 = vstv %s607
        %v609 = vmul.f32 %v582, %v608
        %v610 = vadd.f32 %v565, %v609
        %s611 = sld [smem:[#allocation7 + $0x74]]
        %v612 = vstv %s611
        %v613 = vmul.f32 %v582, %v612
        %v614 = vadd.f32 %v569, %v613
        %s615 = sld [smem:[#allocation2 + $0x5]]
        %v616 = vstv %s615
        %v617 = vmul.f32 %v389, %v616
        %s618 = sld [smem:[#allocation5 + $0x5]]
        %v619 = vstv %s618
        %v620 = vadd.f32 %v617, %v619
        %v621 = vxor.u32 %v620, 2147483648
        %v622 = vmul.f32 %v621, 1.442695
        %v623 = vpow.pop %v622
        %v624 = vadd.f32 %v623, 1.0
        %v625 = vrcp.pop %v624
        %v626 = vmul.f32 1.0, %v625
        %v627 = vmul.f32 %v620, %v626
        %s628 = sld [smem:[#allocation7 + $0x5]]
        %v629 = vstv %s628
        %v630 = vmul.f32 %v627, %v629
        %v631 = vadd.f32 %v586, %v630
        %s632 = sld [smem:[#allocation7 + $0x15]]
        %v633 = vstv %s632
        %v634 = vmul.f32 %v627, %v633
        %v635 = vadd.f32 %v590, %v634
        %s636 = sld [smem:[#allocation7 + $0x25]]
        %v637 = vstv %s636
        %v638 = vmul.f32 %v627, %v637
        %v639 = vadd.f32 %v594, %v638
        %s640 = sld [smem:[#allocation7 + $0x35]]
        %v641 = vstv %s640
        %v642 = vmul.f32 %v627, %v641
        %v643 = vadd.f32 %v598, %v642
        %s644 = sld [smem:[#allocation7 + $0x45]]
        %v645 = vstv %s644
        %v646 = vmul.f32 %v627, %v645
        %v647 = vadd.f32 %v602, %v646
        %s648 = sld [smem:[#allocation7 + $0x55]]
        %v649 = vstv %s648
        %v650 = vmul.f32 %v627, %v649
        %v651 = vadd.f32 %v606, %v650
        %s652 = sld [smem:[#allocation7 + $0x65]]
        %v653 = vstv %s652
        %v654 = vmul.f32 %v627, %v653
        %v655 = vadd.f32 %v610, %v654
        %s656 = sld [smem:[#allocation7 + $0x75]]
        %v657 = vstv %s656
        %v658 = vmul.f32 %v627, %v657
        %v659 = vadd.f32 %v614, %v658
        %s660 = sld [smem:[#allocation2 + $0x6]]
        %v661 = vstv %s660
        %v662 = vmul.f32 %v389, %v661
        %s663 = sld [smem:[#allocation5 + $0x6]]
        %v664 = vstv %s663
        %v665 = vadd.f32 %v662, %v664
        %v666 = vxor.u32 %v665, 2147483648
        %v667 = vmul.f32 %v666, 1.442695
        %v668 = vpow.pop %v667
        %v669 = vadd.f32 %v668, 1.0
        %v670 = vrcp.pop %v669
        %v671 = vmul.f32 1.0, %v670
        %v672 = vmul.f32 %v665, %v671
        %s673 = sld [smem:[#allocation7 + $0x6]]
        %v674 = vstv %s673
        %v675 = vmul.f32 %v672, %v674
        %v676 = vadd.f32 %v631, %v675
        %s677 = sld [smem:[#allocation7 + $0x16]]
        %v678 = vstv %s677
        %v679 = vmul.f32 %v672, %v678
        %v680 = vadd.f32 %v635, %v679
        %s681 = sld [smem:[#allocation7 + $0x26]]
        %v682 = vstv %s681
        %v683 = vmul.f32 %v672, %v682
        %v684 = vadd.f32 %v639, %v683
        %s685 = sld [smem:[#allocation7 + $0x36]]
        %v686 = vstv %s685
        %v687 = vmul.f32 %v672, %v686
        %v688 = vadd.f32 %v643, %v687
        %s689 = sld [smem:[#allocation7 + $0x46]]
        %v690 = vstv %s689
        %v691 = vmul.f32 %v672, %v690
        %v692 = vadd.f32 %v647, %v691
        %s693 = sld [smem:[#allocation7 + $0x56]]
        %v694 = vstv %s693
        %v695 = vmul.f32 %v672, %v694
        %v696 = vadd.f32 %v651, %v695
        %s697 = sld [smem:[#allocation7 + $0x66]]
        %v698 = vstv %s697
        %v699 = vmul.f32 %v672, %v698
        %v700 = vadd.f32 %v655, %v699
        %s701 = sld [smem:[#allocation7 + $0x76]]
        %v702 = vstv %s701
        %v703 = vmul.f32 %v672, %v702
        %v704 = vadd.f32 %v659, %v703
        %s705 = sld [smem:[#allocation2 + $0x7]]
        %v706 = vstv %s705
        %v707 = vmul.f32 %v389, %v706
        %s708 = sld [smem:[#allocation5 + $0x7]]
        %v709 = vstv %s708
        %v710 = vadd.f32 %v707, %v709
        %v711 = vxor.u32 %v710, 2147483648
        %v712 = vmul.f32 %v711, 1.442695
        %v713 = vpow.pop %v712
        %v714 = vadd.f32 %v713, 1.0
        %v715 = vrcp.pop %v714
        %v716 = vmul.f32 1.0, %v715
        %v717 = vmul.f32 %v710, %v716
        %s718 = sld [smem:[#allocation7 + $0x7]]
        %v719 = vstv %s718
        %v720 = vmul.f32 %v717, %v719
        %v721 = vadd.f32 %v676, %v720
        %s722 = sld [smem:[#allocation7 + $0x17]]
        %v723 = vstv %s722
        %v724 = vmul.f32 %v717, %v723
        %v725 = vadd.f32 %v680, %v724
        %s726 = sld [smem:[#allocation7 + $0x27]]
        %v727 = vstv %s726
        %v728 = vmul.f32 %v717, %v727
        %v729 = vadd.f32 %v684, %v728
        %s730 = sld [smem:[#allocation7 + $0x37]]
        %v731 = vstv %s730
        %v732 = vmul.f32 %v717, %v731
        %v733 = vadd.f32 %v688, %v732
        %s734 = sld [smem:[#allocation7 + $0x47]]
        %v735 = vstv %s734
        %v736 = vmul.f32 %v717, %v735
        %v737 = vadd.f32 %v692, %v736
        %s738 = sld [smem:[#allocation7 + $0x57]]
        %v739 = vstv %s738
        %v740 = vmul.f32 %v717, %v739
        %v741 = vadd.f32 %v696, %v740
        %s742 = sld [smem:[#allocation7 + $0x67]]
        %v743 = vstv %s742
        %v744 = vmul.f32 %v717, %v743
        %v745 = vadd.f32 %v700, %v744
        %s746 = sld [smem:[#allocation7 + $0x77]]
        %v747 = vstv %s746
        %v748 = vmul.f32 %v717, %v747
        %v749 = vadd.f32 %v704, %v748
        %s750 = sld [smem:[#allocation2 + $0x8]]
        %v751 = vstv %s750
        %v752 = vmul.f32 %v389, %v751
        %s753 = sld [smem:[#allocation5 + $0x8]]
        %v754 = vstv %s753
        %v755 = vadd.f32 %v752, %v754
        %v756 = vxor.u32 %v755, 2147483648
        %v757 = vmul.f32 %v756, 1.442695
        %v758 = vpow.pop %v757
        %v759 = vadd.f32 %v758, 1.0
        %v760 = vrcp.pop %v759
        %v761 = vmul.f32 1.0, %v760
        %v762 = vmul.f32 %v755, %v761
        %s763 = sld [smem:[#allocation7 + $0x8]]
        %v764 = vstv %s763
        %v765 = vmul.f32 %v762, %v764
        %v766 = vadd.f32 %v721, %v765
        %s767 = sld [smem:[#allocation7 + $0x18]]
        %v768 = vstv %s767
        %v769 = vmul.f32 %v762, %v768
        %v770 = vadd.f32 %v725, %v769
        %s771 = sld [smem:[#allocation7 + $0x28]]
        %v772 = vstv %s771
        %v773 = vmul.f32 %v762, %v772
        %v774 = vadd.f32 %v729, %v773
        %s775 = sld [smem:[#allocation7 + $0x38]]
        %v776 = vstv %s775
        %v777 = vmul.f32 %v762, %v776
        %v778 = vadd.f32 %v733, %v777
        %s779 = sld [smem:[#allocation7 + $0x48]]
        %v780 = vstv %s779
        %v781 = vmul.f32 %v762, %v780
        %v782 = vadd.f32 %v737, %v781
        %s783 = sld [smem:[#allocation7 + $0x58]]
        %v784 = vstv %s783
        %v785 = vmul.f32 %v762, %v784
        %v786 = vadd.f32 %v741, %v785
        %s787 = sld [smem:[#allocation7 + $0x68]]
        %v788 = vstv %s787
        %v789 = vmul.f32 %v762, %v788
        %v790 = vadd.f32 %v745, %v789
        %s791 = sld [smem:[#allocation7 + $0x78]]
        %v792 = vstv %s791
        %v793 = vmul.f32 %v762, %v792
        %v794 = vadd.f32 %v749, %v793
        %s795 = sld [smem:[#allocation2 + $0x9]]
        %v796 = vstv %s795
        %v797 = vmul.f32 %v389, %v796
        %s798 = sld [smem:[#allocation5 + $0x9]]
        %v799 = vstv %s798
        %v800 = vadd.f32 %v797, %v799
        %v801 = vxor.u32 %v800, 2147483648
        %v802 = vmul.f32 %v801, 1.442695
        %v803 = vpow.pop %v802
        %v804 = vadd.f32 %v803, 1.0
        %v805 = vrcp.pop %v804
        %v806 = vmul.f32 1.0, %v805
        %v807 = vmul.f32 %v800, %v806
        %s808 = sld [smem:[#allocation7 + $0x9]]
        %v809 = vstv %s808
        %v810 = vmul.f32 %v807, %v809
        %v811 = vadd.f32 %v766, %v810
        %s812 = sld [smem:[#allocation7 + $0x19]]
        %v813 = vstv %s812
        %v814 = vmul.f32 %v807, %v813
        %v815 = vadd.f32 %v770, %v814
        %s816 = sld [smem:[#allocation7 + $0x29]]
        %v817 = vstv %s816
        %v818 = vmul.f32 %v807, %v817
        %v819 = vadd.f32 %v774, %v818
        %s820 = sld [smem:[#allocation7 + $0x39]]
        %v821 = vstv %s820
        %v822 = vmul.f32 %v807, %v821
        %v823 = vadd.f32 %v778, %v822
        %s824 = sld [smem:[#allocation7 + $0x49]]
        %v825 = vstv %s824
        %v826 = vmul.f32 %v807, %v825
        %v827 = vadd.f32 %v782, %v826
        %s828 = sld [smem:[#allocation7 + $0x59]]
        %v829 = vstv %s828
        %v830 = vmul.f32 %v807, %v829
        %v831 = vadd.f32 %v786, %v830
        %s832 = sld [smem:[#allocation7 + $0x69]]
        %v833 = vstv %s832
        %v834 = vmul.f32 %v807, %v833
        %v835 = vadd.f32 %v790, %v834
        %s836 = sld [smem:[#allocation7 + $0x79]]
        %v837 = vstv %s836
        %v838 = vmul.f32 %v807, %v837
        %v839 = vadd.f32 %v794, %v838
        %s840 = sld [smem:[#allocation2 + $0xa]]
        %v841 = vstv %s840
        %v842 = vmul.f32 %v389, %v841
        %s843 = sld [smem:[#allocation5 + $0xa]]
        %v844 = vstv %s843
        %v845 = vadd.f32 %v842, %v844
        %v846 = vxor.u32 %v845, 2147483648
        %v847 = vmul.f32 %v846, 1.442695
        %v848 = vpow.pop %v847
        %v849 = vadd.f32 %v848, 1.0
        %v850 = vrcp.pop %v849
        %v851 = vmul.f32 1.0, %v850
        %v852 = vmul.f32 %v845, %v851
        %s853 = sld [smem:[#allocation7 + $0xa]]
        %v854 = vstv %s853
        %v855 = vmul.f32 %v852, %v854
        %v856 = vadd.f32 %v811, %v855
        %s857 = sld [smem:[#allocation7 + $0x1a]]
        %v858 = vstv %s857
        %v859 = vmul.f32 %v852, %v858
        %v860 = vadd.f32 %v815, %v859
        %s861 = sld [smem:[#allocation7 + $0x2a]]
        %v862 = vstv %s861
        %v863 = vmul.f32 %v852, %v862
        %v864 = vadd.f32 %v819, %v863
        %s865 = sld [smem:[#allocation7 + $0x3a]]
        %v866 = vstv %s865
        %v867 = vmul.f32 %v852, %v866
        %v868 = vadd.f32 %v823, %v867
        %s869 = sld [smem:[#allocation7 + $0x4a]]
        %v870 = vstv %s869
        %v871 = vmul.f32 %v852, %v870
        %v872 = vadd.f32 %v827, %v871
        %s873 = sld [smem:[#allocation7 + $0x5a]]
        %v874 = vstv %s873
        %v875 = vmul.f32 %v852, %v874
        %v876 = vadd.f32 %v831, %v875
        %s877 = sld [smem:[#allocation7 + $0x6a]]
        %v878 = vstv %s877
        %v879 = vmul.f32 %v852, %v878
        %v880 = vadd.f32 %v835, %v879
        %s881 = sld [smem:[#allocation7 + $0x7a]]
        %v882 = vstv %s881
        %v883 = vmul.f32 %v852, %v882
        %v884 = vadd.f32 %v839, %v883
        %s885 = sld [smem:[#allocation2 + $0xb]]
        %v886 = vstv %s885
        %v887 = vmul.f32 %v389, %v886
        %s888 = sld [smem:[#allocation5 + $0xb]]
        %v889 = vstv %s888
        %v890 = vadd.f32 %v887, %v889
        %v891 = vxor.u32 %v890, 2147483648
        %v892 = vmul.f32 %v891, 1.442695
        %v893 = vpow.pop %v892
        %v894 = vadd.f32 %v893, 1.0
        %v895 = vrcp.pop %v894
        %v896 = vmul.f32 1.0, %v895
        %v897 = vmul.f32 %v890, %v896
        %s898 = sld [smem:[#allocation7 + $0xb]]
        %v899 = vstv %s898
        %v900 = vmul.f32 %v897, %v899
        %v901 = vadd.f32 %v856, %v900
        %s902 = sld [smem:[#allocation7 + $0x1b]]
        %v903 = vstv %s902
        %v904 = vmul.f32 %v897, %v903
        %v905 = vadd.f32 %v860, %v904
        %s906 = sld [smem:[#allocation7 + $0x2b]]
        %v907 = vstv %s906
        %v908 = vmul.f32 %v897, %v907
        %v909 = vadd.f32 %v864, %v908
        %s910 = sld [smem:[#allocation7 + $0x3b]]
        %v911 = vstv %s910
        %v912 = vmul.f32 %v897, %v911
        %v913 = vadd.f32 %v868, %v912
        %s914 = sld [smem:[#allocation7 + $0x4b]]
        %v915 = vstv %s914
        %v916 = vmul.f32 %v897, %v915
        %v917 = vadd.f32 %v872, %v916
        %s918 = sld [smem:[#allocation7 + $0x5b]]
        %v919 = vstv %s918
        %v920 = vmul.f32 %v897, %v919
        %v921 = vadd.f32 %v876, %v920
        %s922 = sld [smem:[#allocation7 + $0x6b]]
        %v923 = vstv %s922
        %v924 = vmul.f32 %v897, %v923
        %v925 = vadd.f32 %v880, %v924
        %s926 = sld [smem:[#allocation7 + $0x7b]]
        %v927 = vstv %s926
        %v928 = vmul.f32 %v897, %v927
        %v929 = vadd.f32 %v884, %v928
        %s930 = sld [smem:[#allocation2 + $0xc]]
        %v931 = vstv %s930
        %v932 = vmul.f32 %v389, %v931
        %s933 = sld [smem:[#allocation5 + $0xc]]
        %v934 = vstv %s933
        %v935 = vadd.f32 %v932, %v934
        %v936 = vxor.u32 %v935, 2147483648
        %v937 = vmul.f32 %v936, 1.442695
        %v938 = vpow.pop %v937
        %v939 = vadd.f32 %v938, 1.0
        %v940 = vrcp.pop %v939
        %v941 = vmul.f32 1.0, %v940
        %v942 = vmul.f32 %v935, %v941
        %s943 = sld [smem:[#allocation7 + $0xc]]
        %v944 = vstv %s943
        %v945 = vmul.f32 %v942, %v944
        %v946 = vadd.f32 %v901, %v945
        %s947 = sld [smem:[#allocation7 + $0x1c]]
        %v948 = vstv %s947
        %v949 = vmul.f32 %v942, %v948
        %v950 = vadd.f32 %v905, %v949
        %s951 = sld [smem:[#allocation7 + $0x2c]]
        %v952 = vstv %s951
        %v953 = vmul.f32 %v942, %v952
        %v954 = vadd.f32 %v909, %v953
        %s955 = sld [smem:[#allocation7 + $0x3c]]
        %v956 = vstv %s955
        %v957 = vmul.f32 %v942, %v956
        %v958 = vadd.f32 %v913, %v957
        %s959 = sld [smem:[#allocation7 + $0x4c]]
        %v960 = vstv %s959
        %v961 = vmul.f32 %v942, %v960
        %v962 = vadd.f32 %v917, %v961
        %s963 = sld [smem:[#allocation7 + $0x5c]]
        %v964 = vstv %s963
        %v965 = vmul.f32 %v942, %v964
        %v966 = vadd.f32 %v921, %v965
        %s967 = sld [smem:[#allocation7 + $0x6c]]
        %v968 = vstv %s967
        %v969 = vmul.f32 %v942, %v968
        %v970 = vadd.f32 %v925, %v969
        %s971 = sld [smem:[#allocation7 + $0x7c]]
        %v972 = vstv %s971
        %v973 = vmul.f32 %v942, %v972
        %v974 = vadd.f32 %v929, %v973
        %s975 = sld [smem:[#allocation2 + $0xd]]
        %v976 = vstv %s975
        %v977 = vmul.f32 %v389, %v976
        %s978 = sld [smem:[#allocation5 + $0xd]]
        %v979 = vstv %s978
        %v980 = vadd.f32 %v977, %v979
        %v981 = vxor.u32 %v980, 2147483648
        %v982 = vmul.f32 %v981, 1.442695
        %v983 = vpow.pop %v982
        %v984 = vadd.f32 %v983, 1.0
        %v985 = vrcp.pop %v984
        %v986 = vmul.f32 1.0, %v985
        %v987 = vmul.f32 %v980, %v986
        %s988 = sld [smem:[#allocation7 + $0xd]]
        %v989 = vstv %s988
        %v990 = vmul.f32 %v987, %v989
        %v991 = vadd.f32 %v946, %v990
        %s992 = sld [smem:[#allocation7 + $0x1d]]
        %v993 = vstv %s992
        %v994 = vmul.f32 %v987, %v993
        %v995 = vadd.f32 %v950, %v994
        %s996 = sld [smem:[#allocation7 + $0x2d]]
        %v997 = vstv %s996
        %v998 = vmul.f32 %v987, %v997
        %v999 = vadd.f32 %v954, %v998
        %s1000 = sld [smem:[#allocation7 + $0x3d]]
        %v1001 = vstv %s1000
        %v1002 = vmul.f32 %v987, %v1001
        %v1003 = vadd.f32 %v958, %v1002
        %s1004 = sld [smem:[#allocation7 + $0x4d]]
        %v1005 = vstv %s1004
        %v1006 = vmul.f32 %v987, %v1005
        %v1007 = vadd.f32 %v962, %v1006
        %s1008 = sld [smem:[#allocation7 + $0x5d]]
        %v1009 = vstv %s1008
        %v1010 = vmul.f32 %v987, %v1009
        %v1011 = vadd.f32 %v966, %v1010
        %s1012 = sld [smem:[#allocation7 + $0x6d]]
        %v1013 = vstv %s1012
        %v1014 = vmul.f32 %v987, %v1013
        %v1015 = vadd.f32 %v970, %v1014
        %s1016 = sld [smem:[#allocation7 + $0x7d]]
        %v1017 = vstv %s1016
        %v1018 = vmul.f32 %v987, %v1017
        %v1019 = vadd.f32 %v974, %v1018
        %s1020 = sld [smem:[#allocation2 + $0xe]]
        %v1021 = vstv %s1020
        %v1022 = vmul.f32 %v389, %v1021
        %s1023 = sld [smem:[#allocation5 + $0xe]]
        %v1024 = vstv %s1023
        %v1025 = vadd.f32 %v1022, %v1024
        %v1026 = vxor.u32 %v1025, 2147483648
        %v1027 = vmul.f32 %v1026, 1.442695
        %v1028 = vpow.pop %v1027
        %v1029 = vadd.f32 %v1028, 1.0
        %v1030 = vrcp.pop %v1029
        %v1031 = vmul.f32 1.0, %v1030
        %v1032 = vmul.f32 %v1025, %v1031
        %s1033 = sld [smem:[#allocation7 + $0xe]]
        %v1034 = vstv %s1033
        %v1035 = vmul.f32 %v1032, %v1034
        %v1036 = vadd.f32 %v991, %v1035
        %s1037 = sld [smem:[#allocation7 + $0x1e]]
        %v1038 = vstv %s1037
        %v1039 = vmul.f32 %v1032, %v1038
        %v1040 = vadd.f32 %v995, %v1039
        %s1041 = sld [smem:[#allocation7 + $0x2e]]
        %v1042 = vstv %s1041
        %v1043 = vmul.f32 %v1032, %v1042
        %v1044 = vadd.f32 %v999, %v1043
        %s1045 = sld [smem:[#allocation7 + $0x3e]]
        %v1046 = vstv %s1045
        %v1047 = vmul.f32 %v1032, %v1046
        %v1048 = vadd.f32 %v1003, %v1047
        %s1049 = sld [smem:[#allocation7 + $0x4e]]
        %v1050 = vstv %s1049
        %v1051 = vmul.f32 %v1032, %v1050
        %v1052 = vadd.f32 %v1007, %v1051
        %s1053 = sld [smem:[#allocation7 + $0x5e]]
        %v1054 = vstv %s1053
        %v1055 = vmul.f32 %v1032, %v1054
        %v1056 = vadd.f32 %v1011, %v1055
        %s1057 = sld [smem:[#allocation7 + $0x6e]]
        %v1058 = vstv %s1057
        %v1059 = vmul.f32 %v1032, %v1058
        %v1060 = vadd.f32 %v1015, %v1059
        %s1061 = sld [smem:[#allocation7 + $0x7e]]
        %v1062 = vstv %s1061
        %v1063 = vmul.f32 %v1032, %v1062
        %v1064 = vadd.f32 %v1019, %v1063
        %s1065 = sld [smem:[#allocation2 + $0xf]]
        %v1066 = vstv %s1065
        %v1067 = vmul.f32 %v389, %v1066
        %s1068 = sld [smem:[#allocation5 + $0xf]]
        %v1069 = vstv %s1068
        %v1070 = vadd.f32 %v1067, %v1069
        %v1071 = vxor.u32 %v1070, 2147483648
        %v1072 = vmul.f32 %v1071, 1.442695
        %v1073 = vpow.pop %v1072
        %v1074 = vadd.f32 %v1073, 1.0
        %v1075 = vrcp.pop %v1074
        %v1076 = vmul.f32 1.0, %v1075
        %v1077 = vmul.f32 %v1070, %v1076
        %s1078 = sld [smem:[#allocation7 + $0xf]]
        %v1079 = vstv %s1078
        %v1080 = vmul.f32 %v1077, %v1079
        %v1081 = vadd.f32 %v1036, %v1080
        %s1082 = sld [smem:[#allocation7 + $0x1f]]
        %v1083 = vstv %s1082
        %v1084 = vmul.f32 %v1077, %v1083
        %v1085 = vadd.f32 %v1040, %v1084
        %s1086 = sld [smem:[#allocation7 + $0x2f]]
        %v1087 = vstv %s1086
        %v1088 = vmul.f32 %v1077, %v1087
        %v1089 = vadd.f32 %v1044, %v1088
        %s1090 = sld [smem:[#allocation7 + $0x3f]]
        %v1091 = vstv %s1090
        %v1092 = vmul.f32 %v1077, %v1091
        %v1093 = vadd.f32 %v1048, %v1092
        %s1094 = sld [smem:[#allocation7 + $0x4f]]
        %v1095 = vstv %s1094
        %v1096 = vmul.f32 %v1077, %v1095
        %v1097 = vadd.f32 %v1052, %v1096
        %s1098 = sld [smem:[#allocation7 + $0x5f]]
        %v1099 = vstv %s1098
        %v1100 = vmul.f32 %v1077, %v1099
        %v1101 = vadd.f32 %v1056, %v1100
        %s1102 = sld [smem:[#allocation7 + $0x6f]]
        %v1103 = vstv %s1102
        %v1104 = vmul.f32 %v1077, %v1103
        %v1105 = vadd.f32 %v1060, %v1104
        %s1106 = sld [smem:[#allocation7 + $0x7f]]
        %v1107 = vstv %s1106
        %v1108 = vmul.f32 %v1077, %v1107
        %v1109 = vadd.f32 %v1064, %v1108
        %s1110 = sld [smem:[#allocation8]]
        %v1111 = vstv %s1110
        %v1112 = vadd.f32 %v1081, %v1111
        %s1113 = sld [smem:[#allocation8 + $0x1]]
        %v1114 = vstv %s1113
        %v1115 = vadd.f32 %v1085, %v1114
        %s1116 = sld [smem:[#allocation8 + $0x2]]
        %v1117 = vstv %s1116
        %v1118 = vadd.f32 %v1089, %v1117
        %s1119 = sld [smem:[#allocation8 + $0x3]]
        %v1120 = vstv %s1119
        %v1121 = vadd.f32 %v1093, %v1120
        %s1122 = sld [smem:[#allocation8 + $0x4]]
        %v1123 = vstv %s1122
        %v1124 = vadd.f32 %v1097, %v1123
        %s1125 = sld [smem:[#allocation8 + $0x5]]
        %v1126 = vstv %s1125
        %v1127 = vadd.f32 %v1101, %v1126
        %s1128 = sld [smem:[#allocation8 + $0x6]]
        %v1129 = vstv %s1128
        %v1130 = vadd.f32 %v1105, %v1129
        %s1131 = sld [smem:[#allocation8 + $0x7]]
        %v1132 = vstv %s1131
        %v1133 = vadd.f32 %v1109, %v1132
        %v1134 = vmul.f32 %v355, %v1112
        %v1135 = vmul.f32 %v355, %v1115
        %v1136 = vmul.f32 %v355, %v1118
        %v1137 = vmul.f32 %v355, %v1121
        %v1138 = vmul.f32 %v355, %v1124
        %v1139 = vmul.f32 %v355, %v1127
        %v1140 = vmul.f32 %v355, %v1130
        %v1141 = vmul.f32 %v355, %v1133
        %v1142 = vmul.f32 %v364, %v1112
        %v1143 = vmul.f32 %v364, %v1115
        %v1144 = vmul.f32 %v364, %v1118
        %v1145 = vmul.f32 %v364, %v1121
        %v1146 = vmul.f32 %v364, %v1124
        %v1147 = vmul.f32 %v364, %v1127
        %v1148 = vmul.f32 %v364, %v1130
        %v1149 = vmul.f32 %v364, %v1133
        %v1150 = vmul.f32 %v373, %v1112
        %v1151 = vmul.f32 %v373, %v1115
        %v1152 = vmul.f32 %v373, %v1118
        %v1153 = vmul.f32 %v373, %v1121
        %v1154 = vmul.f32 %v373, %v1124
        %v1155 = vmul.f32 %v373, %v1127
        %v1156 = vmul.f32 %v373, %v1130
        %v1157 = vmul.f32 %v373, %v1133
        %v1158 = vmul.f32 %v382, %v1112
        %v1159 = vmul.f32 %v382, %v1115
        %v1160 = vmul.f32 %v382, %v1118
        %v1161 = vmul.f32 %v382, %v1121
        %v1162 = vmul.f32 %v382, %v1124
        %v1163 = vmul.f32 %v382, %v1127
        %v1164 = vmul.f32 %v382, %v1130
        %v1165 = vmul.f32 %v382, %v1133
        %v1166 = vlaneseq
        %v1167 = vshrl.u32 %v1166, 7
        %v1168 = vsub.s32 0, %v1167
        %v1169 = vrot.slane %v1134, %v1168
        %1171 = vbcast.lane.b32.xlu0 %v1169, 256
        %v1172 = vpop.permute.xlu0 %1171
        %s1174 = sor.u32 256, 8
        %1175 = vbcast.lane.b32.xlu0 %v1169, %s1174
        %v1176 = vpop.permute.xlu0 %1175
        %s1178 = sor.u32 256, 16
        %1179 = vbcast.lane.b32.xlu0 %v1169, %s1178
        %v1180 = vpop.permute.xlu0 %1179
        %s1182 = sor.u32 256, 24
        %1183 = vbcast.lane.b32.xlu0 %v1169, %s1182
        %v1184 = vpop.permute.xlu0 %1183
        %v1185 = vlaneseq
        %v1186 = vshrl.u32 %v1185, 7
        %v1187 = vsub.s32 1, %v1186
        %v1188 = vrot.slane %v1134, %v1187
        %1190 = vbcast.lane.b32.xlu0 %v1188, 256
        %v1191 = vpop.permute.xlu0 %1190
        %s1193 = sor.u32 256, 8
        %1194 = vbcast.lane.b32.xlu0 %v1188, %s1193
        %v1195 = vpop.permute.xlu0 %1194
        %s1197 = sor.u32 256, 16
        %1198 = vbcast.lane.b32.xlu0 %v1188, %s1197
        %v1199 = vpop.permute.xlu0 %1198
        %s1201 = sor.u32 256, 24
        %1202 = vbcast.lane.b32.xlu0 %v1188, %s1201
        %v1203 = vpop.permute.xlu0 %1202
        %v1204 = vlaneseq
        %v1205 = vshrl.u32 %v1204, 7
        %v1206 = vsub.s32 2, %v1205
        %v1207 = vrot.slane %v1134, %v1206
        %1209 = vbcast.lane.b32.xlu0 %v1207, 256
        %v1210 = vpop.permute.xlu0 %1209
        %s1212 = sor.u32 256, 8
        %1213 = vbcast.lane.b32.xlu0 %v1207, %s1212
        %v1214 = vpop.permute.xlu0 %1213
        %s1216 = sor.u32 256, 16
        %1217 = vbcast.lane.b32.xlu0 %v1207, %s1216
        %v1218 = vpop.permute.xlu0 %1217
        %s1220 = sor.u32 256, 24
        %1221 = vbcast.lane.b32.xlu0 %v1207, %s1220
        %v1222 = vpop.permute.xlu0 %1221
        %v1223 = vlaneseq
        %v1224 = vshrl.u32 %v1223, 7
        %v1225 = vsub.s32 3, %v1224
        %v1226 = vrot.slane %v1134, %v1225
        %1228 = vbcast.lane.b32.xlu0 %v1226, 256
        %v1229 = vpop.permute.xlu0 %1228
        %s1231 = sor.u32 256, 8
        %1232 = vbcast.lane.b32.xlu0 %v1226, %s1231
        %v1233 = vpop.permute.xlu0 %1232
        %s1235 = sor.u32 256, 16
        %1236 = vbcast.lane.b32.xlu0 %v1226, %s1235
        %v1237 = vpop.permute.xlu0 %1236
        %s1239 = sor.u32 256, 24
        %1240 = vbcast.lane.b32.xlu0 %v1226, %s1239
        %v1241 = vpop.permute.xlu0 %1240
        %v1242 = vlaneseq
        %v1243 = vshrl.u32 %v1242, 7
        %v1244 = vsub.s32 4, %v1243
        %v1245 = vrot.slane %v1134, %v1244
        %1247 = vbcast.lane.b32.xlu0 %v1245, 256
        %v1248 = vpop.permute.xlu0 %1247
        %s1250 = sor.u32 256, 8
        %1251 = vbcast.lane.b32.xlu0 %v1245, %s1250
        %v1252 = vpop.permute.xlu0 %1251
        %s1254 = sor.u32 256, 16
        %1255 = vbcast.lane.b32.xlu0 %v1245, %s1254
        %v1256 = vpop.permute.xlu0 %1255
        %s1258 = sor.u32 256, 24
        %1259 = vbcast.lane.b32.xlu0 %v1245, %s1258
        %v1260 = vpop.permute.xlu0 %1259
        %v1261 = vlaneseq
        %v1262 = vshrl.u32 %v1261, 7
        %v1263 = vsub.s32 5, %v1262
        %v1264 = vrot.slane %v1134, %v1263
        %1266 = vbcast.lane.b32.xlu0 %v1264, 256
        %v1267 = vpop.permute.xlu0 %1266
        %s1269 = sor.u32 256, 8
        %1270 = vbcast.lane.b32.xlu0 %v1264, %s1269
        %v1271 = vpop.permute.xlu0 %1270
        %s1273 = sor.u32 256, 16
        %1274 = vbcast.lane.b32.xlu0 %v1264, %s1273
        %v1275 = vpop.permute.xlu0 %1274
        %s1277 = sor.u32 256, 24
        %1278 = vbcast.lane.b32.xlu0 %v1264, %s1277
        %v1279 = vpop.permute.xlu0 %1278
        %v1280 = vlaneseq
        %v1281 = vshrl.u32 %v1280, 7
        %v1282 = vsub.s32 6, %v1281
        %v1283 = vrot.slane %v1134, %v1282
        %1285 = vbcast.lane.b32.xlu0 %v1283, 256
        %v1286 = vpop.permute.xlu0 %1285
        %s1288 = sor.u32 256, 8
        %1289 = vbcast.lane.b32.xlu0 %v1283, %s1288
        %v1290 = vpop.permute.xlu0 %1289
        %s1292 = sor.u32 256, 16
        %1293 = vbcast.lane.b32.xlu0 %v1283, %s1292
        %v1294 = vpop.permute.xlu0 %1293
        %s1296 = sor.u32 256, 24
        %1297 = vbcast.lane.b32.xlu0 %v1283, %s1296
        %v1298 = vpop.permute.xlu0 %1297
        %v1299 = vlaneseq
        %v1300 = vshrl.u32 %v1299, 7
        %v1301 = vsub.s32 7, %v1300
        %v1302 = vrot.slane %v1134, %v1301
        %1304 = vbcast.lane.b32.xlu0 %v1302, 256
        %v1305 = vpop.permute.xlu0 %1304
        %s1307 = sor.u32 256, 8
        %1308 = vbcast.lane.b32.xlu0 %v1302, %s1307
        %v1309 = vpop.permute.xlu0 %1308
        %s1311 = sor.u32 256, 16
        %1312 = vbcast.lane.b32.xlu0 %v1302, %s1311
        %v1313 = vpop.permute.xlu0 %1312
        %s1315 = sor.u32 256, 24
        %1316 = vbcast.lane.b32.xlu0 %v1302, %s1315
        %v1317 = vpop.permute.xlu0 %1316
        %v1318 = vlaneseq
        %v1319 = vshrl.u32 %v1318, 7
        %v1320 = vsub.s32 0, %v1319
        %v1321 = vrot.slane %v1135, %v1320
        %1323 = vbcast.lane.b32.xlu0 %v1321, 256
        %v1324 = vpop.permute.xlu0 %1323
        %s1326 = sor.u32 256, 8
        %1327 = vbcast.lane.b32.xlu0 %v1321, %s1326
        %v1328 = vpop.permute.xlu0 %1327
        %s1330 = sor.u32 256, 16
        %1331 = vbcast.lane.b32.xlu0 %v1321, %s1330
        %v1332 = vpop.permute.xlu0 %1331
        %s1334 = sor.u32 256, 24
        %1335 = vbcast.lane.b32.xlu0 %v1321, %s1334
        %v1336 = vpop.permute.xlu0 %1335
        %v1337 = vlaneseq
        %v1338 = vshrl.u32 %v1337, 7
        %v1339 = vsub.s32 1, %v1338
        %v1340 = vrot.slane %v1135, %v1339
        %1342 = vbcast.lane.b32.xlu0 %v1340, 256
        %v1343 = vpop.permute.xlu0 %1342
        %s1345 = sor.u32 256, 8
        %1346 = vbcast.lane.b32.xlu0 %v1340, %s1345
        %v1347 = vpop.permute.xlu0 %1346
        %s1349 = sor.u32 256, 16
        %1350 = vbcast.lane.b32.xlu0 %v1340, %s1349
        %v1351 = vpop.permute.xlu0 %1350
        %s1353 = sor.u32 256, 24
        %1354 = vbcast.lane.b32.xlu0 %v1340, %s1353
        %v1355 = vpop.permute.xlu0 %1354
        %v1356 = vlaneseq
        %v1357 = vshrl.u32 %v1356, 7
        %v1358 = vsub.s32 2, %v1357
        %v1359 = vrot.slane %v1135, %v1358
        %1361 = vbcast.lane.b32.xlu0 %v1359, 256
        %v1362 = vpop.permute.xlu0 %1361
        %s1364 = sor.u32 256, 8
        %1365 = vbcast.lane.b32.xlu0 %v1359, %s1364
        %v1366 = vpop.permute.xlu0 %1365
        %s1368 = sor.u32 256, 16
        %1369 = vbcast.lane.b32.xlu0 %v1359, %s1368
        %v1370 = vpop.permute.xlu0 %1369
        %s1372 = sor.u32 256, 24
        %1373 = vbcast.lane.b32.xlu0 %v1359, %s1372
        %v1374 = vpop.permute.xlu0 %1373
        %v1375 = vlaneseq
        %v1376 = vshrl.u32 %v1375, 7
        %v1377 = vsub.s32 3, %v1376
        %v1378 = vrot.slane %v1135, %v1377
        %1380 = vbcast.lane.b32.xlu0 %v1378, 256
        %v1381 = vpop.permute.xlu0 %1380
        %s1383 = sor.u32 256, 8
        %1384 = vbcast.lane.b32.xlu0 %v1378, %s1383
        %v1385 = vpop.permute.xlu0 %1384
        %s1387 = sor.u32 256, 16
        %1388 = vbcast.lane.b32.xlu0 %v1378, %s1387
        %v1389 = vpop.permute.xlu0 %1388
        %s1391 = sor.u32 256, 24
        %1392 = vbcast.lane.b32.xlu0 %v1378, %s1391
        %v1393 = vpop.permute.xlu0 %1392
        %v1394 = vlaneseq
        %v1395 = vshrl.u32 %v1394, 7
        %v1396 = vsub.s32 4, %v1395
        %v1397 = vrot.slane %v1135, %v1396
        %1399 = vbcast.lane.b32.xlu0 %v1397, 256
        %v1400 = vpop.permute.xlu0 %1399
        %s1402 = sor.u32 256, 8
        %1403 = vbcast.lane.b32.xlu0 %v1397, %s1402
        %v1404 = vpop.permute.xlu0 %1403
        %s1406 = sor.u32 256, 16
        %1407 = vbcast.lane.b32.xlu0 %v1397, %s1406
        %v1408 = vpop.permute.xlu0 %1407
        %s1410 = sor.u32 256, 24
        %1411 = vbcast.lane.b32.xlu0 %v1397, %s1410
        %v1412 = vpop.permute.xlu0 %1411
        %v1413 = vlaneseq
        %v1414 = vshrl.u32 %v1413, 7
        %v1415 = vsub.s32 5, %v1414
        %v1416 = vrot.slane %v1135, %v1415
        %1418 = vbcast.lane.b32.xlu0 %v1416, 256
        %v1419 = vpop.permute.xlu0 %1418
        %s1421 = sor.u32 256, 8
        %1422 = vbcast.lane.b32.xlu0 %v1416, %s1421
        %v1423 = vpop.permute.xlu0 %1422
        %s1425 = sor.u32 256, 16
        %1426 = vbcast.lane.b32.xlu0 %v1416, %s1425
        %v1427 = vpop.permute.xlu0 %1426
        %s1429 = sor.u32 256, 24
        %1430 = vbcast.lane.b32.xlu0 %v1416, %s1429
        %v1431 = vpop.permute.xlu0 %1430
        %v1432 = vlaneseq
        %v1433 = vshrl.u32 %v1432, 7
        %v1434 = vsub.s32 6, %v1433
        %v1435 = vrot.slane %v1135, %v1434
        %1437 = vbcast.lane.b32.xlu0 %v1435, 256
        %v1438 = vpop.permute.xlu0 %1437
        %s1440 = sor.u32 256, 8
        %1441 = vbcast.lane.b32.xlu0 %v1435, %s1440
        %v1442 = vpop.permute.xlu0 %1441
        %s1444 = sor.u32 256, 16
        %1445 = vbcast.lane.b32.xlu0 %v1435, %s1444
        %v1446 = vpop.permute.xlu0 %1445
        %s1448 = sor.u32 256, 24
        %1449 = vbcast.lane.b32.xlu0 %v1435, %s1448
        %v1450 = vpop.permute.xlu0 %1449
        %v1451 = vlaneseq
        %v1452 = vshrl.u32 %v1451, 7
        %v1453 = vsub.s32 7, %v1452
        %v1454 = vrot.slane %v1135, %v1453
        %1456 = vbcast.lane.b32.xlu0 %v1454, 256
        %v1457 = vpop.permute.xlu0 %1456
        %s1459 = sor.u32 256, 8
        %1460 = vbcast.lane.b32.xlu0 %v1454, %s1459
        %v1461 = vpop.permute.xlu0 %1460
        %s1463 = sor.u32 256, 16
        %1464 = vbcast.lane.b32.xlu0 %v1454, %s1463
        %v1465 = vpop.permute.xlu0 %1464
        %s1467 = sor.u32 256, 24
        %1468 = vbcast.lane.b32.xlu0 %v1454, %s1467
        %v1469 = vpop.permute.xlu0 %1468
        %v1470 = vlaneseq
        %v1471 = vshrl.u32 %v1470, 7
        %v1472 = vsub.s32 0, %v1471
        %v1473 = vrot.slane %v1136, %v1472
        %1475 = vbcast.lane.b32.xlu0 %v1473, 256
        %v1476 = vpop.permute.xlu0 %1475
        %s1478 = sor.u32 256, 8
        %1479 = vbcast.lane.b32.xlu0 %v1473, %s1478
        %v1480 = vpop.permute.xlu0 %1479
        %s1482 = sor.u32 256, 16
        %1483 = vbcast.lane.b32.xlu0 %v1473, %s1482
        %v1484 = vpop.permute.xlu0 %1483
        %s1486 = sor.u32 256, 24
        %1487 = vbcast.lane.b32.xlu0 %v1473, %s1486
        %v1488 = vpop.permute.xlu0 %1487
        %v1489 = vlaneseq
        %v1490 = vshrl.u32 %v1489, 7
        %v1491 = vsub.s32 1, %v1490
        %v1492 = vrot.slane %v1136, %v1491
        %1494 = vbcast.lane.b32.xlu0 %v1492, 256
        %v1495 = vpop.permute.xlu0 %1494
        %s1497 = sor.u32 256, 8
        %1498 = vbcast.lane.b32.xlu0 %v1492, %s1497
        %v1499 = vpop.permute.xlu0 %1498
        %s1501 = sor.u32 256, 16
        %1502 = vbcast.lane.b32.xlu0 %v1492, %s1501
        %v1503 = vpop.permute.xlu0 %1502
        %s1505 = sor.u32 256, 24
        %1506 = vbcast.lane.b32.xlu0 %v1492, %s1505
        %v1507 = vpop.permute.xlu0 %1506
        %v1508 = vlaneseq
        %v1509 = vshrl.u32 %v1508, 7
        %v1510 = vsub.s32 2, %v1509
        %v1511 = vrot.slane %v1136, %v1510
        %1513 = vbcast.lane.b32.xlu0 %v1511, 256
        %v1514 = vpop.permute.xlu0 %1513
        %s1516 = sor.u32 256, 8
        %1517 = vbcast.lane.b32.xlu0 %v1511, %s1516
        %v1518 = vpop.permute.xlu0 %1517
        %s1520 = sor.u32 256, 16
        %1521 = vbcast.lane.b32.xlu0 %v1511, %s1520
        %v1522 = vpop.permute.xlu0 %1521
        %s1524 = sor.u32 256, 24
        %1525 = vbcast.lane.b32.xlu0 %v1511, %s1524
        %v1526 = vpop.permute.xlu0 %1525
        %v1527 = vlaneseq
        %v1528 = vshrl.u32 %v1527, 7
        %v1529 = vsub.s32 3, %v1528
        %v1530 = vrot.slane %v1136, %v1529
        %1532 = vbcast.lane.b32.xlu0 %v1530, 256
        %v1533 = vpop.permute.xlu0 %1532
        %s1535 = sor.u32 256, 8
        %1536 = vbcast.lane.b32.xlu0 %v1530, %s1535
        %v1537 = vpop.permute.xlu0 %1536
        %s1539 = sor.u32 256, 16
        %1540 = vbcast.lane.b32.xlu0 %v1530, %s1539
        %v1541 = vpop.permute.xlu0 %1540
        %s1543 = sor.u32 256, 24
        %1544 = vbcast.lane.b32.xlu0 %v1530, %s1543
        %v1545 = vpop.permute.xlu0 %1544
        %v1546 = vlaneseq
        %v1547 = vshrl.u32 %v1546, 7
        %v1548 = vsub.s32 4, %v1547
        %v1549 = vrot.slane %v1136, %v1548
        %1551 = vbcast.lane.b32.xlu0 %v1549, 256
        %v1552 = vpop.permute.xlu0 %1551
        %s1554 = sor.u32 256, 8
        %1555 = vbcast.lane.b32.xlu0 %v1549, %s1554
        %v1556 = vpop.permute.xlu0 %1555
        %s1558 = sor.u32 256, 16
        %1559 = vbcast.lane.b32.xlu0 %v1549, %s1558
        %v1560 = vpop.permute.xlu0 %1559
        %s1562 = sor.u32 256, 24
        %1563 = vbcast.lane.b32.xlu0 %v1549, %s1562
        %v1564 = vpop.permute.xlu0 %1563
        %v1565 = vlaneseq
        %v1566 = vshrl.u32 %v1565, 7
        %v1567 = vsub.s32 5, %v1566
        %v1568 = vrot.slane %v1136, %v1567
        %1570 = vbcast.lane.b32.xlu0 %v1568, 256
        %v1571 = vpop.permute.xlu0 %1570
        %s1573 = sor.u32 256, 8
        %1574 = vbcast.lane.b32.xlu0 %v1568, %s1573
        %v1575 = vpop.permute.xlu0 %1574
        %s1577 = sor.u32 256, 16
        %1578 = vbcast.lane.b32.xlu0 %v1568, %s1577
        %v1579 = vpop.permute.xlu0 %1578
        %s1581 = sor.u32 256, 24
        %1582 = vbcast.lane.b32.xlu0 %v1568, %s1581
        %v1583 = vpop.permute.xlu0 %1582
        %v1584 = vlaneseq
        %v1585 = vshrl.u32 %v1584, 7
        %v1586 = vsub.s32 6, %v1585
        %v1587 = vrot.slane %v1136, %v1586
        %1589 = vbcast.lane.b32.xlu0 %v1587, 256
        %v1590 = vpop.permute.xlu0 %1589
        %s1592 = sor.u32 256, 8
        %1593 = vbcast.lane.b32.xlu0 %v1587, %s1592
        %v1594 = vpop.permute.xlu0 %1593
        %s1596 = sor.u32 256, 16
        %1597 = vbcast.lane.b32.xlu0 %v1587, %s1596
        %v1598 = vpop.permute.xlu0 %1597
        %s1600 = sor.u32 256, 24
        %1601 = vbcast.lane.b32.xlu0 %v1587, %s1600
        %v1602 = vpop.permute.xlu0 %1601
        %v1603 = vlaneseq
        %v1604 = vshrl.u32 %v1603, 7
        %v1605 = vsub.s32 7, %v1604
        %v1606 = vrot.slane %v1136, %v1605
        %1608 = vbcast.lane.b32.xlu0 %v1606, 256
        %v1609 = vpop.permute.xlu0 %1608
        %s1611 = sor.u32 256, 8
        %1612 = vbcast.lane.b32.xlu0 %v1606, %s1611
        %v1613 = vpop.permute.xlu0 %1612
        %s1615 = sor.u32 256, 16
        %1616 = vbcast.lane.b32.xlu0 %v1606, %s1615
        %v1617 = vpop.permute.xlu0 %1616
        %s1619 = sor.u32 256, 24
        %1620 = vbcast.lane.b32.xlu0 %v1606, %s1619
        %v1621 = vpop.permute.xlu0 %1620
        %v1622 = vlaneseq
        %v1623 = vshrl.u32 %v1622, 7
        %v1624 = vsub.s32 0, %v1623
        %v1625 = vrot.slane %v1137, %v1624
        %1627 = vbcast.lane.b32.xlu0 %v1625, 256
        %v1628 = vpop.permute.xlu0 %1627
        %s1630 = sor.u32 256, 8
        %1631 = vbcast.lane.b32.xlu0 %v1625, %s1630
        %v1632 = vpop.permute.xlu0 %1631
        %s1634 = sor.u32 256, 16
        %1635 = vbcast.lane.b32.xlu0 %v1625, %s1634
        %v1636 = vpop.permute.xlu0 %1635
        %s1638 = sor.u32 256, 24
        %1639 = vbcast.lane.b32.xlu0 %v1625, %s1638
        %v1640 = vpop.permute.xlu0 %1639
        %v1641 = vlaneseq
        %v1642 = vshrl.u32 %v1641, 7
        %v1643 = vsub.s32 1, %v1642
        %v1644 = vrot.slane %v1137, %v1643
        %1646 = vbcast.lane.b32.xlu0 %v1644, 256
        %v1647 = vpop.permute.xlu0 %1646
        %s1649 = sor.u32 256, 8
        %1650 = vbcast.lane.b32.xlu0 %v1644, %s1649
        %v1651 = vpop.permute.xlu0 %1650
        %s1653 = sor.u32 256, 16
        %1654 = vbcast.lane.b32.xlu0 %v1644, %s1653
        %v1655 = vpop.permute.xlu0 %1654
        %s1657 = sor.u32 256, 24
        %1658 = vbcast.lane.b32.xlu0 %v1644, %s1657
        %v1659 = vpop.permute.xlu0 %1658
        %v1660 = vlaneseq
        %v1661 = vshrl.u32 %v1660, 7
        %v1662 = vsub.s32 2, %v1661
        %v1663 = vrot.slane %v1137, %v1662
        %1665 = vbcast.lane.b32.xlu0 %v1663, 256
        %v1666 = vpop.permute.xlu0 %1665
        %s1668 = sor.u32 256, 8
        %1669 = vbcast.lane.b32.xlu0 %v1663, %s1668
        %v1670 = vpop.permute.xlu0 %1669
        %s1672 = sor.u32 256, 16
        %1673 = vbcast.lane.b32.xlu0 %v1663, %s1672
        %v1674 = vpop.permute.xlu0 %1673
        %s1676 = sor.u32 256, 24
        %1677 = vbcast.lane.b32.xlu0 %v1663, %s1676
        %v1678 = vpop.permute.xlu0 %1677
        %v1679 = vlaneseq
        %v1680 = vshrl.u32 %v1679, 7
        %v1681 = vsub.s32 3, %v1680
        %v1682 = vrot.slane %v1137, %v1681
        %1684 = vbcast.lane.b32.xlu0 %v1682, 256
        %v1685 = vpop.permute.xlu0 %1684
        %s1687 = sor.u32 256, 8
        %1688 = vbcast.lane.b32.xlu0 %v1682, %s1687
        %v1689 = vpop.permute.xlu0 %1688
        %s1691 = sor.u32 256, 16
        %1692 = vbcast.lane.b32.xlu0 %v1682, %s1691
        %v1693 = vpop.permute.xlu0 %1692
        %s1695 = sor.u32 256, 24
        %1696 = vbcast.lane.b32.xlu0 %v1682, %s1695
        %v1697 = vpop.permute.xlu0 %1696
        %v1698 = vlaneseq
        %v1699 = vshrl.u32 %v1698, 7
        %v1700 = vsub.s32 4, %v1699
        %v1701 = vrot.slane %v1137, %v1700
        %1703 = vbcast.lane.b32.xlu0 %v1701, 256
        %v1704 = vpop.permute.xlu0 %1703
        %s1706 = sor.u32 256, 8
        %1707 = vbcast.lane.b32.xlu0 %v1701, %s1706
        %v1708 = vpop.permute.xlu0 %1707
        %s1710 = sor.u32 256, 16
        %1711 = vbcast.lane.b32.xlu0 %v1701, %s1710
        %v1712 = vpop.permute.xlu0 %1711
        %s1714 = sor.u32 256, 24
        %1715 = vbcast.lane.b32.xlu0 %v1701, %s1714
        %v1716 = vpop.permute.xlu0 %1715
        %v1717 = vlaneseq
        %v1718 = vshrl.u32 %v1717, 7
        %v1719 = vsub.s32 5, %v1718
        %v1720 = vrot.slane %v1137, %v1719
        %1722 = vbcast.lane.b32.xlu0 %v1720, 256
        %v1723 = vpop.permute.xlu0 %1722
        %s1725 = sor.u32 256, 8
        %1726 = vbcast.lane.b32.xlu0 %v1720, %s1725
        %v1727 = vpop.permute.xlu0 %1726
        %s1729 = sor.u32 256, 16
        %1730 = vbcast.lane.b32.xlu0 %v1720, %s1729
        %v1731 = vpop.permute.xlu0 %1730
        %s1733 = sor.u32 256, 24
        %1734 = vbcast.lane.b32.xlu0 %v1720, %s1733
        %v1735 = vpop.permute.xlu0 %1734
        %v1736 = vlaneseq
        %v1737 = vshrl.u32 %v1736, 7
        %v1738 = vsub.s32 6, %v1737
        %v1739 = vrot.slane %v1137, %v1738
        %1741 = vbcast.lane.b32.xlu0 %v1739, 256
        %v1742 = vpop.permute.xlu0 %1741
        %s1744 = sor.u32 256, 8
        %1745 = vbcast.lane.b32.xlu0 %v1739, %s1744
        %v1746 = vpop.permute.xlu0 %1745
        %s1748 = sor.u32 256, 16
        %1749 = vbcast.lane.b32.xlu0 %v1739, %s1748
        %v1750 = vpop.permute.xlu0 %1749
        %s1752 = sor.u32 256, 24
        %1753 = vbcast.lane.b32.xlu0 %v1739, %s1752
        %v1754 = vpop.permute.xlu0 %1753
        %v1755 = vlaneseq
        %v1756 = vshrl.u32 %v1755, 7
        %v1757 = vsub.s32 7, %v1756
        %v1758 = vrot.slane %v1137, %v1757
        %1760 = vbcast.lane.b32.xlu0 %v1758, 256
        %v1761 = vpop.permute.xlu0 %1760
        %s1763 = sor.u32 256, 8
        %1764 = vbcast.lane.b32.xlu0 %v1758, %s1763
        %v1765 = vpop.permute.xlu0 %1764
        %s1767 = sor.u32 256, 16
        %1768 = vbcast.lane.b32.xlu0 %v1758, %s1767
        %v1769 = vpop.permute.xlu0 %1768
        %s1771 = sor.u32 256, 24
        %1772 = vbcast.lane.b32.xlu0 %v1758, %s1771
        %v1773 = vpop.permute.xlu0 %1772
        %v1774 = vlaneseq
        %v1775 = vshrl.u32 %v1774, 7
        %v1776 = vsub.s32 0, %v1775
        %v1777 = vrot.slane %v1138, %v1776
        %1779 = vbcast.lane.b32.xlu0 %v1777, 256
        %v1780 = vpop.permute.xlu0 %1779
        %s1782 = sor.u32 256, 8
        %1783 = vbcast.lane.b32.xlu0 %v1777, %s1782
        %v1784 = vpop.permute.xlu0 %1783
        %s1786 = sor.u32 256, 16
        %1787 = vbcast.lane.b32.xlu0 %v1777, %s1786
        %v1788 = vpop.permute.xlu0 %1787
        %s1790 = sor.u32 256, 24
        %1791 = vbcast.lane.b32.xlu0 %v1777, %s1790
        %v1792 = vpop.permute.xlu0 %1791
        %v1793 = vlaneseq
        %v1794 = vshrl.u32 %v1793, 7
        %v1795 = vsub.s32 1, %v1794
        %v1796 = vrot.slane %v1138, %v1795
        %1798 = vbcast.lane.b32.xlu0 %v1796, 256
        %v1799 = vpop.permute.xlu0 %1798
        %s1801 = sor.u32 256, 8
        %1802 = vbcast.lane.b32.xlu0 %v1796, %s1801
        %v1803 = vpop.permute.xlu0 %1802
        %s1805 = sor.u32 256, 16
        %1806 = vbcast.lane.b32.xlu0 %v1796, %s1805
        %v1807 = vpop.permute.xlu0 %1806
        %s1809 = sor.u32 256, 24
        %1810 = vbcast.lane.b32.xlu0 %v1796, %s1809
        %v1811 = vpop.permute.xlu0 %1810
        %v1812 = vlaneseq
        %v1813 = vshrl.u32 %v1812, 7
        %v1814 = vsub.s32 2, %v1813
        %v1815 = vrot.slane %v1138, %v1814
        %1817 = vbcast.lane.b32.xlu0 %v1815, 256
        %v1818 = vpop.permute.xlu0 %1817
        %s1820 = sor.u32 256, 8
        %1821 = vbcast.lane.b32.xlu0 %v1815, %s1820
        %v1822 = vpop.permute.xlu0 %1821
        %s1824 = sor.u32 256, 16
        %1825 = vbcast.lane.b32.xlu0 %v1815, %s1824
        %v1826 = vpop.permute.xlu0 %1825
        %s1828 = sor.u32 256, 24
        %1829 = vbcast.lane.b32.xlu0 %v1815, %s1828
        %v1830 = vpop.permute.xlu0 %1829
        %v1831 = vlaneseq
        %v1832 = vshrl.u32 %v1831, 7
        %v1833 = vsub.s32 3, %v1832
        %v1834 = vrot.slane %v1138, %v1833
        %1836 = vbcast.lane.b32.xlu0 %v1834, 256
        %v1837 = vpop.permute.xlu0 %1836
        %s1839 = sor.u32 256, 8
        %1840 = vbcast.lane.b32.xlu0 %v1834, %s1839
        %v1841 = vpop.permute.xlu0 %1840
        %s1843 = sor.u32 256, 16
        %1844 = vbcast.lane.b32.xlu0 %v1834, %s1843
        %v1845 = vpop.permute.xlu0 %1844
        %s1847 = sor.u32 256, 24
        %1848 = vbcast.lane.b32.xlu0 %v1834, %s1847
        %v1849 = vpop.permute.xlu0 %1848
        %v1850 = vlaneseq
        %v1851 = vshrl.u32 %v1850, 7
        %v1852 = vsub.s32 4, %v1851
        %v1853 = vrot.slane %v1138, %v1852
        %1855 = vbcast.lane.b32.xlu0 %v1853, 256
        %v1856 = vpop.permute.xlu0 %1855
        %s1858 = sor.u32 256, 8
        %1859 = vbcast.lane.b32.xlu0 %v1853, %s1858
        %v1860 = vpop.permute.xlu0 %1859
        %s1862 = sor.u32 256, 16
        %1863 = vbcast.lane.b32.xlu0 %v1853, %s1862
        %v1864 = vpop.permute.xlu0 %1863
        %s1866 = sor.u32 256, 24
        %1867 = vbcast.lane.b32.xlu0 %v1853, %s1866
        %v1868 = vpop.permute.xlu0 %1867
        %v1869 = vlaneseq
        %v1870 = vshrl.u32 %v1869, 7
        %v1871 = vsub.s32 5, %v1870
        %v1872 = vrot.slane %v1138, %v1871
        %1874 = vbcast.lane.b32.xlu0 %v1872, 256
        %v1875 = vpop.permute.xlu0 %1874
        %s1877 = sor.u32 256, 8
        %1878 = vbcast.lane.b32.xlu0 %v1872, %s1877
        %v1879 = vpop.permute.xlu0 %1878
        %s1881 = sor.u32 256, 16
        %1882 = vbcast.lane.b32.xlu0 %v1872, %s1881
        %v1883 = vpop.permute.xlu0 %1882
        %s1885 = sor.u32 256, 24
        %1886 = vbcast.lane.b32.xlu0 %v1872, %s1885
        %v1887 = vpop.permute.xlu0 %1886
        %v1888 = vlaneseq
        %v1889 = vshrl.u32 %v1888, 7
        %v1890 = vsub.s32 6, %v1889
        %v1891 = vrot.slane %v1138, %v1890
        %1893 = vbcast.lane.b32.xlu0 %v1891, 256
        %v1894 = vpop.permute.xlu0 %1893
        %s1896 = sor.u32 256, 8
        %1897 = vbcast.lane.b32.xlu0 %v1891, %s1896
        %v1898 = vpop.permute.xlu0 %1897
        %s1900 = sor.u32 256, 16
        %1901 = vbcast.lane.b32.xlu0 %v1891, %s1900
        %v1902 = vpop.permute.xlu0 %1901
        %s1904 = sor.u32 256, 24
        %1905 = vbcast.lane.b32.xlu0 %v1891, %s1904
        %v1906 = vpop.permute.xlu0 %1905
        %v1907 = vlaneseq
        %v1908 = vshrl.u32 %v1907, 7
        %v1909 = vsub.s32 7, %v1908
        %v1910 = vrot.slane %v1138, %v1909
        %1912 = vbcast.lane.b32.xlu0 %v1910, 256
        %v1913 = vpop.permute.xlu0 %1912
        %s1915 = sor.u32 256, 8
        %1916 = vbcast.lane.b32.xlu0 %v1910, %s1915
        %v1917 = vpop.permute.xlu0 %1916
        %s1919 = sor.u32 256, 16
        %1920 = vbcast.lane.b32.xlu0 %v1910, %s1919
        %v1921 = vpop.permute.xlu0 %1920
        %s1923 = sor.u32 256, 24
        %1924 = vbcast.lane.b32.xlu0 %v1910, %s1923
        %v1925 = vpop.permute.xlu0 %1924
        %v1926 = vlaneseq
        %v1927 = vshrl.u32 %v1926, 7
        %v1928 = vsub.s32 0, %v1927
        %v1929 = vrot.slane %v1139, %v1928
        %1931 = vbcast.lane.b32.xlu0 %v1929, 256
        %v1932 = vpop.permute.xlu0 %1931
        %s1934 = sor.u32 256, 8
        %1935 = vbcast.lane.b32.xlu0 %v1929, %s1934
        %v1936 = vpop.permute.xlu0 %1935
        %s1938 = sor.u32 256, 16
        %1939 = vbcast.lane.b32.xlu0 %v1929, %s1938
        %v1940 = vpop.permute.xlu0 %1939
        %s1942 = sor.u32 256, 24
        %1943 = vbcast.lane.b32.xlu0 %v1929, %s1942
        %v1944 = vpop.permute.xlu0 %1943
        %v1945 = vlaneseq
        %v1946 = vshrl.u32 %v1945, 7
        %v1947 = vsub.s32 1, %v1946
        %v1948 = vrot.slane %v1139, %v1947
        %1950 = vbcast.lane.b32.xlu0 %v1948, 256
        %v1951 = vpop.permute.xlu0 %1950
        %s1953 = sor.u32 256, 8
        %1954 = vbcast.lane.b32.xlu0 %v1948, %s1953
        %v1955 = vpop.permute.xlu0 %1954
        %s1957 = sor.u32 256, 16
        %1958 = vbcast.lane.b32.xlu0 %v1948, %s1957
        %v1959 = vpop.permute.xlu0 %1958
        %s1961 = sor.u32 256, 24
        %1962 = vbcast.lane.b32.xlu0 %v1948, %s1961
        %v1963 = vpop.permute.xlu0 %1962
        %v1964 = vlaneseq
        %v1965 = vshrl.u32 %v1964, 7
        %v1966 = vsub.s32 2, %v1965
        %v1967 = vrot.slane %v1139, %v1966
        %1969 = vbcast.lane.b32.xlu0 %v1967, 256
        %v1970 = vpop.permute.xlu0 %1969
        %s1972 = sor.u32 256, 8
        %1973 = vbcast.lane.b32.xlu0 %v1967, %s1972
        %v1974 = vpop.permute.xlu0 %1973
        %s1976 = sor.u32 256, 16
        %1977 = vbcast.lane.b32.xlu0 %v1967, %s1976
        %v1978 = vpop.permute.xlu0 %1977
        %s1980 = sor.u32 256, 24
        %1981 = vbcast.lane.b32.xlu0 %v1967, %s1980
        %v1982 = vpop.permute.xlu0 %1981
        %v1983 = vlaneseq
        %v1984 = vshrl.u32 %v1983, 7
        %v1985 = vsub.s32 3, %v1984
        %v1986 = vrot.slane %v1139, %v1985
        %1988 = vbcast.lane.b32.xlu0 %v1986, 256
        %v1989 = vpop.permute.xlu0 %1988
        %s1991 = sor.u32 256, 8
        %1992 = vbcast.lane.b32.xlu0 %v1986, %s1991
        %v1993 = vpop.permute.xlu0 %1992
        %s1995 = sor.u32 256, 16
        %1996 = vbcast.lane.b32.xlu0 %v1986, %s1995
        %v1997 = vpop.permute.xlu0 %1996
        %s1999 = sor.u32 256, 24
        %2000 = vbcast.lane.b32.xlu0 %v1986, %s1999
        %v2001 = vpop.permute.xlu0 %2000
        %v2002 = vlaneseq
        %v2003 = vshrl.u32 %v2002, 7
        %v2004 = vsub.s32 4, %v2003
        %v2005 = vrot.slane %v1139, %v2004
        %2007 = vbcast.lane.b32.xlu0 %v2005, 256
        %v2008 = vpop.permute.xlu0 %2007
        %s2010 = sor.u32 256, 8
        %2011 = vbcast.lane.b32.xlu0 %v2005, %s2010
        %v2012 = vpop.permute.xlu0 %2011
        %s2014 = sor.u32 256, 16
        %2015 = vbcast.lane.b32.xlu0 %v2005, %s2014
        %v2016 = vpop.permute.xlu0 %2015
        %s2018 = sor.u32 256, 24
        %2019 = vbcast.lane.b32.xlu0 %v2005, %s2018
        %v2020 = vpop.permute.xlu0 %2019
        %v2021 = vlaneseq
        %v2022 = vshrl.u32 %v2021, 7
        %v2023 = vsub.s32 5, %v2022
        %v2024 = vrot.slane %v1139, %v2023
        %2026 = vbcast.lane.b32.xlu0 %v2024, 256
        %v2027 = vpop.permute.xlu0 %2026
        %s2029 = sor.u32 256, 8
        %2030 = vbcast.lane.b32.xlu0 %v2024, %s2029
        %v2031 = vpop.permute.xlu0 %2030
        %s2033 = sor.u32 256, 16
        %2034 = vbcast.lane.b32.xlu0 %v2024, %s2033
        %v2035 = vpop.permute.xlu0 %2034
        %s2037 = sor.u32 256, 24
        %2038 = vbcast.lane.b32.xlu0 %v2024, %s2037
        %v2039 = vpop.permute.xlu0 %2038
        %v2040 = vlaneseq
        %v2041 = vshrl.u32 %v2040, 7
        %v2042 = vsub.s32 6, %v2041
        %v2043 = vrot.slane %v1139, %v2042
        %2045 = vbcast.lane.b32.xlu0 %v2043, 256
        %v2046 = vpop.permute.xlu0 %2045
        %s2048 = sor.u32 256, 8
        %2049 = vbcast.lane.b32.xlu0 %v2043, %s2048
        %v2050 = vpop.permute.xlu0 %2049
        %s2052 = sor.u32 256, 16
        %2053 = vbcast.lane.b32.xlu0 %v2043, %s2052
        %v2054 = vpop.permute.xlu0 %2053
        %s2056 = sor.u32 256, 24
        %2057 = vbcast.lane.b32.xlu0 %v2043, %s2056
        %v2058 = vpop.permute.xlu0 %2057
        %v2059 = vlaneseq
        %v2060 = vshrl.u32 %v2059, 7
        %v2061 = vsub.s32 7, %v2060
        %v2062 = vrot.slane %v1139, %v2061
        %2064 = vbcast.lane.b32.xlu0 %v2062, 256
        %v2065 = vpop.permute.xlu0 %2064
        %s2067 = sor.u32 256, 8
        %2068 = vbcast.lane.b32.xlu0 %v2062, %s2067
        %v2069 = vpop.permute.xlu0 %2068
        %s2071 = sor.u32 256, 16
        %2072 = vbcast.lane.b32.xlu0 %v2062, %s2071
        %v2073 = vpop.permute.xlu0 %2072
        %s2075 = sor.u32 256, 24
        %2076 = vbcast.lane.b32.xlu0 %v2062, %s2075
        %v2077 = vpop.permute.xlu0 %2076
        %v2078 = vlaneseq
        %v2079 = vshrl.u32 %v2078, 7
        %v2080 = vsub.s32 0, %v2079
        %v2081 = vrot.slane %v1140, %v2080
        %2083 = vbcast.lane.b32.xlu0 %v2081, 256
        %v2084 = vpop.permute.xlu0 %2083
        %s2086 = sor.u32 256, 8
        %2087 = vbcast.lane.b32.xlu0 %v2081, %s2086
        %v2088 = vpop.permute.xlu0 %2087
        %s2090 = sor.u32 256, 16
        %2091 = vbcast.lane.b32.xlu0 %v2081, %s2090
        %v2092 = vpop.permute.xlu0 %2091
        %s2094 = sor.u32 256, 24
        %2095 = vbcast.lane.b32.xlu0 %v2081, %s2094
        %v2096 = vpop.permute.xlu0 %2095
        %v2097 = vlaneseq
        %v2098 = vshrl.u32 %v2097, 7
        %v2099 = vsub.s32 1, %v2098
        %v2100 = vrot.slane %v1140, %v2099
        %2102 = vbcast.lane.b32.xlu0 %v2100, 256
        %v2103 = vpop.permute.xlu0 %2102
        %s2105 = sor.u32 256, 8
        %2106 = vbcast.lane.b32.xlu0 %v2100, %s2105
        %v2107 = vpop.permute.xlu0 %2106
        %s2109 = sor.u32 256, 16
        %2110 = vbcast.lane.b32.xlu0 %v2100, %s2109
        %v2111 = vpop.permute.xlu0 %2110
        %s2113 = sor.u32 256, 24
        %2114 = vbcast.lane.b32.xlu0 %v2100, %s2113
        %v2115 = vpop.permute.xlu0 %2114
        %v2116 = vlaneseq
        %v2117 = vshrl.u32 %v2116, 7
        %v2118 = vsub.s32 2, %v2117
        %v2119 = vrot.slane %v1140, %v2118
        %2121 = vbcast.lane.b32.xlu0 %v2119, 256
        %v2122 = vpop.permute.xlu0 %2121
        %s2124 = sor.u32 256, 8
        %2125 = vbcast.lane.b32.xlu0 %v2119, %s2124
        %v2126 = vpop.permute.xlu0 %2125
        %s2128 = sor.u32 256, 16
        %2129 = vbcast.lane.b32.xlu0 %v2119, %s2128
        %v2130 = vpop.permute.xlu0 %2129
        %s2132 = sor.u32 256, 24
        %2133 = vbcast.lane.b32.xlu0 %v2119, %s2132
        %v2134 = vpop.permute.xlu0 %2133
        %v2135 = vlaneseq
        %v2136 = vshrl.u32 %v2135, 7
        %v2137 = vsub.s32 3, %v2136
        %v2138 = vrot.slane %v1140, %v2137
        %2140 = vbcast.lane.b32.xlu0 %v2138, 256
        %v2141 = vpop.permute.xlu0 %2140
        %s2143 = sor.u32 256, 8
        %2144 = vbcast.lane.b32.xlu0 %v2138, %s2143
        %v2145 = vpop.permute.xlu0 %2144
        %s2147 = sor.u32 256, 16
        %2148 = vbcast.lane.b32.xlu0 %v2138, %s2147
        %v2149 = vpop.permute.xlu0 %2148
        %s2151 = sor.u32 256, 24
        %2152 = vbcast.lane.b32.xlu0 %v2138, %s2151
        %v2153 = vpop.permute.xlu0 %2152
        %v2154 = vlaneseq
        %v2155 = vshrl.u32 %v2154, 7
        %v2156 = vsub.s32 4, %v2155
        %v2157 = vrot.slane %v1140, %v2156
        %2159 = vbcast.lane.b32.xlu0 %v2157, 256
        %v2160 = vpop.permute.xlu0 %2159
        %s2162 = sor.u32 256, 8
        %2163 = vbcast.lane.b32.xlu0 %v2157, %s2162
        %v2164 = vpop.permute.xlu0 %2163
        %s2166 = sor.u32 256, 16
        %2167 = vbcast.lane.b32.xlu0 %v2157, %s2166
        %v2168 = vpop.permute.xlu0 %2167
        %s2170 = sor.u32 256, 24
        %2171 = vbcast.lane.b32.xlu0 %v2157, %s2170
        %v2172 = vpop.permute.xlu0 %2171
        %v2173 = vlaneseq
        %v2174 = vshrl.u32 %v2173, 7
        %v2175 = vsub.s32 5, %v2174
        %v2176 = vrot.slane %v1140, %v2175
        %2178 = vbcast.lane.b32.xlu0 %v2176, 256
        %v2179 = vpop.permute.xlu0 %2178
        %s2181 = sor.u32 256, 8
        %2182 = vbcast.lane.b32.xlu0 %v2176, %s2181
        %v2183 = vpop.permute.xlu0 %2182
        %s2185 = sor.u32 256, 16
        %2186 = vbcast.lane.b32.xlu0 %v2176, %s2185
        %v2187 = vpop.permute.xlu0 %2186
        %s2189 = sor.u32 256, 24
        %2190 = vbcast.lane.b32.xlu0 %v2176, %s2189
        %v2191 = vpop.permute.xlu0 %2190
        %v2192 = vlaneseq
        %v2193 = vshrl.u32 %v2192, 7
        %v2194 = vsub.s32 6, %v2193
        %v2195 = vrot.slane %v1140, %v2194
        %2197 = vbcast.lane.b32.xlu0 %v2195, 256
        %v2198 = vpop.permute.xlu0 %2197
        %s2200 = sor.u32 256, 8
        %2201 = vbcast.lane.b32.xlu0 %v2195, %s2200
        %v2202 = vpop.permute.xlu0 %2201
        %s2204 = sor.u32 256, 16
        %2205 = vbcast.lane.b32.xlu0 %v2195, %s2204
        %v2206 = vpop.permute.xlu0 %2205
        %s2208 = sor.u32 256, 24
        %2209 = vbcast.lane.b32.xlu0 %v2195, %s2208
        %v2210 = vpop.permute.xlu0 %2209
        %v2211 = vlaneseq
        %v2212 = vshrl.u32 %v2211, 7
        %v2213 = vsub.s32 7, %v2212
        %v2214 = vrot.slane %v1140, %v2213
        %2216 = vbcast.lane.b32.xlu0 %v2214, 256
        %v2217 = vpop.permute.xlu0 %2216
        %s2219 = sor.u32 256, 8
        %2220 = vbcast.lane.b32.xlu0 %v2214, %s2219
        %v2221 = vpop.permute.xlu0 %2220
        %s2223 = sor.u32 256, 16
        %2224 = vbcast.lane.b32.xlu0 %v2214, %s2223
        %v2225 = vpop.permute.xlu0 %2224
        %s2227 = sor.u32 256, 24
        %2228 = vbcast.lane.b32.xlu0 %v2214, %s2227
        %v2229 = vpop.permute.xlu0 %2228
        %v2230 = vlaneseq
        %v2231 = vshrl.u32 %v2230, 7
        %v2232 = vsub.s32 0, %v2231
        %v2233 = vrot.slane %v1141, %v2232
        %2235 = vbcast.lane.b32.xlu0 %v2233, 256
        %v2236 = vpop.permute.xlu0 %2235
        %s2238 = sor.u32 256, 8
        %2239 = vbcast.lane.b32.xlu0 %v2233, %s2238
        %v2240 = vpop.permute.xlu0 %2239
        %s2242 = sor.u32 256, 16
        %2243 = vbcast.lane.b32.xlu0 %v2233, %s2242
        %v2244 = vpop.permute.xlu0 %2243
        %s2246 = sor.u32 256, 24
        %2247 = vbcast.lane.b32.xlu0 %v2233, %s2246
        %v2248 = vpop.permute.xlu0 %2247
        %v2249 = vlaneseq
        %v2250 = vshrl.u32 %v2249, 7
        %v2251 = vsub.s32 1, %v2250
        %v2252 = vrot.slane %v1141, %v2251
        %2254 = vbcast.lane.b32.xlu0 %v2252, 256
        %v2255 = vpop.permute.xlu0 %2254
        %s2257 = sor.u32 256, 8
        %2258 = vbcast.lane.b32.xlu0 %v2252, %s2257
        %v2259 = vpop.permute.xlu0 %2258
        %s2261 = sor.u32 256, 16
        %2262 = vbcast.lane.b32.xlu0 %v2252, %s2261
        %v2263 = vpop.permute.xlu0 %2262
        %s2265 = sor.u32 256, 24
        %2266 = vbcast.lane.b32.xlu0 %v2252, %s2265
        %v2267 = vpop.permute.xlu0 %2266
        %v2268 = vlaneseq
        %v2269 = vshrl.u32 %v2268, 7
        %v2270 = vsub.s32 2, %v2269
        %v2271 = vrot.slane %v1141, %v2270
        %2273 = vbcast.lane.b32.xlu0 %v2271, 256
        %v2274 = vpop.permute.xlu0 %2273
        %s2276 = sor.u32 256, 8
        %2277 = vbcast.lane.b32.xlu0 %v2271, %s2276
        %v2278 = vpop.permute.xlu0 %2277
        %s2280 = sor.u32 256, 16
        %2281 = vbcast.lane.b32.xlu0 %v2271, %s2280
        %v2282 = vpop.permute.xlu0 %2281
        %s2284 = sor.u32 256, 24
        %2285 = vbcast.lane.b32.xlu0 %v2271, %s2284
        %v2286 = vpop.permute.xlu0 %2285
        %v2287 = vlaneseq
        %v2288 = vshrl.u32 %v2287, 7
        %v2289 = vsub.s32 3, %v2288
        %v2290 = vrot.slane %v1141, %v2289
        %2292 = vbcast.lane.b32.xlu0 %v2290, 256
        %v2293 = vpop.permute.xlu0 %2292
        %s2295 = sor.u32 256, 8
        %2296 = vbcast.lane.b32.xlu0 %v2290, %s2295
        %v2297 = vpop.permute.xlu0 %2296
        %s2299 = sor.u32 256, 16
        %2300 = vbcast.lane.b32.xlu0 %v2290, %s2299
        %v2301 = vpop.permute.xlu0 %2300
        %s2303 = sor.u32 256, 24
        %2304 = vbcast.lane.b32.xlu0 %v2290, %s2303
        %v2305 = vpop.permute.xlu0 %2304
        %v2306 = vlaneseq
        %v2307 = vshrl.u32 %v2306, 7
        %v2308 = vsub.s32 4, %v2307
        %v2309 = vrot.slane %v1141, %v2308
        %2311 = vbcast.lane.b32.xlu0 %v2309, 256
        %v2312 = vpop.permute.xlu0 %2311
        %s2314 = sor.u32 256, 8
        %2315 = vbcast.lane.b32.xlu0 %v2309, %s2314
        %v2316 = vpop.permute.xlu0 %2315
        %s2318 = sor.u32 256, 16
        %2319 = vbcast.lane.b32.xlu0 %v2309, %s2318
        %v2320 = vpop.permute.xlu0 %2319
        %s2322 = sor.u32 256, 24
        %2323 = vbcast.lane.b32.xlu0 %v2309, %s2322
        %v2324 = vpop.permute.xlu0 %2323
        %v2325 = vlaneseq
        %v2326 = vshrl.u32 %v2325, 7
        %v2327 = vsub.s32 5, %v2326
        %v2328 = vrot.slane %v1141, %v2327
        %2330 = vbcast.lane.b32.xlu0 %v2328, 256
        %v2331 = vpop.permute.xlu0 %2330
        %s2333 = sor.u32 256, 8
        %2334 = vbcast.lane.b32.xlu0 %v2328, %s2333
        %v2335 = vpop.permute.xlu0 %2334
        %s2337 = sor.u32 256, 16
        %2338 = vbcast.lane.b32.xlu0 %v2328, %s2337
        %v2339 = vpop.permute.xlu0 %2338
        %s2341 = sor.u32 256, 24
        %2342 = vbcast.lane.b32.xlu0 %v2328, %s2341
        %v2343 = vpop.permute.xlu0 %2342
        %v2344 = vlaneseq
        %v2345 = vshrl.u32 %v2344, 7
        %v2346 = vsub.s32 6, %v2345
        %v2347 = vrot.slane %v1141, %v2346
        %2349 = vbcast.lane.b32.xlu0 %v2347, 256
        %v2350 = vpop.permute.xlu0 %2349
        %s2352 = sor.u32 256, 8
        %2353 = vbcast.lane.b32.xlu0 %v2347, %s2352
        %v2354 = vpop.permute.xlu0 %2353
        %s2356 = sor.u32 256, 16
        %2357 = vbcast.lane.b32.xlu0 %v2347, %s2356
        %v2358 = vpop.permute.xlu0 %2357
        %s2360 = sor.u32 256, 24
        %2361 = vbcast.lane.b32.xlu0 %v2347, %s2360
        %v2362 = vpop.permute.xlu0 %2361
        %v2363 = vlaneseq
        %v2364 = vshrl.u32 %v2363, 7
        %v2365 = vsub.s32 7, %v2364
        %v2366 = vrot.slane %v1141, %v2365
        %2368 = vbcast.lane.b32.xlu0 %v2366, 256
        %v2369 = vpop.permute.xlu0 %2368
        %s2371 = sor.u32 256, 8
        %2372 = vbcast.lane.b32.xlu0 %v2366, %s2371
        %v2373 = vpop.permute.xlu0 %2372
        %s2375 = sor.u32 256, 16
        %2376 = vbcast.lane.b32.xlu0 %v2366, %s2375
        %v2377 = vpop.permute.xlu0 %2376
        %s2379 = sor.u32 256, 24
        %2380 = vbcast.lane.b32.xlu0 %v2366, %s2379
        %v2381 = vpop.permute.xlu0 %2380
        %v2382 = vlaneseq
        %v2383 = vshrl.u32 %v2382, 7
        %v2384 = vsub.s32 0, %v2383
        %v2385 = vrot.slane %v1142, %v2384
        %2387 = vbcast.lane.b32.xlu0 %v2385, 256
        %v2388 = vpop.permute.xlu0 %2387
        %s2390 = sor.u32 256, 8
        %2391 = vbcast.lane.b32.xlu0 %v2385, %s2390
        %v2392 = vpop.permute.xlu0 %2391
        %s2394 = sor.u32 256, 16
        %2395 = vbcast.lane.b32.xlu0 %v2385, %s2394
        %v2396 = vpop.permute.xlu0 %2395
        %s2398 = sor.u32 256, 24
        %2399 = vbcast.lane.b32.xlu0 %v2385, %s2398
        %v2400 = vpop.permute.xlu0 %2399
        %v2401 = vlaneseq
        %v2402 = vshrl.u32 %v2401, 7
        %v2403 = vsub.s32 1, %v2402
        %v2404 = vrot.slane %v1142, %v2403
        %2406 = vbcast.lane.b32.xlu0 %v2404, 256
        %v2407 = vpop.permute.xlu0 %2406
        %s2409 = sor.u32 256, 8
        %2410 = vbcast.lane.b32.xlu0 %v2404, %s2409
        %v2411 = vpop.permute.xlu0 %2410
        %s2413 = sor.u32 256, 16
        %2414 = vbcast.lane.b32.xlu0 %v2404, %s2413
        %v2415 = vpop.permute.xlu0 %2414
        %s2417 = sor.u32 256, 24
        %2418 = vbcast.lane.b32.xlu0 %v2404, %s2417
        %v2419 = vpop.permute.xlu0 %2418
        %v2420 = vlaneseq
        %v2421 = vshrl.u32 %v2420, 7
        %v2422 = vsub.s32 2, %v2421
        %v2423 = vrot.slane %v1142, %v2422
        %2425 = vbcast.lane.b32.xlu0 %v2423, 256
        %v2426 = vpop.permute.xlu0 %2425
        %s2428 = sor.u32 256, 8
        %2429 = vbcast.lane.b32.xlu0 %v2423, %s2428
        %v2430 = vpop.permute.xlu0 %2429
        %s2432 = sor.u32 256, 16
        %2433 = vbcast.lane.b32.xlu0 %v2423, %s2432
        %v2434 = vpop.permute.xlu0 %2433
        %s2436 = sor.u32 256, 24
        %2437 = vbcast.lane.b32.xlu0 %v2423, %s2436
        %v2438 = vpop.permute.xlu0 %2437
        %v2439 = vlaneseq
        %v2440 = vshrl.u32 %v2439, 7
        %v2441 = vsub.s32 3, %v2440
        %v2442 = vrot.slane %v1142, %v2441
        %2444 = vbcast.lane.b32.xlu0 %v2442, 256
        %v2445 = vpop.permute.xlu0 %2444
        %s2447 = sor.u32 256, 8
        %2448 = vbcast.lane.b32.xlu0 %v2442, %s2447
        %v2449 = vpop.permute.xlu0 %2448
        %s2451 = sor.u32 256, 16
        %2452 = vbcast.lane.b32.xlu0 %v2442, %s2451
        %v2453 = vpop.permute.xlu0 %2452
        %s2455 = sor.u32 256, 24
        %2456 = vbcast.lane.b32.xlu0 %v2442, %s2455
        %v2457 = vpop.permute.xlu0 %2456
        %v2458 = vlaneseq
        %v2459 = vshrl.u32 %v2458, 7
        %v2460 = vsub.s32 4, %v2459
        %v2461 = vrot.slane %v1142, %v2460
        %2463 = vbcast.lane.b32.xlu0 %v2461, 256
        %v2464 = vpop.permute.xlu0 %2463
        %s2466 = sor.u32 256, 8
        %2467 = vbcast.lane.b32.xlu0 %v2461, %s2466
        %v2468 = vpop.permute.xlu0 %2467
        %s2470 = sor.u32 256, 16
        %2471 = vbcast.lane.b32.xlu0 %v2461, %s2470
        %v2472 = vpop.permute.xlu0 %2471
        %s2474 = sor.u32 256, 24
        %2475 = vbcast.lane.b32.xlu0 %v2461, %s2474
        %v2476 = vpop.permute.xlu0 %2475
        %v2477 = vlaneseq
        %v2478 = vshrl.u32 %v2477, 7
        %v2479 = vsub.s32 5, %v2478
        %v2480 = vrot.slane %v1142, %v2479
        %2482 = vbcast.lane.b32.xlu0 %v2480, 256
        %v2483 = vpop.permute.xlu0 %2482
        %s2485 = sor.u32 256, 8
        %2486 = vbcast.lane.b32.xlu0 %v2480, %s2485
        %v2487 = vpop.permute.xlu0 %2486
        %s2489 = sor.u32 256, 16
        %2490 = vbcast.lane.b32.xlu0 %v2480, %s2489
        %v2491 = vpop.permute.xlu0 %2490
        %s2493 = sor.u32 256, 24
        %2494 = vbcast.lane.b32.xlu0 %v2480, %s2493
        %v2495 = vpop.permute.xlu0 %2494
        %v2496 = vlaneseq
        %v2497 = vshrl.u32 %v2496, 7
        %v2498 = vsub.s32 6, %v2497
        %v2499 = vrot.slane %v1142, %v2498
        %2501 = vbcast.lane.b32.xlu0 %v2499, 256
        %v2502 = vpop.permute.xlu0 %2501
        %s2504 = sor.u32 256, 8
        %2505 = vbcast.lane.b32.xlu0 %v2499, %s2504
        %v2506 = vpop.permute.xlu0 %2505
        %s2508 = sor.u32 256, 16
        %2509 = vbcast.lane.b32.xlu0 %v2499, %s2508
        %v2510 = vpop.permute.xlu0 %2509
        %s2512 = sor.u32 256, 24
        %2513 = vbcast.lane.b32.xlu0 %v2499, %s2512
        %v2514 = vpop.permute.xlu0 %2513
        %v2515 = vlaneseq
        %v2516 = vshrl.u32 %v2515, 7
        %v2517 = vsub.s32 7, %v2516
        %v2518 = vrot.slane %v1142, %v2517
        %2520 = vbcast.lane.b32.xlu0 %v2518, 256
        %v2521 = vpop.permute.xlu0 %2520
        %s2523 = sor.u32 256, 8
        %2524 = vbcast.lane.b32.xlu0 %v2518, %s2523
        %v2525 = vpop.permute.xlu0 %2524
        %s2527 = sor.u32 256, 16
        %2528 = vbcast.lane.b32.xlu0 %v2518, %s2527
        %v2529 = vpop.permute.xlu0 %2528
        %s2531 = sor.u32 256, 24
        %2532 = vbcast.lane.b32.xlu0 %v2518, %s2531
        %v2533 = vpop.permute.xlu0 %2532
        %v2534 = vlaneseq
        %v2535 = vshrl.u32 %v2534, 7
        %v2536 = vsub.s32 0, %v2535
        %v2537 = vrot.slane %v1143, %v2536
        %2539 = vbcast.lane.b32.xlu0 %v2537, 256
        %v2540 = vpop.permute.xlu0 %2539
        %s2542 = sor.u32 256, 8
        %2543 = vbcast.lane.b32.xlu0 %v2537, %s2542
        %v2544 = vpop.permute.xlu0 %2543
        %s2546 = sor.u32 256, 16
        %2547 = vbcast.lane.b32.xlu0 %v2537, %s2546
        %v2548 = vpop.permute.xlu0 %2547
        %s2550 = sor.u32 256, 24
        %2551 = vbcast.lane.b32.xlu0 %v2537, %s2550
        %v2552 = vpop.permute.xlu0 %2551
        %v2553 = vlaneseq
        %v2554 = vshrl.u32 %v2553, 7
        %v2555 = vsub.s32 1, %v2554
        %v2556 = vrot.slane %v1143, %v2555
        %2558 = vbcast.lane.b32.xlu0 %v2556, 256
        %v2559 = vpop.permute.xlu0 %2558
        %s2561 = sor.u32 256, 8
        %2562 = vbcast.lane.b32.xlu0 %v2556, %s2561
        %v2563 = vpop.permute.xlu0 %2562
        %s2565 = sor.u32 256, 16
        %2566 = vbcast.lane.b32.xlu0 %v2556, %s2565
        %v2567 = vpop.permute.xlu0 %2566
        %s2569 = sor.u32 256, 24
        %2570 = vbcast.lane.b32.xlu0 %v2556, %s2569
        %v2571 = vpop.permute.xlu0 %2570
        %v2572 = vlaneseq
        %v2573 = vshrl.u32 %v2572, 7
        %v2574 = vsub.s32 2, %v2573
        %v2575 = vrot.slane %v1143, %v2574
        %2577 = vbcast.lane.b32.xlu0 %v2575, 256
        %v2578 = vpop.permute.xlu0 %2577
        %s2580 = sor.u32 256, 8
        %2581 = vbcast.lane.b32.xlu0 %v2575, %s2580
        %v2582 = vpop.permute.xlu0 %2581
        %s2584 = sor.u32 256, 16
        %2585 = vbcast.lane.b32.xlu0 %v2575, %s2584
        %v2586 = vpop.permute.xlu0 %2585
        %s2588 = sor.u32 256, 24
        %2589 = vbcast.lane.b32.xlu0 %v2575, %s2588
        %v2590 = vpop.permute.xlu0 %2589
        %v2591 = vlaneseq
        %v2592 = vshrl.u32 %v2591, 7
        %v2593 = vsub.s32 3, %v2592
        %v2594 = vrot.slane %v1143, %v2593
        %2596 = vbcast.lane.b32.xlu0 %v2594, 256
        %v2597 = vpop.permute.xlu0 %2596
        %s2599 = sor.u32 256, 8
        %2600 = vbcast.lane.b32.xlu0 %v2594, %s2599
        %v2601 = vpop.permute.xlu0 %2600
        %s2603 = sor.u32 256, 16
        %2604 = vbcast.lane.b32.xlu0 %v2594, %s2603
        %v2605 = vpop.permute.xlu0 %2604
        %s2607 = sor.u32 256, 24
        %2608 = vbcast.lane.b32.xlu0 %v2594, %s2607
        %v2609 = vpop.permute.xlu0 %2608
        %v2610 = vlaneseq
        %v2611 = vshrl.u32 %v2610, 7
        %v2612 = vsub.s32 4, %v2611
        %v2613 = vrot.slane %v1143, %v2612
        %2615 = vbcast.lane.b32.xlu0 %v2613, 256
        %v2616 = vpop.permute.xlu0 %2615
        %s2618 = sor.u32 256, 8
        %2619 = vbcast.lane.b32.xlu0 %v2613, %s2618
        %v2620 = vpop.permute.xlu0 %2619
        %s2622 = sor.u32 256, 16
        %2623 = vbcast.lane.b32.xlu0 %v2613, %s2622
        %v2624 = vpop.permute.xlu0 %2623
        %s2626 = sor.u32 256, 24
        %2627 = vbcast.lane.b32.xlu0 %v2613, %s2626
        %v2628 = vpop.permute.xlu0 %2627
        %v2629 = vlaneseq
        %v2630 = vshrl.u32 %v2629, 7
        %v2631 = vsub.s32 5, %v2630
        %v2632 = vrot.slane %v1143, %v2631
        %2634 = vbcast.lane.b32.xlu0 %v2632, 256
        %v2635 = vpop.permute.xlu0 %2634
        %s2637 = sor.u32 256, 8
        %2638 = vbcast.lane.b32.xlu0 %v2632, %s2637
        %v2639 = vpop.permute.xlu0 %2638
        %s2641 = sor.u32 256, 16
        %2642 = vbcast.lane.b32.xlu0 %v2632, %s2641
        %v2643 = vpop.permute.xlu0 %2642
        %s2645 = sor.u32 256, 24
        %2646 = vbcast.lane.b32.xlu0 %v2632, %s2645
        %v2647 = vpop.permute.xlu0 %2646
        %v2648 = vlaneseq
        %v2649 = vshrl.u32 %v2648, 7
        %v2650 = vsub.s32 6, %v2649
        %v2651 = vrot.slane %v1143, %v2650
        %2653 = vbcast.lane.b32.xlu0 %v2651, 256
        %v2654 = vpop.permute.xlu0 %2653
        %s2656 = sor.u32 256, 8
        %2657 = vbcast.lane.b32.xlu0 %v2651, %s2656
        %v2658 = vpop.permute.xlu0 %2657
        %s2660 = sor.u32 256, 16
        %2661 = vbcast.lane.b32.xlu0 %v2651, %s2660
        %v2662 = vpop.permute.xlu0 %2661
        %s2664 = sor.u32 256, 24
        %2665 = vbcast.lane.b32.xlu0 %v2651, %s2664
        %v2666 = vpop.permute.xlu0 %2665
        %v2667 = vlaneseq
        %v2668 = vshrl.u32 %v2667, 7
        %v2669 = vsub.s32 7, %v2668
        %v2670 = vrot.slane %v1143, %v2669
        %2672 = vbcast.lane.b32.xlu0 %v2670, 256
        %v2673 = vpop.permute.xlu0 %2672
        %s2675 = sor.u32 256, 8
        %2676 = vbcast.lane.b32.xlu0 %v2670, %s2675
        %v2677 = vpop.permute.xlu0 %2676
        %s2679 = sor.u32 256, 16
        %2680 = vbcast.lane.b32.xlu0 %v2670, %s2679
        %v2681 = vpop.permute.xlu0 %2680
        %s2683 = sor.u32 256, 24
        %2684 = vbcast.lane.b32.xlu0 %v2670, %s2683
        %v2685 = vpop.permute.xlu0 %2684
        %v2686 = vlaneseq
        %v2687 = vshrl.u32 %v2686, 7
        %v2688 = vsub.s32 0, %v2687
        %v2689 = vrot.slane %v1144, %v2688
        %2691 = vbcast.lane.b32.xlu0 %v2689, 256
        %v2692 = vpop.permute.xlu0 %2691
        %s2694 = sor.u32 256, 8
        %2695 = vbcast.lane.b32.xlu0 %v2689, %s2694
        %v2696 = vpop.permute.xlu0 %2695
        %s2698 = sor.u32 256, 16
        %2699 = vbcast.lane.b32.xlu0 %v2689, %s2698
        %v2700 = vpop.permute.xlu0 %2699
        %s2702 = sor.u32 256, 24
        %2703 = vbcast.lane.b32.xlu0 %v2689, %s2702
        %v2704 = vpop.permute.xlu0 %2703
        %v2705 = vlaneseq
        %v2706 = vshrl.u32 %v2705, 7
        %v2707 = vsub.s32 1, %v2706
        %v2708 = vrot.slane %v1144, %v2707
        %2710 = vbcast.lane.b32.xlu0 %v2708, 256
        %v2711 = vpop.permute.xlu0 %2710
        %s2713 = sor.u32 256, 8
        %2714 = vbcast.lane.b32.xlu0 %v2708, %s2713
        %v2715 = vpop.permute.xlu0 %2714
        %s2717 = sor.u32 256, 16
        %2718 = vbcast.lane.b32.xlu0 %v2708, %s2717
        %v2719 = vpop.permute.xlu0 %2718
        %s2721 = sor.u32 256, 24
        %2722 = vbcast.lane.b32.xlu0 %v2708, %s2721
        %v2723 = vpop.permute.xlu0 %2722
        %v2724 = vlaneseq
        %v2725 = vshrl.u32 %v2724, 7
        %v2726 = vsub.s32 2, %v2725
        %v2727 = vrot.slane %v1144, %v2726
        %2729 = vbcast.lane.b32.xlu0 %v2727, 256
        %v2730 = vpop.permute.xlu0 %2729
        %s2732 = sor.u32 256, 8
        %2733 = vbcast.lane.b32.xlu0 %v2727, %s2732
        %v2734 = vpop.permute.xlu0 %2733
        %s2736 = sor.u32 256, 16
        %2737 = vbcast.lane.b32.xlu0 %v2727, %s2736
        %v2738 = vpop.permute.xlu0 %2737
        %s2740 = sor.u32 256, 24
        %2741 = vbcast.lane.b32.xlu0 %v2727, %s2740
        %v2742 = vpop.permute.xlu0 %2741
        %v2743 = vlaneseq
        %v2744 = vshrl.u32 %v2743, 7
        %v2745 = vsub.s32 3, %v2744
        %v2746 = vrot.slane %v1144, %v2745
        %2748 = vbcast.lane.b32.xlu0 %v2746, 256
        %v2749 = vpop.permute.xlu0 %2748
        %s2751 = sor.u32 256, 8
        %2752 = vbcast.lane.b32.xlu0 %v2746, %s2751
        %v2753 = vpop.permute.xlu0 %2752
        %s2755 = sor.u32 256, 16
        %2756 = vbcast.lane.b32.xlu0 %v2746, %s2755
        %v2757 = vpop.permute.xlu0 %2756
        %s2759 = sor.u32 256, 24
        %2760 = vbcast.lane.b32.xlu0 %v2746, %s2759
        %v2761 = vpop.permute.xlu0 %2760
        %v2762 = vlaneseq
        %v2763 = vshrl.u32 %v2762, 7
        %v2764 = vsub.s32 4, %v2763
        %v2765 = vrot.slane %v1144, %v2764
        %2767 = vbcast.lane.b32.xlu0 %v2765, 256
        %v2768 = vpop.permute.xlu0 %2767
        %s2770 = sor.u32 256, 8
        %2771 = vbcast.lane.b32.xlu0 %v2765, %s2770
        %v2772 = vpop.permute.xlu0 %2771
        %s2774 = sor.u32 256, 16
        %2775 = vbcast.lane.b32.xlu0 %v2765, %s2774
        %v2776 = vpop.permute.xlu0 %2775
        %s2778 = sor.u32 256, 24
        %2779 = vbcast.lane.b32.xlu0 %v2765, %s2778
        %v2780 = vpop.permute.xlu0 %2779
        %v2781 = vlaneseq
        %v2782 = vshrl.u32 %v2781, 7
        %v2783 = vsub.s32 5, %v2782
        %v2784 = vrot.slane %v1144, %v2783
        %2786 = vbcast.lane.b32.xlu0 %v2784, 256
        %v2787 = vpop.permute.xlu0 %2786
        %s2789 = sor.u32 256, 8
        %2790 = vbcast.lane.b32.xlu0 %v2784, %s2789
        %v2791 = vpop.permute.xlu0 %2790
        %s2793 = sor.u32 256, 16
        %2794 = vbcast.lane.b32.xlu0 %v2784, %s2793
        %v2795 = vpop.permute.xlu0 %2794
        %s2797 = sor.u32 256, 24
        %2798 = vbcast.lane.b32.xlu0 %v2784, %s2797
        %v2799 = vpop.permute.xlu0 %2798
        %v2800 = vlaneseq
        %v2801 = vshrl.u32 %v2800, 7
        %v2802 = vsub.s32 6, %v2801
        %v2803 = vrot.slane %v1144, %v2802
        %2805 = vbcast.lane.b32.xlu0 %v2803, 256
        %v2806 = vpop.permute.xlu0 %2805
        %s2808 = sor.u32 256, 8
        %2809 = vbcast.lane.b32.xlu0 %v2803, %s2808
        %v2810 = vpop.permute.xlu0 %2809
        %s2812 = sor.u32 256, 16
        %2813 = vbcast.lane.b32.xlu0 %v2803, %s2812
        %v2814 = vpop.permute.xlu0 %2813
        %s2816 = sor.u32 256, 24
        %2817 = vbcast.lane.b32.xlu0 %v2803, %s2816
        %v2818 = vpop.permute.xlu0 %2817
        %v2819 = vlaneseq
        %v2820 = vshrl.u32 %v2819, 7
        %v2821 = vsub.s32 7, %v2820
        %v2822 = vrot.slane %v1144, %v2821
        %2824 = vbcast.lane.b32.xlu0 %v2822, 256
        %v2825 = vpop.permute.xlu0 %2824
        %s2827 = sor.u32 256, 8
        %2828 = vbcast.lane.b32.xlu0 %v2822, %s2827
        %v2829 = vpop.permute.xlu0 %2828
        %s2831 = sor.u32 256, 16
        %2832 = vbcast.lane.b32.xlu0 %v2822, %s2831
        %v2833 = vpop.permute.xlu0 %2832
        %s2835 = sor.u32 256, 24
        %2836 = vbcast.lane.b32.xlu0 %v2822, %s2835
        %v2837 = vpop.permute.xlu0 %2836
        %v2838 = vlaneseq
        %v2839 = vshrl.u32 %v2838, 7
        %v2840 = vsub.s32 0, %v2839
        %v2841 = vrot.slane %v1145, %v2840
        %2843 = vbcast.lane.b32.xlu0 %v2841, 256
        %v2844 = vpop.permute.xlu0 %2843
        %s2846 = sor.u32 256, 8
        %2847 = vbcast.lane.b32.xlu0 %v2841, %s2846
        %v2848 = vpop.permute.xlu0 %2847
        %s2850 = sor.u32 256, 16
        %2851 = vbcast.lane.b32.xlu0 %v2841, %s2850
        %v2852 = vpop.permute.xlu0 %2851
        %s2854 = sor.u32 256, 24
        %2855 = vbcast.lane.b32.xlu0 %v2841, %s2854
        %v2856 = vpop.permute.xlu0 %2855
        %v2857 = vlaneseq
        %v2858 = vshrl.u32 %v2857, 7
        %v2859 = vsub.s32 1, %v2858
        %v2860 = vrot.slane %v1145, %v2859
        %2862 = vbcast.lane.b32.xlu0 %v2860, 256
        %v2863 = vpop.permute.xlu0 %2862
        %s2865 = sor.u32 256, 8
        %2866 = vbcast.lane.b32.xlu0 %v2860, %s2865
        %v2867 = vpop.permute.xlu0 %2866
        %s2869 = sor.u32 256, 16
        %2870 = vbcast.lane.b32.xlu0 %v2860, %s2869
        %v2871 = vpop.permute.xlu0 %2870
        %s2873 = sor.u32 256, 24
        %2874 = vbcast.lane.b32.xlu0 %v2860, %s2873
        %v2875 = vpop.permute.xlu0 %2874
        %v2876 = vlaneseq
        %v2877 = vshrl.u32 %v2876, 7
        %v2878 = vsub.s32 2, %v2877
        %v2879 = vrot.slane %v1145, %v2878
        %2881 = vbcast.lane.b32.xlu0 %v2879, 256
        %v2882 = vpop.permute.xlu0 %2881
        %s2884 = sor.u32 256, 8
        %2885 = vbcast.lane.b32.xlu0 %v2879, %s2884
        %v2886 = vpop.permute.xlu0 %2885
        %s2888 = sor.u32 256, 16
        %2889 = vbcast.lane.b32.xlu0 %v2879, %s2888
        %v2890 = vpop.permute.xlu0 %2889
        %s2892 = sor.u32 256, 24
        %2893 = vbcast.lane.b32.xlu0 %v2879, %s2892
        %v2894 = vpop.permute.xlu0 %2893
        %v2895 = vlaneseq
        %v2896 = vshrl.u32 %v2895, 7
        %v2897 = vsub.s32 3, %v2896
        %v2898 = vrot.slane %v1145, %v2897
        %2900 = vbcast.lane.b32.xlu0 %v2898, 256
        %v2901 = vpop.permute.xlu0 %2900
        %s2903 = sor.u32 256, 8
        %2904 = vbcast.lane.b32.xlu0 %v2898, %s2903
        %v2905 = vpop.permute.xlu0 %2904
        %s2907 = sor.u32 256, 16
        %2908 = vbcast.lane.b32.xlu0 %v2898, %s2907
        %v2909 = vpop.permute.xlu0 %2908
        %s2911 = sor.u32 256, 24
        %2912 = vbcast.lane.b32.xlu0 %v2898, %s2911
        %v2913 = vpop.permute.xlu0 %2912
        %v2914 = vlaneseq
        %v2915 = vshrl.u32 %v2914, 7
        %v2916 = vsub.s32 4, %v2915
        %v2917 = vrot.slane %v1145, %v2916
        %2919 = vbcast.lane.b32.xlu0 %v2917, 256
        %v2920 = vpop.permute.xlu0 %2919
        %s2922 = sor.u32 256, 8
        %2923 = vbcast.lane.b32.xlu0 %v2917, %s2922
        %v2924 = vpop.permute.xlu0 %2923
        %s2926 = sor.u32 256, 16
        %2927 = vbcast.lane.b32.xlu0 %v2917, %s2926
        %v2928 = vpop.permute.xlu0 %2927
        %s2930 = sor.u32 256, 24
        %2931 = vbcast.lane.b32.xlu0 %v2917, %s2930
        %v2932 = vpop.permute.xlu0 %2931
        %v2933 = vlaneseq
        %v2934 = vshrl.u32 %v2933, 7
        %v2935 = vsub.s32 5, %v2934
        %v2936 = vrot.slane %v1145, %v2935
        %2938 = vbcast.lane.b32.xlu0 %v2936, 256
        %v2939 = vpop.permute.xlu0 %2938
        %s2941 = sor.u32 256, 8
        %2942 = vbcast.lane.b32.xlu0 %v2936, %s2941
        %v2943 = vpop.permute.xlu0 %2942
        %s2945 = sor.u32 256, 16
        %2946 = vbcast.lane.b32.xlu0 %v2936, %s2945
        %v2947 = vpop.permute.xlu0 %2946
        %s2949 = sor.u32 256, 24
        %2950 = vbcast.lane.b32.xlu0 %v2936, %s2949
        %v2951 = vpop.permute.xlu0 %2950
        %v2952 = vlaneseq
        %v2953 = vshrl.u32 %v2952, 7
        %v2954 = vsub.s32 6, %v2953
        %v2955 = vrot.slane %v1145, %v2954
        %2957 = vbcast.lane.b32.xlu0 %v2955, 256
        %v2958 = vpop.permute.xlu0 %2957
        %s2960 = sor.u32 256, 8
        %2961 = vbcast.lane.b32.xlu0 %v2955, %s2960
        %v2962 = vpop.permute.xlu0 %2961
        %s2964 = sor.u32 256, 16
        %2965 = vbcast.lane.b32.xlu0 %v2955, %s2964
        %v2966 = vpop.permute.xlu0 %2965
        %s2968 = sor.u32 256, 24
        %2969 = vbcast.lane.b32.xlu0 %v2955, %s2968
        %v2970 = vpop.permute.xlu0 %2969
        %v2971 = vlaneseq
        %v2972 = vshrl.u32 %v2971, 7
        %v2973 = vsub.s32 7, %v2972
        %v2974 = vrot.slane %v1145, %v2973
        %2976 = vbcast.lane.b32.xlu0 %v2974, 256
        %v2977 = vpop.permute.xlu0 %2976
        %s2979 = sor.u32 256, 8
        %2980 = vbcast.lane.b32.xlu0 %v2974, %s2979
        %v2981 = vpop.permute.xlu0 %2980
        %s2983 = sor.u32 256, 16
        %2984 = vbcast.lane.b32.xlu0 %v2974, %s2983
        %v2985 = vpop.permute.xlu0 %2984
        %s2987 = sor.u32 256, 24
        %2988 = vbcast.lane.b32.xlu0 %v2974, %s2987
        %v2989 = vpop.permute.xlu0 %2988
        %v2990 = vlaneseq
        %v2991 = vshrl.u32 %v2990, 7
        %v2992 = vsub.s32 0, %v2991
        %v2993 = vrot.slane %v1146, %v2992
        %2995 = vbcast.lane.b32.xlu0 %v2993, 256
        %v2996 = vpop.permute.xlu0 %2995
        %s2998 = sor.u32 256, 8
        %2999 = vbcast.lane.b32.xlu0 %v2993, %s2998
        %v3000 = vpop.permute.xlu0 %2999
        %s3002 = sor.u32 256, 16
        %3003 = vbcast.lane.b32.xlu0 %v2993, %s3002
        %v3004 = vpop.permute.xlu0 %3003
        %s3006 = sor.u32 256, 24
        %3007 = vbcast.lane.b32.xlu0 %v2993, %s3006
        %v3008 = vpop.permute.xlu0 %3007
        %v3009 = vlaneseq
        %v3010 = vshrl.u32 %v3009, 7
        %v3011 = vsub.s32 1, %v3010
        %v3012 = vrot.slane %v1146, %v3011
        %3014 = vbcast.lane.b32.xlu0 %v3012, 256
        %v3015 = vpop.permute.xlu0 %3014
        %s3017 = sor.u32 256, 8
        %3018 = vbcast.lane.b32.xlu0 %v3012, %s3017
        %v3019 = vpop.permute.xlu0 %3018
        %s3021 = sor.u32 256, 16
        %3022 = vbcast.lane.b32.xlu0 %v3012, %s3021
        %v3023 = vpop.permute.xlu0 %3022
        %s3025 = sor.u32 256, 24
        %3026 = vbcast.lane.b32.xlu0 %v3012, %s3025
        %v3027 = vpop.permute.xlu0 %3026
        %v3028 = vlaneseq
        %v3029 = vshrl.u32 %v3028, 7
        %v3030 = vsub.s32 2, %v3029
        %v3031 = vrot.slane %v1146, %v3030
        %3033 = vbcast.lane.b32.xlu0 %v3031, 256
        %v3034 = vpop.permute.xlu0 %3033
        %s3036 = sor.u32 256, 8
        %3037 = vbcast.lane.b32.xlu0 %v3031, %s3036
        %v3038 = vpop.permute.xlu0 %3037
        %s3040 = sor.u32 256, 16
        %3041 = vbcast.lane.b32.xlu0 %v3031, %s3040
        %v3042 = vpop.permute.xlu0 %3041
        %s3044 = sor.u32 256, 24
        %3045 = vbcast.lane.b32.xlu0 %v3031, %s3044
        %v3046 = vpop.permute.xlu0 %3045
        %v3047 = vlaneseq
        %v3048 = vshrl.u32 %v3047, 7
        %v3049 = vsub.s32 3, %v3048
        %v3050 = vrot.slane %v1146, %v3049
        %3052 = vbcast.lane.b32.xlu0 %v3050, 256
        %v3053 = vpop.permute.xlu0 %3052
        %s3055 = sor.u32 256, 8
        %3056 = vbcast.lane.b32.xlu0 %v3050, %s3055
        %v3057 = vpop.permute.xlu0 %3056
        %s3059 = sor.u32 256, 16
        %3060 = vbcast.lane.b32.xlu0 %v3050, %s3059
        %v3061 = vpop.permute.xlu0 %3060
        %s3063 = sor.u32 256, 24
        %3064 = vbcast.lane.b32.xlu0 %v3050, %s3063
        %v3065 = vpop.permute.xlu0 %3064
        %v3066 = vlaneseq
        %v3067 = vshrl.u32 %v3066, 7
        %v3068 = vsub.s32 4, %v3067
        %v3069 = vrot.slane %v1146, %v3068
        %3071 = vbcast.lane.b32.xlu0 %v3069, 256
        %v3072 = vpop.permute.xlu0 %3071
        %s3074 = sor.u32 256, 8
        %3075 = vbcast.lane.b32.xlu0 %v3069, %s3074
        %v3076 = vpop.permute.xlu0 %3075
        %s3078 = sor.u32 256, 16
        %3079 = vbcast.lane.b32.xlu0 %v3069, %s3078
        %v3080 = vpop.permute.xlu0 %3079
        %s3082 = sor.u32 256, 24
        %3083 = vbcast.lane.b32.xlu0 %v3069, %s3082
        %v3084 = vpop.permute.xlu0 %3083
        %v3085 = vlaneseq
        %v3086 = vshrl.u32 %v3085, 7
        %v3087 = vsub.s32 5, %v3086
        %v3088 = vrot.slane %v1146, %v3087
        %3090 = vbcast.lane.b32.xlu0 %v3088, 256
        %v3091 = vpop.permute.xlu0 %3090
        %s3093 = sor.u32 256, 8
        %3094 = vbcast.lane.b32.xlu0 %v3088, %s3093
        %v3095 = vpop.permute.xlu0 %3094
        %s3097 = sor.u32 256, 16
        %3098 = vbcast.lane.b32.xlu0 %v3088, %s3097
        %v3099 = vpop.permute.xlu0 %3098
        %s3101 = sor.u32 256, 24
        %3102 = vbcast.lane.b32.xlu0 %v3088, %s3101
        %v3103 = vpop.permute.xlu0 %3102
        %v3104 = vlaneseq
        %v3105 = vshrl.u32 %v3104, 7
        %v3106 = vsub.s32 6, %v3105
        %v3107 = vrot.slane %v1146, %v3106
        %3109 = vbcast.lane.b32.xlu0 %v3107, 256
        %v3110 = vpop.permute.xlu0 %3109
        %s3112 = sor.u32 256, 8
        %3113 = vbcast.lane.b32.xlu0 %v3107, %s3112
        %v3114 = vpop.permute.xlu0 %3113
        %s3116 = sor.u32 256, 16
        %3117 = vbcast.lane.b32.xlu0 %v3107, %s3116
        %v3118 = vpop.permute.xlu0 %3117
        %s3120 = sor.u32 256, 24
        %3121 = vbcast.lane.b32.xlu0 %v3107, %s3120
        %v3122 = vpop.permute.xlu0 %3121
        %v3123 = vlaneseq
        %v3124 = vshrl.u32 %v3123, 7
        %v3125 = vsub.s32 7, %v3124
        %v3126 = vrot.slane %v1146, %v3125
        %3128 = vbcast.lane.b32.xlu0 %v3126, 256
        %v3129 = vpop.permute.xlu0 %3128
        %s3131 = sor.u32 256, 8
        %3132 = vbcast.lane.b32.xlu0 %v3126, %s3131
        %v3133 = vpop.permute.xlu0 %3132
        %s3135 = sor.u32 256, 16
        %3136 = vbcast.lane.b32.xlu0 %v3126, %s3135
        %v3137 = vpop.permute.xlu0 %3136
        %s3139 = sor.u32 256, 24
        %3140 = vbcast.lane.b32.xlu0 %v3126, %s3139
        %v3141 = vpop.permute.xlu0 %3140
        %v3142 = vlaneseq
        %v3143 = vshrl.u32 %v3142, 7
        %v3144 = vsub.s32 0, %v3143
        %v3145 = vrot.slane %v1147, %v3144
        %3147 = vbcast.lane.b32.xlu0 %v3145, 256
        %v3148 = vpop.permute.xlu0 %3147
        %s3150 = sor.u32 256, 8
        %3151 = vbcast.lane.b32.xlu0 %v3145, %s3150
        %v3152 = vpop.permute.xlu0 %3151
        %s3154 = sor.u32 256, 16
        %3155 = vbcast.lane.b32.xlu0 %v3145, %s3154
        %v3156 = vpop.permute.xlu0 %3155
        %s3158 = sor.u32 256, 24
        %3159 = vbcast.lane.b32.xlu0 %v3145, %s3158
        %v3160 = vpop.permute.xlu0 %3159
        %v3161 = vlaneseq
        %v3162 = vshrl.u32 %v3161, 7
        %v3163 = vsub.s32 1, %v3162
        %v3164 = vrot.slane %v1147, %v3163
        %3166 = vbcast.lane.b32.xlu0 %v3164, 256
        %v3167 = vpop.permute.xlu0 %3166
        %s3169 = sor.u32 256, 8
        %3170 = vbcast.lane.b32.xlu0 %v3164, %s3169
        %v3171 = vpop.permute.xlu0 %3170
        %s3173 = sor.u32 256, 16
        %3174 = vbcast.lane.b32.xlu0 %v3164, %s3173
        %v3175 = vpop.permute.xlu0 %3174
        %s3177 = sor.u32 256, 24
        %3178 = vbcast.lane.b32.xlu0 %v3164, %s3177
        %v3179 = vpop.permute.xlu0 %3178
        %v3180 = vlaneseq
        %v3181 = vshrl.u32 %v3180, 7
        %v3182 = vsub.s32 2, %v3181
        %v3183 = vrot.slane %v1147, %v3182
        %3185 = vbcast.lane.b32.xlu0 %v3183, 256
        %v3186 = vpop.permute.xlu0 %3185
        %s3188 = sor.u32 256, 8
        %3189 = vbcast.lane.b32.xlu0 %v3183, %s3188
        %v3190 = vpop.permute.xlu0 %3189
        %s3192 = sor.u32 256, 16
        %3193 = vbcast.lane.b32.xlu0 %v3183, %s3192
        %v3194 = vpop.permute.xlu0 %3193
        %s3196 = sor.u32 256, 24
        %3197 = vbcast.lane.b32.xlu0 %v3183, %s3196
        %v3198 = vpop.permute.xlu0 %3197
        %v3199 = vlaneseq
        %v3200 = vshrl.u32 %v3199, 7
        %v3201 = vsub.s32 3, %v3200
        %v3202 = vrot.slane %v1147, %v3201
        %3204 = vbcast.lane.b32.xlu0 %v3202, 256
        %v3205 = vpop.permute.xlu0 %3204
        %s3207 = sor.u32 256, 8
        %3208 = vbcast.lane.b32.xlu0 %v3202, %s3207
        %v3209 = vpop.permute.xlu0 %3208
        %s3211 = sor.u32 256, 16
        %3212 = vbcast.lane.b32.xlu0 %v3202, %s3211
        %v3213 = vpop.permute.xlu0 %3212
        %s3215 = sor.u32 256, 24
        %3216 = vbcast.lane.b32.xlu0 %v3202, %s3215
        %v3217 = vpop.permute.xlu0 %3216
        %v3218 = vlaneseq
        %v3219 = vshrl.u32 %v3218, 7
        %v3220 = vsub.s32 4, %v3219
        %v3221 = vrot.slane %v1147, %v3220
        %3223 = vbcast.lane.b32.xlu0 %v3221, 256
        %v3224 = vpop.permute.xlu0 %3223
        %s3226 = sor.u32 256, 8
        %3227 = vbcast.lane.b32.xlu0 %v3221, %s3226
        %v3228 = vpop.permute.xlu0 %3227
        %s3230 = sor.u32 256, 16
        %3231 = vbcast.lane.b32.xlu0 %v3221, %s3230
        %v3232 = vpop.permute.xlu0 %3231
        %s3234 = sor.u32 256, 24
        %3235 = vbcast.lane.b32.xlu0 %v3221, %s3234
        %v3236 = vpop.permute.xlu0 %3235
        %v3237 = vlaneseq
        %v3238 = vshrl.u32 %v3237, 7
        %v3239 = vsub.s32 5, %v3238
        %v3240 = vrot.slane %v1147, %v3239
        %3242 = vbcast.lane.b32.xlu0 %v3240, 256
        %v3243 = vpop.permute.xlu0 %3242
        %s3245 = sor.u32 256, 8
        %3246 = vbcast.lane.b32.xlu0 %v3240, %s3245
        %v3247 = vpop.permute.xlu0 %3246
        %s3249 = sor.u32 256, 16
        %3250 = vbcast.lane.b32.xlu0 %v3240, %s3249
        %v3251 = vpop.permute.xlu0 %3250
        %s3253 = sor.u32 256, 24
        %3254 = vbcast.lane.b32.xlu0 %v3240, %s3253
        %v3255 = vpop.permute.xlu0 %3254
        %v3256 = vlaneseq
        %v3257 = vshrl.u32 %v3256, 7
        %v3258 = vsub.s32 6, %v3257
        %v3259 = vrot.slane %v1147, %v3258
        %3261 = vbcast.lane.b32.xlu0 %v3259, 256
        %v3262 = vpop.permute.xlu0 %3261
        %s3264 = sor.u32 256, 8
        %3265 = vbcast.lane.b32.xlu0 %v3259, %s3264
        %v3266 = vpop.permute.xlu0 %3265
        %s3268 = sor.u32 256, 16
        %3269 = vbcast.lane.b32.xlu0 %v3259, %s3268
        %v3270 = vpop.permute.xlu0 %3269
        %s3272 = sor.u32 256, 24
        %3273 = vbcast.lane.b32.xlu0 %v3259, %s3272
        %v3274 = vpop.permute.xlu0 %3273
        %v3275 = vlaneseq
        %v3276 = vshrl.u32 %v3275, 7
        %v3277 = vsub.s32 7, %v3276
        %v3278 = vrot.slane %v1147, %v3277
        %3280 = vbcast.lane.b32.xlu0 %v3278, 256
        %v3281 = vpop.permute.xlu0 %3280
        %s3283 = sor.u32 256, 8
        %3284 = vbcast.lane.b32.xlu0 %v3278, %s3283
        %v3285 = vpop.permute.xlu0 %3284
        %s3287 = sor.u32 256, 16
        %3288 = vbcast.lane.b32.xlu0 %v3278, %s3287
        %v3289 = vpop.permute.xlu0 %3288
        %s3291 = sor.u32 256, 24
        %3292 = vbcast.lane.b32.xlu0 %v3278, %s3291
        %v3293 = vpop.permute.xlu0 %3292
        %v3294 = vlaneseq
        %v3295 = vshrl.u32 %v3294, 7
        %v3296 = vsub.s32 0, %v3295
        %v3297 = vrot.slane %v1148, %v3296
        %3299 = vbcast.lane.b32.xlu0 %v3297, 256
        %v3300 = vpop.permute.xlu0 %3299
        %s3302 = sor.u32 256, 8
        %3303 = vbcast.lane.b32.xlu0 %v3297, %s3302
        %v3304 = vpop.permute.xlu0 %3303
        %s3306 = sor.u32 256, 16
        %3307 = vbcast.lane.b32.xlu0 %v3297, %s3306
        %v3308 = vpop.permute.xlu0 %3307
        %s3310 = sor.u32 256, 24
        %3311 = vbcast.lane.b32.xlu0 %v3297, %s3310
        %v3312 = vpop.permute.xlu0 %3311
        %v3313 = vlaneseq
        %v3314 = vshrl.u32 %v3313, 7
        %v3315 = vsub.s32 1, %v3314
        %v3316 = vrot.slane %v1148, %v3315
        %3318 = vbcast.lane.b32.xlu0 %v3316, 256
        %v3319 = vpop.permute.xlu0 %3318
        %s3321 = sor.u32 256, 8
        %3322 = vbcast.lane.b32.xlu0 %v3316, %s3321
        %v3323 = vpop.permute.xlu0 %3322
        %s3325 = sor.u32 256, 16
        %3326 = vbcast.lane.b32.xlu0 %v3316, %s3325
        %v3327 = vpop.permute.xlu0 %3326
        %s3329 = sor.u32 256, 24
        %3330 = vbcast.lane.b32.xlu0 %v3316, %s3329
        %v3331 = vpop.permute.xlu0 %3330
        %v3332 = vlaneseq
        %v3333 = vshrl.u32 %v3332, 7
        %v3334 = vsub.s32 2, %v3333
        %v3335 = vrot.slane %v1148, %v3334
        %3337 = vbcast.lane.b32.xlu0 %v3335, 256
        %v3338 = vpop.permute.xlu0 %3337
        %s3340 = sor.u32 256, 8
        %3341 = vbcast.lane.b32.xlu0 %v3335, %s3340
        %v3342 = vpop.permute.xlu0 %3341
        %s3344 = sor.u32 256, 16
        %3345 = vbcast.lane.b32.xlu0 %v3335, %s3344
        %v3346 = vpop.permute.xlu0 %3345
        %s3348 = sor.u32 256, 24
        %3349 = vbcast.lane.b32.xlu0 %v3335, %s3348
        %v3350 = vpop.permute.xlu0 %3349
        %v3351 = vlaneseq
        %v3352 = vshrl.u32 %v3351, 7
        %v3353 = vsub.s32 3, %v3352
        %v3354 = vrot.slane %v1148, %v3353
        %3356 = vbcast.lane.b32.xlu0 %v3354, 256
        %v3357 = vpop.permute.xlu0 %3356
        %s3359 = sor.u32 256, 8
        %3360 = vbcast.lane.b32.xlu0 %v3354, %s3359
        %v3361 = vpop.permute.xlu0 %3360
        %s3363 = sor.u32 256, 16
        %3364 = vbcast.lane.b32.xlu0 %v3354, %s3363
        %v3365 = vpop.permute.xlu0 %3364
        %s3367 = sor.u32 256, 24
        %3368 = vbcast.lane.b32.xlu0 %v3354, %s3367
        %v3369 = vpop.permute.xlu0 %3368
        %v3370 = vlaneseq
        %v3371 = vshrl.u32 %v3370, 7
        %v3372 = vsub.s32 4, %v3371
        %v3373 = vrot.slane %v1148, %v3372
        %3375 = vbcast.lane.b32.xlu0 %v3373, 256
        %v3376 = vpop.permute.xlu0 %3375
        %s3378 = sor.u32 256, 8
        %3379 = vbcast.lane.b32.xlu0 %v3373, %s3378
        %v3380 = vpop.permute.xlu0 %3379
        %s3382 = sor.u32 256, 16
        %3383 = vbcast.lane.b32.xlu0 %v3373, %s3382
        %v3384 = vpop.permute.xlu0 %3383
        %s3386 = sor.u32 256, 24
        %3387 = vbcast.lane.b32.xlu0 %v3373, %s3386
        %v3388 = vpop.permute.xlu0 %3387
        %v3389 = vlaneseq
        %v3390 = vshrl.u32 %v3389, 7
        %v3391 = vsub.s32 5, %v3390
        %v3392 = vrot.slane %v1148, %v3391
        %3394 = vbcast.lane.b32.xlu0 %v3392, 256
        %v3395 = vpop.permute.xlu0 %3394
        %s3397 = sor.u32 256, 8
        %3398 = vbcast.lane.b32.xlu0 %v3392, %s3397
        %v3399 = vpop.permute.xlu0 %3398
        %s3401 = sor.u32 256, 16
        %3402 = vbcast.lane.b32.xlu0 %v3392, %s3401
        %v3403 = vpop.permute.xlu0 %3402
        %s3405 = sor.u32 256, 24
        %3406 = vbcast.lane.b32.xlu0 %v3392, %s3405
        %v3407 = vpop.permute.xlu0 %3406
        %v3408 = vlaneseq
        %v3409 = vshrl.u32 %v3408, 7
        %v3410 = vsub.s32 6, %v3409
        %v3411 = vrot.slane %v1148, %v3410
        %3413 = vbcast.lane.b32.xlu0 %v3411, 256
        %v3414 = vpop.permute.xlu0 %3413
        %s3416 = sor.u32 256, 8
        %3417 = vbcast.lane.b32.xlu0 %v3411, %s3416
        %v3418 = vpop.permute.xlu0 %3417
        %s3420 = sor.u32 256, 16
        %3421 = vbcast.lane.b32.xlu0 %v3411, %s3420
        %v3422 = vpop.permute.xlu0 %3421
        %s3424 = sor.u32 256, 24
        %3425 = vbcast.lane.b32.xlu0 %v3411, %s3424
        %v3426 = vpop.permute.xlu0 %3425
        %v3427 = vlaneseq
        %v3428 = vshrl.u32 %v3427, 7
        %v3429 = vsub.s32 7, %v3428
        %v3430 = vrot.slane %v1148, %v3429
        %3432 = vbcast.lane.b32.xlu0 %v3430, 256
        %v3433 = vpop.permute.xlu0 %3432
        %s3435 = sor.u32 256, 8
        %3436 = vbcast.lane.b32.xlu0 %v3430, %s3435
        %v3437 = vpop.permute.xlu0 %3436
        %s3439 = sor.u32 256, 16
        %3440 = vbcast.lane.b32.xlu0 %v3430, %s3439
        %v3441 = vpop.permute.xlu0 %3440
        %s3443 = sor.u32 256, 24
        %3444 = vbcast.lane.b32.xlu0 %v3430, %s3443
        %v3445 = vpop.permute.xlu0 %3444
        %v3446 = vlaneseq
        %v3447 = vshrl.u32 %v3446, 7
        %v3448 = vsub.s32 0, %v3447
        %v3449 = vrot.slane %v1149, %v3448
        %3451 = vbcast.lane.b32.xlu0 %v3449, 256
        %v3452 = vpop.permute.xlu0 %3451
        %s3454 = sor.u32 256, 8
        %3455 = vbcast.lane.b32.xlu0 %v3449, %s3454
        %v3456 = vpop.permute.xlu0 %3455
        %s3458 = sor.u32 256, 16
        %3459 = vbcast.lane.b32.xlu0 %v3449, %s3458
        %v3460 = vpop.permute.xlu0 %3459
        %s3462 = sor.u32 256, 24
        %3463 = vbcast.lane.b32.xlu0 %v3449, %s3462
        %v3464 = vpop.permute.xlu0 %3463
        %v3465 = vlaneseq
        %v3466 = vshrl.u32 %v3465, 7
        %v3467 = vsub.s32 1, %v3466
        %v3468 = vrot.slane %v1149, %v3467
        %3470 = vbcast.lane.b32.xlu0 %v3468, 256
        %v3471 = vpop.permute.xlu0 %3470
        %s3473 = sor.u32 256, 8
        %3474 = vbcast.lane.b32.xlu0 %v3468, %s3473
        %v3475 = vpop.permute.xlu0 %3474
        %s3477 = sor.u32 256, 16
        %3478 = vbcast.lane.b32.xlu0 %v3468, %s3477
        %v3479 = vpop.permute.xlu0 %3478
        %s3481 = sor.u32 256, 24
        %3482 = vbcast.lane.b32.xlu0 %v3468, %s3481
        %v3483 = vpop.permute.xlu0 %3482
        %v3484 = vlaneseq
        %v3485 = vshrl.u32 %v3484, 7
        %v3486 = vsub.s32 2, %v3485
        %v3487 = vrot.slane %v1149, %v3486
        %3489 = vbcast.lane.b32.xlu0 %v3487, 256
        %v3490 = vpop.permute.xlu0 %3489
        %s3492 = sor.u32 256, 8
        %3493 = vbcast.lane.b32.xlu0 %v3487, %s3492
        %v3494 = vpop.permute.xlu0 %3493
        %s3496 = sor.u32 256, 16
        %3497 = vbcast.lane.b32.xlu0 %v3487, %s3496
        %v3498 = vpop.permute.xlu0 %3497
        %s3500 = sor.u32 256, 24
        %3501 = vbcast.lane.b32.xlu0 %v3487, %s3500
        %v3502 = vpop.permute.xlu0 %3501
        %v3503 = vlaneseq
        %v3504 = vshrl.u32 %v3503, 7
        %v3505 = vsub.s32 3, %v3504
        %v3506 = vrot.slane %v1149, %v3505
        %3508 = vbcast.lane.b32.xlu0 %v3506, 256
        %v3509 = vpop.permute.xlu0 %3508
        %s3511 = sor.u32 256, 8
        %3512 = vbcast.lane.b32.xlu0 %v3506, %s3511
        %v3513 = vpop.permute.xlu0 %3512
        %s3515 = sor.u32 256, 16
        %3516 = vbcast.lane.b32.xlu0 %v3506, %s3515
        %v3517 = vpop.permute.xlu0 %3516
        %s3519 = sor.u32 256, 24
        %3520 = vbcast.lane.b32.xlu0 %v3506, %s3519
        %v3521 = vpop.permute.xlu0 %3520
        %v3522 = vlaneseq
        %v3523 = vshrl.u32 %v3522, 7
        %v3524 = vsub.s32 4, %v3523
        %v3525 = vrot.slane %v1149, %v3524
        %3527 = vbcast.lane.b32.xlu0 %v3525, 256
        %v3528 = vpop.permute.xlu0 %3527
        %s3530 = sor.u32 256, 8
        %3531 = vbcast.lane.b32.xlu0 %v3525, %s3530
        %v3532 = vpop.permute.xlu0 %3531
        %s3534 = sor.u32 256, 16
        %3535 = vbcast.lane.b32.xlu0 %v3525, %s3534
        %v3536 = vpop.permute.xlu0 %3535
        %s3538 = sor.u32 256, 24
        %3539 = vbcast.lane.b32.xlu0 %v3525, %s3538
        %v3540 = vpop.permute.xlu0 %3539
        %v3541 = vlaneseq
        %v3542 = vshrl.u32 %v3541, 7
        %v3543 = vsub.s32 5, %v3542
        %v3544 = vrot.slane %v1149, %v3543
        %3546 = vbcast.lane.b32.xlu0 %v3544, 256
        %v3547 = vpop.permute.xlu0 %3546
        %s3549 = sor.u32 256, 8
        %3550 = vbcast.lane.b32.xlu0 %v3544, %s3549
        %v3551 = vpop.permute.xlu0 %3550
        %s3553 = sor.u32 256, 16
        %3554 = vbcast.lane.b32.xlu0 %v3544, %s3553
        %v3555 = vpop.permute.xlu0 %3554
        %s3557 = sor.u32 256, 24
        %3558 = vbcast.lane.b32.xlu0 %v3544, %s3557
        %v3559 = vpop.permute.xlu0 %3558
        %v3560 = vlaneseq
        %v3561 = vshrl.u32 %v3560, 7
        %v3562 = vsub.s32 6, %v3561
        %v3563 = vrot.slane %v1149, %v3562
        %3565 = vbcast.lane.b32.xlu0 %v3563, 256
        %v3566 = vpop.permute.xlu0 %3565
        %s3568 = sor.u32 256, 8
        %3569 = vbcast.lane.b32.xlu0 %v3563, %s3568
        %v3570 = vpop.permute.xlu0 %3569
        %s3572 = sor.u32 256, 16
        %3573 = vbcast.lane.b32.xlu0 %v3563, %s3572
        %v3574 = vpop.permute.xlu0 %3573
        %s3576 = sor.u32 256, 24
        %3577 = vbcast.lane.b32.xlu0 %v3563, %s3576
        %v3578 = vpop.permute.xlu0 %3577
        %v3579 = vlaneseq
        %v3580 = vshrl.u32 %v3579, 7
        %v3581 = vsub.s32 7, %v3580
        %v3582 = vrot.slane %v1149, %v3581
        %3584 = vbcast.lane.b32.xlu0 %v3582, 256
        %v3585 = vpop.permute.xlu0 %3584
        %s3587 = sor.u32 256, 8
        %3588 = vbcast.lane.b32.xlu0 %v3582, %s3587
        %v3589 = vpop.permute.xlu0 %3588
        %s3591 = sor.u32 256, 16
        %3592 = vbcast.lane.b32.xlu0 %v3582, %s3591
        %v3593 = vpop.permute.xlu0 %3592
        %s3595 = sor.u32 256, 24
        %3596 = vbcast.lane.b32.xlu0 %v3582, %s3595
        %v3597 = vpop.permute.xlu0 %3596
        %v3598 = vlaneseq
        %v3599 = vshrl.u32 %v3598, 7
        %v3600 = vsub.s32 0, %v3599
        %v3601 = vrot.slane %v1150, %v3600
        %3603 = vbcast.lane.b32.xlu0 %v3601, 256
        %v3604 = vpop.permute.xlu0 %3603
        %s3606 = sor.u32 256, 8
        %3607 = vbcast.lane.b32.xlu0 %v3601, %s3606
        %v3608 = vpop.permute.xlu0 %3607
        %s3610 = sor.u32 256, 16
        %3611 = vbcast.lane.b32.xlu0 %v3601, %s3610
        %v3612 = vpop.permute.xlu0 %3611
        %s3614 = sor.u32 256, 24
        %3615 = vbcast.lane.b32.xlu0 %v3601, %s3614
        %v3616 = vpop.permute.xlu0 %3615
        %v3617 = vlaneseq
        %v3618 = vshrl.u32 %v3617, 7
        %v3619 = vsub.s32 1, %v3618
        %v3620 = vrot.slane %v1150, %v3619
        %3622 = vbcast.lane.b32.xlu0 %v3620, 256
        %v3623 = vpop.permute.xlu0 %3622
        %s3625 = sor.u32 256, 8
        %3626 = vbcast.lane.b32.xlu0 %v3620, %s3625
        %v3627 = vpop.permute.xlu0 %3626
        %s3629 = sor.u32 256, 16
        %3630 = vbcast.lane.b32.xlu0 %v3620, %s3629
        %v3631 = vpop.permute.xlu0 %3630
        %s3633 = sor.u32 256, 24
        %3634 = vbcast.lane.b32.xlu0 %v3620, %s3633
        %v3635 = vpop.permute.xlu0 %3634
        %v3636 = vlaneseq
        %v3637 = vshrl.u32 %v3636, 7
        %v3638 = vsub.s32 2, %v3637
        %v3639 = vrot.slane %v1150, %v3638
        %3641 = vbcast.lane.b32.xlu0 %v3639, 256
        %v3642 = vpop.permute.xlu0 %3641
        %s3644 = sor.u32 256, 8
        %3645 = vbcast.lane.b32.xlu0 %v3639, %s3644
        %v3646 = vpop.permute.xlu0 %3645
        %s3648 = sor.u32 256, 16
        %3649 = vbcast.lane.b32.xlu0 %v3639, %s3648
        %v3650 = vpop.permute.xlu0 %3649
        %s3652 = sor.u32 256, 24
        %3653 = vbcast.lane.b32.xlu0 %v3639, %s3652
        %v3654 = vpop.permute.xlu0 %3653
        %v3655 = vlaneseq
        %v3656 = vshrl.u32 %v3655, 7
        %v3657 = vsub.s32 3, %v3656
        %v3658 = vrot.slane %v1150, %v3657
        %3660 = vbcast.lane.b32.xlu0 %v3658, 256
        %v3661 = vpop.permute.xlu0 %3660
        %s3663 = sor.u32 256, 8
        %3664 = vbcast.lane.b32.xlu0 %v3658, %s3663
        %v3665 = vpop.permute.xlu0 %3664
        %s3667 = sor.u32 256, 16
        %3668 = vbcast.lane.b32.xlu0 %v3658, %s3667
        %v3669 = vpop.permute.xlu0 %3668
        %s3671 = sor.u32 256, 24
        %3672 = vbcast.lane.b32.xlu0 %v3658, %s3671
        %v3673 = vpop.permute.xlu0 %3672
        %v3674 = vlaneseq
        %v3675 = vshrl.u32 %v3674, 7
        %v3676 = vsub.s32 4, %v3675
        %v3677 = vrot.slane %v1150, %v3676
        %3679 = vbcast.lane.b32.xlu0 %v3677, 256
        %v3680 = vpop.permute.xlu0 %3679
        %s3682 = sor.u32 256, 8
        %3683 = vbcast.lane.b32.xlu0 %v3677, %s3682
        %v3684 = vpop.permute.xlu0 %3683
        %s3686 = sor.u32 256, 16
        %3687 = vbcast.lane.b32.xlu0 %v3677, %s3686
        %v3688 = vpop.permute.xlu0 %3687
        %s3690 = sor.u32 256, 24
        %3691 = vbcast.lane.b32.xlu0 %v3677, %s3690
        %v3692 = vpop.permute.xlu0 %3691
        %v3693 = vlaneseq
        %v3694 = vshrl.u32 %v3693, 7
        %v3695 = vsub.s32 5, %v3694
        %v3696 = vrot.slane %v1150, %v3695
        %3698 = vbcast.lane.b32.xlu0 %v3696, 256
        %v3699 = vpop.permute.xlu0 %3698
        %s3701 = sor.u32 256, 8
        %3702 = vbcast.lane.b32.xlu0 %v3696, %s3701
        %v3703 = vpop.permute.xlu0 %3702
        %s3705 = sor.u32 256, 16
        %3706 = vbcast.lane.b32.xlu0 %v3696, %s3705
        %v3707 = vpop.permute.xlu0 %3706
        %s3709 = sor.u32 256, 24
        %3710 = vbcast.lane.b32.xlu0 %v3696, %s3709
        %v3711 = vpop.permute.xlu0 %3710
        %v3712 = vlaneseq
        %v3713 = vshrl.u32 %v3712, 7
        %v3714 = vsub.s32 6, %v3713
        %v3715 = vrot.slane %v1150, %v3714
        %3717 = vbcast.lane.b32.xlu0 %v3715, 256
        %v3718 = vpop.permute.xlu0 %3717
        %s3720 = sor.u32 256, 8
        %3721 = vbcast.lane.b32.xlu0 %v3715, %s3720
        %v3722 = vpop.permute.xlu0 %3721
        %s3724 = sor.u32 256, 16
        %3725 = vbcast.lane.b32.xlu0 %v3715, %s3724
        %v3726 = vpop.permute.xlu0 %3725
        %s3728 = sor.u32 256, 24
        %3729 = vbcast.lane.b32.xlu0 %v3715, %s3728
        %v3730 = vpop.permute.xlu0 %3729
        %v3731 = vlaneseq
        %v3732 = vshrl.u32 %v3731, 7
        %v3733 = vsub.s32 7, %v3732
        %v3734 = vrot.slane %v1150, %v3733
        %3736 = vbcast.lane.b32.xlu0 %v3734, 256
        %v3737 = vpop.permute.xlu0 %3736
        %s3739 = sor.u32 256, 8
        %3740 = vbcast.lane.b32.xlu0 %v3734, %s3739
        %v3741 = vpop.permute.xlu0 %3740
        %s3743 = sor.u32 256, 16
        %3744 = vbcast.lane.b32.xlu0 %v3734, %s3743
        %v3745 = vpop.permute.xlu0 %3744
        %s3747 = sor.u32 256, 24
        %3748 = vbcast.lane.b32.xlu0 %v3734, %s3747
        %v3749 = vpop.permute.xlu0 %3748
        %v3750 = vlaneseq
        %v3751 = vshrl.u32 %v3750, 7
        %v3752 = vsub.s32 0, %v3751
        %v3753 = vrot.slane %v1151, %v3752
        %3755 = vbcast.lane.b32.xlu0 %v3753, 256
        %v3756 = vpop.permute.xlu0 %3755
        %s3758 = sor.u32 256, 8
        %3759 = vbcast.lane.b32.xlu0 %v3753, %s3758
        %v3760 = vpop.permute.xlu0 %3759
        %s3762 = sor.u32 256, 16
        %3763 = vbcast.lane.b32.xlu0 %v3753, %s3762
        %v3764 = vpop.permute.xlu0 %3763
        %s3766 = sor.u32 256, 24
        %3767 = vbcast.lane.b32.xlu0 %v3753, %s3766
        %v3768 = vpop.permute.xlu0 %3767
        %v3769 = vlaneseq
        %v3770 = vshrl.u32 %v3769, 7
        %v3771 = vsub.s32 1, %v3770
        %v3772 = vrot.slane %v1151, %v3771
        %3774 = vbcast.lane.b32.xlu0 %v3772, 256
        %v3775 = vpop.permute.xlu0 %3774
        %s3777 = sor.u32 256, 8
        %3778 = vbcast.lane.b32.xlu0 %v3772, %s3777
        %v3779 = vpop.permute.xlu0 %3778
        %s3781 = sor.u32 256, 16
        %3782 = vbcast.lane.b32.xlu0 %v3772, %s3781
        %v3783 = vpop.permute.xlu0 %3782
        %s3785 = sor.u32 256, 24
        %3786 = vbcast.lane.b32.xlu0 %v3772, %s3785
        %v3787 = vpop.permute.xlu0 %3786
        %v3788 = vlaneseq
        %v3789 = vshrl.u32 %v3788, 7
        %v3790 = vsub.s32 2, %v3789
        %v3791 = vrot.slane %v1151, %v3790
        %3793 = vbcast.lane.b32.xlu0 %v3791, 256
        %v3794 = vpop.permute.xlu0 %3793
        %s3796 = sor.u32 256, 8
        %3797 = vbcast.lane.b32.xlu0 %v3791, %s3796
        %v3798 = vpop.permute.xlu0 %3797
        %s3800 = sor.u32 256, 16
        %3801 = vbcast.lane.b32.xlu0 %v3791, %s3800
        %v3802 = vpop.permute.xlu0 %3801
        %s3804 = sor.u32 256, 24
        %3805 = vbcast.lane.b32.xlu0 %v3791, %s3804
        %v3806 = vpop.permute.xlu0 %3805
        %v3807 = vlaneseq
        %v3808 = vshrl.u32 %v3807, 7
        %v3809 = vsub.s32 3, %v3808
        %v3810 = vrot.slane %v1151, %v3809
        %3812 = vbcast.lane.b32.xlu0 %v3810, 256
        %v3813 = vpop.permute.xlu0 %3812
        %s3815 = sor.u32 256, 8
        %3816 = vbcast.lane.b32.xlu0 %v3810, %s3815
        %v3817 = vpop.permute.xlu0 %3816
        %s3819 = sor.u32 256, 16
        %3820 = vbcast.lane.b32.xlu0 %v3810, %s3819
        %v3821 = vpop.permute.xlu0 %3820
        %s3823 = sor.u32 256, 24
        %3824 = vbcast.lane.b32.xlu0 %v3810, %s3823
        %v3825 = vpop.permute.xlu0 %3824
        %v3826 = vlaneseq
        %v3827 = vshrl.u32 %v3826, 7
        %v3828 = vsub.s32 4, %v3827
        %v3829 = vrot.slane %v1151, %v3828
        %3831 = vbcast.lane.b32.xlu0 %v3829, 256
        %v3832 = vpop.permute.xlu0 %3831
        %s3834 = sor.u32 256, 8
        %3835 = vbcast.lane.b32.xlu0 %v3829, %s3834
        %v3836 = vpop.permute.xlu0 %3835
        %s3838 = sor.u32 256, 16
        %3839 = vbcast.lane.b32.xlu0 %v3829, %s3838
        %v3840 = vpop.permute.xlu0 %3839
        %s3842 = sor.u32 256, 24
        %3843 = vbcast.lane.b32.xlu0 %v3829, %s3842
        %v3844 = vpop.permute.xlu0 %3843
        %v3845 = vlaneseq
        %v3846 = vshrl.u32 %v3845, 7
        %v3847 = vsub.s32 5, %v3846
        %v3848 = vrot.slane %v1151, %v3847
        %3850 = vbcast.lane.b32.xlu0 %v3848, 256
        %v3851 = vpop.permute.xlu0 %3850
        %s3853 = sor.u32 256, 8
        %3854 = vbcast.lane.b32.xlu0 %v3848, %s3853
        %v3855 = vpop.permute.xlu0 %3854
        %s3857 = sor.u32 256, 16
        %3858 = vbcast.lane.b32.xlu0 %v3848, %s3857
        %v3859 = vpop.permute.xlu0 %3858
        %s3861 = sor.u32 256, 24
        %3862 = vbcast.lane.b32.xlu0 %v3848, %s3861
        %v3863 = vpop.permute.xlu0 %3862
        %v3864 = vlaneseq
        %v3865 = vshrl.u32 %v3864, 7
        %v3866 = vsub.s32 6, %v3865
        %v3867 = vrot.slane %v1151, %v3866
        %3869 = vbcast.lane.b32.xlu0 %v3867, 256
        %v3870 = vpop.permute.xlu0 %3869
        %s3872 = sor.u32 256, 8
        %3873 = vbcast.lane.b32.xlu0 %v3867, %s3872
        %v3874 = vpop.permute.xlu0 %3873
        %s3876 = sor.u32 256, 16
        %3877 = vbcast.lane.b32.xlu0 %v3867, %s3876
        %v3878 = vpop.permute.xlu0 %3877
        %s3880 = sor.u32 256, 24
        %3881 = vbcast.lane.b32.xlu0 %v3867, %s3880
        %v3882 = vpop.permute.xlu0 %3881
        %v3883 = vlaneseq
        %v3884 = vshrl.u32 %v3883, 7
        %v3885 = vsub.s32 7, %v3884
        %v3886 = vrot.slane %v1151, %v3885
        %3888 = vbcast.lane.b32.xlu0 %v3886, 256
        %v3889 = vpop.permute.xlu0 %3888
        %s3891 = sor.u32 256, 8
        %3892 = vbcast.lane.b32.xlu0 %v3886, %s3891
        %v3893 = vpop.permute.xlu0 %3892
        %s3895 = sor.u32 256, 16
        %3896 = vbcast.lane.b32.xlu0 %v3886, %s3895
        %v3897 = vpop.permute.xlu0 %3896
        %s3899 = sor.u32 256, 24
        %3900 = vbcast.lane.b32.xlu0 %v3886, %s3899
        %v3901 = vpop.permute.xlu0 %3900
        %v3902 = vlaneseq
        %v3903 = vshrl.u32 %v3902, 7
        %v3904 = vsub.s32 0, %v3903
        %v3905 = vrot.slane %v1152, %v3904
        %3907 = vbcast.lane.b32.xlu0 %v3905, 256
        %v3908 = vpop.permute.xlu0 %3907
        %s3910 = sor.u32 256, 8
        %3911 = vbcast.lane.b32.xlu0 %v3905, %s3910
        %v3912 = vpop.permute.xlu0 %3911
        %s3914 = sor.u32 256, 16
        %3915 = vbcast.lane.b32.xlu0 %v3905, %s3914
        %v3916 = vpop.permute.xlu0 %3915
        %s3918 = sor.u32 256, 24
        %3919 = vbcast.lane.b32.xlu0 %v3905, %s3918
        %v3920 = vpop.permute.xlu0 %3919
        %v3921 = vlaneseq
        %v3922 = vshrl.u32 %v3921, 7
        %v3923 = vsub.s32 1, %v3922
        %v3924 = vrot.slane %v1152, %v3923
        %3926 = vbcast.lane.b32.xlu0 %v3924, 256
        %v3927 = vpop.permute.xlu0 %3926
        %s3929 = sor.u32 256, 8
        %3930 = vbcast.lane.b32.xlu0 %v3924, %s3929
        %v3931 = vpop.permute.xlu0 %3930
        %s3933 = sor.u32 256, 16
        %3934 = vbcast.lane.b32.xlu0 %v3924, %s3933
        %v3935 = vpop.permute.xlu0 %3934
        %s3937 = sor.u32 256, 24
        %3938 = vbcast.lane.b32.xlu0 %v3924, %s3937
        %v3939 = vpop.permute.xlu0 %3938
        %v3940 = vlaneseq
        %v3941 = vshrl.u32 %v3940, 7
        %v3942 = vsub.s32 2, %v3941
        %v3943 = vrot.slane %v1152, %v3942
        %3945 = vbcast.lane.b32.xlu0 %v3943, 256
        %v3946 = vpop.permute.xlu0 %3945
        %s3948 = sor.u32 256, 8
        %3949 = vbcast.lane.b32.xlu0 %v3943, %s3948
        %v3950 = vpop.permute.xlu0 %3949
        %s3952 = sor.u32 256, 16
        %3953 = vbcast.lane.b32.xlu0 %v3943, %s3952
        %v3954 = vpop.permute.xlu0 %3953
        %s3956 = sor.u32 256, 24
        %3957 = vbcast.lane.b32.xlu0 %v3943, %s3956
        %v3958 = vpop.permute.xlu0 %3957
        %v3959 = vlaneseq
        %v3960 = vshrl.u32 %v3959, 7
        %v3961 = vsub.s32 3, %v3960
        %v3962 = vrot.slane %v1152, %v3961
        %3964 = vbcast.lane.b32.xlu0 %v3962, 256
        %v3965 = vpop.permute.xlu0 %3964
        %s3967 = sor.u32 256, 8
        %3968 = vbcast.lane.b32.xlu0 %v3962, %s3967
        %v3969 = vpop.permute.xlu0 %3968
        %s3971 = sor.u32 256, 16
        %3972 = vbcast.lane.b32.xlu0 %v3962, %s3971
        %v3973 = vpop.permute.xlu0 %3972
        %s3975 = sor.u32 256, 24
        %3976 = vbcast.lane.b32.xlu0 %v3962, %s3975
        %v3977 = vpop.permute.xlu0 %3976
        %v3978 = vlaneseq
        %v3979 = vshrl.u32 %v3978, 7
        %v3980 = vsub.s32 4, %v3979
        %v3981 = vrot.slane %v1152, %v3980
        %3983 = vbcast.lane.b32.xlu0 %v3981, 256
        %v3984 = vpop.permute.xlu0 %3983
        %s3986 = sor.u32 256, 8
        %3987 = vbcast.lane.b32.xlu0 %v3981, %s3986
        %v3988 = vpop.permute.xlu0 %3987
        %s3990 = sor.u32 256, 16
        %3991 = vbcast.lane.b32.xlu0 %v3981, %s3990
        %v3992 = vpop.permute.xlu0 %3991
        %s3994 = sor.u32 256, 24
        %3995 = vbcast.lane.b32.xlu0 %v3981, %s3994
        %v3996 = vpop.permute.xlu0 %3995
        %v3997 = vlaneseq
        %v3998 = vshrl.u32 %v3997, 7
        %v3999 = vsub.s32 5, %v3998
        %v4000 = vrot.slane %v1152, %v3999
        %4002 = vbcast.lane.b32.xlu0 %v4000, 256
        %v4003 = vpop.permute.xlu0 %4002
        %s4005 = sor.u32 256, 8
        %4006 = vbcast.lane.b32.xlu0 %v4000, %s4005
        %v4007 = vpop.permute.xlu0 %4006
        %s4009 = sor.u32 256, 16
        %4010 = vbcast.lane.b32.xlu0 %v4000, %s4009
        %v4011 = vpop.permute.xlu0 %4010
        %s4013 = sor.u32 256, 24
        %4014 = vbcast.lane.b32.xlu0 %v4000, %s4013
        %v4015 = vpop.permute.xlu0 %4014
        %v4016 = vlaneseq
        %v4017 = vshrl.u32 %v4016, 7
        %v4018 = vsub.s32 6, %v4017
        %v4019 = vrot.slane %v1152, %v4018
        %4021 = vbcast.lane.b32.xlu0 %v4019, 256
        %v4022 = vpop.permute.xlu0 %4021
        %s4024 = sor.u32 256, 8
        %4025 = vbcast.lane.b32.xlu0 %v4019, %s4024
        %v4026 = vpop.permute.xlu0 %4025
        %s4028 = sor.u32 256, 16
        %4029 = vbcast.lane.b32.xlu0 %v4019, %s4028
        %v4030 = vpop.permute.xlu0 %4029
        %s4032 = sor.u32 256, 24
        %4033 = vbcast.lane.b32.xlu0 %v4019, %s4032
        %v4034 = vpop.permute.xlu0 %4033
        %v4035 = vlaneseq
        %v4036 = vshrl.u32 %v4035, 7
        %v4037 = vsub.s32 7, %v4036
        %v4038 = vrot.slane %v1152, %v4037
        %4040 = vbcast.lane.b32.xlu0 %v4038, 256
        %v4041 = vpop.permute.xlu0 %4040
        %s4043 = sor.u32 256, 8
        %4044 = vbcast.lane.b32.xlu0 %v4038, %s4043
        %v4045 = vpop.permute.xlu0 %4044
        %s4047 = sor.u32 256, 16
        %4048 = vbcast.lane.b32.xlu0 %v4038, %s4047
        %v4049 = vpop.permute.xlu0 %4048
        %s4051 = sor.u32 256, 24
        %4052 = vbcast.lane.b32.xlu0 %v4038, %s4051
        %v4053 = vpop.permute.xlu0 %4052
        %v4054 = vlaneseq
        %v4055 = vshrl.u32 %v4054, 7
        %v4056 = vsub.s32 0, %v4055
        %v4057 = vrot.slane %v1153, %v4056
        %4059 = vbcast.lane.b32.xlu0 %v4057, 256
        %v4060 = vpop.permute.xlu0 %4059
        %s4062 = sor.u32 256, 8
        %4063 = vbcast.lane.b32.xlu0 %v4057, %s4062
        %v4064 = vpop.permute.xlu0 %4063
        %s4066 = sor.u32 256, 16
        %4067 = vbcast.lane.b32.xlu0 %v4057, %s4066
        %v4068 = vpop.permute.xlu0 %4067
        %s4070 = sor.u32 256, 24
        %4071 = vbcast.lane.b32.xlu0 %v4057, %s4070
        %v4072 = vpop.permute.xlu0 %4071
        %v4073 = vlaneseq
        %v4074 = vshrl.u32 %v4073, 7
        %v4075 = vsub.s32 1, %v4074
        %v4076 = vrot.slane %v1153, %v4075
        %4078 = vbcast.lane.b32.xlu0 %v4076, 256
        %v4079 = vpop.permute.xlu0 %4078
        %s4081 = sor.u32 256, 8
        %4082 = vbcast.lane.b32.xlu0 %v4076, %s4081
        %v4083 = vpop.permute.xlu0 %4082
        %s4085 = sor.u32 256, 16
        %4086 = vbcast.lane.b32.xlu0 %v4076, %s4085
        %v4087 = vpop.permute.xlu0 %4086
        %s4089 = sor.u32 256, 24
        %4090 = vbcast.lane.b32.xlu0 %v4076, %s4089
        %v4091 = vpop.permute.xlu0 %4090
        %v4092 = vlaneseq
        %v4093 = vshrl.u32 %v4092, 7
        %v4094 = vsub.s32 2, %v4093
        %v4095 = vrot.slane %v1153, %v4094
        %4097 = vbcast.lane.b32.xlu0 %v4095, 256
        %v4098 = vpop.permute.xlu0 %4097
        %s4100 = sor.u32 256, 8
        %4101 = vbcast.lane.b32.xlu0 %v4095, %s4100
        %v4102 = vpop.permute.xlu0 %4101
        %s4104 = sor.u32 256, 16
        %4105 = vbcast.lane.b32.xlu0 %v4095, %s4104
        %v4106 = vpop.permute.xlu0 %4105
        %s4108 = sor.u32 256, 24
        %4109 = vbcast.lane.b32.xlu0 %v4095, %s4108
        %v4110 = vpop.permute.xlu0 %4109
        %v4111 = vlaneseq
        %v4112 = vshrl.u32 %v4111, 7
        %v4113 = vsub.s32 3, %v4112
        %v4114 = vrot.slane %v1153, %v4113
        %4116 = vbcast.lane.b32.xlu0 %v4114, 256
        %v4117 = vpop.permute.xlu0 %4116
        %s4119 = sor.u32 256, 8
        %4120 = vbcast.lane.b32.xlu0 %v4114, %s4119
        %v4121 = vpop.permute.xlu0 %4120
        %s4123 = sor.u32 256, 16
        %4124 = vbcast.lane.b32.xlu0 %v4114, %s4123
        %v4125 = vpop.permute.xlu0 %4124
        %s4127 = sor.u32 256, 24
        %4128 = vbcast.lane.b32.xlu0 %v4114, %s4127
        %v4129 = vpop.permute.xlu0 %4128
        %v4130 = vlaneseq
        %v4131 = vshrl.u32 %v4130, 7
        %v4132 = vsub.s32 4, %v4131
        %v4133 = vrot.slane %v1153, %v4132
        %4135 = vbcast.lane.b32.xlu0 %v4133, 256
        %v4136 = vpop.permute.xlu0 %4135
        %s4138 = sor.u32 256, 8
        %4139 = vbcast.lane.b32.xlu0 %v4133, %s4138
        %v4140 = vpop.permute.xlu0 %4139
        %s4142 = sor.u32 256, 16
        %4143 = vbcast.lane.b32.xlu0 %v4133, %s4142
        %v4144 = vpop.permute.xlu0 %4143
        %s4146 = sor.u32 256, 24
        %4147 = vbcast.lane.b32.xlu0 %v4133, %s4146
        %v4148 = vpop.permute.xlu0 %4147
        %v4149 = vlaneseq
        %v4150 = vshrl.u32 %v4149, 7
        %v4151 = vsub.s32 5, %v4150
        %v4152 = vrot.slane %v1153, %v4151
        %4154 = vbcast.lane.b32.xlu0 %v4152, 256
        %v4155 = vpop.permute.xlu0 %4154
        %s4157 = sor.u32 256, 8
        %4158 = vbcast.lane.b32.xlu0 %v4152, %s4157
        %v4159 = vpop.permute.xlu0 %4158
        %s4161 = sor.u32 256, 16
        %4162 = vbcast.lane.b32.xlu0 %v4152, %s4161
        %v4163 = vpop.permute.xlu0 %4162
        %s4165 = sor.u32 256, 24
        %4166 = vbcast.lane.b32.xlu0 %v4152, %s4165
        %v4167 = vpop.permute.xlu0 %4166
        %v4168 = vlaneseq
        %v4169 = vshrl.u32 %v4168, 7
        %v4170 = vsub.s32 6, %v4169
        %v4171 = vrot.slane %v1153, %v4170
        %4173 = vbcast.lane.b32.xlu0 %v4171, 256
        %v4174 = vpop.permute.xlu0 %4173
        %s4176 = sor.u32 256, 8
        %4177 = vbcast.lane.b32.xlu0 %v4171, %s4176
        %v4178 = vpop.permute.xlu0 %4177
        %s4180 = sor.u32 256, 16
        %4181 = vbcast.lane.b32.xlu0 %v4171, %s4180
        %v4182 = vpop.permute.xlu0 %4181
        %s4184 = sor.u32 256, 24
        %4185 = vbcast.lane.b32.xlu0 %v4171, %s4184
        %v4186 = vpop.permute.xlu0 %4185
        %v4187 = vlaneseq
        %v4188 = vshrl.u32 %v4187, 7
        %v4189 = vsub.s32 7, %v4188
        %v4190 = vrot.slane %v1153, %v4189
        %4192 = vbcast.lane.b32.xlu0 %v4190, 256
        %v4193 = vpop.permute.xlu0 %4192
        %s4195 = sor.u32 256, 8
        %4196 = vbcast.lane.b32.xlu0 %v4190, %s4195
        %v4197 = vpop.permute.xlu0 %4196
        %s4199 = sor.u32 256, 16
        %4200 = vbcast.lane.b32.xlu0 %v4190, %s4199
        %v4201 = vpop.permute.xlu0 %4200
        %s4203 = sor.u32 256, 24
        %4204 = vbcast.lane.b32.xlu0 %v4190, %s4203
        %v4205 = vpop.permute.xlu0 %4204
        %v4206 = vlaneseq
        %v4207 = vshrl.u32 %v4206, 7
        %v4208 = vsub.s32 0, %v4207
        %v4209 = vrot.slane %v1154, %v4208
        %4211 = vbcast.lane.b32.xlu0 %v4209, 256
        %v4212 = vpop.permute.xlu0 %4211
        %s4214 = sor.u32 256, 8
        %4215 = vbcast.lane.b32.xlu0 %v4209, %s4214
        %v4216 = vpop.permute.xlu0 %4215
        %s4218 = sor.u32 256, 16
        %4219 = vbcast.lane.b32.xlu0 %v4209, %s4218
        %v4220 = vpop.permute.xlu0 %4219
        %s4222 = sor.u32 256, 24
        %4223 = vbcast.lane.b32.xlu0 %v4209, %s4222
        %v4224 = vpop.permute.xlu0 %4223
        %v4225 = vlaneseq
        %v4226 = vshrl.u32 %v4225, 7
        %v4227 = vsub.s32 1, %v4226
        %v4228 = vrot.slane %v1154, %v4227
        %4230 = vbcast.lane.b32.xlu0 %v4228, 256
        %v4231 = vpop.permute.xlu0 %4230
        %s4233 = sor.u32 256, 8
        %4234 = vbcast.lane.b32.xlu0 %v4228, %s4233
        %v4235 = vpop.permute.xlu0 %4234
        %s4237 = sor.u32 256, 16
        %4238 = vbcast.lane.b32.xlu0 %v4228, %s4237
        %v4239 = vpop.permute.xlu0 %4238
        %s4241 = sor.u32 256, 24
        %4242 = vbcast.lane.b32.xlu0 %v4228, %s4241
        %v4243 = vpop.permute.xlu0 %4242
        %v4244 = vlaneseq
        %v4245 = vshrl.u32 %v4244, 7
        %v4246 = vsub.s32 2, %v4245
        %v4247 = vrot.slane %v1154, %v4246
        %4249 = vbcast.lane.b32.xlu0 %v4247, 256
        %v4250 = vpop.permute.xlu0 %4249
        %s4252 = sor.u32 256, 8
        %4253 = vbcast.lane.b32.xlu0 %v4247, %s4252
        %v4254 = vpop.permute.xlu0 %4253
        %s4256 = sor.u32 256, 16
        %4257 = vbcast.lane.b32.xlu0 %v4247, %s4256
        %v4258 = vpop.permute.xlu0 %4257
        %s4260 = sor.u32 256, 24
        %4261 = vbcast.lane.b32.xlu0 %v4247, %s4260
        %v4262 = vpop.permute.xlu0 %4261
        %v4263 = vlaneseq
        %v4264 = vshrl.u32 %v4263, 7
        %v4265 = vsub.s32 3, %v4264
        %v4266 = vrot.slane %v1154, %v4265
        %4268 = vbcast.lane.b32.xlu0 %v4266, 256
        %v4269 = vpop.permute.xlu0 %4268
        %s4271 = sor.u32 256, 8
        %4272 = vbcast.lane.b32.xlu0 %v4266, %s4271
        %v4273 = vpop.permute.xlu0 %4272
        %s4275 = sor.u32 256, 16
        %4276 = vbcast.lane.b32.xlu0 %v4266, %s4275
        %v4277 = vpop.permute.xlu0 %4276
        %s4279 = sor.u32 256, 24
        %4280 = vbcast.lane.b32.xlu0 %v4266, %s4279
        %v4281 = vpop.permute.xlu0 %4280
        %v4282 = vlaneseq
        %v4283 = vshrl.u32 %v4282, 7
        %v4284 = vsub.s32 4, %v4283
        %v4285 = vrot.slane %v1154, %v4284
        %4287 = vbcast.lane.b32.xlu0 %v4285, 256
        %v4288 = vpop.permute.xlu0 %4287
        %s4290 = sor.u32 256, 8
        %4291 = vbcast.lane.b32.xlu0 %v4285, %s4290
        %v4292 = vpop.permute.xlu0 %4291
        %s4294 = sor.u32 256, 16
        %4295 = vbcast.lane.b32.xlu0 %v4285, %s4294
        %v4296 = vpop.permute.xlu0 %4295
        %s4298 = sor.u32 256, 24
        %4299 = vbcast.lane.b32.xlu0 %v4285, %s4298
        %v4300 = vpop.permute.xlu0 %4299
        %v4301 = vlaneseq
        %v4302 = vshrl.u32 %v4301, 7
        %v4303 = vsub.s32 5, %v4302
        %v4304 = vrot.slane %v1154, %v4303
        %4306 = vbcast.lane.b32.xlu0 %v4304, 256
        %v4307 = vpop.permute.xlu0 %4306
        %s4309 = sor.u32 256, 8
        %4310 = vbcast.lane.b32.xlu0 %v4304, %s4309
        %v4311 = vpop.permute.xlu0 %4310
        %s4313 = sor.u32 256, 16
        %4314 = vbcast.lane.b32.xlu0 %v4304, %s4313
        %v4315 = vpop.permute.xlu0 %4314
        %s4317 = sor.u32 256, 24
        %4318 = vbcast.lane.b32.xlu0 %v4304, %s4317
        %v4319 = vpop.permute.xlu0 %4318
        %v4320 = vlaneseq
        %v4321 = vshrl.u32 %v4320, 7
        %v4322 = vsub.s32 6, %v4321
        %v4323 = vrot.slane %v1154, %v4322
        %4325 = vbcast.lane.b32.xlu0 %v4323, 256
        %v4326 = vpop.permute.xlu0 %4325
        %s4328 = sor.u32 256, 8
        %4329 = vbcast.lane.b32.xlu0 %v4323, %s4328
        %v4330 = vpop.permute.xlu0 %4329
        %s4332 = sor.u32 256, 16
        %4333 = vbcast.lane.b32.xlu0 %v4323, %s4332
        %v4334 = vpop.permute.xlu0 %4333
        %s4336 = sor.u32 256, 24
        %4337 = vbcast.lane.b32.xlu0 %v4323, %s4336
        %v4338 = vpop.permute.xlu0 %4337
        %v4339 = vlaneseq
        %v4340 = vshrl.u32 %v4339, 7
        %v4341 = vsub.s32 7, %v4340
        %v4342 = vrot.slane %v1154, %v4341
        %4344 = vbcast.lane.b32.xlu0 %v4342, 256
        %v4345 = vpop.permute.xlu0 %4344
        %s4347 = sor.u32 256, 8
        %4348 = vbcast.lane.b32.xlu0 %v4342, %s4347
        %v4349 = vpop.permute.xlu0 %4348
        %s4351 = sor.u32 256, 16
        %4352 = vbcast.lane.b32.xlu0 %v4342, %s4351
        %v4353 = vpop.permute.xlu0 %4352
        %s4355 = sor.u32 256, 24
        %4356 = vbcast.lane.b32.xlu0 %v4342, %s4355
        %v4357 = vpop.permute.xlu0 %4356
        %v4358 = vlaneseq
        %v4359 = vshrl.u32 %v4358, 7
        %v4360 = vsub.s32 0, %v4359
        %v4361 = vrot.slane %v1155, %v4360
        %4363 = vbcast.lane.b32.xlu0 %v4361, 256
        %v4364 = vpop.permute.xlu0 %4363
        %s4366 = sor.u32 256, 8
        %4367 = vbcast.lane.b32.xlu0 %v4361, %s4366
        %v4368 = vpop.permute.xlu0 %4367
        %s4370 = sor.u32 256, 16
        %4371 = vbcast.lane.b32.xlu0 %v4361, %s4370
        %v4372 = vpop.permute.xlu0 %4371
        %s4374 = sor.u32 256, 24
        %4375 = vbcast.lane.b32.xlu0 %v4361, %s4374
        %v4376 = vpop.permute.xlu0 %4375
        %v4377 = vlaneseq
        %v4378 = vshrl.u32 %v4377, 7
        %v4379 = vsub.s32 1, %v4378
        %v4380 = vrot.slane %v1155, %v4379
        %4382 = vbcast.lane.b32.xlu0 %v4380, 256
        %v4383 = vpop.permute.xlu0 %4382
        %s4385 = sor.u32 256, 8
        %4386 = vbcast.lane.b32.xlu0 %v4380, %s4385
        %v4387 = vpop.permute.xlu0 %4386
        %s4389 = sor.u32 256, 16
        %4390 = vbcast.lane.b32.xlu0 %v4380, %s4389
        %v4391 = vpop.permute.xlu0 %4390
        %s4393 = sor.u32 256, 24
        %4394 = vbcast.lane.b32.xlu0 %v4380, %s4393
        %v4395 = vpop.permute.xlu0 %4394
        %v4396 = vlaneseq
        %v4397 = vshrl.u32 %v4396, 7
        %v4398 = vsub.s32 2, %v4397
        %v4399 = vrot.slane %v1155, %v4398
        %4401 = vbcast.lane.b32.xlu0 %v4399, 256
        %v4402 = vpop.permute.xlu0 %4401
        %s4404 = sor.u32 256, 8
        %4405 = vbcast.lane.b32.xlu0 %v4399, %s4404
        %v4406 = vpop.permute.xlu0 %4405
        %s4408 = sor.u32 256, 16
        %4409 = vbcast.lane.b32.xlu0 %v4399, %s4408
        %v4410 = vpop.permute.xlu0 %4409
        %s4412 = sor.u32 256, 24
        %4413 = vbcast.lane.b32.xlu0 %v4399, %s4412
        %v4414 = vpop.permute.xlu0 %4413
        %v4415 = vlaneseq
        %v4416 = vshrl.u32 %v4415, 7
        %v4417 = vsub.s32 3, %v4416
        %v4418 = vrot.slane %v1155, %v4417
        %4420 = vbcast.lane.b32.xlu0 %v4418, 256
        %v4421 = vpop.permute.xlu0 %4420
        %s4423 = sor.u32 256, 8
        %4424 = vbcast.lane.b32.xlu0 %v4418, %s4423
        %v4425 = vpop.permute.xlu0 %4424
        %s4427 = sor.u32 256, 16
        %4428 = vbcast.lane.b32.xlu0 %v4418, %s4427
        %v4429 = vpop.permute.xlu0 %4428
        %s4431 = sor.u32 256, 24
        %4432 = vbcast.lane.b32.xlu0 %v4418, %s4431
        %v4433 = vpop.permute.xlu0 %4432
        %v4434 = vlaneseq
        %v4435 = vshrl.u32 %v4434, 7
        %v4436 = vsub.s32 4, %v4435
        %v4437 = vrot.slane %v1155, %v4436
        %4439 = vbcast.lane.b32.xlu0 %v4437, 256
        %v4440 = vpop.permute.xlu0 %4439
        %s4442 = sor.u32 256, 8
        %4443 = vbcast.lane.b32.xlu0 %v4437, %s4442
        %v4444 = vpop.permute.xlu0 %4443
        %s4446 = sor.u32 256, 16
        %4447 = vbcast.lane.b32.xlu0 %v4437, %s4446
        %v4448 = vpop.permute.xlu0 %4447
        %s4450 = sor.u32 256, 24
        %4451 = vbcast.lane.b32.xlu0 %v4437, %s4450
        %v4452 = vpop.permute.xlu0 %4451
        %v4453 = vlaneseq
        %v4454 = vshrl.u32 %v4453, 7
        %v4455 = vsub.s32 5, %v4454
        %v4456 = vrot.slane %v1155, %v4455
        %4458 = vbcast.lane.b32.xlu0 %v4456, 256
        %v4459 = vpop.permute.xlu0 %4458
        %s4461 = sor.u32 256, 8
        %4462 = vbcast.lane.b32.xlu0 %v4456, %s4461
        %v4463 = vpop.permute.xlu0 %4462
        %s4465 = sor.u32 256, 16
        %4466 = vbcast.lane.b32.xlu0 %v4456, %s4465
        %v4467 = vpop.permute.xlu0 %4466
        %s4469 = sor.u32 256, 24
        %4470 = vbcast.lane.b32.xlu0 %v4456, %s4469
        %v4471 = vpop.permute.xlu0 %4470
        %v4472 = vlaneseq
        %v4473 = vshrl.u32 %v4472, 7
        %v4474 = vsub.s32 6, %v4473
        %v4475 = vrot.slane %v1155, %v4474
        %4477 = vbcast.lane.b32.xlu0 %v4475, 256
        %v4478 = vpop.permute.xlu0 %4477
        %s4480 = sor.u32 256, 8
        %4481 = vbcast.lane.b32.xlu0 %v4475, %s4480
        %v4482 = vpop.permute.xlu0 %4481
        %s4484 = sor.u32 256, 16
        %4485 = vbcast.lane.b32.xlu0 %v4475, %s4484
        %v4486 = vpop.permute.xlu0 %4485
        %s4488 = sor.u32 256, 24
        %4489 = vbcast.lane.b32.xlu0 %v4475, %s4488
        %v4490 = vpop.permute.xlu0 %4489
        %v4491 = vlaneseq
        %v4492 = vshrl.u32 %v4491, 7
        %v4493 = vsub.s32 7, %v4492
        %v4494 = vrot.slane %v1155, %v4493
        %4496 = vbcast.lane.b32.xlu0 %v4494, 256
        %v4497 = vpop.permute.xlu0 %4496
        %s4499 = sor.u32 256, 8
        %4500 = vbcast.lane.b32.xlu0 %v4494, %s4499
        %v4501 = vpop.permute.xlu0 %4500
        %s4503 = sor.u32 256, 16
        %4504 = vbcast.lane.b32.xlu0 %v4494, %s4503
        %v4505 = vpop.permute.xlu0 %4504
        %s4507 = sor.u32 256, 24
        %4508 = vbcast.lane.b32.xlu0 %v4494, %s4507
        %v4509 = vpop.permute.xlu0 %4508
        %v4510 = vlaneseq
        %v4511 = vshrl.u32 %v4510, 7
        %v4512 = vsub.s32 0, %v4511
        %v4513 = vrot.slane %v1156, %v4512
        %4515 = vbcast.lane.b32.xlu0 %v4513, 256
        %v4516 = vpop.permute.xlu0 %4515
        %s4518 = sor.u32 256, 8
        %4519 = vbcast.lane.b32.xlu0 %v4513, %s4518
        %v4520 = vpop.permute.xlu0 %4519
        %s4522 = sor.u32 256, 16
        %4523 = vbcast.lane.b32.xlu0 %v4513, %s4522
        %v4524 = vpop.permute.xlu0 %4523
        %s4526 = sor.u32 256, 24
        %4527 = vbcast.lane.b32.xlu0 %v4513, %s4526
        %v4528 = vpop.permute.xlu0 %4527
        %v4529 = vlaneseq
        %v4530 = vshrl.u32 %v4529, 7
        %v4531 = vsub.s32 1, %v4530
        %v4532 = vrot.slane %v1156, %v4531
        %4534 = vbcast.lane.b32.xlu0 %v4532, 256
        %v4535 = vpop.permute.xlu0 %4534
        %s4537 = sor.u32 256, 8
        %4538 = vbcast.lane.b32.xlu0 %v4532, %s4537
        %v4539 = vpop.permute.xlu0 %4538
        %s4541 = sor.u32 256, 16
        %4542 = vbcast.lane.b32.xlu0 %v4532, %s4541
        %v4543 = vpop.permute.xlu0 %4542
        %s4545 = sor.u32 256, 24
        %4546 = vbcast.lane.b32.xlu0 %v4532, %s4545
        %v4547 = vpop.permute.xlu0 %4546
        %v4548 = vlaneseq
        %v4549 = vshrl.u32 %v4548, 7
        %v4550 = vsub.s32 2, %v4549
        %v4551 = vrot.slane %v1156, %v4550
        %4553 = vbcast.lane.b32.xlu0 %v4551, 256
        %v4554 = vpop.permute.xlu0 %4553
        %s4556 = sor.u32 256, 8
        %4557 = vbcast.lane.b32.xlu0 %v4551, %s4556
        %v4558 = vpop.permute.xlu0 %4557
        %s4560 = sor.u32 256, 16
        %4561 = vbcast.lane.b32.xlu0 %v4551, %s4560
        %v4562 = vpop.permute.xlu0 %4561
        %s4564 = sor.u32 256, 24
        %4565 = vbcast.lane.b32.xlu0 %v4551, %s4564
        %v4566 = vpop.permute.xlu0 %4565
        %v4567 = vlaneseq
        %v4568 = vshrl.u32 %v4567, 7
        %v4569 = vsub.s32 3, %v4568
        %v4570 = vrot.slane %v1156, %v4569
        %4572 = vbcast.lane.b32.xlu0 %v4570, 256
        %v4573 = vpop.permute.xlu0 %4572
        %s4575 = sor.u32 256, 8
        %4576 = vbcast.lane.b32.xlu0 %v4570, %s4575
        %v4577 = vpop.permute.xlu0 %4576
        %s4579 = sor.u32 256, 16
        %4580 = vbcast.lane.b32.xlu0 %v4570, %s4579
        %v4581 = vpop.permute.xlu0 %4580
        %s4583 = sor.u32 256, 24
        %4584 = vbcast.lane.b32.xlu0 %v4570, %s4583
        %v4585 = vpop.permute.xlu0 %4584
        %v4586 = vlaneseq
        %v4587 = vshrl.u32 %v4586, 7
        %v4588 = vsub.s32 4, %v4587
        %v4589 = vrot.slane %v1156, %v4588
        %4591 = vbcast.lane.b32.xlu0 %v4589, 256
        %v4592 = vpop.permute.xlu0 %4591
        %s4594 = sor.u32 256, 8
        %4595 = vbcast.lane.b32.xlu0 %v4589, %s4594
        %v4596 = vpop.permute.xlu0 %4595
        %s4598 = sor.u32 256, 16
        %4599 = vbcast.lane.b32.xlu0 %v4589, %s4598
        %v4600 = vpop.permute.xlu0 %4599
        %s4602 = sor.u32 256, 24
        %4603 = vbcast.lane.b32.xlu0 %v4589, %s4602
        %v4604 = vpop.permute.xlu0 %4603
        %v4605 = vlaneseq
        %v4606 = vshrl.u32 %v4605, 7
        %v4607 = vsub.s32 5, %v4606
        %v4608 = vrot.slane %v1156, %v4607
        %4610 = vbcast.lane.b32.xlu0 %v4608, 256
        %v4611 = vpop.permute.xlu0 %4610
        %s4613 = sor.u32 256, 8
        %4614 = vbcast.lane.b32.xlu0 %v4608, %s4613
        %v4615 = vpop.permute.xlu0 %4614
        %s4617 = sor.u32 256, 16
        %4618 = vbcast.lane.b32.xlu0 %v4608, %s4617
        %v4619 = vpop.permute.xlu0 %4618
        %s4621 = sor.u32 256, 24
        %4622 = vbcast.lane.b32.xlu0 %v4608, %s4621
        %v4623 = vpop.permute.xlu0 %4622
        %v4624 = vlaneseq
        %v4625 = vshrl.u32 %v4624, 7
        %v4626 = vsub.s32 6, %v4625
        %v4627 = vrot.slane %v1156, %v4626
        %4629 = vbcast.lane.b32.xlu0 %v4627, 256
        %v4630 = vpop.permute.xlu0 %4629
        %s4632 = sor.u32 256, 8
        %4633 = vbcast.lane.b32.xlu0 %v4627, %s4632
        %v4634 = vpop.permute.xlu0 %4633
        %s4636 = sor.u32 256, 16
        %4637 = vbcast.lane.b32.xlu0 %v4627, %s4636
        %v4638 = vpop.permute.xlu0 %4637
        %s4640 = sor.u32 256, 24
        %4641 = vbcast.lane.b32.xlu0 %v4627, %s4640
        %v4642 = vpop.permute.xlu0 %4641
        %v4643 = vlaneseq
        %v4644 = vshrl.u32 %v4643, 7
        %v4645 = vsub.s32 7, %v4644
        %v4646 = vrot.slane %v1156, %v4645
        %4648 = vbcast.lane.b32.xlu0 %v4646, 256
        %v4649 = vpop.permute.xlu0 %4648
        %s4651 = sor.u32 256, 8
        %4652 = vbcast.lane.b32.xlu0 %v4646, %s4651
        %v4653 = vpop.permute.xlu0 %4652
        %s4655 = sor.u32 256, 16
        %4656 = vbcast.lane.b32.xlu0 %v4646, %s4655
        %v4657 = vpop.permute.xlu0 %4656
        %s4659 = sor.u32 256, 24
        %4660 = vbcast.lane.b32.xlu0 %v4646, %s4659
        %v4661 = vpop.permute.xlu0 %4660
        %v4662 = vlaneseq
        %v4663 = vshrl.u32 %v4662, 7
        %v4664 = vsub.s32 0, %v4663
        %v4665 = vrot.slane %v1157, %v4664
        %4667 = vbcast.lane.b32.xlu0 %v4665, 256
        %v4668 = vpop.permute.xlu0 %4667
        %s4670 = sor.u32 256, 8
        %4671 = vbcast.lane.b32.xlu0 %v4665, %s4670
        %v4672 = vpop.permute.xlu0 %4671
        %s4674 = sor.u32 256, 16
        %4675 = vbcast.lane.b32.xlu0 %v4665, %s4674
        %v4676 = vpop.permute.xlu0 %4675
        %s4678 = sor.u32 256, 24
        %4679 = vbcast.lane.b32.xlu0 %v4665, %s4678
        %v4680 = vpop.permute.xlu0 %4679
        %v4681 = vlaneseq
        %v4682 = vshrl.u32 %v4681, 7
        %v4683 = vsub.s32 1, %v4682
        %v4684 = vrot.slane %v1157, %v4683
        %4686 = vbcast.lane.b32.xlu0 %v4684, 256
        %v4687 = vpop.permute.xlu0 %4686
        %s4689 = sor.u32 256, 8
        %4690 = vbcast.lane.b32.xlu0 %v4684, %s4689
        %v4691 = vpop.permute.xlu0 %4690
        %s4693 = sor.u32 256, 16
        %4694 = vbcast.lane.b32.xlu0 %v4684, %s4693
        %v4695 = vpop.permute.xlu0 %4694
        %s4697 = sor.u32 256, 24
        %4698 = vbcast.lane.b32.xlu0 %v4684, %s4697
        %v4699 = vpop.permute.xlu0 %4698
        %v4700 = vlaneseq
        %v4701 = vshrl.u32 %v4700, 7
        %v4702 = vsub.s32 2, %v4701
        %v4703 = vrot.slane %v1157, %v4702
        %4705 = vbcast.lane.b32.xlu0 %v4703, 256
        %v4706 = vpop.permute.xlu0 %4705
        %s4708 = sor.u32 256, 8
        %4709 = vbcast.lane.b32.xlu0 %v4703, %s4708
        %v4710 = vpop.permute.xlu0 %4709
        %s4712 = sor.u32 256, 16
        %4713 = vbcast.lane.b32.xlu0 %v4703, %s4712
        %v4714 = vpop.permute.xlu0 %4713
        %s4716 = sor.u32 256, 24
        %4717 = vbcast.lane.b32.xlu0 %v4703, %s4716
        %v4718 = vpop.permute.xlu0 %4717
        %v4719 = vlaneseq
        %v4720 = vshrl.u32 %v4719, 7
        %v4721 = vsub.s32 3, %v4720
        %v4722 = vrot.slane %v1157, %v4721
        %4724 = vbcast.lane.b32.xlu0 %v4722, 256
        %v4725 = vpop.permute.xlu0 %4724
        %s4727 = sor.u32 256, 8
        %4728 = vbcast.lane.b32.xlu0 %v4722, %s4727
        %v4729 = vpop.permute.xlu0 %4728
        %s4731 = sor.u32 256, 16
        %4732 = vbcast.lane.b32.xlu0 %v4722, %s4731
        %v4733 = vpop.permute.xlu0 %4732
        %s4735 = sor.u32 256, 24
        %4736 = vbcast.lane.b32.xlu0 %v4722, %s4735
        %v4737 = vpop.permute.xlu0 %4736
        %v4738 = vlaneseq
        %v4739 = vshrl.u32 %v4738, 7
        %v4740 = vsub.s32 4, %v4739
        %v4741 = vrot.slane %v1157, %v4740
        %4743 = vbcast.lane.b32.xlu0 %v4741, 256
        %v4744 = vpop.permute.xlu0 %4743
        %s4746 = sor.u32 256, 8
        %4747 = vbcast.lane.b32.xlu0 %v4741, %s4746
        %v4748 = vpop.permute.xlu0 %4747
        %s4750 = sor.u32 256, 16
        %4751 = vbcast.lane.b32.xlu0 %v4741, %s4750
        %v4752 = vpop.permute.xlu0 %4751
        %s4754 = sor.u32 256, 24
        %4755 = vbcast.lane.b32.xlu0 %v4741, %s4754
        %v4756 = vpop.permute.xlu0 %4755
        %v4757 = vlaneseq
        %v4758 = vshrl.u32 %v4757, 7
        %v4759 = vsub.s32 5, %v4758
        %v4760 = vrot.slane %v1157, %v4759
        %4762 = vbcast.lane.b32.xlu0 %v4760, 256
        %v4763 = vpop.permute.xlu0 %4762
        %s4765 = sor.u32 256, 8
        %4766 = vbcast.lane.b32.xlu0 %v4760, %s4765
        %v4767 = vpop.permute.xlu0 %4766
        %s4769 = sor.u32 256, 16
        %4770 = vbcast.lane.b32.xlu0 %v4760, %s4769
        %v4771 = vpop.permute.xlu0 %4770
        %s4773 = sor.u32 256, 24
        %4774 = vbcast.lane.b32.xlu0 %v4760, %s4773
        %v4775 = vpop.permute.xlu0 %4774
        %v4776 = vlaneseq
        %v4777 = vshrl.u32 %v4776, 7
        %v4778 = vsub.s32 6, %v4777
        %v4779 = vrot.slane %v1157, %v4778
        %4781 = vbcast.lane.b32.xlu0 %v4779, 256
        %v4782 = vpop.permute.xlu0 %4781
        %s4784 = sor.u32 256, 8
        %4785 = vbcast.lane.b32.xlu0 %v4779, %s4784
        %v4786 = vpop.permute.xlu0 %4785
        %s4788 = sor.u32 256, 16
        %4789 = vbcast.lane.b32.xlu0 %v4779, %s4788
        %v4790 = vpop.permute.xlu0 %4789
        %s4792 = sor.u32 256, 24
        %4793 = vbcast.lane.b32.xlu0 %v4779, %s4792
        %v4794 = vpop.permute.xlu0 %4793
        %v4795 = vlaneseq
        %v4796 = vshrl.u32 %v4795, 7
        %v4797 = vsub.s32 7, %v4796
        %v4798 = vrot.slane %v1157, %v4797
        %4800 = vbcast.lane.b32.xlu0 %v4798, 256
        %v4801 = vpop.permute.xlu0 %4800
        %s4803 = sor.u32 256, 8
        %4804 = vbcast.lane.b32.xlu0 %v4798, %s4803
        %v4805 = vpop.permute.xlu0 %4804
        %s4807 = sor.u32 256, 16
        %4808 = vbcast.lane.b32.xlu0 %v4798, %s4807
        %v4809 = vpop.permute.xlu0 %4808
        %s4811 = sor.u32 256, 24
        %4812 = vbcast.lane.b32.xlu0 %v4798, %s4811
        %v4813 = vpop.permute.xlu0 %4812
        %v4814 = vlaneseq
        %v4815 = vshrl.u32 %v4814, 7
        %v4816 = vsub.s32 0, %v4815
        %v4817 = vrot.slane %v1158, %v4816
        %4819 = vbcast.lane.b32.xlu0 %v4817, 256
        %v4820 = vpop.permute.xlu0 %4819
        %s4822 = sor.u32 256, 8
        %4823 = vbcast.lane.b32.xlu0 %v4817, %s4822
        %v4824 = vpop.permute.xlu0 %4823
        %s4826 = sor.u32 256, 16
        %4827 = vbcast.lane.b32.xlu0 %v4817, %s4826
        %v4828 = vpop.permute.xlu0 %4827
        %s4830 = sor.u32 256, 24
        %4831 = vbcast.lane.b32.xlu0 %v4817, %s4830
        %v4832 = vpop.permute.xlu0 %4831
        %v4833 = vlaneseq
        %v4834 = vshrl.u32 %v4833, 7
        %v4835 = vsub.s32 1, %v4834
        %v4836 = vrot.slane %v1158, %v4835
        %4838 = vbcast.lane.b32.xlu0 %v4836, 256
        %v4839 = vpop.permute.xlu0 %4838
        %s4841 = sor.u32 256, 8
        %4842 = vbcast.lane.b32.xlu0 %v4836, %s4841
        %v4843 = vpop.permute.xlu0 %4842
        %s4845 = sor.u32 256, 16
        %4846 = vbcast.lane.b32.xlu0 %v4836, %s4845
        %v4847 = vpop.permute.xlu0 %4846
        %s4849 = sor.u32 256, 24
        %4850 = vbcast.lane.b32.xlu0 %v4836, %s4849
        %v4851 = vpop.permute.xlu0 %4850
        %v4852 = vlaneseq
        %v4853 = vshrl.u32 %v4852, 7
        %v4854 = vsub.s32 2, %v4853
        %v4855 = vrot.slane %v1158, %v4854
        %4857 = vbcast.lane.b32.xlu0 %v4855, 256
        %v4858 = vpop.permute.xlu0 %4857
        %s4860 = sor.u32 256, 8
        %4861 = vbcast.lane.b32.xlu0 %v4855, %s4860
        %v4862 = vpop.permute.xlu0 %4861
        %s4864 = sor.u32 256, 16
        %4865 = vbcast.lane.b32.xlu0 %v4855, %s4864
        %v4866 = vpop.permute.xlu0 %4865
        %s4868 = sor.u32 256, 24
        %4869 = vbcast.lane.b32.xlu0 %v4855, %s4868
        %v4870 = vpop.permute.xlu0 %4869
        %v4871 = vlaneseq
        %v4872 = vshrl.u32 %v4871, 7
        %v4873 = vsub.s32 3, %v4872
        %v4874 = vrot.slane %v1158, %v4873
        %4876 = vbcast.lane.b32.xlu0 %v4874, 256
        %v4877 = vpop.permute.xlu0 %4876
        %s4879 = sor.u32 256, 8
        %4880 = vbcast.lane.b32.xlu0 %v4874, %s4879
        %v4881 = vpop.permute.xlu0 %4880
        %s4883 = sor.u32 256, 16
        %4884 = vbcast.lane.b32.xlu0 %v4874, %s4883
        %v4885 = vpop.permute.xlu0 %4884
        %s4887 = sor.u32 256, 24
        %4888 = vbcast.lane.b32.xlu0 %v4874, %s4887
        %v4889 = vpop.permute.xlu0 %4888
        %v4890 = vlaneseq
        %v4891 = vshrl.u32 %v4890, 7
        %v4892 = vsub.s32 4, %v4891
        %v4893 = vrot.slane %v1158, %v4892
        %4895 = vbcast.lane.b32.xlu0 %v4893, 256
        %v4896 = vpop.permute.xlu0 %4895
        %s4898 = sor.u32 256, 8
        %4899 = vbcast.lane.b32.xlu0 %v4893, %s4898
        %v4900 = vpop.permute.xlu0 %4899
        %s4902 = sor.u32 256, 16
        %4903 = vbcast.lane.b32.xlu0 %v4893, %s4902
        %v4904 = vpop.permute.xlu0 %4903
        %s4906 = sor.u32 256, 24
        %4907 = vbcast.lane.b32.xlu0 %v4893, %s4906
        %v4908 = vpop.permute.xlu0 %4907
        %v4909 = vlaneseq
        %v4910 = vshrl.u32 %v4909, 7
        %v4911 = vsub.s32 5, %v4910
        %v4912 = vrot.slane %v1158, %v4911
        %4914 = vbcast.lane.b32.xlu0 %v4912, 256
        %v4915 = vpop.permute.xlu0 %4914
        %s4917 = sor.u32 256, 8
        %4918 = vbcast.lane.b32.xlu0 %v4912, %s4917
        %v4919 = vpop.permute.xlu0 %4918
        %s4921 = sor.u32 256, 16
        %4922 = vbcast.lane.b32.xlu0 %v4912, %s4921
        %v4923 = vpop.permute.xlu0 %4922
        %s4925 = sor.u32 256, 24
        %4926 = vbcast.lane.b32.xlu0 %v4912, %s4925
        %v4927 = vpop.permute.xlu0 %4926
        %v4928 = vlaneseq
        %v4929 = vshrl.u32 %v4928, 7
        %v4930 = vsub.s32 6, %v4929
        %v4931 = vrot.slane %v1158, %v4930
        %4933 = vbcast.lane.b32.xlu0 %v4931, 256
        %v4934 = vpop.permute.xlu0 %4933
        %s4936 = sor.u32 256, 8
        %4937 = vbcast.lane.b32.xlu0 %v4931, %s4936
        %v4938 = vpop.permute.xlu0 %4937
        %s4940 = sor.u32 256, 16
        %4941 = vbcast.lane.b32.xlu0 %v4931, %s4940
        %v4942 = vpop.permute.xlu0 %4941
        %s4944 = sor.u32 256, 24
        %4945 = vbcast.lane.b32.xlu0 %v4931, %s4944
        %v4946 = vpop.permute.xlu0 %4945
        %v4947 = vlaneseq
        %v4948 = vshrl.u32 %v4947, 7
        %v4949 = vsub.s32 7, %v4948
        %v4950 = vrot.slane %v1158, %v4949
        %4952 = vbcast.lane.b32.xlu0 %v4950, 256
        %v4953 = vpop.permute.xlu0 %4952
        %s4955 = sor.u32 256, 8
        %4956 = vbcast.lane.b32.xlu0 %v4950, %s4955
        %v4957 = vpop.permute.xlu0 %4956
        %s4959 = sor.u32 256, 16
        %4960 = vbcast.lane.b32.xlu0 %v4950, %s4959
        %v4961 = vpop.permute.xlu0 %4960
        %s4963 = sor.u32 256, 24
        %4964 = vbcast.lane.b32.xlu0 %v4950, %s4963
        %v4965 = vpop.permute.xlu0 %4964
        %v4966 = vlaneseq
        %v4967 = vshrl.u32 %v4966, 7
        %v4968 = vsub.s32 0, %v4967
        %v4969 = vrot.slane %v1159, %v4968
        %4971 = vbcast.lane.b32.xlu0 %v4969, 256
        %v4972 = vpop.permute.xlu0 %4971
        %s4974 = sor.u32 256, 8
        %4975 = vbcast.lane.b32.xlu0 %v4969, %s4974
        %v4976 = vpop.permute.xlu0 %4975
        %s4978 = sor.u32 256, 16
        %4979 = vbcast.lane.b32.xlu0 %v4969, %s4978
        %v4980 = vpop.permute.xlu0 %4979
        %s4982 = sor.u32 256, 24
        %4983 = vbcast.lane.b32.xlu0 %v4969, %s4982
        %v4984 = vpop.permute.xlu0 %4983
        %v4985 = vlaneseq
        %v4986 = vshrl.u32 %v4985, 7
        %v4987 = vsub.s32 1, %v4986
        %v4988 = vrot.slane %v1159, %v4987
        %4990 = vbcast.lane.b32.xlu0 %v4988, 256
        %v4991 = vpop.permute.xlu0 %4990
        %s4993 = sor.u32 256, 8
        %4994 = vbcast.lane.b32.xlu0 %v4988, %s4993
        %v4995 = vpop.permute.xlu0 %4994
        %s4997 = sor.u32 256, 16
        %4998 = vbcast.lane.b32.xlu0 %v4988, %s4997
        %v4999 = vpop.permute.xlu0 %4998
        %s5001 = sor.u32 256, 24
        %5002 = vbcast.lane.b32.xlu0 %v4988, %s5001
        %v5003 = vpop.permute.xlu0 %5002
        %v5004 = vlaneseq
        %v5005 = vshrl.u32 %v5004, 7
        %v5006 = vsub.s32 2, %v5005
        %v5007 = vrot.slane %v1159, %v5006
        %5009 = vbcast.lane.b32.xlu0 %v5007, 256
        %v5010 = vpop.permute.xlu0 %5009
        %s5012 = sor.u32 256, 8
        %5013 = vbcast.lane.b32.xlu0 %v5007, %s5012
        %v5014 = vpop.permute.xlu0 %5013
        %s5016 = sor.u32 256, 16
        %5017 = vbcast.lane.b32.xlu0 %v5007, %s5016
        %v5018 = vpop.permute.xlu0 %5017
        %s5020 = sor.u32 256, 24
        %5021 = vbcast.lane.b32.xlu0 %v5007, %s5020
        %v5022 = vpop.permute.xlu0 %5021
        %v5023 = vlaneseq
        %v5024 = vshrl.u32 %v5023, 7
        %v5025 = vsub.s32 3, %v5024
        %v5026 = vrot.slane %v1159, %v5025
        %5028 = vbcast.lane.b32.xlu0 %v5026, 256
        %v5029 = vpop.permute.xlu0 %5028
        %s5031 = sor.u32 256, 8
        %5032 = vbcast.lane.b32.xlu0 %v5026, %s5031
        %v5033 = vpop.permute.xlu0 %5032
        %s5035 = sor.u32 256, 16
        %5036 = vbcast.lane.b32.xlu0 %v5026, %s5035
        %v5037 = vpop.permute.xlu0 %5036
        %s5039 = sor.u32 256, 24
        %5040 = vbcast.lane.b32.xlu0 %v5026, %s5039
        %v5041 = vpop.permute.xlu0 %5040
        %v5042 = vlaneseq
        %v5043 = vshrl.u32 %v5042, 7
        %v5044 = vsub.s32 4, %v5043
        %v5045 = vrot.slane %v1159, %v5044
        %5047 = vbcast.lane.b32.xlu0 %v5045, 256
        %v5048 = vpop.permute.xlu0 %5047
        %s5050 = sor.u32 256, 8
        %5051 = vbcast.lane.b32.xlu0 %v5045, %s5050
        %v5052 = vpop.permute.xlu0 %5051
        %s5054 = sor.u32 256, 16
        %5055 = vbcast.lane.b32.xlu0 %v5045, %s5054
        %v5056 = vpop.permute.xlu0 %5055
        %s5058 = sor.u32 256, 24
        %5059 = vbcast.lane.b32.xlu0 %v5045, %s5058
        %v5060 = vpop.permute.xlu0 %5059
        %v5061 = vlaneseq
        %v5062 = vshrl.u32 %v5061, 7
        %v5063 = vsub.s32 5, %v5062
        %v5064 = vrot.slane %v1159, %v5063
        %5066 = vbcast.lane.b32.xlu0 %v5064, 256
        %v5067 = vpop.permute.xlu0 %5066
        %s5069 = sor.u32 256, 8
        %5070 = vbcast.lane.b32.xlu0 %v5064, %s5069
        %v5071 = vpop.permute.xlu0 %5070
        %s5073 = sor.u32 256, 16
        %5074 = vbcast.lane.b32.xlu0 %v5064, %s5073
        %v5075 = vpop.permute.xlu0 %5074
        %s5077 = sor.u32 256, 24
        %5078 = vbcast.lane.b32.xlu0 %v5064, %s5077
        %v5079 = vpop.permute.xlu0 %5078
        %v5080 = vlaneseq
        %v5081 = vshrl.u32 %v5080, 7
        %v5082 = vsub.s32 6, %v5081
        %v5083 = vrot.slane %v1159, %v5082
        %5085 = vbcast.lane.b32.xlu0 %v5083, 256
        %v5086 = vpop.permute.xlu0 %5085
        %s5088 = sor.u32 256, 8
        %5089 = vbcast.lane.b32.xlu0 %v5083, %s5088
        %v5090 = vpop.permute.xlu0 %5089
        %s5092 = sor.u32 256, 16
        %5093 = vbcast.lane.b32.xlu0 %v5083, %s5092
        %v5094 = vpop.permute.xlu0 %5093
        %s5096 = sor.u32 256, 24
        %5097 = vbcast.lane.b32.xlu0 %v5083, %s5096
        %v5098 = vpop.permute.xlu0 %5097
        %v5099 = vlaneseq
        %v5100 = vshrl.u32 %v5099, 7
        %v5101 = vsub.s32 7, %v5100
        %v5102 = vrot.slane %v1159, %v5101
        %5104 = vbcast.lane.b32.xlu0 %v5102, 256
        %v5105 = vpop.permute.xlu0 %5104
        %s5107 = sor.u32 256, 8
        %5108 = vbcast.lane.b32.xlu0 %v5102, %s5107
        %v5109 = vpop.permute.xlu0 %5108
        %s5111 = sor.u32 256, 16
        %5112 = vbcast.lane.b32.xlu0 %v5102, %s5111
        %v5113 = vpop.permute.xlu0 %5112
        %s5115 = sor.u32 256, 24
        %5116 = vbcast.lane.b32.xlu0 %v5102, %s5115
        %v5117 = vpop.permute.xlu0 %5116
        %v5118 = vlaneseq
        %v5119 = vshrl.u32 %v5118, 7
        %v5120 = vsub.s32 0, %v5119
        %v5121 = vrot.slane %v1160, %v5120
        %5123 = vbcast.lane.b32.xlu0 %v5121, 256
        %v5124 = vpop.permute.xlu0 %5123
        %s5126 = sor.u32 256, 8
        %5127 = vbcast.lane.b32.xlu0 %v5121, %s5126
        %v5128 = vpop.permute.xlu0 %5127
        %s5130 = sor.u32 256, 16
        %5131 = vbcast.lane.b32.xlu0 %v5121, %s5130
        %v5132 = vpop.permute.xlu0 %5131
        %s5134 = sor.u32 256, 24
        %5135 = vbcast.lane.b32.xlu0 %v5121, %s5134
        %v5136 = vpop.permute.xlu0 %5135
        %v5137 = vlaneseq
        %v5138 = vshrl.u32 %v5137, 7
        %v5139 = vsub.s32 1, %v5138
        %v5140 = vrot.slane %v1160, %v5139
        %5142 = vbcast.lane.b32.xlu0 %v5140, 256
        %v5143 = vpop.permute.xlu0 %5142
        %s5145 = sor.u32 256, 8
        %5146 = vbcast.lane.b32.xlu0 %v5140, %s5145
        %v5147 = vpop.permute.xlu0 %5146
        %s5149 = sor.u32 256, 16
        %5150 = vbcast.lane.b32.xlu0 %v5140, %s5149
        %v5151 = vpop.permute.xlu0 %5150
        %s5153 = sor.u32 256, 24
        %5154 = vbcast.lane.b32.xlu0 %v5140, %s5153
        %v5155 = vpop.permute.xlu0 %5154
        %v5156 = vlaneseq
        %v5157 = vshrl.u32 %v5156, 7
        %v5158 = vsub.s32 2, %v5157
        %v5159 = vrot.slane %v1160, %v5158
        %5161 = vbcast.lane.b32.xlu0 %v5159, 256
        %v5162 = vpop.permute.xlu0 %5161
        %s5164 = sor.u32 256, 8
        %5165 = vbcast.lane.b32.xlu0 %v5159, %s5164
        %v5166 = vpop.permute.xlu0 %5165
        %s5168 = sor.u32 256, 16
        %5169 = vbcast.lane.b32.xlu0 %v5159, %s5168
        %v5170 = vpop.permute.xlu0 %5169
        %s5172 = sor.u32 256, 24
        %5173 = vbcast.lane.b32.xlu0 %v5159, %s5172
        %v5174 = vpop.permute.xlu0 %5173
        %v5175 = vlaneseq
        %v5176 = vshrl.u32 %v5175, 7
        %v5177 = vsub.s32 3, %v5176
        %v5178 = vrot.slane %v1160, %v5177
        %5180 = vbcast.lane.b32.xlu0 %v5178, 256
        %v5181 = vpop.permute.xlu0 %5180
        %s5183 = sor.u32 256, 8
        %5184 = vbcast.lane.b32.xlu0 %v5178, %s5183
        %v5185 = vpop.permute.xlu0 %5184
        %s5187 = sor.u32 256, 16
        %5188 = vbcast.lane.b32.xlu0 %v5178, %s5187
        %v5189 = vpop.permute.xlu0 %5188
        %s5191 = sor.u32 256, 24
        %5192 = vbcast.lane.b32.xlu0 %v5178, %s5191
        %v5193 = vpop.permute.xlu0 %5192
        %v5194 = vlaneseq
        %v5195 = vshrl.u32 %v5194, 7
        %v5196 = vsub.s32 4, %v5195
        %v5197 = vrot.slane %v1160, %v5196
        %5199 = vbcast.lane.b32.xlu0 %v5197, 256
        %v5200 = vpop.permute.xlu0 %5199
        %s5202 = sor.u32 256, 8
        %5203 = vbcast.lane.b32.xlu0 %v5197, %s5202
        %v5204 = vpop.permute.xlu0 %5203
        %s5206 = sor.u32 256, 16
        %5207 = vbcast.lane.b32.xlu0 %v5197, %s5206
        %v5208 = vpop.permute.xlu0 %5207
        %s5210 = sor.u32 256, 24
        %5211 = vbcast.lane.b32.xlu0 %v5197, %s5210
        %v5212 = vpop.permute.xlu0 %5211
        %v5213 = vlaneseq
        %v5214 = vshrl.u32 %v5213, 7
        %v5215 = vsub.s32 5, %v5214
        %v5216 = vrot.slane %v1160, %v5215
        %5218 = vbcast.lane.b32.xlu0 %v5216, 256
        %v5219 = vpop.permute.xlu0 %5218
        %s5221 = sor.u32 256, 8
        %5222 = vbcast.lane.b32.xlu0 %v5216, %s5221
        %v5223 = vpop.permute.xlu0 %5222
        %s5225 = sor.u32 256, 16
        %5226 = vbcast.lane.b32.xlu0 %v5216, %s5225
        %v5227 = vpop.permute.xlu0 %5226
        %s5229 = sor.u32 256, 24
        %5230 = vbcast.lane.b32.xlu0 %v5216, %s5229
        %v5231 = vpop.permute.xlu0 %5230
        %v5232 = vlaneseq
        %v5233 = vshrl.u32 %v5232, 7
        %v5234 = vsub.s32 6, %v5233
        %v5235 = vrot.slane %v1160, %v5234
        %5237 = vbcast.lane.b32.xlu0 %v5235, 256
        %v5238 = vpop.permute.xlu0 %5237
        %s5240 = sor.u32 256, 8
        %5241 = vbcast.lane.b32.xlu0 %v5235, %s5240
        %v5242 = vpop.permute.xlu0 %5241
        %s5244 = sor.u32 256, 16
        %5245 = vbcast.lane.b32.xlu0 %v5235, %s5244
        %v5246 = vpop.permute.xlu0 %5245
        %s5248 = sor.u32 256, 24
        %5249 = vbcast.lane.b32.xlu0 %v5235, %s5248
        %v5250 = vpop.permute.xlu0 %5249
        %v5251 = vlaneseq
        %v5252 = vshrl.u32 %v5251, 7
        %v5253 = vsub.s32 7, %v5252
        %v5254 = vrot.slane %v1160, %v5253
        %5256 = vbcast.lane.b32.xlu0 %v5254, 256
        %v5257 = vpop.permute.xlu0 %5256
        %s5259 = sor.u32 256, 8
        %5260 = vbcast.lane.b32.xlu0 %v5254, %s5259
        %v5261 = vpop.permute.xlu0 %5260
        %s5263 = sor.u32 256, 16
        %5264 = vbcast.lane.b32.xlu0 %v5254, %s5263
        %v5265 = vpop.permute.xlu0 %5264
        %s5267 = sor.u32 256, 24
        %5268 = vbcast.lane.b32.xlu0 %v5254, %s5267
        %v5269 = vpop.permute.xlu0 %5268
        %v5270 = vlaneseq
        %v5271 = vshrl.u32 %v5270, 7
        %v5272 = vsub.s32 0, %v5271
        %v5273 = vrot.slane %v1161, %v5272
        %5275 = vbcast.lane.b32.xlu0 %v5273, 256
        %v5276 = vpop.permute.xlu0 %5275
        %s5278 = sor.u32 256, 8
        %5279 = vbcast.lane.b32.xlu0 %v5273, %s5278
        %v5280 = vpop.permute.xlu0 %5279
        %s5282 = sor.u32 256, 16
        %5283 = vbcast.lane.b32.xlu0 %v5273, %s5282
        %v5284 = vpop.permute.xlu0 %5283
        %s5286 = sor.u32 256, 24
        %5287 = vbcast.lane.b32.xlu0 %v5273, %s5286
        %v5288 = vpop.permute.xlu0 %5287
        %v5289 = vlaneseq
        %v5290 = vshrl.u32 %v5289, 7
        %v5291 = vsub.s32 1, %v5290
        %v5292 = vrot.slane %v1161, %v5291
        %5294 = vbcast.lane.b32.xlu0 %v5292, 256
        %v5295 = vpop.permute.xlu0 %5294
        %s5297 = sor.u32 256, 8
        %5298 = vbcast.lane.b32.xlu0 %v5292, %s5297
        %v5299 = vpop.permute.xlu0 %5298
        %s5301 = sor.u32 256, 16
        %5302 = vbcast.lane.b32.xlu0 %v5292, %s5301
        %v5303 = vpop.permute.xlu0 %5302
        %s5305 = sor.u32 256, 24
        %5306 = vbcast.lane.b32.xlu0 %v5292, %s5305
        %v5307 = vpop.permute.xlu0 %5306
        %v5308 = vlaneseq
        %v5309 = vshrl.u32 %v5308, 7
        %v5310 = vsub.s32 2, %v5309
        %v5311 = vrot.slane %v1161, %v5310
        %5313 = vbcast.lane.b32.xlu0 %v5311, 256
        %v5314 = vpop.permute.xlu0 %5313
        %s5316 = sor.u32 256, 8
        %5317 = vbcast.lane.b32.xlu0 %v5311, %s5316
        %v5318 = vpop.permute.xlu0 %5317
        %s5320 = sor.u32 256, 16
        %5321 = vbcast.lane.b32.xlu0 %v5311, %s5320
        %v5322 = vpop.permute.xlu0 %5321
        %s5324 = sor.u32 256, 24
        %5325 = vbcast.lane.b32.xlu0 %v5311, %s5324
        %v5326 = vpop.permute.xlu0 %5325
        %v5327 = vlaneseq
        %v5328 = vshrl.u32 %v5327, 7
        %v5329 = vsub.s32 3, %v5328
        %v5330 = vrot.slane %v1161, %v5329
        %5332 = vbcast.lane.b32.xlu0 %v5330, 256
        %v5333 = vpop.permute.xlu0 %5332
        %s5335 = sor.u32 256, 8
        %5336 = vbcast.lane.b32.xlu0 %v5330, %s5335
        %v5337 = vpop.permute.xlu0 %5336
        %s5339 = sor.u32 256, 16
        %5340 = vbcast.lane.b32.xlu0 %v5330, %s5339
        %v5341 = vpop.permute.xlu0 %5340
        %s5343 = sor.u32 256, 24
        %5344 = vbcast.lane.b32.xlu0 %v5330, %s5343
        %v5345 = vpop.permute.xlu0 %5344
        %v5346 = vlaneseq
        %v5347 = vshrl.u32 %v5346, 7
        %v5348 = vsub.s32 4, %v5347
        %v5349 = vrot.slane %v1161, %v5348
        %5351 = vbcast.lane.b32.xlu0 %v5349, 256
        %v5352 = vpop.permute.xlu0 %5351
        %s5354 = sor.u32 256, 8
        %5355 = vbcast.lane.b32.xlu0 %v5349, %s5354
        %v5356 = vpop.permute.xlu0 %5355
        %s5358 = sor.u32 256, 16
        %5359 = vbcast.lane.b32.xlu0 %v5349, %s5358
        %v5360 = vpop.permute.xlu0 %5359
        %s5362 = sor.u32 256, 24
        %5363 = vbcast.lane.b32.xlu0 %v5349, %s5362
        %v5364 = vpop.permute.xlu0 %5363
        %v5365 = vlaneseq
        %v5366 = vshrl.u32 %v5365, 7
        %v5367 = vsub.s32 5, %v5366
        %v5368 = vrot.slane %v1161, %v5367
        %5370 = vbcast.lane.b32.xlu0 %v5368, 256
        %v5371 = vpop.permute.xlu0 %5370
        %s5373 = sor.u32 256, 8
        %5374 = vbcast.lane.b32.xlu0 %v5368, %s5373
        %v5375 = vpop.permute.xlu0 %5374
        %s5377 = sor.u32 256, 16
        %5378 = vbcast.lane.b32.xlu0 %v5368, %s5377
        %v5379 = vpop.permute.xlu0 %5378
        %s5381 = sor.u32 256, 24
        %5382 = vbcast.lane.b32.xlu0 %v5368, %s5381
        %v5383 = vpop.permute.xlu0 %5382
        %v5384 = vlaneseq
        %v5385 = vshrl.u32 %v5384, 7
        %v5386 = vsub.s32 6, %v5385
        %v5387 = vrot.slane %v1161, %v5386
        %5389 = vbcast.lane.b32.xlu0 %v5387, 256
        %v5390 = vpop.permute.xlu0 %5389
        %s5392 = sor.u32 256, 8
        %5393 = vbcast.lane.b32.xlu0 %v5387, %s5392
        %v5394 = vpop.permute.xlu0 %5393
        %s5396 = sor.u32 256, 16
        %5397 = vbcast.lane.b32.xlu0 %v5387, %s5396
        %v5398 = vpop.permute.xlu0 %5397
        %s5400 = sor.u32 256, 24
        %5401 = vbcast.lane.b32.xlu0 %v5387, %s5400
        %v5402 = vpop.permute.xlu0 %5401
        %v5403 = vlaneseq
        %v5404 = vshrl.u32 %v5403, 7
        %v5405 = vsub.s32 7, %v5404
        %v5406 = vrot.slane %v1161, %v5405
        %5408 = vbcast.lane.b32.xlu0 %v5406, 256
        %v5409 = vpop.permute.xlu0 %5408
        %s5411 = sor.u32 256, 8
        %5412 = vbcast.lane.b32.xlu0 %v5406, %s5411
        %v5413 = vpop.permute.xlu0 %5412
        %s5415 = sor.u32 256, 16
        %5416 = vbcast.lane.b32.xlu0 %v5406, %s5415
        %v5417 = vpop.permute.xlu0 %5416
        %s5419 = sor.u32 256, 24
        %5420 = vbcast.lane.b32.xlu0 %v5406, %s5419
        %v5421 = vpop.permute.xlu0 %5420
        %v5422 = vlaneseq
        %v5423 = vshrl.u32 %v5422, 7
        %v5424 = vsub.s32 0, %v5423
        %v5425 = vrot.slane %v1162, %v5424
        %5427 = vbcast.lane.b32.xlu0 %v5425, 256
        %v5428 = vpop.permute.xlu0 %5427
        %s5430 = sor.u32 256, 8
        %5431 = vbcast.lane.b32.xlu0 %v5425, %s5430
        %v5432 = vpop.permute.xlu0 %5431
        %s5434 = sor.u32 256, 16
        %5435 = vbcast.lane.b32.xlu0 %v5425, %s5434
        %v5436 = vpop.permute.xlu0 %5435
        %s5438 = sor.u32 256, 24
        %5439 = vbcast.lane.b32.xlu0 %v5425, %s5438
        %v5440 = vpop.permute.xlu0 %5439
        %v5441 = vlaneseq
        %v5442 = vshrl.u32 %v5441, 7
        %v5443 = vsub.s32 1, %v5442
        %v5444 = vrot.slane %v1162, %v5443
        %5446 = vbcast.lane.b32.xlu0 %v5444, 256
        %v5447 = vpop.permute.xlu0 %5446
        %s5449 = sor.u32 256, 8
        %5450 = vbcast.lane.b32.xlu0 %v5444, %s5449
        %v5451 = vpop.permute.xlu0 %5450
        %s5453 = sor.u32 256, 16
        %5454 = vbcast.lane.b32.xlu0 %v5444, %s5453
        %v5455 = vpop.permute.xlu0 %5454
        %s5457 = sor.u32 256, 24
        %5458 = vbcast.lane.b32.xlu0 %v5444, %s5457
        %v5459 = vpop.permute.xlu0 %5458
        %v5460 = vlaneseq
        %v5461 = vshrl.u32 %v5460, 7
        %v5462 = vsub.s32 2, %v5461
        %v5463 = vrot.slane %v1162, %v5462
        %5465 = vbcast.lane.b32.xlu0 %v5463, 256
        %v5466 = vpop.permute.xlu0 %5465
        %s5468 = sor.u32 256, 8
        %5469 = vbcast.lane.b32.xlu0 %v5463, %s5468
        %v5470 = vpop.permute.xlu0 %5469
        %s5472 = sor.u32 256, 16
        %5473 = vbcast.lane.b32.xlu0 %v5463, %s5472
        %v5474 = vpop.permute.xlu0 %5473
        %s5476 = sor.u32 256, 24
        %5477 = vbcast.lane.b32.xlu0 %v5463, %s5476
        %v5478 = vpop.permute.xlu0 %5477
        %v5479 = vlaneseq
        %v5480 = vshrl.u32 %v5479, 7
        %v5481 = vsub.s32 3, %v5480
        %v5482 = vrot.slane %v1162, %v5481
        %5484 = vbcast.lane.b32.xlu0 %v5482, 256
        %v5485 = vpop.permute.xlu0 %5484
        %s5487 = sor.u32 256, 8
        %5488 = vbcast.lane.b32.xlu0 %v5482, %s5487
        %v5489 = vpop.permute.xlu0 %5488
        %s5491 = sor.u32 256, 16
        %5492 = vbcast.lane.b32.xlu0 %v5482, %s5491
        %v5493 = vpop.permute.xlu0 %5492
        %s5495 = sor.u32 256, 24
        %5496 = vbcast.lane.b32.xlu0 %v5482, %s5495
        %v5497 = vpop.permute.xlu0 %5496
        %v5498 = vlaneseq
        %v5499 = vshrl.u32 %v5498, 7
        %v5500 = vsub.s32 4, %v5499
        %v5501 = vrot.slane %v1162, %v5500
        %5503 = vbcast.lane.b32.xlu0 %v5501, 256
        %v5504 = vpop.permute.xlu0 %5503
        %s5506 = sor.u32 256, 8
        %5507 = vbcast.lane.b32.xlu0 %v5501, %s5506
        %v5508 = vpop.permute.xlu0 %5507
        %s5510 = sor.u32 256, 16
        %5511 = vbcast.lane.b32.xlu0 %v5501, %s5510
        %v5512 = vpop.permute.xlu0 %5511
        %s5514 = sor.u32 256, 24
        %5515 = vbcast.lane.b32.xlu0 %v5501, %s5514
        %v5516 = vpop.permute.xlu0 %5515
        %v5517 = vlaneseq
        %v5518 = vshrl.u32 %v5517, 7
        %v5519 = vsub.s32 5, %v5518
        %v5520 = vrot.slane %v1162, %v5519
        %5522 = vbcast.lane.b32.xlu0 %v5520, 256
        %v5523 = vpop.permute.xlu0 %5522
        %s5525 = sor.u32 256, 8
        %5526 = vbcast.lane.b32.xlu0 %v5520, %s5525
        %v5527 = vpop.permute.xlu0 %5526
        %s5529 = sor.u32 256, 16
        %5530 = vbcast.lane.b32.xlu0 %v5520, %s5529
        %v5531 = vpop.permute.xlu0 %5530
        %s5533 = sor.u32 256, 24
        %5534 = vbcast.lane.b32.xlu0 %v5520, %s5533
        %v5535 = vpop.permute.xlu0 %5534
        %v5536 = vlaneseq
        %v5537 = vshrl.u32 %v5536, 7
        %v5538 = vsub.s32 6, %v5537
        %v5539 = vrot.slane %v1162, %v5538
        %5541 = vbcast.lane.b32.xlu0 %v5539, 256
        %v5542 = vpop.permute.xlu0 %5541
        %s5544 = sor.u32 256, 8
        %5545 = vbcast.lane.b32.xlu0 %v5539, %s5544
        %v5546 = vpop.permute.xlu0 %5545
        %s5548 = sor.u32 256, 16
        %5549 = vbcast.lane.b32.xlu0 %v5539, %s5548
        %v5550 = vpop.permute.xlu0 %5549
        %s5552 = sor.u32 256, 24
        %5553 = vbcast.lane.b32.xlu0 %v5539, %s5552
        %v5554 = vpop.permute.xlu0 %5553
        %v5555 = vlaneseq
        %v5556 = vshrl.u32 %v5555, 7
        %v5557 = vsub.s32 7, %v5556
        %v5558 = vrot.slane %v1162, %v5557
        %5560 = vbcast.lane.b32.xlu0 %v5558, 256
        %v5561 = vpop.permute.xlu0 %5560
        %s5563 = sor.u32 256, 8
        %5564 = vbcast.lane.b32.xlu0 %v5558, %s5563
        %v5565 = vpop.permute.xlu0 %5564
        %s5567 = sor.u32 256, 16
        %5568 = vbcast.lane.b32.xlu0 %v5558, %s5567
        %v5569 = vpop.permute.xlu0 %5568
        %s5571 = sor.u32 256, 24
        %5572 = vbcast.lane.b32.xlu0 %v5558, %s5571
        %v5573 = vpop.permute.xlu0 %5572
        %v5574 = vlaneseq
        %v5575 = vshrl.u32 %v5574, 7
        %v5576 = vsub.s32 0, %v5575
        %v5577 = vrot.slane %v1163, %v5576
        %5579 = vbcast.lane.b32.xlu0 %v5577, 256
        %v5580 = vpop.permute.xlu0 %5579
        %s5582 = sor.u32 256, 8
        %5583 = vbcast.lane.b32.xlu0 %v5577, %s5582
        %v5584 = vpop.permute.xlu0 %5583
        %s5586 = sor.u32 256, 16
        %5587 = vbcast.lane.b32.xlu0 %v5577, %s5586
        %v5588 = vpop.permute.xlu0 %5587
        %s5590 = sor.u32 256, 24
        %5591 = vbcast.lane.b32.xlu0 %v5577, %s5590
        %v5592 = vpop.permute.xlu0 %5591
        %v5593 = vlaneseq
        %v5594 = vshrl.u32 %v5593, 7
        %v5595 = vsub.s32 1, %v5594
        %v5596 = vrot.slane %v1163, %v5595
        %5598 = vbcast.lane.b32.xlu0 %v5596, 256
        %v5599 = vpop.permute.xlu0 %5598
        %s5601 = sor.u32 256, 8
        %5602 = vbcast.lane.b32.xlu0 %v5596, %s5601
        %v5603 = vpop.permute.xlu0 %5602
        %s5605 = sor.u32 256, 16
        %5606 = vbcast.lane.b32.xlu0 %v5596, %s5605
        %v5607 = vpop.permute.xlu0 %5606
        %s5609 = sor.u32 256, 24
        %5610 = vbcast.lane.b32.xlu0 %v5596, %s5609
        %v5611 = vpop.permute.xlu0 %5610
        %v5612 = vlaneseq
        %v5613 = vshrl.u32 %v5612, 7
        %v5614 = vsub.s32 2, %v5613
        %v5615 = vrot.slane %v1163, %v5614
        %5617 = vbcast.lane.b32.xlu0 %v5615, 256
        %v5618 = vpop.permute.xlu0 %5617
        %s5620 = sor.u32 256, 8
        %5621 = vbcast.lane.b32.xlu0 %v5615, %s5620
        %v5622 = vpop.permute.xlu0 %5621
        %s5624 = sor.u32 256, 16
        %5625 = vbcast.lane.b32.xlu0 %v5615, %s5624
        %v5626 = vpop.permute.xlu0 %5625
        %s5628 = sor.u32 256, 24
        %5629 = vbcast.lane.b32.xlu0 %v5615, %s5628
        %v5630 = vpop.permute.xlu0 %5629
        %v5631 = vlaneseq
        %v5632 = vshrl.u32 %v5631, 7
        %v5633 = vsub.s32 3, %v5632
        %v5634 = vrot.slane %v1163, %v5633
        %5636 = vbcast.lane.b32.xlu0 %v5634, 256
        %v5637 = vpop.permute.xlu0 %5636
        %s5639 = sor.u32 256, 8
        %5640 = vbcast.lane.b32.xlu0 %v5634, %s5639
        %v5641 = vpop.permute.xlu0 %5640
        %s5643 = sor.u32 256, 16
        %5644 = vbcast.lane.b32.xlu0 %v5634, %s5643
        %v5645 = vpop.permute.xlu0 %5644
        %s5647 = sor.u32 256, 24
        %5648 = vbcast.lane.b32.xlu0 %v5634, %s5647
        %v5649 = vpop.permute.xlu0 %5648
        %v5650 = vlaneseq
        %v5651 = vshrl.u32 %v5650, 7
        %v5652 = vsub.s32 4, %v5651
        %v5653 = vrot.slane %v1163, %v5652
        %5655 = vbcast.lane.b32.xlu0 %v5653, 256
        %v5656 = vpop.permute.xlu0 %5655
        %s5658 = sor.u32 256, 8
        %5659 = vbcast.lane.b32.xlu0 %v5653, %s5658
        %v5660 = vpop.permute.xlu0 %5659
        %s5662 = sor.u32 256, 16
        %5663 = vbcast.lane.b32.xlu0 %v5653, %s5662
        %v5664 = vpop.permute.xlu0 %5663
        %s5666 = sor.u32 256, 24
        %5667 = vbcast.lane.b32.xlu0 %v5653, %s5666
        %v5668 = vpop.permute.xlu0 %5667
        %v5669 = vlaneseq
        %v5670 = vshrl.u32 %v5669, 7
        %v5671 = vsub.s32 5, %v5670
        %v5672 = vrot.slane %v1163, %v5671
        %5674 = vbcast.lane.b32.xlu0 %v5672, 256
        %v5675 = vpop.permute.xlu0 %5674
        %s5677 = sor.u32 256, 8
        %5678 = vbcast.lane.b32.xlu0 %v5672, %s5677
        %v5679 = vpop.permute.xlu0 %5678
        %s5681 = sor.u32 256, 16
        %5682 = vbcast.lane.b32.xlu0 %v5672, %s5681
        %v5683 = vpop.permute.xlu0 %5682
        %s5685 = sor.u32 256, 24
        %5686 = vbcast.lane.b32.xlu0 %v5672, %s5685
        %v5687 = vpop.permute.xlu0 %5686
        %v5688 = vlaneseq
        %v5689 = vshrl.u32 %v5688, 7
        %v5690 = vsub.s32 6, %v5689
        %v5691 = vrot.slane %v1163, %v5690
        %5693 = vbcast.lane.b32.xlu0 %v5691, 256
        %v5694 = vpop.permute.xlu0 %5693
        %s5696 = sor.u32 256, 8
        %5697 = vbcast.lane.b32.xlu0 %v5691, %s5696
        %v5698 = vpop.permute.xlu0 %5697
        %s5700 = sor.u32 256, 16
        %5701 = vbcast.lane.b32.xlu0 %v5691, %s5700
        %v5702 = vpop.permute.xlu0 %5701
        %s5704 = sor.u32 256, 24
        %5705 = vbcast.lane.b32.xlu0 %v5691, %s5704
        %v5706 = vpop.permute.xlu0 %5705
        %v5707 = vlaneseq
        %v5708 = vshrl.u32 %v5707, 7
        %v5709 = vsub.s32 7, %v5708
        %v5710 = vrot.slane %v1163, %v5709
        %5712 = vbcast.lane.b32.xlu0 %v5710, 256
        %v5713 = vpop.permute.xlu0 %5712
        %s5715 = sor.u32 256, 8
        %5716 = vbcast.lane.b32.xlu0 %v5710, %s5715
        %v5717 = vpop.permute.xlu0 %5716
        %s5719 = sor.u32 256, 16
        %5720 = vbcast.lane.b32.xlu0 %v5710, %s5719
        %v5721 = vpop.permute.xlu0 %5720
        %s5723 = sor.u32 256, 24
        %5724 = vbcast.lane.b32.xlu0 %v5710, %s5723
        %v5725 = vpop.permute.xlu0 %5724
        %v5726 = vlaneseq
        %v5727 = vshrl.u32 %v5726, 7
        %v5728 = vsub.s32 0, %v5727
        %v5729 = vrot.slane %v1164, %v5728
        %5731 = vbcast.lane.b32.xlu0 %v5729, 256
        %v5732 = vpop.permute.xlu0 %5731
        %s5734 = sor.u32 256, 8
        %5735 = vbcast.lane.b32.xlu0 %v5729, %s5734
        %v5736 = vpop.permute.xlu0 %5735
        %s5738 = sor.u32 256, 16
        %5739 = vbcast.lane.b32.xlu0 %v5729, %s5738
        %v5740 = vpop.permute.xlu0 %5739
        %s5742 = sor.u32 256, 24
        %5743 = vbcast.lane.b32.xlu0 %v5729, %s5742
        %v5744 = vpop.permute.xlu0 %5743
        %v5745 = vlaneseq
        %v5746 = vshrl.u32 %v5745, 7
        %v5747 = vsub.s32 1, %v5746
        %v5748 = vrot.slane %v1164, %v5747
        %5750 = vbcast.lane.b32.xlu0 %v5748, 256
        %v5751 = vpop.permute.xlu0 %5750
        %s5753 = sor.u32 256, 8
        %5754 = vbcast.lane.b32.xlu0 %v5748, %s5753
        %v5755 = vpop.permute.xlu0 %5754
        %s5757 = sor.u32 256, 16
        %5758 = vbcast.lane.b32.xlu0 %v5748, %s5757
        %v5759 = vpop.permute.xlu0 %5758
        %s5761 = sor.u32 256, 24
        %5762 = vbcast.lane.b32.xlu0 %v5748, %s5761
        %v5763 = vpop.permute.xlu0 %5762
        %v5764 = vlaneseq
        %v5765 = vshrl.u32 %v5764, 7
        %v5766 = vsub.s32 2, %v5765
        %v5767 = vrot.slane %v1164, %v5766
        %5769 = vbcast.lane.b32.xlu0 %v5767, 256
        %v5770 = vpop.permute.xlu0 %5769
        %s5772 = sor.u32 256, 8
        %5773 = vbcast.lane.b32.xlu0 %v5767, %s5772
        %v5774 = vpop.permute.xlu0 %5773
        %s5776 = sor.u32 256, 16
        %5777 = vbcast.lane.b32.xlu0 %v5767, %s5776
        %v5778 = vpop.permute.xlu0 %5777
        %s5780 = sor.u32 256, 24
        %5781 = vbcast.lane.b32.xlu0 %v5767, %s5780
        %v5782 = vpop.permute.xlu0 %5781
        %v5783 = vlaneseq
        %v5784 = vshrl.u32 %v5783, 7
        %v5785 = vsub.s32 3, %v5784
        %v5786 = vrot.slane %v1164, %v5785
        %5788 = vbcast.lane.b32.xlu0 %v5786, 256
        %v5789 = vpop.permute.xlu0 %5788
        %s5791 = sor.u32 256, 8
        %5792 = vbcast.lane.b32.xlu0 %v5786, %s5791
        %v5793 = vpop.permute.xlu0 %5792
        %s5795 = sor.u32 256, 16
        %5796 = vbcast.lane.b32.xlu0 %v5786, %s5795
        %v5797 = vpop.permute.xlu0 %5796
        %s5799 = sor.u32 256, 24
        %5800 = vbcast.lane.b32.xlu0 %v5786, %s5799
        %v5801 = vpop.permute.xlu0 %5800
        %v5802 = vlaneseq
        %v5803 = vshrl.u32 %v5802, 7
        %v5804 = vsub.s32 4, %v5803
        %v5805 = vrot.slane %v1164, %v5804
        %5807 = vbcast.lane.b32.xlu0 %v5805, 256
        %v5808 = vpop.permute.xlu0 %5807
        %s5810 = sor.u32 256, 8
        %5811 = vbcast.lane.b32.xlu0 %v5805, %s5810
        %v5812 = vpop.permute.xlu0 %5811
        %s5814 = sor.u32 256, 16
        %5815 = vbcast.lane.b32.xlu0 %v5805, %s5814
        %v5816 = vpop.permute.xlu0 %5815
        %s5818 = sor.u32 256, 24
        %5819 = vbcast.lane.b32.xlu0 %v5805, %s5818
        %v5820 = vpop.permute.xlu0 %5819
        %v5821 = vlaneseq
        %v5822 = vshrl.u32 %v5821, 7
        %v5823 = vsub.s32 5, %v5822
        %v5824 = vrot.slane %v1164, %v5823
        %5826 = vbcast.lane.b32.xlu0 %v5824, 256
        %v5827 = vpop.permute.xlu0 %5826
        %s5829 = sor.u32 256, 8
        %5830 = vbcast.lane.b32.xlu0 %v5824, %s5829
        %v5831 = vpop.permute.xlu0 %5830
        %s5833 = sor.u32 256, 16
        %5834 = vbcast.lane.b32.xlu0 %v5824, %s5833
        %v5835 = vpop.permute.xlu0 %5834
        %s5837 = sor.u32 256, 24
        %5838 = vbcast.lane.b32.xlu0 %v5824, %s5837
        %v5839 = vpop.permute.xlu0 %5838
        %v5840 = vlaneseq
        %v5841 = vshrl.u32 %v5840, 7
        %v5842 = vsub.s32 6, %v5841
        %v5843 = vrot.slane %v1164, %v5842
        %5845 = vbcast.lane.b32.xlu0 %v5843, 256
        %v5846 = vpop.permute.xlu0 %5845
        %s5848 = sor.u32 256, 8
        %5849 = vbcast.lane.b32.xlu0 %v5843, %s5848
        %v5850 = vpop.permute.xlu0 %5849
        %s5852 = sor.u32 256, 16
        %5853 = vbcast.lane.b32.xlu0 %v5843, %s5852
        %v5854 = vpop.permute.xlu0 %5853
        %s5856 = sor.u32 256, 24
        %5857 = vbcast.lane.b32.xlu0 %v5843, %s5856
        %v5858 = vpop.permute.xlu0 %5857
        %v5859 = vlaneseq
        %v5860 = vshrl.u32 %v5859, 7
        %v5861 = vsub.s32 7, %v5860
        %v5862 = vrot.slane %v1164, %v5861
        %5864 = vbcast.lane.b32.xlu0 %v5862, 256
        %v5865 = vpop.permute.xlu0 %5864
        %s5867 = sor.u32 256, 8
        %5868 = vbcast.lane.b32.xlu0 %v5862, %s5867
        %v5869 = vpop.permute.xlu0 %5868
        %s5871 = sor.u32 256, 16
        %5872 = vbcast.lane.b32.xlu0 %v5862, %s5871
        %v5873 = vpop.permute.xlu0 %5872
        %s5875 = sor.u32 256, 24
        %5876 = vbcast.lane.b32.xlu0 %v5862, %s5875
        %v5877 = vpop.permute.xlu0 %5876
        %v5878 = vlaneseq
        %v5879 = vshrl.u32 %v5878, 7
        %v5880 = vsub.s32 0, %v5879
        %v5881 = vrot.slane %v1165, %v5880
        %5883 = vbcast.lane.b32.xlu0 %v5881, 256
        %v5884 = vpop.permute.xlu0 %5883
        %s5886 = sor.u32 256, 8
        %5887 = vbcast.lane.b32.xlu0 %v5881, %s5886
        %v5888 = vpop.permute.xlu0 %5887
        %s5890 = sor.u32 256, 16
        %5891 = vbcast.lane.b32.xlu0 %v5881, %s5890
        %v5892 = vpop.permute.xlu0 %5891
        %s5894 = sor.u32 256, 24
        %5895 = vbcast.lane.b32.xlu0 %v5881, %s5894
        %v5896 = vpop.permute.xlu0 %5895
        %v5897 = vlaneseq
        %v5898 = vshrl.u32 %v5897, 7
        %v5899 = vsub.s32 1, %v5898
        %v5900 = vrot.slane %v1165, %v5899
        %5902 = vbcast.lane.b32.xlu0 %v5900, 256
        %v5903 = vpop.permute.xlu0 %5902
        %s5905 = sor.u32 256, 8
        %5906 = vbcast.lane.b32.xlu0 %v5900, %s5905
        %v5907 = vpop.permute.xlu0 %5906
        %s5909 = sor.u32 256, 16
        %5910 = vbcast.lane.b32.xlu0 %v5900, %s5909
        %v5911 = vpop.permute.xlu0 %5910
        %s5913 = sor.u32 256, 24
        %5914 = vbcast.lane.b32.xlu0 %v5900, %s5913
        %v5915 = vpop.permute.xlu0 %5914
        %v5916 = vlaneseq
        %v5917 = vshrl.u32 %v5916, 7
        %v5918 = vsub.s32 2, %v5917
        %v5919 = vrot.slane %v1165, %v5918
        %5921 = vbcast.lane.b32.xlu0 %v5919, 256
        %v5922 = vpop.permute.xlu0 %5921
        %s5924 = sor.u32 256, 8
        %5925 = vbcast.lane.b32.xlu0 %v5919, %s5924
        %v5926 = vpop.permute.xlu0 %5925
        %s5928 = sor.u32 256, 16
        %5929 = vbcast.lane.b32.xlu0 %v5919, %s5928
        %v5930 = vpop.permute.xlu0 %5929
        %s5932 = sor.u32 256, 24
        %5933 = vbcast.lane.b32.xlu0 %v5919, %s5932
        %v5934 = vpop.permute.xlu0 %5933
        %v5935 = vlaneseq
        %v5936 = vshrl.u32 %v5935, 7
        %v5937 = vsub.s32 3, %v5936
        %v5938 = vrot.slane %v1165, %v5937
        %5940 = vbcast.lane.b32.xlu0 %v5938, 256
        %v5941 = vpop.permute.xlu0 %5940
        %s5943 = sor.u32 256, 8
        %5944 = vbcast.lane.b32.xlu0 %v5938, %s5943
        %v5945 = vpop.permute.xlu0 %5944
        %s5947 = sor.u32 256, 16
        %5948 = vbcast.lane.b32.xlu0 %v5938, %s5947
        %v5949 = vpop.permute.xlu0 %5948
        %s5951 = sor.u32 256, 24
        %5952 = vbcast.lane.b32.xlu0 %v5938, %s5951
        %v5953 = vpop.permute.xlu0 %5952
        %v5954 = vlaneseq
        %v5955 = vshrl.u32 %v5954, 7
        %v5956 = vsub.s32 4, %v5955
        %v5957 = vrot.slane %v1165, %v5956
        %5959 = vbcast.lane.b32.xlu0 %v5957, 256
        %v5960 = vpop.permute.xlu0 %5959
        %s5962 = sor.u32 256, 8
        %5963 = vbcast.lane.b32.xlu0 %v5957, %s5962
        %v5964 = vpop.permute.xlu0 %5963
        %s5966 = sor.u32 256, 16
        %5967 = vbcast.lane.b32.xlu0 %v5957, %s5966
        %v5968 = vpop.permute.xlu0 %5967
        %s5970 = sor.u32 256, 24
        %5971 = vbcast.lane.b32.xlu0 %v5957, %s5970
        %v5972 = vpop.permute.xlu0 %5971
        %v5973 = vlaneseq
        %v5974 = vshrl.u32 %v5973, 7
        %v5975 = vsub.s32 5, %v5974
        %v5976 = vrot.slane %v1165, %v5975
        %5978 = vbcast.lane.b32.xlu0 %v5976, 256
        %v5979 = vpop.permute.xlu0 %5978
        %s5981 = sor.u32 256, 8
        %5982 = vbcast.lane.b32.xlu0 %v5976, %s5981
        %v5983 = vpop.permute.xlu0 %5982
        %s5985 = sor.u32 256, 16
        %5986 = vbcast.lane.b32.xlu0 %v5976, %s5985
        %v5987 = vpop.permute.xlu0 %5986
        %s5989 = sor.u32 256, 24
        %5990 = vbcast.lane.b32.xlu0 %v5976, %s5989
        %v5991 = vpop.permute.xlu0 %5990
        %v5992 = vlaneseq
        %v5993 = vshrl.u32 %v5992, 7
        %v5994 = vsub.s32 6, %v5993
        %v5995 = vrot.slane %v1165, %v5994
        %5997 = vbcast.lane.b32.xlu0 %v5995, 256
        %v5998 = vpop.permute.xlu0 %5997
        %s6000 = sor.u32 256, 8
        %6001 = vbcast.lane.b32.xlu0 %v5995, %s6000
        %v6002 = vpop.permute.xlu0 %6001
        %s6004 = sor.u32 256, 16
        %6005 = vbcast.lane.b32.xlu0 %v5995, %s6004
        %v6006 = vpop.permute.xlu0 %6005
        %s6008 = sor.u32 256, 24
        %6009 = vbcast.lane.b32.xlu0 %v5995, %s6008
        %v6010 = vpop.permute.xlu0 %6009
        %v6011 = vlaneseq
        %v6012 = vshrl.u32 %v6011, 7
        %v6013 = vsub.s32 7, %v6012
        %v6014 = vrot.slane %v1165, %v6013
        %6016 = vbcast.lane.b32.xlu0 %v6014, 256
        %v6017 = vpop.permute.xlu0 %6016
        %s6019 = sor.u32 256, 8
        %6020 = vbcast.lane.b32.xlu0 %v6014, %s6019
        %v6021 = vpop.permute.xlu0 %6020
        %s6023 = sor.u32 256, 16
        %6024 = vbcast.lane.b32.xlu0 %v6014, %s6023
        %v6025 = vpop.permute.xlu0 %6024
        %s6027 = sor.u32 256, 24
        %6028 = vbcast.lane.b32.xlu0 %v6014, %s6027
        %v6029 = vpop.permute.xlu0 %6028
        %vm6030 = vcmask 7168
        %v6031 = vsel %vm6030, %v1172, %v1324
        %v6032 = vsel %vm6030, %v1176, %v1328
        %v6033 = vsel %vm6030, %v1180, %v1332
        %v6034 = vsel %vm6030, %v1184, %v1336
        %v6035 = vsel %vm6030, %v1191, %v1343
        %v6036 = vsel %vm6030, %v1195, %v1347
        %v6037 = vsel %vm6030, %v1199, %v1351
        %v6038 = vsel %vm6030, %v1203, %v1355
        %v6039 = vsel %vm6030, %v1210, %v1362
        %v6040 = vsel %vm6030, %v1214, %v1366
        %v6041 = vsel %vm6030, %v1218, %v1370
        %v6042 = vsel %vm6030, %v1222, %v1374
        %v6043 = vsel %vm6030, %v1229, %v1381
        %v6044 = vsel %vm6030, %v1233, %v1385
        %v6045 = vsel %vm6030, %v1237, %v1389
        %v6046 = vsel %vm6030, %v1241, %v1393
        %v6047 = vsel %vm6030, %v1248, %v1400
        %v6048 = vsel %vm6030, %v1252, %v1404
        %v6049 = vsel %vm6030, %v1256, %v1408
        %v6050 = vsel %vm6030, %v1260, %v1412
        %v6051 = vsel %vm6030, %v1267, %v1419
        %v6052 = vsel %vm6030, %v1271, %v1423
        %v6053 = vsel %vm6030, %v1275, %v1427
        %v6054 = vsel %vm6030, %v1279, %v1431
        %v6055 = vsel %vm6030, %v1286, %v1438
        %v6056 = vsel %vm6030, %v1290, %v1442
        %v6057 = vsel %vm6030, %v1294, %v1446
        %v6058 = vsel %vm6030, %v1298, %v1450
        %v6059 = vsel %vm6030, %v1305, %v1457
        %v6060 = vsel %vm6030, %v1309, %v1461
        %v6061 = vsel %vm6030, %v1313, %v1465
        %v6062 = vsel %vm6030, %v1317, %v1469
        %vm6063 = vcmask 15360
        %v6064 = vsel %vm6063, %v6031, %v1476
        %v6065 = vsel %vm6063, %v6032, %v1480
        %v6066 = vsel %vm6063, %v6033, %v1484
        %v6067 = vsel %vm6063, %v6034, %v1488
        %v6068 = vsel %vm6063, %v6035, %v1495
        %v6069 = vsel %vm6063, %v6036, %v1499
        %v6070 = vsel %vm6063, %v6037, %v1503
        %v6071 = vsel %vm6063, %v6038, %v1507
        %v6072 = vsel %vm6063, %v6039, %v1514
        %v6073 = vsel %vm6063, %v6040, %v1518
        %v6074 = vsel %vm6063, %v6041, %v1522
        %v6075 = vsel %vm6063, %v6042, %v1526
        %v6076 = vsel %vm6063, %v6043, %v1533
        %v6077 = vsel %vm6063, %v6044, %v1537
        %v6078 = vsel %vm6063, %v6045, %v1541
        %v6079 = vsel %vm6063, %v6046, %v1545
        %v6080 = vsel %vm6063, %v6047, %v1552
        %v6081 = vsel %vm6063, %v6048, %v1556
        %v6082 = vsel %vm6063, %v6049, %v1560
        %v6083 = vsel %vm6063, %v6050, %v1564
        %v6084 = vsel %vm6063, %v6051, %v1571
        %v6085 = vsel %vm6063, %v6052, %v1575
        %v6086 = vsel %vm6063, %v6053, %v1579
        %v6087 = vsel %vm6063, %v6054, %v1583
        %v6088 = vsel %vm6063, %v6055, %v1590
        %v6089 = vsel %vm6063, %v6056, %v1594
        %v6090 = vsel %vm6063, %v6057, %v1598
        %v6091 = vsel %vm6063, %v6058, %v1602
        %v6092 = vsel %vm6063, %v6059, %v1609
        %v6093 = vsel %vm6063, %v6060, %v1613
        %v6094 = vsel %vm6063, %v6061, %v1617
        %v6095 = vsel %vm6063, %v6062, %v1621
        %vm6096 = vcmask 23552
        %v6097 = vsel %vm6096, %v6064, %v1628
        %v6098 = vsel %vm6096, %v6065, %v1632
        %v6099 = vsel %vm6096, %v6066, %v1636
        %v6100 = vsel %vm6096, %v6067, %v1640
        %v6101 = vsel %vm6096, %v6068, %v1647
        %v6102 = vsel %vm6096, %v6069, %v1651
        %v6103 = vsel %vm6096, %v6070, %v1655
        %v6104 = vsel %vm6096, %v6071, %v1659
        %v6105 = vsel %vm6096, %v6072, %v1666
        %v6106 = vsel %vm6096, %v6073, %v1670
        %v6107 = vsel %vm6096, %v6074, %v1674
        %v6108 = vsel %vm6096, %v6075, %v1678
        %v6109 = vsel %vm6096, %v6076, %v1685
        %v6110 = vsel %vm6096, %v6077, %v1689
        %v6111 = vsel %vm6096, %v6078, %v1693
        %v6112 = vsel %vm6096, %v6079, %v1697
        %v6113 = vsel %vm6096, %v6080, %v1704
        %v6114 = vsel %vm6096, %v6081, %v1708
        %v6115 = vsel %vm6096, %v6082, %v1712
        %v6116 = vsel %vm6096, %v6083, %v1716
        %v6117 = vsel %vm6096, %v6084, %v1723
        %v6118 = vsel %vm6096, %v6085, %v1727
        %v6119 = vsel %vm6096, %v6086, %v1731
        %v6120 = vsel %vm6096, %v6087, %v1735
        %v6121 = vsel %vm6096, %v6088, %v1742
        %v6122 = vsel %vm6096, %v6089, %v1746
        %v6123 = vsel %vm6096, %v6090, %v1750
        %v6124 = vsel %vm6096, %v6091, %v1754
        %v6125 = vsel %vm6096, %v6092, %v1761
        %v6126 = vsel %vm6096, %v6093, %v1765
        %v6127 = vsel %vm6096, %v6094, %v1769
        %v6128 = vsel %vm6096, %v6095, %v1773
        %vm6129 = vcmask 31744
        %v6130 = vsel %vm6129, %v6097, %v1780
        %v6131 = vsel %vm6129, %v6098, %v1784
        %v6132 = vsel %vm6129, %v6099, %v1788
        %v6133 = vsel %vm6129, %v6100, %v1792
        %v6134 = vsel %vm6129, %v6101, %v1799
        %v6135 = vsel %vm6129, %v6102, %v1803
        %v6136 = vsel %vm6129, %v6103, %v1807
        %v6137 = vsel %vm6129, %v6104, %v1811
        %v6138 = vsel %vm6129, %v6105, %v1818
        %v6139 = vsel %vm6129, %v6106, %v1822
        %v6140 = vsel %vm6129, %v6107, %v1826
        %v6141 = vsel %vm6129, %v6108, %v1830
        %v6142 = vsel %vm6129, %v6109, %v1837
        %v6143 = vsel %vm6129, %v6110, %v1841
        %v6144 = vsel %vm6129, %v6111, %v1845
        %v6145 = vsel %vm6129, %v6112, %v1849
        %v6146 = vsel %vm6129, %v6113, %v1856
        %v6147 = vsel %vm6129, %v6114, %v1860
        %v6148 = vsel %vm6129, %v6115, %v1864
        %v6149 = vsel %vm6129, %v6116, %v1868
        %v6150 = vsel %vm6129, %v6117, %v1875
        %v6151 = vsel %vm6129, %v6118, %v1879
        %v6152 = vsel %vm6129, %v6119, %v1883
        %v6153 = vsel %vm6129, %v6120, %v1887
        %v6154 = vsel %vm6129, %v6121, %v1894
        %v6155 = vsel %vm6129, %v6122, %v1898
        %v6156 = vsel %vm6129, %v6123, %v1902
        %v6157 = vsel %vm6129, %v6124, %v1906
        %v6158 = vsel %vm6129, %v6125, %v1913
        %v6159 = vsel %vm6129, %v6126, %v1917
        %v6160 = vsel %vm6129, %v6127, %v1921
        %v6161 = vsel %vm6129, %v6128, %v1925
        %vm6162 = vcmask 39936
        %v6163 = vsel %vm6162, %v6130, %v1932
        %v6164 = vsel %vm6162, %v6131, %v1936
        %v6165 = vsel %vm6162, %v6132, %v1940
        %v6166 = vsel %vm6162, %v6133, %v1944
        %v6167 = vsel %vm6162, %v6134, %v1951
        %v6168 = vsel %vm6162, %v6135, %v1955
        %v6169 = vsel %vm6162, %v6136, %v1959
        %v6170 = vsel %vm6162, %v6137, %v1963
        %v6171 = vsel %vm6162, %v6138, %v1970
        %v6172 = vsel %vm6162, %v6139, %v1974
        %v6173 = vsel %vm6162, %v6140, %v1978
        %v6174 = vsel %vm6162, %v6141, %v1982
        %v6175 = vsel %vm6162, %v6142, %v1989
        %v6176 = vsel %vm6162, %v6143, %v1993
        %v6177 = vsel %vm6162, %v6144, %v1997
        %v6178 = vsel %vm6162, %v6145, %v2001
        %v6179 = vsel %vm6162, %v6146, %v2008
        %v6180 = vsel %vm6162, %v6147, %v2012
        %v6181 = vsel %vm6162, %v6148, %v2016
        %v6182 = vsel %vm6162, %v6149, %v2020
        %v6183 = vsel %vm6162, %v6150, %v2027
        %v6184 = vsel %vm6162, %v6151, %v2031
        %v6185 = vsel %vm6162, %v6152, %v2035
        %v6186 = vsel %vm6162, %v6153, %v2039
        %v6187 = vsel %vm6162, %v6154, %v2046
        %v6188 = vsel %vm6162, %v6155, %v2050
        %v6189 = vsel %vm6162, %v6156, %v2054
        %v6190 = vsel %vm6162, %v6157, %v2058
        %v6191 = vsel %vm6162, %v6158, %v2065
        %v6192 = vsel %vm6162, %v6159, %v2069
        %v6193 = vsel %vm6162, %v6160, %v2073
        %v6194 = vsel %vm6162, %v6161, %v2077
        %vm6195 = vcmask 48128
        %v6196 = vsel %vm6195, %v6163, %v2084
        %v6197 = vsel %vm6195, %v6164, %v2088
        %v6198 = vsel %vm6195, %v6165, %v2092
        %v6199 = vsel %vm6195, %v6166, %v2096
        %v6200 = vsel %vm6195, %v6167, %v2103
        %v6201 = vsel %vm6195, %v6168, %v2107
        %v6202 = vsel %vm6195, %v6169, %v2111
        %v6203 = vsel %vm6195, %v6170, %v2115
        %v6204 = vsel %vm6195, %v6171, %v2122
        %v6205 = vsel %vm6195, %v6172, %v2126
        %v6206 = vsel %vm6195, %v6173, %v2130
        %v6207 = vsel %vm6195, %v6174, %v2134
        %v6208 = vsel %vm6195, %v6175, %v2141
        %v6209 = vsel %vm6195, %v6176, %v2145
        %v6210 = vsel %vm6195, %v6177, %v2149
        %v6211 = vsel %vm6195, %v6178, %v2153
        %v6212 = vsel %vm6195, %v6179, %v2160
        %v6213 = vsel %vm6195, %v6180, %v2164
        %v6214 = vsel %vm6195, %v6181, %v2168
        %v6215 = vsel %vm6195, %v6182, %v2172
        %v6216 = vsel %vm6195, %v6183, %v2179
        %v6217 = vsel %vm6195, %v6184, %v2183
        %v6218 = vsel %vm6195, %v6185, %v2187
        %v6219 = vsel %vm6195, %v6186, %v2191
        %v6220 = vsel %vm6195, %v6187, %v2198
        %v6221 = vsel %vm6195, %v6188, %v2202
        %v6222 = vsel %vm6195, %v6189, %v2206
        %v6223 = vsel %vm6195, %v6190, %v2210
        %v6224 = vsel %vm6195, %v6191, %v2217
        %v6225 = vsel %vm6195, %v6192, %v2221
        %v6226 = vsel %vm6195, %v6193, %v2225
        %v6227 = vsel %vm6195, %v6194, %v2229
        %vm6228 = vcmask 56320
        %v6229 = vsel %vm6228, %v6196, %v2236
        %v6230 = vsel %vm6228, %v6197, %v2240
        %v6231 = vsel %vm6228, %v6198, %v2244
        %v6232 = vsel %vm6228, %v6199, %v2248
        %v6233 = vsel %vm6228, %v6200, %v2255
        %v6234 = vsel %vm6228, %v6201, %v2259
        %v6235 = vsel %vm6228, %v6202, %v2263
        %v6236 = vsel %vm6228, %v6203, %v2267
        %v6237 = vsel %vm6228, %v6204, %v2274
        %v6238 = vsel %vm6228, %v6205, %v2278
        %v6239 = vsel %vm6228, %v6206, %v2282
        %v6240 = vsel %vm6228, %v6207, %v2286
        %v6241 = vsel %vm6228, %v6208, %v2293
        %v6242 = vsel %vm6228, %v6209, %v2297
        %v6243 = vsel %vm6228, %v6210, %v2301
        %v6244 = vsel %vm6228, %v6211, %v2305
        %v6245 = vsel %vm6228, %v6212, %v2312
        %v6246 = vsel %vm6228, %v6213, %v2316
        %v6247 = vsel %vm6228, %v6214, %v2320
        %v6248 = vsel %vm6228, %v6215, %v2324
        %v6249 = vsel %vm6228, %v6216, %v2331
        %v6250 = vsel %vm6228, %v6217, %v2335
        %v6251 = vsel %vm6228, %v6218, %v2339
        %v6252 = vsel %vm6228, %v6219, %v2343
        %v6253 = vsel %vm6228, %v6220, %v2350
        %v6254 = vsel %vm6228, %v6221, %v2354
        %v6255 = vsel %vm6228, %v6222, %v2358
        %v6256 = vsel %vm6228, %v6223, %v2362
        %v6257 = vsel %vm6228, %v6224, %v2369
        %v6258 = vsel %vm6228, %v6225, %v2373
        %v6259 = vsel %vm6228, %v6226, %v2377
        %v6260 = vsel %vm6228, %v6227, %v2381
        %vm6261 = vcmask 64512
        %v6262 = vsel %vm6261, %v6229, %v2388
        %v6263 = vsel %vm6261, %v6230, %v2392
        %v6264 = vsel %vm6261, %v6231, %v2396
        %v6265 = vsel %vm6261, %v6232, %v2400
        %v6266 = vsel %vm6261, %v6233, %v2407
        %v6267 = vsel %vm6261, %v6234, %v2411
        %v6268 = vsel %vm6261, %v6235, %v2415
        %v6269 = vsel %vm6261, %v6236, %v2419
        %v6270 = vsel %vm6261, %v6237, %v2426
        %v6271 = vsel %vm6261, %v6238, %v2430
        %v6272 = vsel %vm6261, %v6239, %v2434
        %v6273 = vsel %vm6261, %v6240, %v2438
        %v6274 = vsel %vm6261, %v6241, %v2445
        %v6275 = vsel %vm6261, %v6242, %v2449
        %v6276 = vsel %vm6261, %v6243, %v2453
        %v6277 = vsel %vm6261, %v6244, %v2457
        %v6278 = vsel %vm6261, %v6245, %v2464
        %v6279 = vsel %vm6261, %v6246, %v2468
        %v6280 = vsel %vm6261, %v6247, %v2472
        %v6281 = vsel %vm6261, %v6248, %v2476
        %v6282 = vsel %vm6261, %v6249, %v2483
        %v6283 = vsel %vm6261, %v6250, %v2487
        %v6284 = vsel %vm6261, %v6251, %v2491
        %v6285 = vsel %vm6261, %v6252, %v2495
        %v6286 = vsel %vm6261, %v6253, %v2502
        %v6287 = vsel %vm6261, %v6254, %v2506
        %v6288 = vsel %vm6261, %v6255, %v2510
        %v6289 = vsel %vm6261, %v6256, %v2514
        %v6290 = vsel %vm6261, %v6257, %v2521
        %v6291 = vsel %vm6261, %v6258, %v2525
        %v6292 = vsel %vm6261, %v6259, %v2529
        %v6293 = vsel %vm6261, %v6260, %v2533
        %vm6294 = vcmask 72704
        %v6295 = vsel %vm6294, %v6262, %v2540
        %v6296 = vsel %vm6294, %v6263, %v2544
        %v6297 = vsel %vm6294, %v6264, %v2548
        %v6298 = vsel %vm6294, %v6265, %v2552
        %v6299 = vsel %vm6294, %v6266, %v2559
        %v6300 = vsel %vm6294, %v6267, %v2563
        %v6301 = vsel %vm6294, %v6268, %v2567
        %v6302 = vsel %vm6294, %v6269, %v2571
        %v6303 = vsel %vm6294, %v6270, %v2578
        %v6304 = vsel %vm6294, %v6271, %v2582
        %v6305 = vsel %vm6294, %v6272, %v2586
        %v6306 = vsel %vm6294, %v6273, %v2590
        %v6307 = vsel %vm6294, %v6274, %v2597
        %v6308 = vsel %vm6294, %v6275, %v2601
        %v6309 = vsel %vm6294, %v6276, %v2605
        %v6310 = vsel %vm6294, %v6277, %v2609
        %v6311 = vsel %vm6294, %v6278, %v2616
        %v6312 = vsel %vm6294, %v6279, %v2620
        %v6313 = vsel %vm6294, %v6280, %v2624
        %v6314 = vsel %vm6294, %v6281, %v2628
        %v6315 = vsel %vm6294, %v6282, %v2635
        %v6316 = vsel %vm6294, %v6283, %v2639
        %v6317 = vsel %vm6294, %v6284, %v2643
        %v6318 = vsel %vm6294, %v6285, %v2647
        %v6319 = vsel %vm6294, %v6286, %v2654
        %v6320 = vsel %vm6294, %v6287, %v2658
        %v6321 = vsel %vm6294, %v6288, %v2662
        %v6322 = vsel %vm6294, %v6289, %v2666
        %v6323 = vsel %vm6294, %v6290, %v2673
        %v6324 = vsel %vm6294, %v6291, %v2677
        %v6325 = vsel %vm6294, %v6292, %v2681
        %v6326 = vsel %vm6294, %v6293, %v2685
        %vm6327 = vcmask 80896
        %v6328 = vsel %vm6327, %v6295, %v2692
        %v6329 = vsel %vm6327, %v6296, %v2696
        %v6330 = vsel %vm6327, %v6297, %v2700
        %v6331 = vsel %vm6327, %v6298, %v2704
        %v6332 = vsel %vm6327, %v6299, %v2711
        %v6333 = vsel %vm6327, %v6300, %v2715
        %v6334 = vsel %vm6327, %v6301, %v2719
        %v6335 = vsel %vm6327, %v6302, %v2723
        %v6336 = vsel %vm6327, %v6303, %v2730
        %v6337 = vsel %vm6327, %v6304, %v2734
        %v6338 = vsel %vm6327, %v6305, %v2738
        %v6339 = vsel %vm6327, %v6306, %v2742
        %v6340 = vsel %vm6327, %v6307, %v2749
        %v6341 = vsel %vm6327, %v6308, %v2753
        %v6342 = vsel %vm6327, %v6309, %v2757
        %v6343 = vsel %vm6327, %v6310, %v2761
        %v6344 = vsel %vm6327, %v6311, %v2768
        %v6345 = vsel %vm6327, %v6312, %v2772
        %v6346 = vsel %vm6327, %v6313, %v2776
        %v6347 = vsel %vm6327, %v6314, %v2780
        %v6348 = vsel %vm6327, %v6315, %v2787
        %v6349 = vsel %vm6327, %v6316, %v2791
        %v6350 = vsel %vm6327, %v6317, %v2795
        %v6351 = vsel %vm6327, %v6318, %v2799
        %v6352 = vsel %vm6327, %v6319, %v2806
        %v6353 = vsel %vm6327, %v6320, %v2810
        %v6354 = vsel %vm6327, %v6321, %v2814
        %v6355 = vsel %vm6327, %v6322, %v2818
        %v6356 = vsel %vm6327, %v6323, %v2825
        %v6357 = vsel %vm6327, %v6324, %v2829
        %v6358 = vsel %vm6327, %v6325, %v2833
        %v6359 = vsel %vm6327, %v6326, %v2837
        %vm6360 = vcmask 89088
        %v6361 = vsel %vm6360, %v6328, %v2844
        %v6362 = vsel %vm6360, %v6329, %v2848
        %v6363 = vsel %vm6360, %v6330, %v2852
        %v6364 = vsel %vm6360, %v6331, %v2856
        %v6365 = vsel %vm6360, %v6332, %v2863
        %v6366 = vsel %vm6360, %v6333, %v2867
        %v6367 = vsel %vm6360, %v6334, %v2871
        %v6368 = vsel %vm6360, %v6335, %v2875
        %v6369 = vsel %vm6360, %v6336, %v2882
        %v6370 = vsel %vm6360, %v6337, %v2886
        %v6371 = vsel %vm6360, %v6338, %v2890
        %v6372 = vsel %vm6360, %v6339, %v2894
        %v6373 = vsel %vm6360, %v6340, %v2901
        %v6374 = vsel %vm6360, %v6341, %v2905
        %v6375 = vsel %vm6360, %v6342, %v2909
        %v6376 = vsel %vm6360, %v6343, %v2913
        %v6377 = vsel %vm6360, %v6344, %v2920
        %v6378 = vsel %vm6360, %v6345, %v2924
        %v6379 = vsel %vm6360, %v6346, %v2928
        %v6380 = vsel %vm6360, %v6347, %v2932
        %v6381 = vsel %vm6360, %v6348, %v2939
        %v6382 = vsel %vm6360, %v6349, %v2943
        %v6383 = vsel %vm6360, %v6350, %v2947
        %v6384 = vsel %vm6360, %v6351, %v2951
        %v6385 = vsel %vm6360, %v6352, %v2958
        %v6386 = vsel %vm6360, %v6353, %v2962
        %v6387 = vsel %vm6360, %v6354, %v2966
        %v6388 = vsel %vm6360, %v6355, %v2970
        %v6389 = vsel %vm6360, %v6356, %v2977
        %v6390 = vsel %vm6360, %v6357, %v2981
        %v6391 = vsel %vm6360, %v6358, %v2985
        %v6392 = vsel %vm6360, %v6359, %v2989
        %vm6393 = vcmask 97280
        %v6394 = vsel %vm6393, %v6361, %v2996
        %v6395 = vsel %vm6393, %v6362, %v3000
        %v6396 = vsel %vm6393, %v6363, %v3004
        %v6397 = vsel %vm6393, %v6364, %v3008
        %v6398 = vsel %vm6393, %v6365, %v3015
        %v6399 = vsel %vm6393, %v6366, %v3019
        %v6400 = vsel %vm6393, %v6367, %v3023
        %v6401 = vsel %vm6393, %v6368, %v3027
        %v6402 = vsel %vm6393, %v6369, %v3034
        %v6403 = vsel %vm6393, %v6370, %v3038
        %v6404 = vsel %vm6393, %v6371, %v3042
        %v6405 = vsel %vm6393, %v6372, %v3046
        %v6406 = vsel %vm6393, %v6373, %v3053
        %v6407 = vsel %vm6393, %v6374, %v3057
        %v6408 = vsel %vm6393, %v6375, %v3061
        %v6409 = vsel %vm6393, %v6376, %v3065
        %v6410 = vsel %vm6393, %v6377, %v3072
        %v6411 = vsel %vm6393, %v6378, %v3076
        %v6412 = vsel %vm6393, %v6379, %v3080
        %v6413 = vsel %vm6393, %v6380, %v3084
        %v6414 = vsel %vm6393, %v6381, %v3091
        %v6415 = vsel %vm6393, %v6382, %v3095
        %v6416 = vsel %vm6393, %v6383, %v3099
        %v6417 = vsel %vm6393, %v6384, %v3103
        %v6418 = vsel %vm6393, %v6385, %v3110
        %v6419 = vsel %vm6393, %v6386, %v3114
        %v6420 = vsel %vm6393, %v6387, %v3118
        %v6421 = vsel %vm6393, %v6388, %v3122
        %v6422 = vsel %vm6393, %v6389, %v3129
        %v6423 = vsel %vm6393, %v6390, %v3133
        %v6424 = vsel %vm6393, %v6391, %v3137
        %v6425 = vsel %vm6393, %v6392, %v3141
        %vm6426 = vcmask 105472
        %v6427 = vsel %vm6426, %v6394, %v3148
        %v6428 = vsel %vm6426, %v6395, %v3152
        %v6429 = vsel %vm6426, %v6396, %v3156
        %v6430 = vsel %vm6426, %v6397, %v3160
        %v6431 = vsel %vm6426, %v6398, %v3167
        %v6432 = vsel %vm6426, %v6399, %v3171
        %v6433 = vsel %vm6426, %v6400, %v3175
        %v6434 = vsel %vm6426, %v6401, %v3179
        %v6435 = vsel %vm6426, %v6402, %v3186
        %v6436 = vsel %vm6426, %v6403, %v3190
        %v6437 = vsel %vm6426, %v6404, %v3194
        %v6438 = vsel %vm6426, %v6405, %v3198
        %v6439 = vsel %vm6426, %v6406, %v3205
        %v6440 = vsel %vm6426, %v6407, %v3209
        %v6441 = vsel %vm6426, %v6408, %v3213
        %v6442 = vsel %vm6426, %v6409, %v3217
        %v6443 = vsel %vm6426, %v6410, %v3224
        %v6444 = vsel %vm6426, %v6411, %v3228
        %v6445 = vsel %vm6426, %v6412, %v3232
        %v6446 = vsel %vm6426, %v6413, %v3236
        %v6447 = vsel %vm6426, %v6414, %v3243
        %v6448 = vsel %vm6426, %v6415, %v3247
        %v6449 = vsel %vm6426, %v6416, %v3251
        %v6450 = vsel %vm6426, %v6417, %v3255
        %v6451 = vsel %vm6426, %v6418, %v3262
        %v6452 = vsel %vm6426, %v6419, %v3266
        %v6453 = vsel %vm6426, %v6420, %v3270
        %v6454 = vsel %vm6426, %v6421, %v3274
        %v6455 = vsel %vm6426, %v6422, %v3281
        %v6456 = vsel %vm6426, %v6423, %v3285
        %v6457 = vsel %vm6426, %v6424, %v3289
        %v6458 = vsel %vm6426, %v6425, %v3293
        %vm6459 = vcmask 113664
        %v6460 = vsel %vm6459, %v6427, %v3300
        %v6461 = vsel %vm6459, %v6428, %v3304
        %v6462 = vsel %vm6459, %v6429, %v3308
        %v6463 = vsel %vm6459, %v6430, %v3312
        %v6464 = vsel %vm6459, %v6431, %v3319
        %v6465 = vsel %vm6459, %v6432, %v3323
        %v6466 = vsel %vm6459, %v6433, %v3327
        %v6467 = vsel %vm6459, %v6434, %v3331
        %v6468 = vsel %vm6459, %v6435, %v3338
        %v6469 = vsel %vm6459, %v6436, %v3342
        %v6470 = vsel %vm6459, %v6437, %v3346
        %v6471 = vsel %vm6459, %v6438, %v3350
        %v6472 = vsel %vm6459, %v6439, %v3357
        %v6473 = vsel %vm6459, %v6440, %v3361
        %v6474 = vsel %vm6459, %v6441, %v3365
        %v6475 = vsel %vm6459, %v6442, %v3369
        %v6476 = vsel %vm6459, %v6443, %v3376
        %v6477 = vsel %vm6459, %v6444, %v3380
        %v6478 = vsel %vm6459, %v6445, %v3384
        %v6479 = vsel %vm6459, %v6446, %v3388
        %v6480 = vsel %vm6459, %v6447, %v3395
        %v6481 = vsel %vm6459, %v6448, %v3399
        %v6482 = vsel %vm6459, %v6449, %v3403
        %v6483 = vsel %vm6459, %v6450, %v3407
        %v6484 = vsel %vm6459, %v6451, %v3414
        %v6485 = vsel %vm6459, %v6452, %v3418
        %v6486 = vsel %vm6459, %v6453, %v3422
        %v6487 = vsel %vm6459, %v6454, %v3426
        %v6488 = vsel %vm6459, %v6455, %v3433
        %v6489 = vsel %vm6459, %v6456, %v3437
        %v6490 = vsel %vm6459, %v6457, %v3441
        %v6491 = vsel %vm6459, %v6458, %v3445
        %vm6492 = vcmask 121856
        %v6493 = vsel %vm6492, %v6460, %v3452
        %v6494 = vsel %vm6492, %v6461, %v3456
        %v6495 = vsel %vm6492, %v6462, %v3460
        %v6496 = vsel %vm6492, %v6463, %v3464
        %v6497 = vsel %vm6492, %v6464, %v3471
        %v6498 = vsel %vm6492, %v6465, %v3475
        %v6499 = vsel %vm6492, %v6466, %v3479
        %v6500 = vsel %vm6492, %v6467, %v3483
        %v6501 = vsel %vm6492, %v6468, %v3490
        %v6502 = vsel %vm6492, %v6469, %v3494
        %v6503 = vsel %vm6492, %v6470, %v3498
        %v6504 = vsel %vm6492, %v6471, %v3502
        %v6505 = vsel %vm6492, %v6472, %v3509
        %v6506 = vsel %vm6492, %v6473, %v3513
        %v6507 = vsel %vm6492, %v6474, %v3517
        %v6508 = vsel %vm6492, %v6475, %v3521
        %v6509 = vsel %vm6492, %v6476, %v3528
        %v6510 = vsel %vm6492, %v6477, %v3532
        %v6511 = vsel %vm6492, %v6478, %v3536
        %v6512 = vsel %vm6492, %v6479, %v3540
        %v6513 = vsel %vm6492, %v6480, %v3547
        %v6514 = vsel %vm6492, %v6481, %v3551
        %v6515 = vsel %vm6492, %v6482, %v3555
        %v6516 = vsel %vm6492, %v6483, %v3559
        %v6517 = vsel %vm6492, %v6484, %v3566
        %v6518 = vsel %vm6492, %v6485, %v3570
        %v6519 = vsel %vm6492, %v6486, %v3574
        %v6520 = vsel %vm6492, %v6487, %v3578
        %v6521 = vsel %vm6492, %v6488, %v3585
        %v6522 = vsel %vm6492, %v6489, %v3589
        %v6523 = vsel %vm6492, %v6490, %v3593
        %v6524 = vsel %vm6492, %v6491, %v3597
        %v6525 = vsel %vm6030, %v3604, %v3756
        %v6526 = vsel %vm6030, %v3608, %v3760
        %v6527 = vsel %vm6030, %v3612, %v3764
        %v6528 = vsel %vm6030, %v3616, %v3768
        %v6529 = vsel %vm6030, %v3623, %v3775
        %v6530 = vsel %vm6030, %v3627, %v3779
        %v6531 = vsel %vm6030, %v3631, %v3783
        %v6532 = vsel %vm6030, %v3635, %v3787
        %v6533 = vsel %vm6030, %v3642, %v3794
        %v6534 = vsel %vm6030, %v3646, %v3798
        %v6535 = vsel %vm6030, %v3650, %v3802
        %v6536 = vsel %vm6030, %v3654, %v3806
        %v6537 = vsel %vm6030, %v3661, %v3813
        %v6538 = vsel %vm6030, %v3665, %v3817
        %v6539 = vsel %vm6030, %v3669, %v3821
        %v6540 = vsel %vm6030, %v3673, %v3825
        %v6541 = vsel %vm6030, %v3680, %v3832
        %v6542 = vsel %vm6030, %v3684, %v3836
        %v6543 = vsel %vm6030, %v3688, %v3840
        %v6544 = vsel %vm6030, %v3692, %v3844
        %v6545 = vsel %vm6030, %v3699, %v3851
        %v6546 = vsel %vm6030, %v3703, %v3855
        %v6547 = vsel %vm6030, %v3707, %v3859
        %v6548 = vsel %vm6030, %v3711, %v3863
        %v6549 = vsel %vm6030, %v3718, %v3870
        %v6550 = vsel %vm6030, %v3722, %v3874
        %v6551 = vsel %vm6030, %v3726, %v3878
        %v6552 = vsel %vm6030, %v3730, %v3882
        %v6553 = vsel %vm6030, %v3737, %v3889
        %v6554 = vsel %vm6030, %v3741, %v3893
        %v6555 = vsel %vm6030, %v3745, %v3897
        %v6556 = vsel %vm6030, %v3749, %v3901
        %v6557 = vsel %vm6063, %v6525, %v3908
        %v6558 = vsel %vm6063, %v6526, %v3912
        %v6559 = vsel %vm6063, %v6527, %v3916
        %v6560 = vsel %vm6063, %v6528, %v3920
        %v6561 = vsel %vm6063, %v6529, %v3927
        %v6562 = vsel %vm6063, %v6530, %v3931
        %v6563 = vsel %vm6063, %v6531, %v3935
        %v6564 = vsel %vm6063, %v6532, %v3939
        %v6565 = vsel %vm6063, %v6533, %v3946
        %v6566 = vsel %vm6063, %v6534, %v3950
        %v6567 = vsel %vm6063, %v6535, %v3954
        %v6568 = vsel %vm6063, %v6536, %v3958
        %v6569 = vsel %vm6063, %v6537, %v3965
        %v6570 = vsel %vm6063, %v6538, %v3969
        %v6571 = vsel %vm6063, %v6539, %v3973
        %v6572 = vsel %vm6063, %v6540, %v3977
        %v6573 = vsel %vm6063, %v6541, %v3984
        %v6574 = vsel %vm6063, %v6542, %v3988
        %v6575 = vsel %vm6063, %v6543, %v3992
        %v6576 = vsel %vm6063, %v6544, %v3996
        %v6577 = vsel %vm6063, %v6545, %v4003
        %v6578 = vsel %vm6063, %v6546, %v4007
        %v6579 = vsel %vm6063, %v6547, %v4011
        %v6580 = vsel %vm6063, %v6548, %v4015
        %v6581 = vsel %vm6063, %v6549, %v4022
        %v6582 = vsel %vm6063, %v6550, %v4026
        %v6583 = vsel %vm6063, %v6551, %v4030
        %v6584 = vsel %vm6063, %v6552, %v4034
        %v6585 = vsel %vm6063, %v6553, %v4041
        %v6586 = vsel %vm6063, %v6554, %v4045
        %v6587 = vsel %vm6063, %v6555, %v4049
        %v6588 = vsel %vm6063, %v6556, %v4053
        %v6589 = vsel %vm6096, %v6557, %v4060
        %v6590 = vsel %vm6096, %v6558, %v4064
        %v6591 = vsel %vm6096, %v6559, %v4068
        %v6592 = vsel %vm6096, %v6560, %v4072
        %v6593 = vsel %vm6096, %v6561, %v4079
        %v6594 = vsel %vm6096, %v6562, %v4083
        %v6595 = vsel %vm6096, %v6563, %v4087
        %v6596 = vsel %vm6096, %v6564, %v4091
        %v6597 = vsel %vm6096, %v6565, %v4098
        %v6598 = vsel %vm6096, %v6566, %v4102
        %v6599 = vsel %vm6096, %v6567, %v4106
        %v6600 = vsel %vm6096, %v6568, %v4110
        %v6601 = vsel %vm6096, %v6569, %v4117
        %v6602 = vsel %vm6096, %v6570, %v4121
        %v6603 = vsel %vm6096, %v6571, %v4125
        %v6604 = vsel %vm6096, %v6572, %v4129
        %v6605 = vsel %vm6096, %v6573, %v4136
        %v6606 = vsel %vm6096, %v6574, %v4140
        %v6607 = vsel %vm6096, %v6575, %v4144
        %v6608 = vsel %vm6096, %v6576, %v4148
        %v6609 = vsel %vm6096, %v6577, %v4155
        %v6610 = vsel %vm6096, %v6578, %v4159
        %v6611 = vsel %vm6096, %v6579, %v4163
        %v6612 = vsel %vm6096, %v6580, %v4167
        %v6613 = vsel %vm6096, %v6581, %v4174
        %v6614 = vsel %vm6096, %v6582, %v4178
        %v6615 = vsel %vm6096, %v6583, %v4182
        %v6616 = vsel %vm6096, %v6584, %v4186
        %v6617 = vsel %vm6096, %v6585, %v4193
        %v6618 = vsel %vm6096, %v6586, %v4197
        %v6619 = vsel %vm6096, %v6587, %v4201
        %v6620 = vsel %vm6096, %v6588, %v4205
        %v6621 = vsel %vm6129, %v6589, %v4212
        %v6622 = vsel %vm6129, %v6590, %v4216
        %v6623 = vsel %vm6129, %v6591, %v4220
        %v6624 = vsel %vm6129, %v6592, %v4224
        %v6625 = vsel %vm6129, %v6593, %v4231
        %v6626 = vsel %vm6129, %v6594, %v4235
        %v6627 = vsel %vm6129, %v6595, %v4239
        %v6628 = vsel %vm6129, %v6596, %v4243
        %v6629 = vsel %vm6129, %v6597, %v4250
        %v6630 = vsel %vm6129, %v6598, %v4254
        %v6631 = vsel %vm6129, %v6599, %v4258
        %v6632 = vsel %vm6129, %v6600, %v4262
        %v6633 = vsel %vm6129, %v6601, %v4269
        %v6634 = vsel %vm6129, %v6602, %v4273
        %v6635 = vsel %vm6129, %v6603, %v4277
        %v6636 = vsel %vm6129, %v6604, %v4281
        %v6637 = vsel %vm6129, %v6605, %v4288
        %v6638 = vsel %vm6129, %v6606, %v4292
        %v6639 = vsel %vm6129, %v6607, %v4296
        %v6640 = vsel %vm6129, %v6608, %v4300
        %v6641 = vsel %vm6129, %v6609, %v4307
        %v6642 = vsel %vm6129, %v6610, %v4311
        %v6643 = vsel %vm6129, %v6611, %v4315
        %v6644 = vsel %vm6129, %v6612, %v4319
        %v6645 = vsel %vm6129, %v6613, %v4326
        %v6646 = vsel %vm6129, %v6614, %v4330
        %v6647 = vsel %vm6129, %v6615, %v4334
        %v6648 = vsel %vm6129, %v6616, %v4338
        %v6649 = vsel %vm6129, %v6617, %v4345
        %v6650 = vsel %vm6129, %v6618, %v4349
        %v6651 = vsel %vm6129, %v6619, %v4353
        %v6652 = vsel %vm6129, %v6620, %v4357
        %v6653 = vsel %vm6162, %v6621, %v4364
        %v6654 = vsel %vm6162, %v6622, %v4368
        %v6655 = vsel %vm6162, %v6623, %v4372
        %v6656 = vsel %vm6162, %v6624, %v4376
        %v6657 = vsel %vm6162, %v6625, %v4383
        %v6658 = vsel %vm6162, %v6626, %v4387
        %v6659 = vsel %vm6162, %v6627, %v4391
        %v6660 = vsel %vm6162, %v6628, %v4395
        %v6661 = vsel %vm6162, %v6629, %v4402
        %v6662 = vsel %vm6162, %v6630, %v4406
        %v6663 = vsel %vm6162, %v6631, %v4410
        %v6664 = vsel %vm6162, %v6632, %v4414
        %v6665 = vsel %vm6162, %v6633, %v4421
        %v6666 = vsel %vm6162, %v6634, %v4425
        %v6667 = vsel %vm6162, %v6635, %v4429
        %v6668 = vsel %vm6162, %v6636, %v4433
        %v6669 = vsel %vm6162, %v6637, %v4440
        %v6670 = vsel %vm6162, %v6638, %v4444
        %v6671 = vsel %vm6162, %v6639, %v4448
        %v6672 = vsel %vm6162, %v6640, %v4452
        %v6673 = vsel %vm6162, %v6641, %v4459
        %v6674 = vsel %vm6162, %v6642, %v4463
        %v6675 = vsel %vm6162, %v6643, %v4467
        %v6676 = vsel %vm6162, %v6644, %v4471
        %v6677 = vsel %vm6162, %v6645, %v4478
        %v6678 = vsel %vm6162, %v6646, %v4482
        %v6679 = vsel %vm6162, %v6647, %v4486
        %v6680 = vsel %vm6162, %v6648, %v4490
        %v6681 = vsel %vm6162, %v6649, %v4497
        %v6682 = vsel %vm6162, %v6650, %v4501
        %v6683 = vsel %vm6162, %v6651, %v4505
        %v6684 = vsel %vm6162, %v6652, %v4509
        %v6685 = vsel %vm6195, %v6653, %v4516
        %v6686 = vsel %vm6195, %v6654, %v4520
        %v6687 = vsel %vm6195, %v6655, %v4524
        %v6688 = vsel %vm6195, %v6656, %v4528
        %v6689 = vsel %vm6195, %v6657, %v4535
        %v6690 = vsel %vm6195, %v6658, %v4539
        %v6691 = vsel %vm6195, %v6659, %v4543
        %v6692 = vsel %vm6195, %v6660, %v4547
        %v6693 = vsel %vm6195, %v6661, %v4554
        %v6694 = vsel %vm6195, %v6662, %v4558
        %v6695 = vsel %vm6195, %v6663, %v4562
        %v6696 = vsel %vm6195, %v6664, %v4566
        %v6697 = vsel %vm6195, %v6665, %v4573
        %v6698 = vsel %vm6195, %v6666, %v4577
        %v6699 = vsel %vm6195, %v6667, %v4581
        %v6700 = vsel %vm6195, %v6668, %v4585
        %v6701 = vsel %vm6195, %v6669, %v4592
        %v6702 = vsel %vm6195, %v6670, %v4596
        %v6703 = vsel %vm6195, %v6671, %v4600
        %v6704 = vsel %vm6195, %v6672, %v4604
        %v6705 = vsel %vm6195, %v6673, %v4611
        %v6706 = vsel %vm6195, %v6674, %v4615
        %v6707 = vsel %vm6195, %v6675, %v4619
        %v6708 = vsel %vm6195, %v6676, %v4623
        %v6709 = vsel %vm6195, %v6677, %v4630
        %v6710 = vsel %vm6195, %v6678, %v4634
        %v6711 = vsel %vm6195, %v6679, %v4638
        %v6712 = vsel %vm6195, %v6680, %v4642
        %v6713 = vsel %vm6195, %v6681, %v4649
        %v6714 = vsel %vm6195, %v6682, %v4653
        %v6715 = vsel %vm6195, %v6683, %v4657
        %v6716 = vsel %vm6195, %v6684, %v4661
        %v6717 = vsel %vm6228, %v6685, %v4668
        %v6718 = vsel %vm6228, %v6686, %v4672
        %v6719 = vsel %vm6228, %v6687, %v4676
        %v6720 = vsel %vm6228, %v6688, %v4680
        %v6721 = vsel %vm6228, %v6689, %v4687
        %v6722 = vsel %vm6228, %v6690, %v4691
        %v6723 = vsel %vm6228, %v6691, %v4695
        %v6724 = vsel %vm6228, %v6692, %v4699
        %v6725 = vsel %vm6228, %v6693, %v4706
        %v6726 = vsel %vm6228, %v6694, %v4710
        %v6727 = vsel %vm6228, %v6695, %v4714
        %v6728 = vsel %vm6228, %v6696, %v4718
        %v6729 = vsel %vm6228, %v6697, %v4725
        %v6730 = vsel %vm6228, %v6698, %v4729
        %v6731 = vsel %vm6228, %v6699, %v4733
        %v6732 = vsel %vm6228, %v6700, %v4737
        %v6733 = vsel %vm6228, %v6701, %v4744
        %v6734 = vsel %vm6228, %v6702, %v4748
        %v6735 = vsel %vm6228, %v6703, %v4752
        %v6736 = vsel %vm6228, %v6704, %v4756
        %v6737 = vsel %vm6228, %v6705, %v4763
        %v6738 = vsel %vm6228, %v6706, %v4767
        %v6739 = vsel %vm6228, %v6707, %v4771
        %v6740 = vsel %vm6228, %v6708, %v4775
        %v6741 = vsel %vm6228, %v6709, %v4782
        %v6742 = vsel %vm6228, %v6710, %v4786
        %v6743 = vsel %vm6228, %v6711, %v4790
        %v6744 = vsel %vm6228, %v6712, %v4794
        %v6745 = vsel %vm6228, %v6713, %v4801
        %v6746 = vsel %vm6228, %v6714, %v4805
        %v6747 = vsel %vm6228, %v6715, %v4809
        %v6748 = vsel %vm6228, %v6716, %v4813
        %v6749 = vsel %vm6261, %v6717, %v4820
        %v6750 = vsel %vm6261, %v6718, %v4824
        %v6751 = vsel %vm6261, %v6719, %v4828
        %v6752 = vsel %vm6261, %v6720, %v4832
        %v6753 = vsel %vm6261, %v6721, %v4839
        %v6754 = vsel %vm6261, %v6722, %v4843
        %v6755 = vsel %vm6261, %v6723, %v4847
        %v6756 = vsel %vm6261, %v6724, %v4851
        %v6757 = vsel %vm6261, %v6725, %v4858
        %v6758 = vsel %vm6261, %v6726, %v4862
        %v6759 = vsel %vm6261, %v6727, %v4866
        %v6760 = vsel %vm6261, %v6728, %v4870
        %v6761 = vsel %vm6261, %v6729, %v4877
        %v6762 = vsel %vm6261, %v6730, %v4881
        %v6763 = vsel %vm6261, %v6731, %v4885
        %v6764 = vsel %vm6261, %v6732, %v4889
        %v6765 = vsel %vm6261, %v6733, %v4896
        %v6766 = vsel %vm6261, %v6734, %v4900
        %v6767 = vsel %vm6261, %v6735, %v4904
        %v6768 = vsel %vm6261, %v6736, %v4908
        %v6769 = vsel %vm6261, %v6737, %v4915
        %v6770 = vsel %vm6261, %v6738, %v4919
        %v6771 = vsel %vm6261, %v6739, %v4923
        %v6772 = vsel %vm6261, %v6740, %v4927
        %v6773 = vsel %vm6261, %v6741, %v4934
        %v6774 = vsel %vm6261, %v6742, %v4938
        %v6775 = vsel %vm6261, %v6743, %v4942
        %v6776 = vsel %vm6261, %v6744, %v4946
        %v6777 = vsel %vm6261, %v6745, %v4953
        %v6778 = vsel %vm6261, %v6746, %v4957
        %v6779 = vsel %vm6261, %v6747, %v4961
        %v6780 = vsel %vm6261, %v6748, %v4965
        %v6781 = vsel %vm6294, %v6749, %v4972
        %v6782 = vsel %vm6294, %v6750, %v4976
        %v6783 = vsel %vm6294, %v6751, %v4980
        %v6784 = vsel %vm6294, %v6752, %v4984
        %v6785 = vsel %vm6294, %v6753, %v4991
        %v6786 = vsel %vm6294, %v6754, %v4995
        %v6787 = vsel %vm6294, %v6755, %v4999
        %v6788 = vsel %vm6294, %v6756, %v5003
        %v6789 = vsel %vm6294, %v6757, %v5010
        %v6790 = vsel %vm6294, %v6758, %v5014
        %v6791 = vsel %vm6294, %v6759, %v5018
        %v6792 = vsel %vm6294, %v6760, %v5022
        %v6793 = vsel %vm6294, %v6761, %v5029
        %v6794 = vsel %vm6294, %v6762, %v5033
        %v6795 = vsel %vm6294, %v6763, %v5037
        %v6796 = vsel %vm6294, %v6764, %v5041
        %v6797 = vsel %vm6294, %v6765, %v5048
        %v6798 = vsel %vm6294, %v6766, %v5052
        %v6799 = vsel %vm6294, %v6767, %v5056
        %v6800 = vsel %vm6294, %v6768, %v5060
        %v6801 = vsel %vm6294, %v6769, %v5067
        %v6802 = vsel %vm6294, %v6770, %v5071
        %v6803 = vsel %vm6294, %v6771, %v5075
        %v6804 = vsel %vm6294, %v6772, %v5079
        %v6805 = vsel %vm6294, %v6773, %v5086
        %v6806 = vsel %vm6294, %v6774, %v5090
        %v6807 = vsel %vm6294, %v6775, %v5094
        %v6808 = vsel %vm6294, %v6776, %v5098
        %v6809 = vsel %vm6294, %v6777, %v5105
        %v6810 = vsel %vm6294, %v6778, %v5109
        %v6811 = vsel %vm6294, %v6779, %v5113
        %v6812 = vsel %vm6294, %v6780, %v5117
        %v6813 = vsel %vm6327, %v6781, %v5124
        %v6814 = vsel %vm6327, %v6782, %v5128
        %v6815 = vsel %vm6327, %v6783, %v5132
        %v6816 = vsel %vm6327, %v6784, %v5136
        %v6817 = vsel %vm6327, %v6785, %v5143
        %v6818 = vsel %vm6327, %v6786, %v5147
        %v6819 = vsel %vm6327, %v6787, %v5151
        %v6820 = vsel %vm6327, %v6788, %v5155
        %v6821 = vsel %vm6327, %v6789, %v5162
        %v6822 = vsel %vm6327, %v6790, %v5166
        %v6823 = vsel %vm6327, %v6791, %v5170
        %v6824 = vsel %vm6327, %v6792, %v5174
        %v6825 = vsel %vm6327, %v6793, %v5181
        %v6826 = vsel %vm6327, %v6794, %v5185
        %v6827 = vsel %vm6327, %v6795, %v5189
        %v6828 = vsel %vm6327, %v6796, %v5193
        %v6829 = vsel %vm6327, %v6797, %v5200
        %v6830 = vsel %vm6327, %v6798, %v5204
        %v6831 = vsel %vm6327, %v6799, %v5208
        %v6832 = vsel %vm6327, %v6800, %v5212
        %v6833 = vsel %vm6327, %v6801, %v5219
        %v6834 = vsel %vm6327, %v6802, %v5223
        %v6835 = vsel %vm6327, %v6803, %v5227
        %v6836 = vsel %vm6327, %v6804, %v5231
        %v6837 = vsel %vm6327, %v6805, %v5238
        %v6838 = vsel %vm6327, %v6806, %v5242
        %v6839 = vsel %vm6327, %v6807, %v5246
        %v6840 = vsel %vm6327, %v6808, %v5250
        %v6841 = vsel %vm6327, %v6809, %v5257
        %v6842 = vsel %vm6327, %v6810, %v5261
        %v6843 = vsel %vm6327, %v6811, %v5265
        %v6844 = vsel %vm6327, %v6812, %v5269
        %v6845 = vsel %vm6360, %v6813, %v5276
        %v6846 = vsel %vm6360, %v6814, %v5280
        %v6847 = vsel %vm6360, %v6815, %v5284
        %v6848 = vsel %vm6360, %v6816, %v5288
        %v6849 = vsel %vm6360, %v6817, %v5295
        %v6850 = vsel %vm6360, %v6818, %v5299
        %v6851 = vsel %vm6360, %v6819, %v5303
        %v6852 = vsel %vm6360, %v6820, %v5307
        %v6853 = vsel %vm6360, %v6821, %v5314
        %v6854 = vsel %vm6360, %v6822, %v5318
        %v6855 = vsel %vm6360, %v6823, %v5322
        %v6856 = vsel %vm6360, %v6824, %v5326
        %v6857 = vsel %vm6360, %v6825, %v5333
        %v6858 = vsel %vm6360, %v6826, %v5337
        %v6859 = vsel %vm6360, %v6827, %v5341
        %v6860 = vsel %vm6360, %v6828, %v5345
        %v6861 = vsel %vm6360, %v6829, %v5352
        %v6862 = vsel %vm6360, %v6830, %v5356
        %v6863 = vsel %vm6360, %v6831, %v5360
        %v6864 = vsel %vm6360, %v6832, %v5364
        %v6865 = vsel %vm6360, %v6833, %v5371
        %v6866 = vsel %vm6360, %v6834, %v5375
        %v6867 = vsel %vm6360, %v6835, %v5379
        %v6868 = vsel %vm6360, %v6836, %v5383
        %v6869 = vsel %vm6360, %v6837, %v5390
        %v6870 = vsel %vm6360, %v6838, %v5394
        %v6871 = vsel %vm6360, %v6839, %v5398
        %v6872 = vsel %vm6360, %v6840, %v5402
        %v6873 = vsel %vm6360, %v6841, %v5409
        %v6874 = vsel %vm6360, %v6842, %v5413
        %v6875 = vsel %vm6360, %v6843, %v5417
        %v6876 = vsel %vm6360, %v6844, %v5421
        %v6877 = vsel %vm6393, %v6845, %v5428
        %v6878 = vsel %vm6393, %v6846, %v5432
        %v6879 = vsel %vm6393, %v6847, %v5436
        %v6880 = vsel %vm6393, %v6848, %v5440
        %v6881 = vsel %vm6393, %v6849, %v5447
        %v6882 = vsel %vm6393, %v6850, %v5451
        %v6883 = vsel %vm6393, %v6851, %v5455
        %v6884 = vsel %vm6393, %v6852, %v5459
        %v6885 = vsel %vm6393, %v6853, %v5466
        %v6886 = vsel %vm6393, %v6854, %v5470
        %v6887 = vsel %vm6393, %v6855, %v5474
        %v6888 = vsel %vm6393, %v6856, %v5478
        %v6889 = vsel %vm6393, %v6857, %v5485
        %v6890 = vsel %vm6393, %v6858, %v5489
        %v6891 = vsel %vm6393, %v6859, %v5493
        %v6892 = vsel %vm6393, %v6860, %v5497
        %v6893 = vsel %vm6393, %v6861, %v5504
        %v6894 = vsel %vm6393, %v6862, %v5508
        %v6895 = vsel %vm6393, %v6863, %v5512
        %v6896 = vsel %vm6393, %v6864, %v5516
        %v6897 = vsel %vm6393, %v6865, %v5523
        %v6898 = vsel %vm6393, %v6866, %v5527
        %v6899 = vsel %vm6393, %v6867, %v5531
        %v6900 = vsel %vm6393, %v6868, %v5535
        %v6901 = vsel %vm6393, %v6869, %v5542
        %v6902 = vsel %vm6393, %v6870, %v5546
        %v6903 = vsel %vm6393, %v6871, %v5550
        %v6904 = vsel %vm6393, %v6872, %v5554
        %v6905 = vsel %vm6393, %v6873, %v5561
        %v6906 = vsel %vm6393, %v6874, %v5565
        %v6907 = vsel %vm6393, %v6875, %v5569
        %v6908 = vsel %vm6393, %v6876, %v5573
        %v6909 = vsel %vm6426, %v6877, %v5580
        %v6910 = vsel %vm6426, %v6878, %v5584
        %v6911 = vsel %vm6426, %v6879, %v5588
        %v6912 = vsel %vm6426, %v6880, %v5592
        %v6913 = vsel %vm6426, %v6881, %v5599
        %v6914 = vsel %vm6426, %v6882, %v5603
        %v6915 = vsel %vm6426, %v6883, %v5607
        %v6916 = vsel %vm6426, %v6884, %v5611
        %v6917 = vsel %vm6426, %v6885, %v5618
        %v6918 = vsel %vm6426, %v6886, %v5622
        %v6919 = vsel %vm6426, %v6887, %v5626
        %v6920 = vsel %vm6426, %v6888, %v5630
        %v6921 = vsel %vm6426, %v6889, %v5637
        %v6922 = vsel %vm6426, %v6890, %v5641
        %v6923 = vsel %vm6426, %v6891, %v5645
        %v6924 = vsel %vm6426, %v6892, %v5649
        %v6925 = vsel %vm6426, %v6893, %v5656
        %v6926 = vsel %vm6426, %v6894, %v5660
        %v6927 = vsel %vm6426, %v6895, %v5664
        %v6928 = vsel %vm6426, %v6896, %v5668
        %v6929 = vsel %vm6426, %v6897, %v5675
        %v6930 = vsel %vm6426, %v6898, %v5679
        %v6931 = vsel %vm6426, %v6899, %v5683
        %v6932 = vsel %vm6426, %v6900, %v5687
        %v6933 = vsel %vm6426, %v6901, %v5694
        %v6934 = vsel %vm6426, %v6902, %v5698
        %v6935 = vsel %vm6426, %v6903, %v5702
        %v6936 = vsel %vm6426, %v6904, %v5706
        %v6937 = vsel %vm6426, %v6905, %v5713
        %v6938 = vsel %vm6426, %v6906, %v5717
        %v6939 = vsel %vm6426, %v6907, %v5721
        %v6940 = vsel %vm6426, %v6908, %v5725
        %v6941 = vsel %vm6459, %v6909, %v5732
        %v6942 = vsel %vm6459, %v6910, %v5736
        %v6943 = vsel %vm6459, %v6911, %v5740
        %v6944 = vsel %vm6459, %v6912, %v5744
        %v6945 = vsel %vm6459, %v6913, %v5751
        %v6946 = vsel %vm6459, %v6914, %v5755
        %v6947 = vsel %vm6459, %v6915, %v5759
        %v6948 = vsel %vm6459, %v6916, %v5763
        %v6949 = vsel %vm6459, %v6917, %v5770
        %v6950 = vsel %vm6459, %v6918, %v5774
        %v6951 = vsel %vm6459, %v6919, %v5778
        %v6952 = vsel %vm6459, %v6920, %v5782
        %v6953 = vsel %vm6459, %v6921, %v5789
        %v6954 = vsel %vm6459, %v6922, %v5793
        %v6955 = vsel %vm6459, %v6923, %v5797
        %v6956 = vsel %vm6459, %v6924, %v5801
        %v6957 = vsel %vm6459, %v6925, %v5808
        %v6958 = vsel %vm6459, %v6926, %v5812
        %v6959 = vsel %vm6459, %v6927, %v5816
        %v6960 = vsel %vm6459, %v6928, %v5820
        %v6961 = vsel %vm6459, %v6929, %v5827
        %v6962 = vsel %vm6459, %v6930, %v5831
        %v6963 = vsel %vm6459, %v6931, %v5835
        %v6964 = vsel %vm6459, %v6932, %v5839
        %v6965 = vsel %vm6459, %v6933, %v5846
        %v6966 = vsel %vm6459, %v6934, %v5850
        %v6967 = vsel %vm6459, %v6935, %v5854
        %v6968 = vsel %vm6459, %v6936, %v5858
        %v6969 = vsel %vm6459, %v6937, %v5865
        %v6970 = vsel %vm6459, %v6938, %v5869
        %v6971 = vsel %vm6459, %v6939, %v5873
        %v6972 = vsel %vm6459, %v6940, %v5877
        %v6973 = vsel %vm6492, %v6941, %v5884
        %v6974 = vsel %vm6492, %v6942, %v5888
        %v6975 = vsel %vm6492, %v6943, %v5892
        %v6976 = vsel %vm6492, %v6944, %v5896
        %v6977 = vsel %vm6492, %v6945, %v5903
        %v6978 = vsel %vm6492, %v6946, %v5907
        %v6979 = vsel %vm6492, %v6947, %v5911
        %v6980 = vsel %vm6492, %v6948, %v5915
        %v6981 = vsel %vm6492, %v6949, %v5922
        %v6982 = vsel %vm6492, %v6950, %v5926
        %v6983 = vsel %vm6492, %v6951, %v5930
        %v6984 = vsel %vm6492, %v6952, %v5934
        %v6985 = vsel %vm6492, %v6953, %v5941
        %v6986 = vsel %vm6492, %v6954, %v5945
        %v6987 = vsel %vm6492, %v6955, %v5949
        %v6988 = vsel %vm6492, %v6956, %v5953
        %v6989 = vsel %vm6492, %v6957, %v5960
        %v6990 = vsel %vm6492, %v6958, %v5964
        %v6991 = vsel %vm6492, %v6959, %v5968
        %v6992 = vsel %vm6492, %v6960, %v5972
        %v6993 = vsel %vm6492, %v6961, %v5979
        %v6994 = vsel %vm6492, %v6962, %v5983
        %v6995 = vsel %vm6492, %v6963, %v5987
        %v6996 = vsel %vm6492, %v6964, %v5991
        %v6997 = vsel %vm6492, %v6965, %v5998
        %v6998 = vsel %vm6492, %v6966, %v6002
        %v6999 = vsel %vm6492, %v6967, %v6006
        %v7000 = vsel %vm6492, %v6968, %v6010
        %v7001 = vsel %vm6492, %v6969, %v6017
        %v7002 = vsel %vm6492, %v6970, %v6021
        %v7003 = vsel %vm6492, %v6971, %v6025
        %v7004 = vsel %vm6492, %v6972, %v6029
        %7037 = vrot.lane.b32.xlu0 %v6973, 16
        %v7038 = vpop.permute.xlu0 %7037
        %7039 = vrot.lane.b32.xlu0 %v6974, 16
        %v7040 = vpop.permute.xlu0 %7039
        %7041 = vrot.lane.b32.xlu0 %v6975, 16
        %v7042 = vpop.permute.xlu0 %7041
        %7043 = vrot.lane.b32.xlu0 %v6976, 16
        %v7044 = vpop.permute.xlu0 %7043
        %7045 = vrot.lane.b32.xlu0 %v6977, 16
        %v7046 = vpop.permute.xlu0 %7045
        %7047 = vrot.lane.b32.xlu0 %v6978, 16
        %v7048 = vpop.permute.xlu0 %7047
        %7049 = vrot.lane.b32.xlu0 %v6979, 16
        %v7050 = vpop.permute.xlu0 %7049
        %7051 = vrot.lane.b32.xlu0 %v6980, 16
        %v7052 = vpop.permute.xlu0 %7051
        %7053 = vrot.lane.b32.xlu0 %v6981, 16
        %v7054 = vpop.permute.xlu0 %7053
        %7055 = vrot.lane.b32.xlu0 %v6982, 16
        %v7056 = vpop.permute.xlu0 %7055
        %7057 = vrot.lane.b32.xlu0 %v6983, 16
        %v7058 = vpop.permute.xlu0 %7057
        %7059 = vrot.lane.b32.xlu0 %v6984, 16
        %v7060 = vpop.permute.xlu0 %7059
        %7061 = vrot.lane.b32.xlu0 %v6985, 16
        %v7062 = vpop.permute.xlu0 %7061
        %7063 = vrot.lane.b32.xlu0 %v6986, 16
        %v7064 = vpop.permute.xlu0 %7063
        %7065 = vrot.lane.b32.xlu0 %v6987, 16
        %v7066 = vpop.permute.xlu0 %7065
        %7067 = vrot.lane.b32.xlu0 %v6988, 16
        %v7068 = vpop.permute.xlu0 %7067
        %7069 = vrot.lane.b32.xlu0 %v6989, 16
        %v7070 = vpop.permute.xlu0 %7069
        %7071 = vrot.lane.b32.xlu0 %v6990, 16
        %v7072 = vpop.permute.xlu0 %7071
        %7073 = vrot.lane.b32.xlu0 %v6991, 16
        %v7074 = vpop.permute.xlu0 %7073
        %7075 = vrot.lane.b32.xlu0 %v6992, 16
        %v7076 = vpop.permute.xlu0 %7075
        %7077 = vrot.lane.b32.xlu0 %v6993, 16
        %v7078 = vpop.permute.xlu0 %7077
        %7079 = vrot.lane.b32.xlu0 %v6994, 16
        %v7080 = vpop.permute.xlu0 %7079
        %7081 = vrot.lane.b32.xlu0 %v6995, 16
        %v7082 = vpop.permute.xlu0 %7081
        %7083 = vrot.lane.b32.xlu0 %v6996, 16
        %v7084 = vpop.permute.xlu0 %7083
        %7085 = vrot.lane.b32.xlu0 %v6997, 16
        %v7086 = vpop.permute.xlu0 %7085
        %7087 = vrot.lane.b32.xlu0 %v6998, 16
        %v7088 = vpop.permute.xlu0 %7087
        %7089 = vrot.lane.b32.xlu0 %v6999, 16
        %v7090 = vpop.permute.xlu0 %7089
        %7091 = vrot.lane.b32.xlu0 %v7000, 16
        %v7092 = vpop.permute.xlu0 %7091
        %7093 = vrot.lane.b32.xlu0 %v7001, 16
        %v7094 = vpop.permute.xlu0 %7093
        %7095 = vrot.lane.b32.xlu0 %v7002, 16
        %v7096 = vpop.permute.xlu0 %7095
        %7097 = vrot.lane.b32.xlu0 %v7003, 16
        %v7098 = vpop.permute.xlu0 %7097
        %7099 = vrot.lane.b32.xlu0 %v7004, 16
        %v7100 = vpop.permute.xlu0 %7099
        %vm7133 = vcmask 130048
        %v7134 = vsel %vm7133, %v6493, %v7038
        %v7135 = vsel %vm7133, %v6494, %v7040
        %v7136 = vsel %vm7133, %v6495, %v7042
        %v7137 = vsel %vm7133, %v6496, %v7044
        %v7138 = vsel %vm7133, %v6497, %v7046
        %v7139 = vsel %vm7133, %v6498, %v7048
        %v7140 = vsel %vm7133, %v6499, %v7050
        %v7141 = vsel %vm7133, %v6500, %v7052
        %v7142 = vsel %vm7133, %v6501, %v7054
        %v7143 = vsel %vm7133, %v6502, %v7056
        %v7144 = vsel %vm7133, %v6503, %v7058
        %v7145 = vsel %vm7133, %v6504, %v7060
        %v7146 = vsel %vm7133, %v6505, %v7062
        %v7147 = vsel %vm7133, %v6506, %v7064
        %v7148 = vsel %vm7133, %v6507, %v7066
        %v7149 = vsel %vm7133, %v6508, %v7068
        %v7150 = vsel %vm7133, %v6509, %v7070
        %v7151 = vsel %vm7133, %v6510, %v7072
        %v7152 = vsel %vm7133, %v6511, %v7074
        %v7153 = vsel %vm7133, %v6512, %v7076
        %v7154 = vsel %vm7133, %v6513, %v7078
        %v7155 = vsel %vm7133, %v6514, %v7080
        %v7156 = vsel %vm7133, %v6515, %v7082
        %v7157 = vsel %vm7133, %v6516, %v7084
        %v7158 = vsel %vm7133, %v6517, %v7086
        %v7159 = vsel %vm7133, %v6518, %v7088
        %v7160 = vsel %vm7133, %v6519, %v7090
        %v7161 = vsel %vm7133, %v6520, %v7092
        %v7162 = vsel %vm7133, %v6521, %v7094
        %v7163 = vsel %vm7133, %v6522, %v7096
        %v7164 = vsel %vm7133, %v6523, %v7098
        %v7165 = vsel %vm7133, %v6524, %v7100
        %v7166 = vcombine.low %v7134, %v7142
        %v7167 = vcombine.high %v7134, %v7142
        %v7169 = vunpack.c.l.s4 1983009808
        %v7170 = vunpack.c.0.s8 %v7169
        %v7171 = vlaneseq
        %v7172 = vshrl.u32 %v7171, 7
        %v7173 = vsub.s32 %v7170, %v7172
        %v7174 = vrot.slane %v7166, %v7173
        %v7176 = vunpack.c.l.s4 1983009808
        %v7177 = vunpack.c.0.s8 %v7176
        %v7178 = vlaneseq
        %v7179 = vshrl.u32 %v7178, 7
        %v7180 = vsub.s32 %v7177, %v7179
        %v7181 = vrot.slane %v7167, %v7180
        %v7182 = vcombine.low %v7138, %v7146
        %v7183 = vcombine.high %v7138, %v7146
        %v7185 = vunpack.c.l.s4 1983009808
        %v7186 = vunpack.c.0.s8 %v7185
        %v7187 = vlaneseq
        %v7188 = vshrl.u32 %v7187, 7
        %v7189 = vsub.s32 %v7186, %v7188
        %v7190 = vrot.slane %v7182, %v7189
        %v7192 = vunpack.c.l.s4 1983009808
        %v7193 = vunpack.c.0.s8 %v7192
        %v7194 = vlaneseq
        %v7195 = vshrl.u32 %v7194, 7
        %v7196 = vsub.s32 %v7193, %v7195
        %v7197 = vrot.slane %v7183, %v7196
        %v7198 = vcombine.low %v7150, %v7158
        %v7199 = vcombine.high %v7150, %v7158
        %v7201 = vunpack.c.l.s4 1983009808
        %v7202 = vunpack.c.0.s8 %v7201
        %v7203 = vlaneseq
        %v7204 = vshrl.u32 %v7203, 7
        %v7205 = vsub.s32 %v7202, %v7204
        %v7206 = vrot.slane %v7198, %v7205
        %v7208 = vunpack.c.l.s4 1983009808
        %v7209 = vunpack.c.0.s8 %v7208
        %v7210 = vlaneseq
        %v7211 = vshrl.u32 %v7210, 7
        %v7212 = vsub.s32 %v7209, %v7211
        %v7213 = vrot.slane %v7199, %v7212
        %v7214 = vcombine.low %v7154, %v7162
        %v7215 = vcombine.high %v7154, %v7162
        %v7217 = vunpack.c.l.s4 1983009808
        %v7218 = vunpack.c.0.s8 %v7217
        %v7219 = vlaneseq
        %v7220 = vshrl.u32 %v7219, 7
        %v7221 = vsub.s32 %v7218, %v7220
        %v7222 = vrot.slane %v7214, %v7221
        %v7224 = vunpack.c.l.s4 1983009808
        %v7225 = vunpack.c.0.s8 %v7224
        %v7226 = vlaneseq
        %v7227 = vshrl.u32 %v7226, 7
        %v7228 = vsub.s32 %v7225, %v7227
        %v7229 = vrot.slane %v7215, %v7228
        %v7230 = vcombine.low %v7174, %v7190
        %v7231 = vcombine.high %v7174, %v7190
        %v7233 = vunpack.c.l.s4 1934713408
        %v7234 = vunpack.c.0.s8 %v7233
        %v7235 = vlaneseq
        %v7236 = vshrl.u32 %v7235, 7
        %v7237 = vsub.s32 %v7234, %v7236
        %v7238 = vrot.slane %v7230, %v7237
        %v7240 = vunpack.c.l.s4 1934713408
        %v7241 = vunpack.c.0.s8 %v7240
        %v7242 = vlaneseq
        %v7243 = vshrl.u32 %v7242, 7
        %v7244 = vsub.s32 %v7241, %v7243
        %v7245 = vrot.slane %v7231, %v7244
        %v7246 = vcombine.low %v7181, %v7197
        %v7247 = vcombine.high %v7181, %v7197
        %v7249 = vunpack.c.l.s4 1934713408
        %v7250 = vunpack.c.0.s8 %v7249
        %v7251 = vlaneseq
        %v7252 = vshrl.u32 %v7251, 7
        %v7253 = vsub.s32 %v7250, %v7252
        %v7254 = vrot.slane %v7246, %v7253
        %v7256 = vunpack.c.l.s4 1934713408
        %v7257 = vunpack.c.0.s8 %v7256
        %v7258 = vlaneseq
        %v7259 = vshrl.u32 %v7258, 7
        %v7260 = vsub.s32 %v7257, %v7259
        %v7261 = vrot.slane %v7247, %v7260
        %v7262 = vcombine.low %v7206, %v7222
        %v7263 = vcombine.high %v7206, %v7222
        %v7265 = vunpack.c.l.s4 1934713408
        %v7266 = vunpack.c.0.s8 %v7265
        %v7267 = vlaneseq
        %v7268 = vshrl.u32 %v7267, 7
        %v7269 = vsub.s32 %v7266, %v7268
        %v7270 = vrot.slane %v7262, %v7269
        %v7272 = vunpack.c.l.s4 1934713408
        %v7273 = vunpack.c.0.s8 %v7272
        %v7274 = vlaneseq
        %v7275 = vshrl.u32 %v7274, 7
        %v7276 = vsub.s32 %v7273, %v7275
        %v7277 = vrot.slane %v7263, %v7276
        %v7278 = vcombine.low %v7213, %v7229
        %v7279 = vcombine.high %v7213, %v7229
        %v7281 = vunpack.c.l.s4 1934713408
        %v7282 = vunpack.c.0.s8 %v7281
        %v7283 = vlaneseq
        %v7284 = vshrl.u32 %v7283, 7
        %v7285 = vsub.s32 %v7282, %v7284
        %v7286 = vrot.slane %v7278, %v7285
        %v7288 = vunpack.c.l.s4 1934713408
        %v7289 = vunpack.c.0.s8 %v7288
        %v7290 = vlaneseq
        %v7291 = vshrl.u32 %v7290, 7
        %v7292 = vsub.s32 %v7289, %v7291
        %v7293 = vrot.slane %v7279, %v7292
        %v7294 = vcombine.low %v7238, %v7270
        %v7295 = vcombine.high %v7238, %v7270
        %v7296 = vcombine.low %v7245, %v7277
        %v7297 = vcombine.high %v7245, %v7277
        %v7298 = vcombine.low %v7254, %v7286
        %v7299 = vcombine.high %v7254, %v7286
        %v7300 = vcombine.low %v7261, %v7293
        %v7301 = vcombine.high %v7261, %v7293
        %v7302 = vcombine.low %v7135, %v7143
        %v7303 = vcombine.high %v7135, %v7143
        %v7305 = vunpack.c.l.s4 1983009808
        %v7306 = vunpack.c.0.s8 %v7305
        %v7307 = vlaneseq
        %v7308 = vshrl.u32 %v7307, 7
        %v7309 = vsub.s32 %v7306, %v7308
        %v7310 = vrot.slane %v7302, %v7309
        %v7312 = vunpack.c.l.s4 1983009808
        %v7313 = vunpack.c.0.s8 %v7312
        %v7314 = vlaneseq
        %v7315 = vshrl.u32 %v7314, 7
        %v7316 = vsub.s32 %v7313, %v7315
        %v7317 = vrot.slane %v7303, %v7316
        %v7318 = vcombine.low %v7139, %v7147
        %v7319 = vcombine.high %v7139, %v7147
        %v7321 = vunpack.c.l.s4 1983009808
        %v7322 = vunpack.c.0.s8 %v7321
        %v7323 = vlaneseq
        %v7324 = vshrl.u32 %v7323, 7
        %v7325 = vsub.s32 %v7322, %v7324
        %v7326 = vrot.slane %v7318, %v7325
        %v7328 = vunpack.c.l.s4 1983009808
        %v7329 = vunpack.c.0.s8 %v7328
        %v7330 = vlaneseq
        %v7331 = vshrl.u32 %v7330, 7
        %v7332 = vsub.s32 %v7329, %v7331
        %v7333 = vrot.slane %v7319, %v7332
        %v7334 = vcombine.low %v7151, %v7159
        %v7335 = vcombine.high %v7151, %v7159
        %v7337 = vunpack.c.l.s4 1983009808
        %v7338 = vunpack.c.0.s8 %v7337
        %v7339 = vlaneseq
        %v7340 = vshrl.u32 %v7339, 7
        %v7341 = vsub.s32 %v7338, %v7340
        %v7342 = vrot.slane %v7334, %v7341
        %v7344 = vunpack.c.l.s4 1983009808
        %v7345 = vunpack.c.0.s8 %v7344
        %v7346 = vlaneseq
        %v7347 = vshrl.u32 %v7346, 7
        %v7348 = vsub.s32 %v7345, %v7347
        %v7349 = vrot.slane %v7335, %v7348
        %v7350 = vcombine.low %v7155, %v7163
        %v7351 = vcombine.high %v7155, %v7163
        %v7353 = vunpack.c.l.s4 1983009808
        %v7354 = vunpack.c.0.s8 %v7353
        %v7355 = vlaneseq
        %v7356 = vshrl.u32 %v7355, 7
        %v7357 = vsub.s32 %v7354, %v7356
        %v7358 = vrot.slane %v7350, %v7357
        %v7360 = vunpack.c.l.s4 1983009808
        %v7361 = vunpack.c.0.s8 %v7360
        %v7362 = vlaneseq
        %v7363 = vshrl.u32 %v7362, 7
        %v7364 = vsub.s32 %v7361, %v7363
        %v7365 = vrot.slane %v7351, %v7364
        %v7366 = vcombine.low %v7310, %v7326
        %v7367 = vcombine.high %v7310, %v7326
        %v7369 = vunpack.c.l.s4 1934713408
        %v7370 = vunpack.c.0.s8 %v7369
        %v7371 = vlaneseq
        %v7372 = vshrl.u32 %v7371, 7
        %v7373 = vsub.s32 %v7370, %v7372
        %v7374 = vrot.slane %v7366, %v7373
        %v7376 = vunpack.c.l.s4 1934713408
        %v7377 = vunpack.c.0.s8 %v7376
        %v7378 = vlaneseq
        %v7379 = vshrl.u32 %v7378, 7
        %v7380 = vsub.s32 %v7377, %v7379
        %v7381 = vrot.slane %v7367, %v7380
        %v7382 = vcombine.low %v7317, %v7333
        %v7383 = vcombine.high %v7317, %v7333
        %v7385 = vunpack.c.l.s4 1934713408
        %v7386 = vunpack.c.0.s8 %v7385
        %v7387 = vlaneseq
        %v7388 = vshrl.u32 %v7387, 7
        %v7389 = vsub.s32 %v7386, %v7388
        %v7390 = vrot.slane %v7382, %v7389
        %v7392 = vunpack.c.l.s4 1934713408
        %v7393 = vunpack.c.0.s8 %v7392
        %v7394 = vlaneseq
        %v7395 = vshrl.u32 %v7394, 7
        %v7396 = vsub.s32 %v7393, %v7395
        %v7397 = vrot.slane %v7383, %v7396
        %v7398 = vcombine.low %v7342, %v7358
        %v7399 = vcombine.high %v7342, %v7358
        %v7401 = vunpack.c.l.s4 1934713408
        %v7402 = vunpack.c.0.s8 %v7401
        %v7403 = vlaneseq
        %v7404 = vshrl.u32 %v7403, 7
        %v7405 = vsub.s32 %v7402, %v7404
        %v7406 = vrot.slane %v7398, %v7405
        %v7408 = vunpack.c.l.s4 1934713408
        %v7409 = vunpack.c.0.s8 %v7408
        %v7410 = vlaneseq
        %v7411 = vshrl.u32 %v7410, 7
        %v7412 = vsub.s32 %v7409, %v7411
        %v7413 = vrot.slane %v7399, %v7412
        %v7414 = vcombine.low %v7349, %v7365
        %v7415 = vcombine.high %v7349, %v7365
        %v7417 = vunpack.c.l.s4 1934713408
        %v7418 = vunpack.c.0.s8 %v7417
        %v7419 = vlaneseq
        %v7420 = vshrl.u32 %v7419, 7
        %v7421 = vsub.s32 %v7418, %v7420
        %v7422 = vrot.slane %v7414, %v7421
        %v7424 = vunpack.c.l.s4 1934713408
        %v7425 = vunpack.c.0.s8 %v7424
        %v7426 = vlaneseq
        %v7427 = vshrl.u32 %v7426, 7
        %v7428 = vsub.s32 %v7425, %v7427
        %v7429 = vrot.slane %v7415, %v7428
        %v7430 = vcombine.low %v7374, %v7406
        %v7431 = vcombine.high %v7374, %v7406
        %v7432 = vcombine.low %v7381, %v7413
        %v7433 = vcombine.high %v7381, %v7413
        %v7434 = vcombine.low %v7390, %v7422
        %v7435 = vcombine.high %v7390, %v7422
        %v7436 = vcombine.low %v7397, %v7429
        %v7437 = vcombine.high %v7397, %v7429
        %v7438 = vcombine.low %v7136, %v7144
        %v7439 = vcombine.high %v7136, %v7144
        %v7441 = vunpack.c.l.s4 1983009808
        %v7442 = vunpack.c.0.s8 %v7441
        %v7443 = vlaneseq
        %v7444 = vshrl.u32 %v7443, 7
        %v7445 = vsub.s32 %v7442, %v7444
        %v7446 = vrot.slane %v7438, %v7445
        %v7448 = vunpack.c.l.s4 1983009808
        %v7449 = vunpack.c.0.s8 %v7448
        %v7450 = vlaneseq
        %v7451 = vshrl.u32 %v7450, 7
        %v7452 = vsub.s32 %v7449, %v7451
        %v7453 = vrot.slane %v7439, %v7452
        %v7454 = vcombine.low %v7140, %v7148
        %v7455 = vcombine.high %v7140, %v7148
        %v7457 = vunpack.c.l.s4 1983009808
        %v7458 = vunpack.c.0.s8 %v7457
        %v7459 = vlaneseq
        %v7460 = vshrl.u32 %v7459, 7
        %v7461 = vsub.s32 %v7458, %v7460
        %v7462 = vrot.slane %v7454, %v7461
        %v7464 = vunpack.c.l.s4 1983009808
        %v7465 = vunpack.c.0.s8 %v7464
        %v7466 = vlaneseq
        %v7467 = vshrl.u32 %v7466, 7
        %v7468 = vsub.s32 %v7465, %v7467
        %v7469 = vrot.slane %v7455, %v7468
        %v7470 = vcombine.low %v7152, %v7160
        %v7471 = vcombine.high %v7152, %v7160
        %v7473 = vunpack.c.l.s4 1983009808
        %v7474 = vunpack.c.0.s8 %v7473
        %v7475 = vlaneseq
        %v7476 = vshrl.u32 %v7475, 7
        %v7477 = vsub.s32 %v7474, %v7476
        %v7478 = vrot.slane %v7470, %v7477
        %v7480 = vunpack.c.l.s4 1983009808
        %v7481 = vunpack.c.0.s8 %v7480
        %v7482 = vlaneseq
        %v7483 = vshrl.u32 %v7482, 7
        %v7484 = vsub.s32 %v7481, %v7483
        %v7485 = vrot.slane %v7471, %v7484
        %v7486 = vcombine.low %v7156, %v7164
        %v7487 = vcombine.high %v7156, %v7164
        %v7489 = vunpack.c.l.s4 1983009808
        %v7490 = vunpack.c.0.s8 %v7489
        %v7491 = vlaneseq
        %v7492 = vshrl.u32 %v7491, 7
        %v7493 = vsub.s32 %v7490, %v7492
        %v7494 = vrot.slane %v7486, %v7493
        %v7496 = vunpack.c.l.s4 1983009808
        %v7497 = vunpack.c.0.s8 %v7496
        %v7498 = vlaneseq
        %v7499 = vshrl.u32 %v7498, 7
        %v7500 = vsub.s32 %v7497, %v7499
        %v7501 = vrot.slane %v7487, %v7500
        %v7502 = vcombine.low %v7446, %v7462
        %v7503 = vcombine.high %v7446, %v7462
        %v7505 = vunpack.c.l.s4 1934713408
        %v7506 = vunpack.c.0.s8 %v7505
        %v7507 = vlaneseq
        %v7508 = vshrl.u32 %v7507, 7
        %v7509 = vsub.s32 %v7506, %v7508
        %v7510 = vrot.slane %v7502, %v7509
        %v7512 = vunpack.c.l.s4 1934713408
        %v7513 = vunpack.c.0.s8 %v7512
        %v7514 = vlaneseq
        %v7515 = vshrl.u32 %v7514, 7
        %v7516 = vsub.s32 %v7513, %v7515
        %v7517 = vrot.slane %v7503, %v7516
        %v7518 = vcombine.low %v7453, %v7469
        %v7519 = vcombine.high %v7453, %v7469
        %v7521 = vunpack.c.l.s4 1934713408
        %v7522 = vunpack.c.0.s8 %v7521
        %v7523 = vlaneseq
        %v7524 = vshrl.u32 %v7523, 7
        %v7525 = vsub.s32 %v7522, %v7524
        %v7526 = vrot.slane %v7518, %v7525
        %v7528 = vunpack.c.l.s4 1934713408
        %v7529 = vunpack.c.0.s8 %v7528
        %v7530 = vlaneseq
        %v7531 = vshrl.u32 %v7530, 7
        %v7532 = vsub.s32 %v7529, %v7531
        %v7533 = vrot.slane %v7519, %v7532
        %v7534 = vcombine.low %v7478, %v7494
        %v7535 = vcombine.high %v7478, %v7494
        %v7537 = vunpack.c.l.s4 1934713408
        %v7538 = vunpack.c.0.s8 %v7537
        %v7539 = vlaneseq
        %v7540 = vshrl.u32 %v7539, 7
        %v7541 = vsub.s32 %v7538, %v7540
        %v7542 = vrot.slane %v7534, %v7541
        %v7544 = vunpack.c.l.s4 1934713408
        %v7545 = vunpack.c.0.s8 %v7544
        %v7546 = vlaneseq
        %v7547 = vshrl.u32 %v7546, 7
        %v7548 = vsub.s32 %v7545, %v7547
        %v7549 = vrot.slane %v7535, %v7548
        %v7550 = vcombine.low %v7485, %v7501
        %v7551 = vcombine.high %v7485, %v7501
        %v7553 = vunpack.c.l.s4 1934713408
        %v7554 = vunpack.c.0.s8 %v7553
        %v7555 = vlaneseq
        %v7556 = vshrl.u32 %v7555, 7
        %v7557 = vsub.s32 %v7554, %v7556
        %v7558 = vrot.slane %v7550, %v7557
        %v7560 = vunpack.c.l.s4 1934713408
        %v7561 = vunpack.c.0.s8 %v7560
        %v7562 = vlaneseq
        %v7563 = vshrl.u32 %v7562, 7
        %v7564 = vsub.s32 %v7561, %v7563
        %v7565 = vrot.slane %v7551, %v7564
        %v7566 = vcombine.low %v7510, %v7542
        %v7567 = vcombine.high %v7510, %v7542
        %v7568 = vcombine.low %v7517, %v7549
        %v7569 = vcombine.high %v7517, %v7549
        %v7570 = vcombine.low %v7526, %v7558
        %v7571 = vcombine.high %v7526, %v7558
        %v7572 = vcombine.low %v7533, %v7565
        %v7573 = vcombine.high %v7533, %v7565
        %v7574 = vcombine.low %v7137, %v7145
        %v7575 = vcombine.high %v7137, %v7145
        %v7577 = vunpack.c.l.s4 1983009808
        %v7578 = vunpack.c.0.s8 %v7577
        %v7579 = vlaneseq
        %v7580 = vshrl.u32 %v7579, 7
        %v7581 = vsub.s32 %v7578, %v7580
        %v7582 = vrot.slane %v7574, %v7581
        %v7584 = vunpack.c.l.s4 1983009808
        %v7585 = vunpack.c.0.s8 %v7584
        %v7586 = vlaneseq
        %v7587 = vshrl.u32 %v7586, 7
        %v7588 = vsub.s32 %v7585, %v7587
        %v7589 = vrot.slane %v7575, %v7588
        %v7590 = vcombine.low %v7141, %v7149
        %v7591 = vcombine.high %v7141, %v7149
        %v7593 = vunpack.c.l.s4 1983009808
        %v7594 = vunpack.c.0.s8 %v7593
        %v7595 = vlaneseq
        %v7596 = vshrl.u32 %v7595, 7
        %v7597 = vsub.s32 %v7594, %v7596
        %v7598 = vrot.slane %v7590, %v7597
        %v7600 = vunpack.c.l.s4 1983009808
        %v7601 = vunpack.c.0.s8 %v7600
        %v7602 = vlaneseq
        %v7603 = vshrl.u32 %v7602, 7
        %v7604 = vsub.s32 %v7601, %v7603
        %v7605 = vrot.slane %v7591, %v7604
        %v7606 = vcombine.low %v7153, %v7161
        %v7607 = vcombine.high %v7153, %v7161
        %v7609 = vunpack.c.l.s4 1983009808
        %v7610 = vunpack.c.0.s8 %v7609
        %v7611 = vlaneseq
        %v7612 = vshrl.u32 %v7611, 7
        %v7613 = vsub.s32 %v7610, %v7612
        %v7614 = vrot.slane %v7606, %v7613
        %v7616 = vunpack.c.l.s4 1983009808
        %v7617 = vunpack.c.0.s8 %v7616
        %v7618 = vlaneseq
        %v7619 = vshrl.u32 %v7618, 7
        %v7620 = vsub.s32 %v7617, %v7619
        %v7621 = vrot.slane %v7607, %v7620
        %v7622 = vcombine.low %v7157, %v7165
        %v7623 = vcombine.high %v7157, %v7165
        %v7625 = vunpack.c.l.s4 1983009808
        %v7626 = vunpack.c.0.s8 %v7625
        %v7627 = vlaneseq
        %v7628 = vshrl.u32 %v7627, 7
        %v7629 = vsub.s32 %v7626, %v7628
        %v7630 = vrot.slane %v7622, %v7629
        %v7632 = vunpack.c.l.s4 1983009808
        %v7633 = vunpack.c.0.s8 %v7632
        %v7634 = vlaneseq
        %v7635 = vshrl.u32 %v7634, 7
        %v7636 = vsub.s32 %v7633, %v7635
        %v7637 = vrot.slane %v7623, %v7636
        %v7638 = vcombine.low %v7582, %v7598
        %v7639 = vcombine.high %v7582, %v7598
        %v7641 = vunpack.c.l.s4 1934713408
        %v7642 = vunpack.c.0.s8 %v7641
        %v7643 = vlaneseq
        %v7644 = vshrl.u32 %v7643, 7
        %v7645 = vsub.s32 %v7642, %v7644
        %v7646 = vrot.slane %v7638, %v7645
        %v7648 = vunpack.c.l.s4 1934713408
        %v7649 = vunpack.c.0.s8 %v7648
        %v7650 = vlaneseq
        %v7651 = vshrl.u32 %v7650, 7
        %v7652 = vsub.s32 %v7649, %v7651
        %v7653 = vrot.slane %v7639, %v7652
        %v7654 = vcombine.low %v7589, %v7605
        %v7655 = vcombine.high %v7589, %v7605
        %v7657 = vunpack.c.l.s4 1934713408
        %v7658 = vunpack.c.0.s8 %v7657
        %v7659 = vlaneseq
        %v7660 = vshrl.u32 %v7659, 7
        %v7661 = vsub.s32 %v7658, %v7660
        %v7662 = vrot.slane %v7654, %v7661
        %v7664 = vunpack.c.l.s4 1934713408
        %v7665 = vunpack.c.0.s8 %v7664
        %v7666 = vlaneseq
        %v7667 = vshrl.u32 %v7666, 7
        %v7668 = vsub.s32 %v7665, %v7667
        %v7669 = vrot.slane %v7655, %v7668
        %v7670 = vcombine.low %v7614, %v7630
        %v7671 = vcombine.high %v7614, %v7630
        %v7673 = vunpack.c.l.s4 1934713408
        %v7674 = vunpack.c.0.s8 %v7673
        %v7675 = vlaneseq
        %v7676 = vshrl.u32 %v7675, 7
        %v7677 = vsub.s32 %v7674, %v7676
        %v7678 = vrot.slane %v7670, %v7677
        %v7680 = vunpack.c.l.s4 1934713408
        %v7681 = vunpack.c.0.s8 %v7680
        %v7682 = vlaneseq
        %v7683 = vshrl.u32 %v7682, 7
        %v7684 = vsub.s32 %v7681, %v7683
        %v7685 = vrot.slane %v7671, %v7684
        %v7686 = vcombine.low %v7621, %v7637
        %v7687 = vcombine.high %v7621, %v7637
        %v7689 = vunpack.c.l.s4 1934713408
        %v7690 = vunpack.c.0.s8 %v7689
        %v7691 = vlaneseq
        %v7692 = vshrl.u32 %v7691, 7
        %v7693 = vsub.s32 %v7690, %v7692
        %v7694 = vrot.slane %v7686, %v7693
        %v7696 = vunpack.c.l.s4 1934713408
        %v7697 = vunpack.c.0.s8 %v7696
        %v7698 = vlaneseq
        %v7699 = vshrl.u32 %v7698, 7
        %v7700 = vsub.s32 %v7697, %v7699
        %v7701 = vrot.slane %v7687, %v7700
        %v7702 = vcombine.low %v7646, %v7678
        %v7703 = vcombine.high %v7646, %v7678
        %v7704 = vcombine.low %v7653, %v7685
        %v7705 = vcombine.high %v7653, %v7685
        %v7706 = vcombine.low %v7662, %v7694
        %v7707 = vcombine.high %v7662, %v7694
        %v7708 = vcombine.low %v7669, %v7701
        %v7709 = vcombine.high %v7669, %v7701
        %7711 = vrot.lane.b32.xlu0 %v7295, 32
        %v7712 = vpop.permute.xlu0 %7711
        %7715 = vrot.lane.b32.xlu0 %v7296, 64
        %v7716 = vpop.permute.xlu0 %7715
        %7719 = vrot.lane.b32.xlu0 %v7297, 96
        %v7720 = vpop.permute.xlu0 %7719
        %7723 = vrot.lane.b32.xlu0 %v7299, 32
        %v7724 = vpop.permute.xlu0 %7723
        %7727 = vrot.lane.b32.xlu0 %v7300, 64
        %v7728 = vpop.permute.xlu0 %7727
        %7731 = vrot.lane.b32.xlu0 %v7301, 96
        %v7732 = vpop.permute.xlu0 %7731
        %7735 = vrot.lane.b32.xlu0 %v7431, 32
        %v7736 = vpop.permute.xlu0 %7735
        %7739 = vrot.lane.b32.xlu0 %v7432, 64
        %v7740 = vpop.permute.xlu0 %7739
        %7743 = vrot.lane.b32.xlu0 %v7433, 96
        %v7744 = vpop.permute.xlu0 %7743
        %7747 = vrot.lane.b32.xlu0 %v7435, 32
        %v7748 = vpop.permute.xlu0 %7747
        %7751 = vrot.lane.b32.xlu0 %v7436, 64
        %v7752 = vpop.permute.xlu0 %7751
        %7755 = vrot.lane.b32.xlu0 %v7437, 96
        %v7756 = vpop.permute.xlu0 %7755
        %7759 = vrot.lane.b32.xlu0 %v7567, 32
        %v7760 = vpop.permute.xlu0 %7759
        %7763 = vrot.lane.b32.xlu0 %v7568, 64
        %v7764 = vpop.permute.xlu0 %7763
        %7767 = vrot.lane.b32.xlu0 %v7569, 96
        %v7768 = vpop.permute.xlu0 %7767
        %7771 = vrot.lane.b32.xlu0 %v7571, 32
        %v7772 = vpop.permute.xlu0 %7771
        %7775 = vrot.lane.b32.xlu0 %v7572, 64
        %v7776 = vpop.permute.xlu0 %7775
        %7779 = vrot.lane.b32.xlu0 %v7573, 96
        %v7780 = vpop.permute.xlu0 %7779
        %7783 = vrot.lane.b32.xlu0 %v7703, 32
        %v7784 = vpop.permute.xlu0 %7783
        %7787 = vrot.lane.b32.xlu0 %v7704, 64
        %v7788 = vpop.permute.xlu0 %7787
        %7791 = vrot.lane.b32.xlu0 %v7705, 96
        %v7792 = vpop.permute.xlu0 %7791
        %7795 = vrot.lane.b32.xlu0 %v7707, 32
        %v7796 = vpop.permute.xlu0 %7795
        %7799 = vrot.lane.b32.xlu0 %v7708, 64
        %v7800 = vpop.permute.xlu0 %7799
        %7803 = vrot.lane.b32.xlu0 %v7709, 96
        %v7804 = vpop.permute.xlu0 %7803
        %vm7806 = vcmask 261120
        %v7807 = vsel %vm7806, %v7294, %v7712
        %vm7808 = vcmask 523264
        %v7809 = vsel %vm7808, %v7807, %v7716
        %vm7810 = vcmask 785408
        %v7811 = vsel %vm7810, %v7809, %v7720
        %v7812 = vsel %vm7806, %v7298, %v7724
        %v7813 = vsel %vm7808, %v7812, %v7728
        %v7814 = vsel %vm7810, %v7813, %v7732
        %v7815 = vsel %vm7806, %v7430, %v7736
        %v7816 = vsel %vm7808, %v7815, %v7740
        %v7817 = vsel %vm7810, %v7816, %v7744
        %v7818 = vsel %vm7806, %v7434, %v7748
        %v7819 = vsel %vm7808, %v7818, %v7752
        %v7820 = vsel %vm7810, %v7819, %v7756
        %v7821 = vsel %vm7806, %v7566, %v7760
        %v7822 = vsel %vm7808, %v7821, %v7764
        %v7823 = vsel %vm7810, %v7822, %v7768
        %v7824 = vsel %vm7806, %v7570, %v7772
        %v7825 = vsel %vm7808, %v7824, %v7776
        %v7826 = vsel %vm7810, %v7825, %v7780
        %v7827 = vsel %vm7806, %v7702, %v7784
        %v7828 = vsel %vm7808, %v7827, %v7788
        %v7829 = vsel %vm7810, %v7828, %v7792
        %v7830 = vsel %vm7806, %v7706, %v7796
        %v7831 = vsel %vm7808, %v7830, %v7800
        %v7832 = vsel %vm7810, %v7831, %v7804
        %7833 = vst [vmem:[%s331] sm:$0xff] %v7811
        %7834 = vst [vmem:[%s331 + $0x8] sm:$0xff] %v7814
        %7835 = vst [vmem:[%s331 + $0x10] sm:$0xff] %v7817
        %7836 = vst [vmem:[%s331 + $0x18] sm:$0xff] %v7820
        %7837 = vst [vmem:[%s331 + $0x20] sm:$0xff] %v7823
        %7838 = vst [vmem:[%s331 + $0x28] sm:$0xff] %v7826
        %7839 = vst [vmem:[%s331 + $0x30] sm:$0xff] %v7829
        %7840 = vst [vmem:[%s331 + $0x38] sm:$0xff] %v7832
        %s7841 = sand.u32 %s183, 1
        %s7842 = scalar_lea.sflag [#allocation3], %s7841
        %s7843 = sand.u32 %s183, 1
        %s7844 = smul.addr %s7843, 64
        %s7845 = scalar_lea.vmem [#allocation10], %s7844
        // Predicated region
        $region61: #{tpu_custom_call.1} parent=43 // pred_check
          %p7846 = pneg %p193
        $region62: #{tpu_custom_call.1} parent=43 // pred_check_branch
          %7848 = sbr.rel (%p7846) target = $region64
        $region63: #{tpu_custom_call.1} parent=43 // pred_region
          %s7850 = ssub.s32 1024, 1024
          %7851 = vsyncadd %s7842, %s7850
          %s7852 = smul.addr %s28, 8
          %s7853 = smul.addr %s27, 32
          %s7854 = sadd.s32 %s7852, %s7853
          %s7855 = smul.addr %s7854, 128
          %s7856 = scalar_lea.hbm %s6, %s7855
          %s7858 = sshll.u32 %s7845, 4
          %s7859 = int_to_ptr.vmem [resolvable:$true] %s7858
          %7861 = dma.vmem_to_hbm [thread:$0]  %s7859, 1024, %s7856, %s7842
        $region64: #{tpu_custom_call.1} parent=43 // pred_fallthru
          _
      $region44: #{tpu_custom_call.1} parent=5 // pred_fallthru
        _
      %p7862 = scmp.le.s32.totalorder 2, %s18
      // Predicated region
      $region65: #{tpu_custom_call.1} parent=5 // pred_check
        %p7863 = pneg %p7862
      $region66: #{tpu_custom_call.1} parent=5 // pred_check_branch
        %7865 = sbr.rel (%p7863) target = $region68
      $region67: #{tpu_custom_call.1} parent=5 // pred_region
        %s7866 = ssub.s32 %s18, 2
        // Predicated region
        $region69: #{tpu_custom_call.1} parent=67 // pred_check
          %p7867 = pneg %p199
        $region70: #{tpu_custom_call.1} parent=67 // pred_check_branch
          %7869 = sbr.rel (%p7867) target = $region72
        $region71: #{tpu_custom_call.1} parent=67 // pred_region
          %s7870 = sand.u32 %s184, 1
          %s7871 = scalar_lea.sflag [#allocation3], %s7870
          %s7872 = sand.u32 %s184, 1
          %s7873 = smul.addr %s7872, 64
          %s7874 = scalar_lea.vmem [#allocation10], %s7873
          %7875 = dma.done %s7871, 1024
        $region72: #{tpu_custom_call.1} parent=67 // pred_fallthru
          _
      $region68: #{tpu_custom_call.1} parent=5 // pred_fallthru
        _
    $region6: #{tpu_custom_call.1} parent=1 // loop_footer
      %s22 = sadd.s32 1, %s18
    $region7: #{tpu_custom_call.1} parent=1 // loop_footer_branch
      %17 = sbr.rel target = $region3
    $region8: #{tpu_custom_call.1} parent=1 // loop_exit
      _
    %7876 = vsyncpa [#allocation3], 1
    %s7877 = scalar_lea.sflag [#allocation3], 1
    %7878 = vsyncpa %s7877, 1
    %7879 = vsyncpa [#allocation4], 1
    %s7880 = scalar_lea.sflag [#allocation4], 1
    %7881 = vsyncpa %s7880, 1
    %7882 = vsyncpa [#allocation6], 1
    %7883 = vsyncpa [#allocation9], 1

</llo_original>
